<compile_context>
chip_gen: v7x
topology: tpu7x:2x2x1
jax: 0.10.0
libtpu: 0.0.40
codegen_flags: <defaults>
</compile_context>

<pallas_src>
import functools

import jax
import jax.numpy as jnp
from jax.experimental import pallas as pl
from jax.experimental.pallas import tpu as pltpu

_MXU_DTYPE = jnp.bfloat16  # MXU input dtype (set jnp.float32 for exact f32 matmuls)


# ----------------------------------------------------------------------------
# In-kernel helpers (traced inside the fused kernel; all ops stay 2-D)
# ----------------------------------------------------------------------------
def _pdot(a, b):
    """Projection matmul: bf16 MXU inputs, f32 accumulation."""
    return jnp.dot(a.astype(_MXU_DTYPE), b.astype(_MXU_DTYPE),
                   preferred_element_type=jnp.float32)


def _fdot(a, b):
    """f32 matmul (attention-weight application / selector aggregation)."""
    return jnp.dot(a, b, preferred_element_type=jnp.float32)


def _layer_norm(x, g, b, eps=1e-5):
    mu = jnp.mean(x, axis=-1, keepdims=True)
    var = jnp.mean(jnp.square(x - mu), axis=-1, keepdims=True)
    return (x - mu) * jax.lax.rsqrt(var + eps) * g + b


def _mhsa_block(x, wq, bq, wk, bk, wv, bv, heads, mask=None):
    """Multi-head self-attention over row-blocks of x ([R, Din] -> [R, M]).

    `mask` (0 / -1e9, shape [R, R]) makes attention block-diagonal so a whole
    batch of sequences is handled with plain 2-D matmuls (no per-item grid).
    """
    q = _pdot(x, wq) + bq
    k = _pdot(x, wk) + bk
    v = _pdot(x, wv) + bv
    dk = q.shape[-1] // heads
    scale = 1.0 / (dk ** 0.5)
    outs = []
    for h in range(heads):                       # small static unroll (heads=4)
        sl = slice(h * dk, (h + 1) * dk)
        s = _fdot(q[:, sl], k[:, sl].T) * scale
        if mask is not None:
            s = s + mask
        a = jax.nn.softmax(s, axis=-1)
        outs.append(_fdot(a, v[:, sl]))
    return jnp.concatenate(outs, axis=-1)


def _grouped_additive_attention(x, w, b, q_row, gsel):
    """Additive attention pooled per row-group.

    x: [R, D] (rows grouped), gsel: [G, R] 0/1 membership -> [G, D].
    The global-max shift is a valid per-group softmax shift (constant / group).
    """
    t = jnp.tanh(_pdot(x, w) + b)                        # [R, Q]
    s = jnp.sum(t * q_row, axis=-1, keepdims=True)       # [R, 1]
    e = jnp.exp(s - jnp.max(s, axis=0, keepdims=True))   # [R, 1]
    num = _fdot(gsel, e * x)                             # [G, D]
    den = _fdot(gsel, e)                                 # [G, 1]
    return num * pl.reciprocal(den, approx=False)


def _grouped_similarity_attention(query, cand, gsel, gsel_t):
    """Dot-product similarity attention pooled per row-group.

    query: [G, D] (one query per group), cand: [R, D] -> [G, D].
    """
    q_rows = _fdot(gsel_t, query)                        # [R, D]
    s = jnp.sum(cand * q_rows, axis=-1, keepdims=True)   # [R, 1]
    e = jnp.exp(s - jnp.max(s, axis=0, keepdims=True))
    num = _fdot(gsel, e * cand)
    den = _fdot(gsel, e)
    return num * pl.reciprocal(den, approx=False)


# ----------------------------------------------------------------------------
# The single fused kernel (news_encoder for all B news + user_encoder stage)
# ----------------------------------------------------------------------------
def _fused_user_encoder_kernel(*refs, names, dims):
    o_ref = refs[-1]
    env = dict(zip(names, refs[:-1]))
    g = lambda n: env[n][...]

    B, N, K, H = (dims[d] for d in ("B", "N", "K", "H"))
    BN = B * N

    # ---- category / subcategory representations ------------------------------
    cat_rep = jnp.tanh(_pdot(g("cat_emb"), g("fc1_w")) + g("fc1_b"))        # [B, M]
    sub_rep = jnp.tanh(_pdot(g("subcat_emb"), g("fc2_w")) + g("fc2_b"))     # [B, M]

    # ---- word view: MHSA -> LayerNorm -> additive attention ------------------
    we = _mhsa_block(g("we_flat"), g("w_wq"), g("w_bq"), g("w_wk"), g("w_bk"),
                     g("w_wv"), g("w_bv"), H, mask=g("mask_words"))         # [B*L, M]
    we = _layer_norm(we, g("norm_g"), g("norm_b"))
    word_rep = jnp.tanh(_grouped_additive_attention(
        we, g("wa_w"), g("wa_b"), g("wa_q"), g("gsel_words")))              # [B, M]

    # ---- entity view: KGAT -> fc3 -> GCN -> LayerNorm -> additive attention --
    hcat = jnp.maximum(_pdot(g("kg_cat"), g("kg_w1")) + g("kg_b1"), 0.0)    # [K*BN, M]
    w2_row = g("kg_w2")                                                     # [1, M]
    scores = [jnp.sum(hcat[k * BN:(k + 1) * BN, :] * w2_row,
                      axis=-1, keepdims=True) for k in range(K)]            # K x [BN,1]
    s = jnp.concatenate(scores, axis=-1) + g("kg_b2")                       # [BN, K]
    a = jax.nn.softmax(s, axis=-1)
    ne_all = g("ne_k")                                                      # [K*BN, E]
    agg = a[:, 0:1] * ne_all[0:BN, :]
    for k in range(1, K):
        agg = agg + a[:, k:k + 1] * ne_all[k * BN:(k + 1) * BN, :]
    entity_agg = jnp.concatenate([g("ent2"), agg], axis=-1)                 # [BN, 2E]

    ent_h = jnp.tanh(_pdot(entity_agg, g("fc3_w")) + g("fc3_b"))            # [BN, 100]
    gcn_agg = _fdot(g("adj_blk"), ent_h)                                    # [BN, 100]
    entity_inter = jnp.maximum(_pdot(gcn_agg, g("gcn_w")) + g("gcn_b"), 0.0)
    entity_inter = _layer_norm(entity_inter, g("norm_g"), g("norm_b"))      # [BN, M]
    entity_rep = jnp.tanh(_grouped_additive_attention(
        entity_inter, g("ea_w"), g("ea_b"), g("ea_q"), g("gsel_ent")))      # [B, M]

    # ---- semantic view: additive attention over the four per-news views ------
    views = jnp.concatenate([word_rep, entity_rep, cat_rep, sub_rep], axis=0)  # [4B, M]
    semantic_rep = jnp.tanh(_grouped_additive_attention(
        views, g("na_w"), g("na_b"), g("na_q"), g("gsel_news")))            # [B, M]

    # ---- relation view: similarity attention over fc4(entity_agg) ------------
    fc4_out = _pdot(entity_agg, g("fc4_w")) + g("fc4_b")                    # [BN, M]
    relation_rep = jnp.tanh(_grouped_similarity_attention(
        semantic_rep, fc4_out, g("gsel_ent"), g("gsel_ent_t")))             # [B, M]

    # ---- news_rep = tanh(stack([semantic, relation])) ------------------------
    sem_emb = jnp.tanh(semantic_rep)                                        # [B, M]
    rel_emb = jnp.tanh(relation_rep)                                        # [B, M]

    # ---- user encoder: per-view MHSA over the news sequence + user attention -
    sem_u = jnp.tanh(_mhsa_block(sem_emb, g("s_wq"), g("s_bq"), g("s_wk"),
                                 g("s_bk"), g("s_wv"), g("s_bv"), H))       # [B, M]
    rel_u = jnp.tanh(_mhsa_block(rel_emb, g("r_wq"), g("r_bq"), g("r_wk"),
                                 g("r_bk"), g("r_wv"), g("r_bv"), H))       # [B, M]
    user_cat = jnp.concatenate([sem_u, rel_u], axis=-1)                     # [B, 2M]
    user_rep = jnp.tanh(_grouped_additive_attention(
        user_cat, g("ua_w"), g("ua_b"), g("ua_q"), g("gsel_user")))         # [1, 2M]

    o_ref[...] = user_rep


# ----------------------------------------------------------------------------
# Wrapper: input layout prep (free reshapes / tiny constants) + one pallas_call
# ----------------------------------------------------------------------------
def user_encoder_forward(params, cfg, word_embedding, entity_embedding,
                         neigh_entity_embedding, neigh_relation_embedding,
                         category_index, subcategory_index):
    B, L, Dw = word_embedding.shape
    _, N, E = entity_embedding.shape
    K = neigh_entity_embedding.shape[2]
    H = cfg["attention_heads"]
    M = cfg["attention_dim"] * H
    f32 = jnp.float32
    mx = lambda x: x.astype(_MXU_DTYPE)   # matmul-only operands -> bf16

    p = params

    # -- free layout prep (contiguous reshapes / tiny constant structures) -----
    we_flat = mx(word_embedding.reshape(B * L, Dw))
    ent2 = entity_embedding.reshape(B * N, E)
    ne_k = jnp.transpose(neigh_entity_embedding, (2, 0, 1, 3)).reshape(K * B * N, E)
    nr_k = jnp.transpose(neigh_relation_embedding, (2, 0, 1, 3)).reshape(K * B * N, E)
    ent_tiled = jnp.broadcast_to(ent2[None], (K, B * N, E)).reshape(K * B * N, E)
    kg_cat = mx(jnp.concatenate([ent_tiled, ne_k, nr_k], axis=-1))          # [K*B*N, 3E]

    cat_emb = p["cat_emb"][category_index.astype(jnp.int32)]                # [B, catd]
    subcat_emb = p["subcat_emb"][subcategory_index.astype(jnp.int32)]       # [B, subd]

    eye_b = jnp.eye(B, dtype=f32)
    gsel_words = jnp.kron(eye_b, jnp.ones((1, L), f32))                     # [B, B*L]
    gsel_ent = jnp.kron(eye_b, jnp.ones((1, N), f32))                       # [B, B*N]
    gsel_news = jnp.tile(eye_b, (1, 4))        # 4 views (word/entity/cat/subcat)
    gsel_user = jnp.ones((1, B), f32)
    mask_words = (1.0 - jnp.kron(eye_b, jnp.ones((L, L), f32))) * (-1e9)    # [B*L, B*L]
    adj_blk = jnp.kron(eye_b, p["gcn"]["adj"])                              # [B*N, B*N]

    inputs = dict(
        # activations / static structure
        we_flat=we_flat, cat_emb=cat_emb, subcat_emb=subcat_emb,
        ent2=ent2, kg_cat=kg_cat, ne_k=ne_k, adj_blk=adj_blk,
        mask_words=mask_words, gsel_words=gsel_words, gsel_ent=gsel_ent,
        gsel_ent_t=gsel_ent.T, gsel_news=gsel_news, gsel_user=gsel_user,
        # news-encoder weights
        fc1_w=mx(p["fc1_w"]), fc1_b=p["fc1_b"],
        fc2_w=mx(p["fc2_w"]), fc2_b=p["fc2_b"],
        w_wq=mx(p["word_mhsa"]["wq"]), w_bq=p["word_mhsa"]["bq"],
        w_wk=mx(p["word_mhsa"]["wk"]), w_bk=p["word_mhsa"]["bk"],
        w_wv=mx(p["word_mhsa"]["wv"]), w_bv=p["word_mhsa"]["bv"],
        norm_g=p["norm_g"], norm_b=p["norm_b"],
        wa_w=mx(p["word_attn"]["w"]), wa_b=p["word_attn"]["b"], wa_q=p["word_attn"]["q"],
        kg_w1=mx(p["kgat"]["w1"]), kg_b1=p["kgat"]["b1"],
        kg_w2=p["kgat"]["w2"], kg_b2=p["kgat"]["b2"],
        fc3_w=mx(p["fc3_w"]), fc3_b=p["fc3_b"],
        gcn_w=mx(p["gcn"]["w"]), gcn_b=p["gcn"]["b"],
        ea_w=mx(p["entity_attn"]["w"]), ea_b=p["entity_attn"]["b"], ea_q=p["entity_attn"]["q"],
        na_w=mx(p["news_attn"]["w"]), na_b=p["news_attn"]["b"], na_q=p["news_attn"]["q"],
        fc4_w=mx(p["fc4_w"]), fc4_b=p["fc4_b"],
        # user-encoder weights
        s_wq=mx(p["sem_mhsa"]["wq"]), s_bq=p["sem_mhsa"]["bq"],
        s_wk=mx(p["sem_mhsa"]["wk"]), s_bk=p["sem_mhsa"]["bk"],
        s_wv=mx(p["sem_mhsa"]["wv"]), s_bv=p["sem_mhsa"]["bv"],
        r_wq=mx(p["rel_mhsa"]["wq"]), r_bq=p["rel_mhsa"]["bq"],
        r_wk=mx(p["rel_mhsa"]["wk"]), r_bk=p["rel_mhsa"]["bk"],
        r_wv=mx(p["rel_mhsa"]["wv"]), r_bv=p["rel_mhsa"]["bv"],
        ua_w=mx(p["user_attn"]["w"]), ua_b=p["user_attn"]["b"], ua_q=p["user_attn"]["q"],
    )
    names = tuple(inputs.keys())
    vals = [inputs[n] for n in names]
    dims = dict(B=B, N=N, K=K, H=H)

    kernel = functools.partial(_fused_user_encoder_kernel, names=names, dims=dims)

    f3 = p["fc3_w"].shape[1]
    flops = 2 * (K * B * N * 3 * E * M + B * N * 2 * E * (f3 + M)
                 + (B * N) ** 2 * f3 + B * N * f3 * M
                 + 3 * B * L * Dw * M + 2 * H * (B * L) ** 2 * (M // H)
                 + 6 * B * M * M + 2 * H * B * B * (M // H))
    cost = pl.CostEstimate(
        flops=int(flops),
        transcendentals=int(8 * (B * L) ** 2 + 20 * B * M),
        bytes_accessed=int(sum(x.size * x.dtype.itemsize for x in vals) + 8 * M))

    return pl.pallas_call(
        kernel,
        out_shape=jax.ShapeDtypeStruct((1, 2 * M), jnp.float32),
        cost_estimate=cost,
        compiler_params=pltpu.CompilerParams(vmem_limit_bytes=32 * 1024 * 1024),
    )(*vals)


# ----------------------------------------------------------------------------
# Parameter construction (deterministic, synthetic; torch-Linear semantics with
# weights stored [in_dim, out_dim])
# ----------------------------------------------------------------------------
def init_params(key, cfg):
    keys = iter(jax.random.split(key, 64))
    nk = lambda: next(keys)
    rnd = lambda shape: jax.random.normal(nk(), shape, jnp.float32) * 0.05
    zeros = lambda shape: jnp.zeros(shape, jnp.float32)

    M = cfg["attention_dim"] * cfg["attention_heads"]
    E = cfg["entity_embedding_dim"]
    Q = cfg["query_vector_dim"]
    N = cfg["entity_size"]

    def mhsa_p(din, dout):
        return dict(wq=rnd((din, dout)), bq=zeros((1, dout)),
                    wk=rnd((din, dout)), bk=zeros((1, dout)),
                    wv=rnd((din, dout)), bv=zeros((1, dout)))

    def attn_p(d):
        return dict(w=rnd((d, Q)), b=zeros((1, Q)), q=rnd((1, Q)))

    return dict(
        cat_emb=rnd((cfg["category_size"], cfg["category_dim"])),
        fc1_w=rnd((cfg["category_dim"], M)), fc1_b=zeros((1, M)),
        subcat_emb=rnd((cfg["subcategory_size"], cfg["subcategory_dim"])),
        fc2_w=rnd((cfg["subcategory_dim"], M)), fc2_b=zeros((1, M)),
        word_mhsa=mhsa_p(cfg["word_dim"], M),
        norm_g=jnp.ones((1, M), jnp.float32), norm_b=zeros((1, M)),
        word_attn=attn_p(M),
        # KGAT score weight stored as a row vector [1, M] so the kernel can use
        # a lane reduction instead of an [M, 1] matmul.
        kgat=dict(w1=rnd((3 * E, M)), b1=zeros((1, M)),
                  w2=rnd((1, M)), b2=zeros((1, 1))),
        fc3_w=rnd((2 * E, 100)), fc3_b=zeros((1, 100)),
        gcn=dict(adj=jnp.full((N, N), 1.0 / N, jnp.float32),
                 w=rnd((100, M)), b=zeros((1, M))),
        entity_attn=attn_p(M),
        news_attn=attn_p(M),
        fc4_w=rnd((2 * E, M)), fc4_b=zeros((1, M)),
        sem_mhsa=mhsa_p(M, M),
        rel_mhsa=mhsa_p(M, M),
        user_attn=attn_p(2 * M),
    )


# ----------------------------------------------------------------------------
if __name__ == "__main__":
    cfg = dict(
        word_dim=32, attention_dim=16, attention_heads=4, query_vector_dim=32,
        entity_size=5, entity_embedding_dim=100,
        category_dim=16, subcategory_dim=16,
        category_size=10, subcategory_size=10,
    )
    num_news, num_words, num_neigh = 8, 8, 4

    key = jax.random.PRNGKey(0)
    k_par, k1, k2, k3, k4 = jax.random.split(key, 5)
    params = init_params(k_par, cfg)

    word_embedding = jax.random.normal(
        k1, (num_news, num_words, cfg["word_dim"]), jnp.float32)
    entity_embedding = jax.random.normal(
        k2, (num_news, cfg["entity_size"], cfg["entity_embedding_dim"]), jnp.float32)
    neigh_entity_embedding = jax.random.normal(
        k3, (num_news, cfg["entity_size"], num_neigh, cfg["entity_embedding_dim"]),
        jnp.float32)
    neigh_relation_embedding = jax.random.normal(
        k4, (num_news, cfg["entity_size"], num_neigh, cfg["entity_embedding_dim"]),
        jnp.float32)
    category_index = (jnp.arange(num_news) % cfg["category_size"]).astype(jnp.int32)
    subcategory_index = (jnp.arange(num_news) % cfg["subcategory_size"]).astype(jnp.int32)

    fwd = jax.jit(functools.partial(user_encoder_forward, params, cfg))
    user_rep = jax.block_until_ready(
        fwd(word_embedding, entity_embedding, neigh_entity_embedding,
            neigh_relation_embedding, category_index, subcategory_index))

    expected = (1, 2 * cfg["attention_dim"] * cfg["attention_heads"])
    assert user_rep.shape == expected, (user_rep.shape, expected)
    assert bool(jnp.all(jnp.isfinite(user_rep)))
    print("KERNEL_OK")
</pallas_src>

<mosaic_0001>
module attributes {stable_mosaic.version = 11 : i64} {
  func.func @_fused_user_encoder_kernel(%arg0: memref<64x32xbf16, #tpu.memory_space<vmem>>, %arg1: memref<8x16xf32, #tpu.memory_space<vmem>>, %arg2: memref<8x16xf32, #tpu.memory_space<vmem>>, %arg3: memref<40x100xf32, #tpu.memory_space<vmem>>, %arg4: memref<160x300xbf16, #tpu.memory_space<vmem>>, %arg5: memref<160x100xf32, #tpu.memory_space<vmem>>, %arg6: memref<40x40xf32, #tpu.memory_space<vmem>>, %arg7: memref<64x64xf32, #tpu.memory_space<vmem>>, %arg8: memref<8x64xf32, #tpu.memory_space<vmem>>, %arg9: memref<8x40xf32, #tpu.memory_space<vmem>>, %arg10: memref<40x8xf32, #tpu.memory_space<vmem>>, %arg11: memref<8x32xf32, #tpu.memory_space<vmem>>, %arg12: memref<1x8xf32, #tpu.memory_space<vmem>>, %arg13: memref<16x64xbf16, #tpu.memory_space<vmem>>, %arg14: memref<1x64xf32, #tpu.memory_space<vmem>>, %arg15: memref<16x64xbf16, #tpu.memory_space<vmem>>, %arg16: memref<1x64xf32, #tpu.memory_space<vmem>>, %arg17: memref<32x64xbf16, #tpu.memory_space<vmem>>, %arg18: memref<1x64xf32, #tpu.memory_space<vmem>>, %arg19: memref<32x64xbf16, #tpu.memory_space<vmem>>, %arg20: memref<1x64xf32, #tpu.memory_space<vmem>>, %arg21: memref<32x64xbf16, #tpu.memory_space<vmem>>, %arg22: memref<1x64xf32, #tpu.memory_space<vmem>>, %arg23: memref<1x64xf32, #tpu.memory_space<vmem>>, %arg24: memref<1x64xf32, #tpu.memory_space<vmem>>, %arg25: memref<64x32xbf16, #tpu.memory_space<vmem>>, %arg26: memref<1x32xf32, #tpu.memory_space<vmem>>, %arg27: memref<1x32xf32, #tpu.memory_space<vmem>>, %arg28: memref<300x64xbf16, #tpu.memory_space<vmem>>, %arg29: memref<1x64xf32, #tpu.memory_space<vmem>>, %arg30: memref<1x64xf32, #tpu.memory_space<vmem>>, %arg31: memref<1x1xf32, #tpu.memory_space<vmem>>, %arg32: memref<200x100xbf16, #tpu.memory_space<vmem>>, %arg33: memref<1x100xf32, #tpu.memory_space<vmem>>, %arg34: memref<100x64xbf16, #tpu.memory_space<vmem>>, %arg35: memref<1x64xf32, #tpu.memory_space<vmem>>, %arg36: memref<64x32xbf16, #tpu.memory_space<vmem>>, %arg37: memref<1x32xf32, #tpu.memory_space<vmem>>, %arg38: memref<1x32xf32, #tpu.memory_space<vmem>>, %arg39: memref<64x32xbf16, #tpu.memory_space<vmem>>, %arg40: memref<1x32xf32, #tpu.memory_space<vmem>>, %arg41: memref<1x32xf32, #tpu.memory_space<vmem>>, %arg42: memref<200x64xbf16, #tpu.memory_space<vmem>>, %arg43: memref<1x64xf32, #tpu.memory_space<vmem>>, %arg44: memref<64x64xbf16, #tpu.memory_space<vmem>>, %arg45: memref<1x64xf32, #tpu.memory_space<vmem>>, %arg46: memref<64x64xbf16, #tpu.memory_space<vmem>>, %arg47: memref<1x64xf32, #tpu.memory_space<vmem>>, %arg48: memref<64x64xbf16, #tpu.memory_space<vmem>>, %arg49: memref<1x64xf32, #tpu.memory_space<vmem>>, %arg50: memref<64x64xbf16, #tpu.memory_space<vmem>>, %arg51: memref<1x64xf32, #tpu.memory_space<vmem>>, %arg52: memref<64x64xbf16, #tpu.memory_space<vmem>>, %arg53: memref<1x64xf32, #tpu.memory_space<vmem>>, %arg54: memref<64x64xbf16, #tpu.memory_space<vmem>>, %arg55: memref<1x64xf32, #tpu.memory_space<vmem>>, %arg56: memref<128x32xbf16, #tpu.memory_space<vmem>>, %arg57: memref<1x32xf32, #tpu.memory_space<vmem>>, %arg58: memref<1x32xf32, #tpu.memory_space<vmem>>, %arg59: memref<1x128xf32, #tpu.memory_space<vmem>>) attributes {dimension_semantics = [], scalar_prefetch = 0 : i64, scratch_operands = 0 : i64, tpu.core_type = #tpu.core_type<tc>} {
    %c0 = arith.constant 0 : index
    %c0_0 = arith.constant 0 : index
    %0 = vector.load %arg1[%c0, %c0_0] : memref<8x16xf32, #tpu.memory_space<vmem>>, vector<8x16xf32>
    %c0_1 = arith.constant 0 : index
    %c0_2 = arith.constant 0 : index
    %1 = vector.load %arg13[%c0_1, %c0_2] : memref<16x64xbf16, #tpu.memory_space<vmem>>, vector<16x64xbf16>
    %2 = arith.truncf %0 : vector<8x16xf32> to vector<8x16xbf16>
    %cst = arith.constant dense<0.000000e+00> : vector<8x64xf32>
    %3 = tpu.matmul %2, %1, %cst {dimension_numbers = #tpu.dot_dimension_numbers<[1], [0], [0], [1], [0, 0, 1, 1], [], []>} : vector<8x16xbf16>, vector<16x64xbf16>, vector<8x64xf32> -> vector<8x64xf32>
    %c0_3 = arith.constant 0 : index
    %c0_4 = arith.constant 0 : index
    %4 = vector.load %arg14[%c0_3, %c0_4] : memref<1x64xf32, #tpu.memory_space<vmem>>, vector<1x64xf32>
    %5 = vector.broadcast %4 : vector<1x64xf32> to vector<8x64xf32>
    %6 = arith.addf %3, %5 : vector<8x64xf32>
    %7 = math.tanh %6 : vector<8x64xf32>
    %c0_5 = arith.constant 0 : index
    %c0_6 = arith.constant 0 : index
    %8 = vector.load %arg2[%c0_5, %c0_6] : memref<8x16xf32, #tpu.memory_space<vmem>>, vector<8x16xf32>
    %c0_7 = arith.constant 0 : index
    %c0_8 = arith.constant 0 : index
    %9 = vector.load %arg15[%c0_7, %c0_8] : memref<16x64xbf16, #tpu.memory_space<vmem>>, vector<16x64xbf16>
    %10 = arith.truncf %8 : vector<8x16xf32> to vector<8x16xbf16>
    %cst_9 = arith.constant dense<0.000000e+00> : vector<8x64xf32>
    %11 = tpu.matmul %10, %9, %cst_9 {dimension_numbers = #tpu.dot_dimension_numbers<[1], [0], [0], [1], [0, 0, 1, 1], [], []>} : vector<8x16xbf16>, vector<16x64xbf16>, vector<8x64xf32> -> vector<8x64xf32>
    %c0_10 = arith.constant 0 : index
    %c0_11 = arith.constant 0 : index
    %12 = vector.load %arg16[%c0_10, %c0_11] : memref<1x64xf32, #tpu.memory_space<vmem>>, vector<1x64xf32>
    %13 = vector.broadcast %12 : vector<1x64xf32> to vector<8x64xf32>
    %14 = arith.addf %11, %13 : vector<8x64xf32>
    %15 = math.tanh %14 : vector<8x64xf32>
    %c0_12 = arith.constant 0 : index
    %c0_13 = arith.constant 0 : index
    %16 = vector.load %arg0[%c0_12, %c0_13] : memref<64x32xbf16, #tpu.memory_space<vmem>>, vector<64x32xbf16>
    %c0_14 = arith.constant 0 : index
    %c0_15 = arith.constant 0 : index
    %17 = vector.load %arg17[%c0_14, %c0_15] : memref<32x64xbf16, #tpu.memory_space<vmem>>, vector<32x64xbf16>
    %c0_16 = arith.constant 0 : index
    %c0_17 = arith.constant 0 : index
    %18 = vector.load %arg18[%c0_16, %c0_17] : memref<1x64xf32, #tpu.memory_space<vmem>>, vector<1x64xf32>
    %c0_18 = arith.constant 0 : index
    %c0_19 = arith.constant 0 : index
    %19 = vector.load %arg19[%c0_18, %c0_19] : memref<32x64xbf16, #tpu.memory_space<vmem>>, vector<32x64xbf16>
    %c0_20 = arith.constant 0 : index
    %c0_21 = arith.constant 0 : index
    %20 = vector.load %arg20[%c0_20, %c0_21] : memref<1x64xf32, #tpu.memory_space<vmem>>, vector<1x64xf32>
    %c0_22 = arith.constant 0 : index
    %c0_23 = arith.constant 0 : index
    %21 = vector.load %arg21[%c0_22, %c0_23] : memref<32x64xbf16, #tpu.memory_space<vmem>>, vector<32x64xbf16>
    %c0_24 = arith.constant 0 : index
    %c0_25 = arith.constant 0 : index
    %22 = vector.load %arg22[%c0_24, %c0_25] : memref<1x64xf32, #tpu.memory_space<vmem>>, vector<1x64xf32>
    %c0_26 = arith.constant 0 : index
    %c0_27 = arith.constant 0 : index
    %23 = vector.load %arg7[%c0_26, %c0_27] : memref<64x64xf32, #tpu.memory_space<vmem>>, vector<64x64xf32>
    %cst_28 = arith.constant dense<0.000000e+00> : vector<64x64xf32>
    %24 = tpu.matmul %16, %17, %cst_28 {dimension_numbers = #tpu.dot_dimension_numbers<[1], [0], [0], [1], [0, 0, 1, 1], [], []>} : vector<64x32xbf16>, vector<32x64xbf16>, vector<64x64xf32> -> vector<64x64xf32>
    %25 = vector.broadcast %18 : vector<1x64xf32> to vector<64x64xf32>
    %26 = arith.addf %24, %25 : vector<64x64xf32>
    %cst_29 = arith.constant dense<0.000000e+00> : vector<64x64xf32>
    %27 = tpu.matmul %16, %19, %cst_29 {dimension_numbers = #tpu.dot_dimension_numbers<[1], [0], [0], [1], [0, 0, 1, 1], [], []>} : vector<64x32xbf16>, vector<32x64xbf16>, vector<64x64xf32> -> vector<64x64xf32>
    %28 = vector.broadcast %20 : vector<1x64xf32> to vector<64x64xf32>
    %29 = arith.addf %27, %28 : vector<64x64xf32>
    %cst_30 = arith.constant dense<0.000000e+00> : vector<64x64xf32>
    %30 = tpu.matmul %16, %21, %cst_30 {dimension_numbers = #tpu.dot_dimension_numbers<[1], [0], [0], [1], [0, 0, 1, 1], [], []>} : vector<64x32xbf16>, vector<32x64xbf16>, vector<64x64xf32> -> vector<64x64xf32>
    %31 = vector.broadcast %22 : vector<1x64xf32> to vector<64x64xf32>
    %32 = arith.addf %30, %31 : vector<64x64xf32>
    %33 = vector.extract_strided_slice %26 {offsets = [0, 0], sizes = [64, 16], strides = [1, 1]} : vector<64x64xf32> to vector<64x16xf32>
    %34 = vector.extract_strided_slice %29 {offsets = [0, 0], sizes = [64, 16], strides = [1, 1]} : vector<64x64xf32> to vector<64x16xf32>
    %35 = tpu.transpose %34, [1, 0] : vector<64x16xf32> -> vector<16x64xf32>
    %cst_31 = arith.constant dense<0.000000e+00> : vector<64x64xf32>
    %36 = tpu.matmul %33, %35, %cst_31 {dimension_numbers = #tpu.dot_dimension_numbers<[1], [0], [0], [1], [0, 0, 1, 1], [], []>} : vector<64x16xf32>, vector<16x64xf32>, vector<64x64xf32> -> vector<64x64xf32>
    %cst_32 = arith.constant 2.500000e-01 : f32
    %37 = vector.broadcast %cst_32 : f32 to vector<64x64xf32>
    %38 = arith.mulf %36, %37 : vector<64x64xf32>
    %39 = arith.addf %38, %23 : vector<64x64xf32>
    %cst_33 = arith.constant dense<0xFF800000> : vector<64xf32>
    %40 = vector.multi_reduction <maximumf>, %39, %cst_33 [1] : vector<64x64xf32> to vector<64xf32>
    %cst_34 = arith.constant 0xFF800000 : f32
    %41 = vector.broadcast %cst_34 : f32 to vector<64xf32>
    %42 = arith.maximumf %41, %40 : vector<64xf32>
    %43 = vector.shape_cast %42 : vector<64xf32> to vector<64x1xf32>
    %44 = vector.broadcast %43 : vector<64x1xf32> to vector<64x64xf32>
    %45 = arith.subf %39, %44 : vector<64x64xf32>
    %46 = math.exp %45 : vector<64x64xf32>
    %cst_35 = arith.constant dense<0.000000e+00> : vector<64xf32>
    %47 = vector.multi_reduction <add>, %46, %cst_35 [1] : vector<64x64xf32> to vector<64xf32>
    %48 = vector.shape_cast %47 : vector<64xf32> to vector<64x1xf32>
    %49 = vector.broadcast %48 : vector<64x1xf32> to vector<64x64xf32>
    %50 = arith.divf %46, %49 : vector<64x64xf32>
    %51 = vector.extract_strided_slice %32 {offsets = [0, 0], sizes = [64, 16], strides = [1, 1]} : vector<64x64xf32> to vector<64x16xf32>
    %cst_36 = arith.constant dense<0.000000e+00> : vector<64x16xf32>
    %52 = tpu.matmul %50, %51, %cst_36 {dimension_numbers = #tpu.dot_dimension_numbers<[1], [0], [0], [1], [0, 0, 1, 1], [], []>} : vector<64x64xf32>, vector<64x16xf32>, vector<64x16xf32> -> vector<64x16xf32>
    %53 = vector.extract_strided_slice %26 {offsets = [0, 16], sizes = [64, 16], strides = [1, 1]} : vector<64x64xf32> to vector<64x16xf32>
    %54 = vector.extract_strided_slice %29 {offsets = [0, 16], sizes = [64, 16], strides = [1, 1]} : vector<64x64xf32> to vector<64x16xf32>
    %55 = tpu.transpose %54, [1, 0] : vector<64x16xf32> -> vector<16x64xf32>
    %cst_37 = arith.constant dense<0.000000e+00> : vector<64x64xf32>
    %56 = tpu.matmul %53, %55, %cst_37 {dimension_numbers = #tpu.dot_dimension_numbers<[1], [0], [0], [1], [0, 0, 1, 1], [], []>} : vector<64x16xf32>, vector<16x64xf32>, vector<64x64xf32> -> vector<64x64xf32>
    %cst_38 = arith.constant 2.500000e-01 : f32
    %57 = vector.broadcast %cst_38 : f32 to vector<64x64xf32>
    %58 = arith.mulf %56, %57 : vector<64x64xf32>
    %59 = arith.addf %58, %23 : vector<64x64xf32>
    %cst_39 = arith.constant dense<0xFF800000> : vector<64xf32>
    %60 = vector.multi_reduction <maximumf>, %59, %cst_39 [1] : vector<64x64xf32> to vector<64xf32>
    %cst_40 = arith.constant 0xFF800000 : f32
    %61 = vector.broadcast %cst_40 : f32 to vector<64xf32>
    %62 = arith.maximumf %61, %60 : vector<64xf32>
    %63 = vector.shape_cast %62 : vector<64xf32> to vector<64x1xf32>
    %64 = vector.broadcast %63 : vector<64x1xf32> to vector<64x64xf32>
    %65 = arith.subf %59, %64 : vector<64x64xf32>
    %66 = math.exp %65 : vector<64x64xf32>
    %cst_41 = arith.constant dense<0.000000e+00> : vector<64xf32>
    %67 = vector.multi_reduction <add>, %66, %cst_41 [1] : vector<64x64xf32> to vector<64xf32>
    %68 = vector.shape_cast %67 : vector<64xf32> to vector<64x1xf32>
    %69 = vector.broadcast %68 : vector<64x1xf32> to vector<64x64xf32>
    %70 = arith.divf %66, %69 : vector<64x64xf32>
    %71 = vector.extract_strided_slice %32 {offsets = [0, 16], sizes = [64, 16], strides = [1, 1]} : vector<64x64xf32> to vector<64x16xf32>
    %cst_42 = arith.constant dense<0.000000e+00> : vector<64x16xf32>
    %72 = tpu.matmul %70, %71, %cst_42 {dimension_numbers = #tpu.dot_dimension_numbers<[1], [0], [0], [1], [0, 0, 1, 1], [], []>} : vector<64x64xf32>, vector<64x16xf32>, vector<64x16xf32> -> vector<64x16xf32>
    %73 = vector.extract_strided_slice %26 {offsets = [0, 32], sizes = [64, 16], strides = [1, 1]} : vector<64x64xf32> to vector<64x16xf32>
    %74 = vector.extract_strided_slice %29 {offsets = [0, 32], sizes = [64, 16], strides = [1, 1]} : vector<64x64xf32> to vector<64x16xf32>
    %75 = tpu.transpose %74, [1, 0] : vector<64x16xf32> -> vector<16x64xf32>
    %cst_43 = arith.constant dense<0.000000e+00> : vector<64x64xf32>
    %76 = tpu.matmul %73, %75, %cst_43 {dimension_numbers = #tpu.dot_dimension_numbers<[1], [0], [0], [1], [0, 0, 1, 1], [], []>} : vector<64x16xf32>, vector<16x64xf32>, vector<64x64xf32> -> vector<64x64xf32>
    %cst_44 = arith.constant 2.500000e-01 : f32
    %77 = vector.broadcast %cst_44 : f32 to vector<64x64xf32>
    %78 = arith.mulf %76, %77 : vector<64x64xf32>
    %79 = arith.addf %78, %23 : vector<64x64xf32>
    %cst_45 = arith.constant dense<0xFF800000> : vector<64xf32>
    %80 = vector.multi_reduction <maximumf>, %79, %cst_45 [1] : vector<64x64xf32> to vector<64xf32>
    %cst_46 = arith.constant 0xFF800000 : f32
    %81 = vector.broadcast %cst_46 : f32 to vector<64xf32>
    %82 = arith.maximumf %81, %80 : vector<64xf32>
    %83 = vector.shape_cast %82 : vector<64xf32> to vector<64x1xf32>
    %84 = vector.broadcast %83 : vector<64x1xf32> to vector<64x64xf32>
    %85 = arith.subf %79, %84 : vector<64x64xf32>
    %86 = math.exp %85 : vector<64x64xf32>
    %cst_47 = arith.constant dense<0.000000e+00> : vector<64xf32>
    %87 = vector.multi_reduction <add>, %86, %cst_47 [1] : vector<64x64xf32> to vector<64xf32>
    %88 = vector.shape_cast %87 : vector<64xf32> to vector<64x1xf32>
    %89 = vector.broadcast %88 : vector<64x1xf32> to vector<64x64xf32>
    %90 = arith.divf %86, %89 : vector<64x64xf32>
    %91 = vector.extract_strided_slice %32 {offsets = [0, 32], sizes = [64, 16], strides = [1, 1]} : vector<64x64xf32> to vector<64x16xf32>
    %cst_48 = arith.constant dense<0.000000e+00> : vector<64x16xf32>
    %92 = tpu.matmul %90, %91, %cst_48 {dimension_numbers = #tpu.dot_dimension_numbers<[1], [0], [0], [1], [0, 0, 1, 1], [], []>} : vector<64x64xf32>, vector<64x16xf32>, vector<64x16xf32> -> vector<64x16xf32>
    %93 = vector.extract_strided_slice %26 {offsets = [0, 48], sizes = [64, 16], strides = [1, 1]} : vector<64x64xf32> to vector<64x16xf32>
    %94 = vector.extract_strided_slice %29 {offsets = [0, 48], sizes = [64, 16], strides = [1, 1]} : vector<64x64xf32> to vector<64x16xf32>
    %95 = tpu.transpose %94, [1, 0] : vector<64x16xf32> -> vector<16x64xf32>
    %cst_49 = arith.constant dense<0.000000e+00> : vector<64x64xf32>
    %96 = tpu.matmul %93, %95, %cst_49 {dimension_numbers = #tpu.dot_dimension_numbers<[1], [0], [0], [1], [0, 0, 1, 1], [], []>} : vector<64x16xf32>, vector<16x64xf32>, vector<64x64xf32> -> vector<64x64xf32>
    %cst_50 = arith.constant 2.500000e-01 : f32
    %97 = vector.broadcast %cst_50 : f32 to vector<64x64xf32>
    %98 = arith.mulf %96, %97 : vector<64x64xf32>
    %99 = arith.addf %98, %23 : vector<64x64xf32>
    %cst_51 = arith.constant dense<0xFF800000> : vector<64xf32>
    %100 = vector.multi_reduction <maximumf>, %99, %cst_51 [1] : vector<64x64xf32> to vector<64xf32>
    %cst_52 = arith.constant 0xFF800000 : f32
    %101 = vector.broadcast %cst_52 : f32 to vector<64xf32>
    %102 = arith.maximumf %101, %100 : vector<64xf32>
    %103 = vector.shape_cast %102 : vector<64xf32> to vector<64x1xf32>
    %104 = vector.broadcast %103 : vector<64x1xf32> to vector<64x64xf32>
    %105 = arith.subf %99, %104 : vector<64x64xf32>
    %106 = math.exp %105 : vector<64x64xf32>
    %cst_53 = arith.constant dense<0.000000e+00> : vector<64xf32>
    %107 = vector.multi_reduction <add>, %106, %cst_53 [1] : vector<64x64xf32> to vector<64xf32>
    %108 = vector.shape_cast %107 : vector<64xf32> to vector<64x1xf32>
    %109 = vector.broadcast %108 : vector<64x1xf32> to vector<64x64xf32>
    %110 = arith.divf %106, %109 : vector<64x64xf32>
    %111 = vector.extract_strided_slice %32 {offsets = [0, 48], sizes = [64, 16], strides = [1, 1]} : vector<64x64xf32> to vector<64x16xf32>
    %cst_54 = arith.constant dense<0.000000e+00> : vector<64x16xf32>
    %112 = tpu.matmul %110, %111, %cst_54 {dimension_numbers = #tpu.dot_dimension_numbers<[1], [0], [0], [1], [0, 0, 1, 1], [], []>} : vector<64x64xf32>, vector<64x16xf32>, vector<64x16xf32> -> vector<64x16xf32>
    %113 = tpu.concatenate %52, %72, %92, %112 in 1 : vector<64x16xf32>, vector<64x16xf32>, vector<64x16xf32>, vector<64x16xf32> -> vector<64x64xf32>
    %c0_55 = arith.constant 0 : index
    %c0_56 = arith.constant 0 : index
    %114 = vector.load %arg23[%c0_55, %c0_56] : memref<1x64xf32, #tpu.memory_space<vmem>>, vector<1x64xf32>
    %c0_57 = arith.constant 0 : index
    %c0_58 = arith.constant 0 : index
    %115 = vector.load %arg24[%c0_57, %c0_58] : memref<1x64xf32, #tpu.memory_space<vmem>>, vector<1x64xf32>
    %cst_59 = arith.constant dense<0.000000e+00> : vector<64xf32>
    %116 = vector.multi_reduction <add>, %113, %cst_59 [1] : vector<64x64xf32> to vector<64xf32>
    %117 = vector.shape_cast %116 : vector<64xf32> to vector<64x1xf32>
    %cst_60 = arith.constant 6.400000e+01 : f32
    %118 = vector.broadcast %cst_60 : f32 to vector<64x1xf32>
    %119 = arith.divf %117, %118 : vector<64x1xf32>
    %120 = vector.broadcast %119 : vector<64x1xf32> to vector<64x64xf32>
    %121 = arith.subf %113, %120 : vector<64x64xf32>
    %122 = arith.mulf %121, %121 : vector<64x64xf32>
    %cst_61 = arith.constant dense<0.000000e+00> : vector<64xf32>
    %123 = vector.multi_reduction <add>, %122, %cst_61 [1] : vector<64x64xf32> to vector<64xf32>
    %124 = vector.shape_cast %123 : vector<64xf32> to vector<64x1xf32>
    %cst_62 = arith.constant 6.400000e+01 : f32
    %125 = vector.broadcast %cst_62 : f32 to vector<64x1xf32>
    %126 = arith.divf %124, %125 : vector<64x1xf32>
    %127 = vector.broadcast %119 : vector<64x1xf32> to vector<64x64xf32>
    %128 = arith.subf %113, %127 : vector<64x64xf32>
    %cst_63 = arith.constant 9.99999974E-6 : f32
    %129 = vector.broadcast %cst_63 : f32 to vector<64x1xf32>
    %130 = arith.addf %126, %129 : vector<64x1xf32>
    %131 = math.rsqrt %130 : vector<64x1xf32>
    %132 = vector.broadcast %131 : vector<64x1xf32> to vector<64x64xf32>
    %133 = arith.mulf %128, %132 : vector<64x64xf32>
    %134 = vector.broadcast %114 : vector<1x64xf32> to vector<64x64xf32>
    %135 = arith.mulf %133, %134 : vector<64x64xf32>
    %136 = vector.broadcast %115 : vector<1x64xf32> to vector<64x64xf32>
    %137 = arith.addf %135, %136 : vector<64x64xf32>
    %c0_64 = arith.constant 0 : index
    %c0_65 = arith.constant 0 : index
    %138 = vector.load %arg25[%c0_64, %c0_65] : memref<64x32xbf16, #tpu.memory_space<vmem>>, vector<64x32xbf16>
    %c0_66 = arith.constant 0 : index
    %c0_67 = arith.constant 0 : index
    %139 = vector.load %arg26[%c0_66, %c0_67] : memref<1x32xf32, #tpu.memory_space<vmem>>, vector<1x32xf32>
    %c0_68 = arith.constant 0 : index
    %c0_69 = arith.constant 0 : index
    %140 = vector.load %arg27[%c0_68, %c0_69] : memref<1x32xf32, #tpu.memory_space<vmem>>, vector<1x32xf32>
    %c0_70 = arith.constant 0 : index
    %c0_71 = arith.constant 0 : index
    %141 = vector.load %arg8[%c0_70, %c0_71] : memref<8x64xf32, #tpu.memory_space<vmem>>, vector<8x64xf32>
    %142 = arith.truncf %137 : vector<64x64xf32> to vector<64x64xbf16>
    %cst_72 = arith.constant dense<0.000000e+00> : vector<64x32xf32>
    %143 = tpu.matmul %142, %138, %cst_72 {dimension_numbers = #tpu.dot_dimension_numbers<[1], [0], [0], [1], [0, 0, 1, 1], [], []>} : vector<64x64xbf16>, vector<64x32xbf16>, vector<64x32xf32> -> vector<64x32xf32>
    %144 = vector.broadcast %139 : vector<1x32xf32> to vector<64x32xf32>
    %145 = arith.addf %143, %144 : vector<64x32xf32>
    %146 = math.tanh %145 : vector<64x32xf32>
    %147 = vector.broadcast %140 : vector<1x32xf32> to vector<64x32xf32>
    %148 = arith.mulf %146, %147 : vector<64x32xf32>
    %cst_73 = arith.constant dense<0.000000e+00> : vector<64xf32>
    %149 = vector.multi_reduction <add>, %148, %cst_73 [1] : vector<64x32xf32> to vector<64xf32>
    %150 = vector.shape_cast %149 : vector<64xf32> to vector<64x1xf32>
    %cst_74 = arith.constant dense<0xFF800000> : vector<1xf32>
    %151 = vector.multi_reduction <maximumf>, %150, %cst_74 [0] : vector<64x1xf32> to vector<1xf32>
    %152 = vector.shape_cast %151 : vector<1xf32> to vector<1x1xf32>
    %153 = vector.broadcast %152 : vector<1x1xf32> to vector<64x1xf32>
    %154 = arith.subf %150, %153 : vector<64x1xf32>
    %155 = math.exp %154 : vector<64x1xf32>
    %156 = vector.broadcast %155 : vector<64x1xf32> to vector<64x64xf32>
    %157 = arith.mulf %156, %137 : vector<64x64xf32>
    %cst_75 = arith.constant dense<0.000000e+00> : vector<8x64xf32>
    %158 = tpu.matmul %141, %157, %cst_75 {dimension_numbers = #tpu.dot_dimension_numbers<[1], [0], [0], [1], [0, 0, 1, 1], [], []>} : vector<8x64xf32>, vector<64x64xf32>, vector<8x64xf32> -> vector<8x64xf32>
    %cst_76 = arith.constant dense<0.000000e+00> : vector<8x1xf32>
    %159 = tpu.matmul %141, %155, %cst_76 {dimension_numbers = #tpu.dot_dimension_numbers<[1], [0], [0], [1], [0, 0, 1, 1], [], []>} : vector<8x64xf32>, vector<64x1xf32>, vector<8x1xf32> -> vector<8x1xf32>
    %160 = tpu.reciprocal %159 : vector<8x1xf32> -> vector<8x1xf32>
    %161 = vector.broadcast %160 : vector<8x1xf32> to vector<8x64xf32>
    %162 = arith.mulf %158, %161 : vector<8x64xf32>
    %163 = math.tanh %162 : vector<8x64xf32>
    %c0_77 = arith.constant 0 : index
    %c0_78 = arith.constant 0 : index
    %164 = vector.load %arg4[%c0_77, %c0_78] : memref<160x300xbf16, #tpu.memory_space<vmem>>, vector<160x300xbf16>
    %c0_79 = arith.constant 0 : index
    %c0_80 = arith.constant 0 : index
    %165 = vector.load %arg28[%c0_79, %c0_80] : memref<300x64xbf16, #tpu.memory_space<vmem>>, vector<300x64xbf16>
    %cst_81 = arith.constant dense<0.000000e+00> : vector<160x64xf32>
    %166 = tpu.matmul %164, %165, %cst_81 {dimension_numbers = #tpu.dot_dimension_numbers<[1], [0], [0], [1], [0, 0, 1, 1], [], []>} : vector<160x300xbf16>, vector<300x64xbf16>, vector<160x64xf32> -> vector<160x64xf32>
    %c0_82 = arith.constant 0 : index
    %c0_83 = arith.constant 0 : index
    %167 = vector.load %arg29[%c0_82, %c0_83] : memref<1x64xf32, #tpu.memory_space<vmem>>, vector<1x64xf32>
    %168 = vector.broadcast %167 : vector<1x64xf32> to vector<160x64xf32>
    %169 = arith.addf %166, %168 : vector<160x64xf32>
    %cst_84 = arith.constant 0.000000e+00 : f32
    %170 = vector.broadcast %cst_84 : f32 to vector<160x64xf32>
    %171 = arith.maximumf %169, %170 : vector<160x64xf32>
    %c0_85 = arith.constant 0 : index
    %c0_86 = arith.constant 0 : index
    %172 = vector.load %arg30[%c0_85, %c0_86] : memref<1x64xf32, #tpu.memory_space<vmem>>, vector<1x64xf32>
    %173 = vector.extract_strided_slice %171 {offsets = [0, 0], sizes = [40, 64], strides = [1, 1]} : vector<160x64xf32> to vector<40x64xf32>
    %174 = vector.broadcast %172 : vector<1x64xf32> to vector<40x64xf32>
    %175 = arith.mulf %173, %174 : vector<40x64xf32>
    %cst_87 = arith.constant dense<0.000000e+00> : vector<40xf32>
    %176 = vector.multi_reduction <add>, %175, %cst_87 [1] : vector<40x64xf32> to vector<40xf32>
    %177 = vector.shape_cast %176 : vector<40xf32> to vector<40x1xf32>
    %178 = vector.extract_strided_slice %171 {offsets = [40, 0], sizes = [40, 64], strides = [1, 1]} : vector<160x64xf32> to vector<40x64xf32>
    %179 = vector.broadcast %172 : vector<1x64xf32> to vector<40x64xf32>
    %180 = arith.mulf %178, %179 : vector<40x64xf32>
    %cst_88 = arith.constant dense<0.000000e+00> : vector<40xf32>
    %181 = vector.multi_reduction <add>, %180, %cst_88 [1] : vector<40x64xf32> to vector<40xf32>
    %182 = vector.shape_cast %181 : vector<40xf32> to vector<40x1xf32>
    %183 = vector.extract_strided_slice %171 {offsets = [80, 0], sizes = [40, 64], strides = [1, 1]} : vector<160x64xf32> to vector<40x64xf32>
    %184 = vector.broadcast %172 : vector<1x64xf32> to vector<40x64xf32>
    %185 = arith.mulf %183, %184 : vector<40x64xf32>
    %cst_89 = arith.constant dense<0.000000e+00> : vector<40xf32>
    %186 = vector.multi_reduction <add>, %185, %cst_89 [1] : vector<40x64xf32> to vector<40xf32>
    %187 = vector.shape_cast %186 : vector<40xf32> to vector<40x1xf32>
    %188 = vector.extract_strided_slice %171 {offsets = [120, 0], sizes = [40, 64], strides = [1, 1]} : vector<160x64xf32> to vector<40x64xf32>
    %189 = vector.broadcast %172 : vector<1x64xf32> to vector<40x64xf32>
    %190 = arith.mulf %188, %189 : vector<40x64xf32>
    %cst_90 = arith.constant dense<0.000000e+00> : vector<40xf32>
    %191 = vector.multi_reduction <add>, %190, %cst_90 [1] : vector<40x64xf32> to vector<40xf32>
    %192 = vector.shape_cast %191 : vector<40xf32> to vector<40x1xf32>
    %193 = tpu.concatenate %177, %182, %187, %192 in 1 : vector<40x1xf32>, vector<40x1xf32>, vector<40x1xf32>, vector<40x1xf32> -> vector<40x4xf32>
    %c0_91 = arith.constant 0 : index
    %c0_92 = arith.constant 0 : index
    %194 = vector.load %arg31[%c0_91, %c0_92] : memref<1x1xf32, #tpu.memory_space<vmem>>, vector<1x1xf32>
    %195 = vector.broadcast %194 : vector<1x1xf32> to vector<40x4xf32>
    %196 = arith.addf %193, %195 : vector<40x4xf32>
    %cst_93 = arith.constant dense<0xFF800000> : vector<40xf32>
    %197 = vector.multi_reduction <maximumf>, %196, %cst_93 [1] : vector<40x4xf32> to vector<40xf32>
    %cst_94 = arith.constant 0xFF800000 : f32
    %198 = vector.broadcast %cst_94 : f32 to vector<40xf32>
    %199 = arith.maximumf %198, %197 : vector<40xf32>
    %200 = vector.shape_cast %199 : vector<40xf32> to vector<40x1xf32>
    %201 = vector.broadcast %200 : vector<40x1xf32> to vector<40x4xf32>
    %202 = arith.subf %196, %201 : vector<40x4xf32>
    %203 = math.exp %202 : vector<40x4xf32>
    %cst_95 = arith.constant dense<0.000000e+00> : vector<40xf32>
    %204 = vector.multi_reduction <add>, %203, %cst_95 [1] : vector<40x4xf32> to vector<40xf32>
    %205 = vector.shape_cast %204 : vector<40xf32> to vector<40x1xf32>
    %206 = vector.broadcast %205 : vector<40x1xf32> to vector<40x4xf32>
    %207 = arith.divf %203, %206 : vector<40x4xf32>
    %c0_96 = arith.constant 0 : index
    %c0_97 = arith.constant 0 : index
    %208 = vector.load %arg5[%c0_96, %c0_97] : memref<160x100xf32, #tpu.memory_space<vmem>>, vector<160x100xf32>
    %209 = vector.extract_strided_slice %207 {offsets = [0, 0], sizes = [40, 1], strides = [1, 1]} : vector<40x4xf32> to vector<40x1xf32>
    %210 = vector.extract_strided_slice %208 {offsets = [0, 0], sizes = [40, 100], strides = [1, 1]} : vector<160x100xf32> to vector<40x100xf32>
    %211 = vector.broadcast %209 : vector<40x1xf32> to vector<40x100xf32>
    %212 = arith.mulf %211, %210 : vector<40x100xf32>
    %213 = vector.extract_strided_slice %207 {offsets = [0, 1], sizes = [40, 1], strides = [1, 1]} : vector<40x4xf32> to vector<40x1xf32>
    %214 = vector.extract_strided_slice %208 {offsets = [40, 0], sizes = [40, 100], strides = [1, 1]} : vector<160x100xf32> to vector<40x100xf32>
    %215 = vector.broadcast %213 : vector<40x1xf32> to vector<40x100xf32>
    %216 = arith.mulf %215, %214 : vector<40x100xf32>
    %217 = arith.addf %212, %216 : vector<40x100xf32>
    %218 = vector.extract_strided_slice %207 {offsets = [0, 2], sizes = [40, 1], strides = [1, 1]} : vector<40x4xf32> to vector<40x1xf32>
    %219 = vector.extract_strided_slice %208 {offsets = [80, 0], sizes = [40, 100], strides = [1, 1]} : vector<160x100xf32> to vector<40x100xf32>
    %220 = vector.broadcast %218 : vector<40x1xf32> to vector<40x100xf32>
    %221 = arith.mulf %220, %219 : vector<40x100xf32>
    %222 = arith.addf %217, %221 : vector<40x100xf32>
    %223 = vector.extract_strided_slice %207 {offsets = [0, 3], sizes = [40, 1], strides = [1, 1]} : vector<40x4xf32> to vector<40x1xf32>
    %224 = vector.extract_strided_slice %208 {offsets = [120, 0], sizes = [40, 100], strides = [1, 1]} : vector<160x100xf32> to vector<40x100xf32>
    %225 = vector.broadcast %223 : vector<40x1xf32> to vector<40x100xf32>
    %226 = arith.mulf %225, %224 : vector<40x100xf32>
    %227 = arith.addf %222, %226 : vector<40x100xf32>
    %c0_98 = arith.constant 0 : index
    %c0_99 = arith.constant 0 : index
    %228 = vector.load %arg3[%c0_98, %c0_99] : memref<40x100xf32, #tpu.memory_space<vmem>>, vector<40x100xf32>
    %229 = tpu.concatenate %228, %227 in 1 : vector<40x100xf32>, vector<40x100xf32> -> vector<40x200xf32>
    %c0_100 = arith.constant 0 : index
    %c0_101 = arith.constant 0 : index
    %230 = vector.load %arg32[%c0_100, %c0_101] : memref<200x100xbf16, #tpu.memory_space<vmem>>, vector<200x100xbf16>
    %231 = arith.truncf %229 : vector<40x200xf32> to vector<40x200xbf16>
    %cst_102 = arith.constant dense<0.000000e+00> : vector<40x100xf32>
    %232 = tpu.matmul %231, %230, %cst_102 {dimension_numbers = #tpu.dot_dimension_numbers<[1], [0], [0], [1], [0, 0, 1, 1], [], []>} : vector<40x200xbf16>, vector<200x100xbf16>, vector<40x100xf32> -> vector<40x100xf32>
    %c0_103 = arith.constant 0 : index
    %c0_104 = arith.constant 0 : index
    %233 = vector.load %arg33[%c0_103, %c0_104] : memref<1x100xf32, #tpu.memory_space<vmem>>, vector<1x100xf32>
    %234 = vector.broadcast %233 : vector<1x100xf32> to vector<40x100xf32>
    %235 = arith.addf %232, %234 : vector<40x100xf32>
    %236 = math.tanh %235 : vector<40x100xf32>
    %c0_105 = arith.constant 0 : index
    %c0_106 = arith.constant 0 : index
    %237 = vector.load %arg6[%c0_105, %c0_106] : memref<40x40xf32, #tpu.memory_space<vmem>>, vector<40x40xf32>
    %cst_107 = arith.constant dense<0.000000e+00> : vector<40x100xf32>
    %238 = tpu.matmul %237, %236, %cst_107 {dimension_numbers = #tpu.dot_dimension_numbers<[1], [0], [0], [1], [0, 0, 1, 1], [], []>} : vector<40x40xf32>, vector<40x100xf32>, vector<40x100xf32> -> vector<40x100xf32>
    %c0_108 = arith.constant 0 : index
    %c0_109 = arith.constant 0 : index
    %239 = vector.load %arg34[%c0_108, %c0_109] : memref<100x64xbf16, #tpu.memory_space<vmem>>, vector<100x64xbf16>
    %240 = arith.truncf %238 : vector<40x100xf32> to vector<40x100xbf16>
    %cst_110 = arith.constant dense<0.000000e+00> : vector<40x64xf32>
    %241 = tpu.matmul %240, %239, %cst_110 {dimension_numbers = #tpu.dot_dimension_numbers<[1], [0], [0], [1], [0, 0, 1, 1], [], []>} : vector<40x100xbf16>, vector<100x64xbf16>, vector<40x64xf32> -> vector<40x64xf32>
    %c0_111 = arith.constant 0 : index
    %c0_112 = arith.constant 0 : index
    %242 = vector.load %arg35[%c0_111, %c0_112] : memref<1x64xf32, #tpu.memory_space<vmem>>, vector<1x64xf32>
    %243 = vector.broadcast %242 : vector<1x64xf32> to vector<40x64xf32>
    %244 = arith.addf %241, %243 : vector<40x64xf32>
    %cst_113 = arith.constant 0.000000e+00 : f32
    %245 = vector.broadcast %cst_113 : f32 to vector<40x64xf32>
    %246 = arith.maximumf %244, %245 : vector<40x64xf32>
    %c0_114 = arith.constant 0 : index
    %c0_115 = arith.constant 0 : index
    %247 = vector.load %arg23[%c0_114, %c0_115] : memref<1x64xf32, #tpu.memory_space<vmem>>, vector<1x64xf32>
    %c0_116 = arith.constant 0 : index
    %c0_117 = arith.constant 0 : index
    %248 = vector.load %arg24[%c0_116, %c0_117] : memref<1x64xf32, #tpu.memory_space<vmem>>, vector<1x64xf32>
    %cst_118 = arith.constant dense<0.000000e+00> : vector<40xf32>
    %249 = vector.multi_reduction <add>, %246, %cst_118 [1] : vector<40x64xf32> to vector<40xf32>
    %250 = vector.shape_cast %249 : vector<40xf32> to vector<40x1xf32>
    %cst_119 = arith.constant 6.400000e+01 : f32
    %251 = vector.broadcast %cst_119 : f32 to vector<40x1xf32>
    %252 = arith.divf %250, %251 : vector<40x1xf32>
    %253 = vector.broadcast %252 : vector<40x1xf32> to vector<40x64xf32>
    %254 = arith.subf %246, %253 : vector<40x64xf32>
    %255 = arith.mulf %254, %254 : vector<40x64xf32>
    %cst_120 = arith.constant dense<0.000000e+00> : vector<40xf32>
    %256 = vector.multi_reduction <add>, %255, %cst_120 [1] : vector<40x64xf32> to vector<40xf32>
    %257 = vector.shape_cast %256 : vector<40xf32> to vector<40x1xf32>
    %cst_121 = arith.constant 6.400000e+01 : f32
    %258 = vector.broadcast %cst_121 : f32 to vector<40x1xf32>
    %259 = arith.divf %257, %258 : vector<40x1xf32>
    %260 = vector.broadcast %252 : vector<40x1xf32> to vector<40x64xf32>
    %261 = arith.subf %246, %260 : vector<40x64xf32>
    %cst_122 = arith.constant 9.99999974E-6 : f32
    %262 = vector.broadcast %cst_122 : f32 to vector<40x1xf32>
    %263 = arith.addf %259, %262 : vector<40x1xf32>
    %264 = math.rsqrt %263 : vector<40x1xf32>
    %265 = vector.broadcast %264 : vector<40x1xf32> to vector<40x64xf32>
    %266 = arith.mulf %261, %265 : vector<40x64xf32>
    %267 = vector.broadcast %247 : vector<1x64xf32> to vector<40x64xf32>
    %268 = arith.mulf %266, %267 : vector<40x64xf32>
    %269 = vector.broadcast %248 : vector<1x64xf32> to vector<40x64xf32>
    %270 = arith.addf %268, %269 : vector<40x64xf32>
    %c0_123 = arith.constant 0 : index
    %c0_124 = arith.constant 0 : index
    %271 = vector.load %arg36[%c0_123, %c0_124] : memref<64x32xbf16, #tpu.memory_space<vmem>>, vector<64x32xbf16>
    %c0_125 = arith.constant 0 : index
    %c0_126 = arith.constant 0 : index
    %272 = vector.load %arg37[%c0_125, %c0_126] : memref<1x32xf32, #tpu.memory_space<vmem>>, vector<1x32xf32>
    %c0_127 = arith.constant 0 : index
    %c0_128 = arith.constant 0 : index
    %273 = vector.load %arg38[%c0_127, %c0_128] : memref<1x32xf32, #tpu.memory_space<vmem>>, vector<1x32xf32>
    %c0_129 = arith.constant 0 : index
    %c0_130 = arith.constant 0 : index
    %274 = vector.load %arg9[%c0_129, %c0_130] : memref<8x40xf32, #tpu.memory_space<vmem>>, vector<8x40xf32>
    %275 = arith.truncf %270 : vector<40x64xf32> to vector<40x64xbf16>
    %cst_131 = arith.constant dense<0.000000e+00> : vector<40x32xf32>
    %276 = tpu.matmul %275, %271, %cst_131 {dimension_numbers = #tpu.dot_dimension_numbers<[1], [0], [0], [1], [0, 0, 1, 1], [], []>} : vector<40x64xbf16>, vector<64x32xbf16>, vector<40x32xf32> -> vector<40x32xf32>
    %277 = vector.broadcast %272 : vector<1x32xf32> to vector<40x32xf32>
    %278 = arith.addf %276, %277 : vector<40x32xf32>
    %279 = math.tanh %278 : vector<40x32xf32>
    %280 = vector.broadcast %273 : vector<1x32xf32> to vector<40x32xf32>
    %281 = arith.mulf %279, %280 : vector<40x32xf32>
    %cst_132 = arith.constant dense<0.000000e+00> : vector<40xf32>
    %282 = vector.multi_reduction <add>, %281, %cst_132 [1] : vector<40x32xf32> to vector<40xf32>
    %283 = vector.shape_cast %282 : vector<40xf32> to vector<40x1xf32>
    %cst_133 = arith.constant dense<0xFF800000> : vector<1xf32>
    %284 = vector.multi_reduction <maximumf>, %283, %cst_133 [0] : vector<40x1xf32> to vector<1xf32>
    %285 = vector.shape_cast %284 : vector<1xf32> to vector<1x1xf32>
    %286 = vector.broadcast %285 : vector<1x1xf32> to vector<40x1xf32>
    %287 = arith.subf %283, %286 : vector<40x1xf32>
    %288 = math.exp %287 : vector<40x1xf32>
    %289 = vector.broadcast %288 : vector<40x1xf32> to vector<40x64xf32>
    %290 = arith.mulf %289, %270 : vector<40x64xf32>
    %cst_134 = arith.constant dense<0.000000e+00> : vector<8x64xf32>
    %291 = tpu.matmul %274, %290, %cst_134 {dimension_numbers = #tpu.dot_dimension_numbers<[1], [0], [0], [1], [0, 0, 1, 1], [], []>} : vector<8x40xf32>, vector<40x64xf32>, vector<8x64xf32> -> vector<8x64xf32>
    %cst_135 = arith.constant dense<0.000000e+00> : vector<8x1xf32>
    %292 = tpu.matmul %274, %288, %cst_135 {dimension_numbers = #tpu.dot_dimension_numbers<[1], [0], [0], [1], [0, 0, 1, 1], [], []>} : vector<8x40xf32>, vector<40x1xf32>, vector<8x1xf32> -> vector<8x1xf32>
    %293 = tpu.reciprocal %292 : vector<8x1xf32> -> vector<8x1xf32>
    %294 = vector.broadcast %293 : vector<8x1xf32> to vector<8x64xf32>
    %295 = arith.mulf %291, %294 : vector<8x64xf32>
    %296 = math.tanh %295 : vector<8x64xf32>
    %297 = tpu.concatenate %163, %296, %7, %15 in 0 : vector<8x64xf32>, vector<8x64xf32>, vector<8x64xf32>, vector<8x64xf32> -> vector<32x64xf32>
    %c0_136 = arith.constant 0 : index
    %c0_137 = arith.constant 0 : index
    %298 = vector.load %arg39[%c0_136, %c0_137] : memref<64x32xbf16, #tpu.memory_space<vmem>>, vector<64x32xbf16>
    %c0_138 = arith.constant 0 : index
    %c0_139 = arith.constant 0 : index
    %299 = vector.load %arg40[%c0_138, %c0_139] : memref<1x32xf32, #tpu.memory_space<vmem>>, vector<1x32xf32>
    %c0_140 = arith.constant 0 : index
    %c0_141 = arith.constant 0 : index
    %300 = vector.load %arg41[%c0_140, %c0_141] : memref<1x32xf32, #tpu.memory_space<vmem>>, vector<1x32xf32>
    %c0_142 = arith.constant 0 : index
    %c0_143 = arith.constant 0 : index
    %301 = vector.load %arg11[%c0_142, %c0_143] : memref<8x32xf32, #tpu.memory_space<vmem>>, vector<8x32xf32>
    %302 = arith.truncf %297 : vector<32x64xf32> to vector<32x64xbf16>
    %cst_144 = arith.constant dense<0.000000e+00> : vector<32x32xf32>
    %303 = tpu.matmul %302, %298, %cst_144 {dimension_numbers = #tpu.dot_dimension_numbers<[1], [0], [0], [1], [0, 0, 1, 1], [], []>} : vector<32x64xbf16>, vector<64x32xbf16>, vector<32x32xf32> -> vector<32x32xf32>
    %304 = vector.broadcast %299 : vector<1x32xf32> to vector<32x32xf32>
    %305 = arith.addf %303, %304 : vector<32x32xf32>
    %306 = math.tanh %305 : vector<32x32xf32>
    %307 = vector.broadcast %300 : vector<1x32xf32> to vector<32x32xf32>
    %308 = arith.mulf %306, %307 : vector<32x32xf32>
    %cst_145 = arith.constant dense<0.000000e+00> : vector<32xf32>
    %309 = vector.multi_reduction <add>, %308, %cst_145 [1] : vector<32x32xf32> to vector<32xf32>
    %310 = vector.shape_cast %309 : vector<32xf32> to vector<32x1xf32>
    %cst_146 = arith.constant dense<0xFF800000> : vector<1xf32>
    %311 = vector.multi_reduction <maximumf>, %310, %cst_146 [0] : vector<32x1xf32> to vector<1xf32>
    %312 = vector.shape_cast %311 : vector<1xf32> to vector<1x1xf32>
    %313 = vector.broadcast %312 : vector<1x1xf32> to vector<32x1xf32>
    %314 = arith.subf %310, %313 : vector<32x1xf32>
    %315 = math.exp %314 : vector<32x1xf32>
    %316 = vector.broadcast %315 : vector<32x1xf32> to vector<32x64xf32>
    %317 = arith.mulf %316, %297 : vector<32x64xf32>
    %cst_147 = arith.constant dense<0.000000e+00> : vector<8x64xf32>
    %318 = tpu.matmul %301, %317, %cst_147 {dimension_numbers = #tpu.dot_dimension_numbers<[1], [0], [0], [1], [0, 0, 1, 1], [], []>} : vector<8x32xf32>, vector<32x64xf32>, vector<8x64xf32> -> vector<8x64xf32>
    %cst_148 = arith.constant dense<0.000000e+00> : vector<8x1xf32>
    %319 = tpu.matmul %301, %315, %cst_148 {dimension_numbers = #tpu.dot_dimension_numbers<[1], [0], [0], [1], [0, 0, 1, 1], [], []>} : vector<8x32xf32>, vector<32x1xf32>, vector<8x1xf32> -> vector<8x1xf32>
    %320 = tpu.reciprocal %319 : vector<8x1xf32> -> vector<8x1xf32>
    %321 = vector.broadcast %320 : vector<8x1xf32> to vector<8x64xf32>
    %322 = arith.mulf %318, %321 : vector<8x64xf32>
    %323 = math.tanh %322 : vector<8x64xf32>
    %c0_149 = arith.constant 0 : index
    %c0_150 = arith.constant 0 : index
    %324 = vector.load %arg42[%c0_149, %c0_150] : memref<200x64xbf16, #tpu.memory_space<vmem>>, vector<200x64xbf16>
    %325 = arith.truncf %229 : vector<40x200xf32> to vector<40x200xbf16>
    %cst_151 = arith.constant dense<0.000000e+00> : vector<40x64xf32>
    %326 = tpu.matmul %325, %324, %cst_151 {dimension_numbers = #tpu.dot_dimension_numbers<[1], [0], [0], [1], [0, 0, 1, 1], [], []>} : vector<40x200xbf16>, vector<200x64xbf16>, vector<40x64xf32> -> vector<40x64xf32>
    %c0_152 = arith.constant 0 : index
    %c0_153 = arith.constant 0 : index
    %327 = vector.load %arg43[%c0_152, %c0_153] : memref<1x64xf32, #tpu.memory_space<vmem>>, vector<1x64xf32>
    %328 = vector.broadcast %327 : vector<1x64xf32> to vector<40x64xf32>
    %329 = arith.addf %326, %328 : vector<40x64xf32>
    %c0_154 = arith.constant 0 : index
    %c0_155 = arith.constant 0 : index
    %330 = vector.load %arg9[%c0_154, %c0_155] : memref<8x40xf32, #tpu.memory_space<vmem>>, vector<8x40xf32>
    %c0_156 = arith.constant 0 : index
    %c0_157 = arith.constant 0 : index
    %331 = vector.load %arg10[%c0_156, %c0_157] : memref<40x8xf32, #tpu.memory_space<vmem>>, vector<40x8xf32>
    %cst_158 = arith.constant dense<0.000000e+00> : vector<40x64xf32>
    %332 = tpu.matmul %331, %323, %cst_158 {dimension_numbers = #tpu.dot_dimension_numbers<[1], [0], [0], [1], [0, 0, 1, 1], [], []>} : vector<40x8xf32>, vector<8x64xf32>, vector<40x64xf32> -> vector<40x64xf32>
    %333 = arith.mulf %329, %332 : vector<40x64xf32>
    %cst_159 = arith.constant dense<0.000000e+00> : vector<40xf32>
    %334 = vector.multi_reduction <add>, %333, %cst_159 [1] : vector<40x64xf32> to vector<40xf32>
    %335 = vector.shape_cast %334 : vector<40xf32> to vector<40x1xf32>
    %cst_160 = arith.constant dense<0xFF800000> : vector<1xf32>
    %336 = vector.multi_reduction <maximumf>, %335, %cst_160 [0] : vector<40x1xf32> to vector<1xf32>
    %337 = vector.shape_cast %336 : vector<1xf32> to vector<1x1xf32>
    %338 = vector.broadcast %337 : vector<1x1xf32> to vector<40x1xf32>
    %339 = arith.subf %335, %338 : vector<40x1xf32>
    %340 = math.exp %339 : vector<40x1xf32>
    %341 = vector.broadcast %340 : vector<40x1xf32> to vector<40x64xf32>
    %342 = arith.mulf %341, %329 : vector<40x64xf32>
    %cst_161 = arith.constant dense<0.000000e+00> : vector<8x64xf32>
    %343 = tpu.matmul %330, %342, %cst_161 {dimension_numbers = #tpu.dot_dimension_numbers<[1], [0], [0], [1], [0, 0, 1, 1], [], []>} : vector<8x40xf32>, vector<40x64xf32>, vector<8x64xf32> -> vector<8x64xf32>
    %cst_162 = arith.constant dense<0.000000e+00> : vector<8x1xf32>
    %344 = tpu.matmul %330, %340, %cst_162 {dimension_numbers = #tpu.dot_dimension_numbers<[1], [0], [0], [1], [0, 0, 1, 1], [], []>} : vector<8x40xf32>, vector<40x1xf32>, vector<8x1xf32> -> vector<8x1xf32>
    %345 = tpu.reciprocal %344 : vector<8x1xf32> -> vector<8x1xf32>
    %346 = vector.broadcast %345 : vector<8x1xf32> to vector<8x64xf32>
    %347 = arith.mulf %343, %346 : vector<8x64xf32>
    %348 = math.tanh %347 : vector<8x64xf32>
    %349 = math.tanh %323 : vector<8x64xf32>
    %350 = math.tanh %348 : vector<8x64xf32>
    %c0_163 = arith.constant 0 : index
    %c0_164 = arith.constant 0 : index
    %351 = vector.load %arg44[%c0_163, %c0_164] : memref<64x64xbf16, #tpu.memory_space<vmem>>, vector<64x64xbf16>
    %c0_165 = arith.constant 0 : index
    %c0_166 = arith.constant 0 : index
    %352 = vector.load %arg45[%c0_165, %c0_166] : memref<1x64xf32, #tpu.memory_space<vmem>>, vector<1x64xf32>
    %c0_167 = arith.constant 0 : index
    %c0_168 = arith.constant 0 : index
    %353 = vector.load %arg46[%c0_167, %c0_168] : memref<64x64xbf16, #tpu.memory_space<vmem>>, vector<64x64xbf16>
    %c0_169 = arith.constant 0 : index
    %c0_170 = arith.constant 0 : index
    %354 = vector.load %arg47[%c0_169, %c0_170] : memref<1x64xf32, #tpu.memory_space<vmem>>, vector<1x64xf32>
    %c0_171 = arith.constant 0 : index
    %c0_172 = arith.constant 0 : index
    %355 = vector.load %arg48[%c0_171, %c0_172] : memref<64x64xbf16, #tpu.memory_space<vmem>>, vector<64x64xbf16>
    %c0_173 = arith.constant 0 : index
    %c0_174 = arith.constant 0 : index
    %356 = vector.load %arg49[%c0_173, %c0_174] : memref<1x64xf32, #tpu.memory_space<vmem>>, vector<1x64xf32>
    %357 = arith.truncf %349 : vector<8x64xf32> to vector<8x64xbf16>
    %cst_175 = arith.constant dense<0.000000e+00> : vector<8x64xf32>
    %358 = tpu.matmul %357, %351, %cst_175 {dimension_numbers = #tpu.dot_dimension_numbers<[1], [0], [0], [1], [0, 0, 1, 1], [], []>} : vector<8x64xbf16>, vector<64x64xbf16>, vector<8x64xf32> -> vector<8x64xf32>
    %359 = vector.broadcast %352 : vector<1x64xf32> to vector<8x64xf32>
    %360 = arith.addf %358, %359 : vector<8x64xf32>
    %361 = arith.truncf %349 : vector<8x64xf32> to vector<8x64xbf16>
    %cst_176 = arith.constant dense<0.000000e+00> : vector<8x64xf32>
    %362 = tpu.matmul %361, %353, %cst_176 {dimension_numbers = #tpu.dot_dimension_numbers<[1], [0], [0], [1], [0, 0, 1, 1], [], []>} : vector<8x64xbf16>, vector<64x64xbf16>, vector<8x64xf32> -> vector<8x64xf32>
    %363 = vector.broadcast %354 : vector<1x64xf32> to vector<8x64xf32>
    %364 = arith.addf %362, %363 : vector<8x64xf32>
    %365 = arith.truncf %349 : vector<8x64xf32> to vector<8x64xbf16>
    %cst_177 = arith.constant dense<0.000000e+00> : vector<8x64xf32>
    %366 = tpu.matmul %365, %355, %cst_177 {dimension_numbers = #tpu.dot_dimension_numbers<[1], [0], [0], [1], [0, 0, 1, 1], [], []>} : vector<8x64xbf16>, vector<64x64xbf16>, vector<8x64xf32> -> vector<8x64xf32>
    %367 = vector.broadcast %356 : vector<1x64xf32> to vector<8x64xf32>
    %368 = arith.addf %366, %367 : vector<8x64xf32>
    %369 = vector.extract_strided_slice %360 {offsets = [0, 0], sizes = [8, 16], strides = [1, 1]} : vector<8x64xf32> to vector<8x16xf32>
    %370 = vector.extract_strided_slice %364 {offsets = [0, 0], sizes = [8, 16], strides = [1, 1]} : vector<8x64xf32> to vector<8x16xf32>
    %371 = tpu.transpose %370, [1, 0] : vector<8x16xf32> -> vector<16x8xf32>
    %cst_178 = arith.constant dense<0.000000e+00> : vector<8x8xf32>
    %372 = tpu.matmul %369, %371, %cst_178 {dimension_numbers = #tpu.dot_dimension_numbers<[1], [0], [0], [1], [0, 0, 1, 1], [], []>} : vector<8x16xf32>, vector<16x8xf32>, vector<8x8xf32> -> vector<8x8xf32>
    %cst_179 = arith.constant 2.500000e-01 : f32
    %373 = vector.broadcast %cst_179 : f32 to vector<8x8xf32>
    %374 = arith.mulf %372, %373 : vector<8x8xf32>
    %cst_180 = arith.constant dense<0xFF800000> : vector<8xf32>
    %375 = vector.multi_reduction <maximumf>, %374, %cst_180 [1] : vector<8x8xf32> to vector<8xf32>
    %cst_181 = arith.constant 0xFF800000 : f32
    %376 = vector.broadcast %cst_181 : f32 to vector<8xf32>
    %377 = arith.maximumf %376, %375 : vector<8xf32>
    %378 = vector.shape_cast %377 : vector<8xf32> to vector<8x1xf32>
    %379 = vector.broadcast %378 : vector<8x1xf32> to vector<8x8xf32>
    %380 = arith.subf %374, %379 : vector<8x8xf32>
    %381 = math.exp %380 : vector<8x8xf32>
    %cst_182 = arith.constant dense<0.000000e+00> : vector<8xf32>
    %382 = vector.multi_reduction <add>, %381, %cst_182 [1] : vector<8x8xf32> to vector<8xf32>
    %383 = vector.shape_cast %382 : vector<8xf32> to vector<8x1xf32>
    %384 = vector.broadcast %383 : vector<8x1xf32> to vector<8x8xf32>
    %385 = arith.divf %381, %384 : vector<8x8xf32>
    %386 = vector.extract_strided_slice %368 {offsets = [0, 0], sizes = [8, 16], strides = [1, 1]} : vector<8x64xf32> to vector<8x16xf32>
    %cst_183 = arith.constant dense<0.000000e+00> : vector<8x16xf32>
    %387 = tpu.matmul %385, %386, %cst_183 {dimension_numbers = #tpu.dot_dimension_numbers<[1], [0], [0], [1], [0, 0, 1, 1], [], []>} : vector<8x8xf32>, vector<8x16xf32>, vector<8x16xf32> -> vector<8x16xf32>
    %388 = vector.extract_strided_slice %360 {offsets = [0, 16], sizes = [8, 16], strides = [1, 1]} : vector<8x64xf32> to vector<8x16xf32>
    %389 = vector.extract_strided_slice %364 {offsets = [0, 16], sizes = [8, 16], strides = [1, 1]} : vector<8x64xf32> to vector<8x16xf32>
    %390 = tpu.transpose %389, [1, 0] : vector<8x16xf32> -> vector<16x8xf32>
    %cst_184 = arith.constant dense<0.000000e+00> : vector<8x8xf32>
    %391 = tpu.matmul %388, %390, %cst_184 {dimension_numbers = #tpu.dot_dimension_numbers<[1], [0], [0], [1], [0, 0, 1, 1], [], []>} : vector<8x16xf32>, vector<16x8xf32>, vector<8x8xf32> -> vector<8x8xf32>
    %cst_185 = arith.constant 2.500000e-01 : f32
    %392 = vector.broadcast %cst_185 : f32 to vector<8x8xf32>
    %393 = arith.mulf %391, %392 : vector<8x8xf32>
    %cst_186 = arith.constant dense<0xFF800000> : vector<8xf32>
    %394 = vector.multi_reduction <maximumf>, %393, %cst_186 [1] : vector<8x8xf32> to vector<8xf32>
    %cst_187 = arith.constant 0xFF800000 : f32
    %395 = vector.broadcast %cst_187 : f32 to vector<8xf32>
    %396 = arith.maximumf %395, %394 : vector<8xf32>
    %397 = vector.shape_cast %396 : vector<8xf32> to vector<8x1xf32>
    %398 = vector.broadcast %397 : vector<8x1xf32> to vector<8x8xf32>
    %399 = arith.subf %393, %398 : vector<8x8xf32>
    %400 = math.exp %399 : vector<8x8xf32>
    %cst_188 = arith.constant dense<0.000000e+00> : vector<8xf32>
    %401 = vector.multi_reduction <add>, %400, %cst_188 [1] : vector<8x8xf32> to vector<8xf32>
    %402 = vector.shape_cast %401 : vector<8xf32> to vector<8x1xf32>
    %403 = vector.broadcast %402 : vector<8x1xf32> to vector<8x8xf32>
    %404 = arith.divf %400, %403 : vector<8x8xf32>
    %405 = vector.extract_strided_slice %368 {offsets = [0, 16], sizes = [8, 16], strides = [1, 1]} : vector<8x64xf32> to vector<8x16xf32>
    %cst_189 = arith.constant dense<0.000000e+00> : vector<8x16xf32>
    %406 = tpu.matmul %404, %405, %cst_189 {dimension_numbers = #tpu.dot_dimension_numbers<[1], [0], [0], [1], [0, 0, 1, 1], [], []>} : vector<8x8xf32>, vector<8x16xf32>, vector<8x16xf32> -> vector<8x16xf32>
    %407 = vector.extract_strided_slice %360 {offsets = [0, 32], sizes = [8, 16], strides = [1, 1]} : vector<8x64xf32> to vector<8x16xf32>
    %408 = vector.extract_strided_slice %364 {offsets = [0, 32], sizes = [8, 16], strides = [1, 1]} : vector<8x64xf32> to vector<8x16xf32>
    %409 = tpu.transpose %408, [1, 0] : vector<8x16xf32> -> vector<16x8xf32>
    %cst_190 = arith.constant dense<0.000000e+00> : vector<8x8xf32>
    %410 = tpu.matmul %407, %409, %cst_190 {dimension_numbers = #tpu.dot_dimension_numbers<[1], [0], [0], [1], [0, 0, 1, 1], [], []>} : vector<8x16xf32>, vector<16x8xf32>, vector<8x8xf32> -> vector<8x8xf32>
    %cst_191 = arith.constant 2.500000e-01 : f32
    %411 = vector.broadcast %cst_191 : f32 to vector<8x8xf32>
    %412 = arith.mulf %410, %411 : vector<8x8xf32>
    %cst_192 = arith.constant dense<0xFF800000> : vector<8xf32>
    %413 = vector.multi_reduction <maximumf>, %412, %cst_192 [1] : vector<8x8xf32> to vector<8xf32>
    %cst_193 = arith.constant 0xFF800000 : f32
    %414 = vector.broadcast %cst_193 : f32 to vector<8xf32>
    %415 = arith.maximumf %414, %413 : vector<8xf32>
    %416 = vector.shape_cast %415 : vector<8xf32> to vector<8x1xf32>
    %417 = vector.broadcast %416 : vector<8x1xf32> to vector<8x8xf32>
    %418 = arith.subf %412, %417 : vector<8x8xf32>
    %419 = math.exp %418 : vector<8x8xf32>
    %cst_194 = arith.constant dense<0.000000e+00> : vector<8xf32>
    %420 = vector.multi_reduction <add>, %419, %cst_194 [1] : vector<8x8xf32> to vector<8xf32>
    %421 = vector.shape_cast %420 : vector<8xf32> to vector<8x1xf32>
    %422 = vector.broadcast %421 : vector<8x1xf32> to vector<8x8xf32>
    %423 = arith.divf %419, %422 : vector<8x8xf32>
    %424 = vector.extract_strided_slice %368 {offsets = [0, 32], sizes = [8, 16], strides = [1, 1]} : vector<8x64xf32> to vector<8x16xf32>
    %cst_195 = arith.constant dense<0.000000e+00> : vector<8x16xf32>
    %425 = tpu.matmul %423, %424, %cst_195 {dimension_numbers = #tpu.dot_dimension_numbers<[1], [0], [0], [1], [0, 0, 1, 1], [], []>} : vector<8x8xf32>, vector<8x16xf32>, vector<8x16xf32> -> vector<8x16xf32>
    %426 = vector.extract_strided_slice %360 {offsets = [0, 48], sizes = [8, 16], strides = [1, 1]} : vector<8x64xf32> to vector<8x16xf32>
    %427 = vector.extract_strided_slice %364 {offsets = [0, 48], sizes = [8, 16], strides = [1, 1]} : vector<8x64xf32> to vector<8x16xf32>
    %428 = tpu.transpose %427, [1, 0] : vector<8x16xf32> -> vector<16x8xf32>
    %cst_196 = arith.constant dense<0.000000e+00> : vector<8x8xf32>
    %429 = tpu.matmul %426, %428, %cst_196 {dimension_numbers = #tpu.dot_dimension_numbers<[1], [0], [0], [1], [0, 0, 1, 1], [], []>} : vector<8x16xf32>, vector<16x8xf32>, vector<8x8xf32> -> vector<8x8xf32>
    %cst_197 = arith.constant 2.500000e-01 : f32
    %430 = vector.broadcast %cst_197 : f32 to vector<8x8xf32>
    %431 = arith.mulf %429, %430 : vector<8x8xf32>
    %cst_198 = arith.constant dense<0xFF800000> : vector<8xf32>
    %432 = vector.multi_reduction <maximumf>, %431, %cst_198 [1] : vector<8x8xf32> to vector<8xf32>
    %cst_199 = arith.constant 0xFF800000 : f32
    %433 = vector.broadcast %cst_199 : f32 to vector<8xf32>
    %434 = arith.maximumf %433, %432 : vector<8xf32>
    %435 = vector.shape_cast %434 : vector<8xf32> to vector<8x1xf32>
    %436 = vector.broadcast %435 : vector<8x1xf32> to vector<8x8xf32>
    %437 = arith.subf %431, %436 : vector<8x8xf32>
    %438 = math.exp %437 : vector<8x8xf32>
    %cst_200 = arith.constant dense<0.000000e+00> : vector<8xf32>
    %439 = vector.multi_reduction <add>, %438, %cst_200 [1] : vector<8x8xf32> to vector<8xf32>
    %440 = vector.shape_cast %439 : vector<8xf32> to vector<8x1xf32>
    %441 = vector.broadcast %440 : vector<8x1xf32> to vector<8x8xf32>
    %442 = arith.divf %438, %441 : vector<8x8xf32>
    %443 = vector.extract_strided_slice %368 {offsets = [0, 48], sizes = [8, 16], strides = [1, 1]} : vector<8x64xf32> to vector<8x16xf32>
    %cst_201 = arith.constant dense<0.000000e+00> : vector<8x16xf32>
    %444 = tpu.matmul %442, %443, %cst_201 {dimension_numbers = #tpu.dot_dimension_numbers<[1], [0], [0], [1], [0, 0, 1, 1], [], []>} : vector<8x8xf32>, vector<8x16xf32>, vector<8x16xf32> -> vector<8x16xf32>
    %445 = tpu.concatenate %387, %406, %425, %444 in 1 : vector<8x16xf32>, vector<8x16xf32>, vector<8x16xf32>, vector<8x16xf32> -> vector<8x64xf32>
    %446 = math.tanh %445 : vector<8x64xf32>
    %c0_202 = arith.constant 0 : index
    %c0_203 = arith.constant 0 : index
    %447 = vector.load %arg50[%c0_202, %c0_203] : memref<64x64xbf16, #tpu.memory_space<vmem>>, vector<64x64xbf16>
    %c0_204 = arith.constant 0 : index
    %c0_205 = arith.constant 0 : index
    %448 = vector.load %arg51[%c0_204, %c0_205] : memref<1x64xf32, #tpu.memory_space<vmem>>, vector<1x64xf32>
    %c0_206 = arith.constant 0 : index
    %c0_207 = arith.constant 0 : index
    %449 = vector.load %arg52[%c0_206, %c0_207] : memref<64x64xbf16, #tpu.memory_space<vmem>>, vector<64x64xbf16>
    %c0_208 = arith.constant 0 : index
    %c0_209 = arith.constant 0 : index
    %450 = vector.load %arg53[%c0_208, %c0_209] : memref<1x64xf32, #tpu.memory_space<vmem>>, vector<1x64xf32>
    %c0_210 = arith.constant 0 : index
    %c0_211 = arith.constant 0 : index
    %451 = vector.load %arg54[%c0_210, %c0_211] : memref<64x64xbf16, #tpu.memory_space<vmem>>, vector<64x64xbf16>
    %c0_212 = arith.constant 0 : index
    %c0_213 = arith.constant 0 : index
    %452 = vector.load %arg55[%c0_212, %c0_213] : memref<1x64xf32, #tpu.memory_space<vmem>>, vector<1x64xf32>
    %453 = arith.truncf %350 : vector<8x64xf32> to vector<8x64xbf16>
    %cst_214 = arith.constant dense<0.000000e+00> : vector<8x64xf32>
    %454 = tpu.matmul %453, %447, %cst_214 {dimension_numbers = #tpu.dot_dimension_numbers<[1], [0], [0], [1], [0, 0, 1, 1], [], []>} : vector<8x64xbf16>, vector<64x64xbf16>, vector<8x64xf32> -> vector<8x64xf32>
    %455 = vector.broadcast %448 : vector<1x64xf32> to vector<8x64xf32>
    %456 = arith.addf %454, %455 : vector<8x64xf32>
    %457 = arith.truncf %350 : vector<8x64xf32> to vector<8x64xbf16>
    %cst_215 = arith.constant dense<0.000000e+00> : vector<8x64xf32>
    %458 = tpu.matmul %457, %449, %cst_215 {dimension_numbers = #tpu.dot_dimension_numbers<[1], [0], [0], [1], [0, 0, 1, 1], [], []>} : vector<8x64xbf16>, vector<64x64xbf16>, vector<8x64xf32> -> vector<8x64xf32>
    %459 = vector.broadcast %450 : vector<1x64xf32> to vector<8x64xf32>
    %460 = arith.addf %458, %459 : vector<8x64xf32>
    %461 = arith.truncf %350 : vector<8x64xf32> to vector<8x64xbf16>
    %cst_216 = arith.constant dense<0.000000e+00> : vector<8x64xf32>
    %462 = tpu.matmul %461, %451, %cst_216 {dimension_numbers = #tpu.dot_dimension_numbers<[1], [0], [0], [1], [0, 0, 1, 1], [], []>} : vector<8x64xbf16>, vector<64x64xbf16>, vector<8x64xf32> -> vector<8x64xf32>
    %463 = vector.broadcast %452 : vector<1x64xf32> to vector<8x64xf32>
    %464 = arith.addf %462, %463 : vector<8x64xf32>
    %465 = vector.extract_strided_slice %456 {offsets = [0, 0], sizes = [8, 16], strides = [1, 1]} : vector<8x64xf32> to vector<8x16xf32>
    %466 = vector.extract_strided_slice %460 {offsets = [0, 0], sizes = [8, 16], strides = [1, 1]} : vector<8x64xf32> to vector<8x16xf32>
    %467 = tpu.transpose %466, [1, 0] : vector<8x16xf32> -> vector<16x8xf32>
    %cst_217 = arith.constant dense<0.000000e+00> : vector<8x8xf32>
    %468 = tpu.matmul %465, %467, %cst_217 {dimension_numbers = #tpu.dot_dimension_numbers<[1], [0], [0], [1], [0, 0, 1, 1], [], []>} : vector<8x16xf32>, vector<16x8xf32>, vector<8x8xf32> -> vector<8x8xf32>
    %cst_218 = arith.constant 2.500000e-01 : f32
    %469 = vector.broadcast %cst_218 : f32 to vector<8x8xf32>
    %470 = arith.mulf %468, %469 : vector<8x8xf32>
    %cst_219 = arith.constant dense<0xFF800000> : vector<8xf32>
    %471 = vector.multi_reduction <maximumf>, %470, %cst_219 [1] : vector<8x8xf32> to vector<8xf32>
    %cst_220 = arith.constant 0xFF800000 : f32
    %472 = vector.broadcast %cst_220 : f32 to vector<8xf32>
    %473 = arith.maximumf %472, %471 : vector<8xf32>
    %474 = vector.shape_cast %473 : vector<8xf32> to vector<8x1xf32>
    %475 = vector.broadcast %474 : vector<8x1xf32> to vector<8x8xf32>
    %476 = arith.subf %470, %475 : vector<8x8xf32>
    %477 = math.exp %476 : vector<8x8xf32>
    %cst_221 = arith.constant dense<0.000000e+00> : vector<8xf32>
    %478 = vector.multi_reduction <add>, %477, %cst_221 [1] : vector<8x8xf32> to vector<8xf32>
    %479 = vector.shape_cast %478 : vector<8xf32> to vector<8x1xf32>
    %480 = vector.broadcast %479 : vector<8x1xf32> to vector<8x8xf32>
    %481 = arith.divf %477, %480 : vector<8x8xf32>
    %482 = vector.extract_strided_slice %464 {offsets = [0, 0], sizes = [8, 16], strides = [1, 1]} : vector<8x64xf32> to vector<8x16xf32>
    %cst_222 = arith.constant dense<0.000000e+00> : vector<8x16xf32>
    %483 = tpu.matmul %481, %482, %cst_222 {dimension_numbers = #tpu.dot_dimension_numbers<[1], [0], [0], [1], [0, 0, 1, 1], [], []>} : vector<8x8xf32>, vector<8x16xf32>, vector<8x16xf32> -> vector<8x16xf32>
    %484 = vector.extract_strided_slice %456 {offsets = [0, 16], sizes = [8, 16], strides = [1, 1]} : vector<8x64xf32> to vector<8x16xf32>
    %485 = vector.extract_strided_slice %460 {offsets = [0, 16], sizes = [8, 16], strides = [1, 1]} : vector<8x64xf32> to vector<8x16xf32>
    %486 = tpu.transpose %485, [1, 0] : vector<8x16xf32> -> vector<16x8xf32>
    %cst_223 = arith.constant dense<0.000000e+00> : vector<8x8xf32>
    %487 = tpu.matmul %484, %486, %cst_223 {dimension_numbers = #tpu.dot_dimension_numbers<[1], [0], [0], [1], [0, 0, 1, 1], [], []>} : vector<8x16xf32>, vector<16x8xf32>, vector<8x8xf32> -> vector<8x8xf32>
    %cst_224 = arith.constant 2.500000e-01 : f32
    %488 = vector.broadcast %cst_224 : f32 to vector<8x8xf32>
    %489 = arith.mulf %487, %488 : vector<8x8xf32>
    %cst_225 = arith.constant dense<0xFF800000> : vector<8xf32>
    %490 = vector.multi_reduction <maximumf>, %489, %cst_225 [1] : vector<8x8xf32> to vector<8xf32>
    %cst_226 = arith.constant 0xFF800000 : f32
    %491 = vector.broadcast %cst_226 : f32 to vector<8xf32>
    %492 = arith.maximumf %491, %490 : vector<8xf32>
    %493 = vector.shape_cast %492 : vector<8xf32> to vector<8x1xf32>
    %494 = vector.broadcast %493 : vector<8x1xf32> to vector<8x8xf32>
    %495 = arith.subf %489, %494 : vector<8x8xf32>
    %496 = math.exp %495 : vector<8x8xf32>
    %cst_227 = arith.constant dense<0.000000e+00> : vector<8xf32>
    %497 = vector.multi_reduction <add>, %496, %cst_227 [1] : vector<8x8xf32> to vector<8xf32>
    %498 = vector.shape_cast %497 : vector<8xf32> to vector<8x1xf32>
    %499 = vector.broadcast %498 : vector<8x1xf32> to vector<8x8xf32>
    %500 = arith.divf %496, %499 : vector<8x8xf32>
    %501 = vector.extract_strided_slice %464 {offsets = [0, 16], sizes = [8, 16], strides = [1, 1]} : vector<8x64xf32> to vector<8x16xf32>
    %cst_228 = arith.constant dense<0.000000e+00> : vector<8x16xf32>
    %502 = tpu.matmul %500, %501, %cst_228 {dimension_numbers = #tpu.dot_dimension_numbers<[1], [0], [0], [1], [0, 0, 1, 1], [], []>} : vector<8x8xf32>, vector<8x16xf32>, vector<8x16xf32> -> vector<8x16xf32>
    %503 = vector.extract_strided_slice %456 {offsets = [0, 32], sizes = [8, 16], strides = [1, 1]} : vector<8x64xf32> to vector<8x16xf32>
    %504 = vector.extract_strided_slice %460 {offsets = [0, 32], sizes = [8, 16], strides = [1, 1]} : vector<8x64xf32> to vector<8x16xf32>
    %505 = tpu.transpose %504, [1, 0] : vector<8x16xf32> -> vector<16x8xf32>
    %cst_229 = arith.constant dense<0.000000e+00> : vector<8x8xf32>
    %506 = tpu.matmul %503, %505, %cst_229 {dimension_numbers = #tpu.dot_dimension_numbers<[1], [0], [0], [1], [0, 0, 1, 1], [], []>} : vector<8x16xf32>, vector<16x8xf32>, vector<8x8xf32> -> vector<8x8xf32>
    %cst_230 = arith.constant 2.500000e-01 : f32
    %507 = vector.broadcast %cst_230 : f32 to vector<8x8xf32>
    %508 = arith.mulf %506, %507 : vector<8x8xf32>
    %cst_231 = arith.constant dense<0xFF800000> : vector<8xf32>
    %509 = vector.multi_reduction <maximumf>, %508, %cst_231 [1] : vector<8x8xf32> to vector<8xf32>
    %cst_232 = arith.constant 0xFF800000 : f32
    %510 = vector.broadcast %cst_232 : f32 to vector<8xf32>
    %511 = arith.maximumf %510, %509 : vector<8xf32>
    %512 = vector.shape_cast %511 : vector<8xf32> to vector<8x1xf32>
    %513 = vector.broadcast %512 : vector<8x1xf32> to vector<8x8xf32>
    %514 = arith.subf %508, %513 : vector<8x8xf32>
    %515 = math.exp %514 : vector<8x8xf32>
    %cst_233 = arith.constant dense<0.000000e+00> : vector<8xf32>
    %516 = vector.multi_reduction <add>, %515, %cst_233 [1] : vector<8x8xf32> to vector<8xf32>
    %517 = vector.shape_cast %516 : vector<8xf32> to vector<8x1xf32>
    %518 = vector.broadcast %517 : vector<8x1xf32> to vector<8x8xf32>
    %519 = arith.divf %515, %518 : vector<8x8xf32>
    %520 = vector.extract_strided_slice %464 {offsets = [0, 32], sizes = [8, 16], strides = [1, 1]} : vector<8x64xf32> to vector<8x16xf32>
    %cst_234 = arith.constant dense<0.000000e+00> : vector<8x16xf32>
    %521 = tpu.matmul %519, %520, %cst_234 {dimension_numbers = #tpu.dot_dimension_numbers<[1], [0], [0], [1], [0, 0, 1, 1], [], []>} : vector<8x8xf32>, vector<8x16xf32>, vector<8x16xf32> -> vector<8x16xf32>
    %522 = vector.extract_strided_slice %456 {offsets = [0, 48], sizes = [8, 16], strides = [1, 1]} : vector<8x64xf32> to vector<8x16xf32>
    %523 = vector.extract_strided_slice %460 {offsets = [0, 48], sizes = [8, 16], strides = [1, 1]} : vector<8x64xf32> to vector<8x16xf32>
    %524 = tpu.transpose %523, [1, 0] : vector<8x16xf32> -> vector<16x8xf32>
    %cst_235 = arith.constant dense<0.000000e+00> : vector<8x8xf32>
    %525 = tpu.matmul %522, %524, %cst_235 {dimension_numbers = #tpu.dot_dimension_numbers<[1], [0], [0], [1], [0, 0, 1, 1], [], []>} : vector<8x16xf32>, vector<16x8xf32>, vector<8x8xf32> -> vector<8x8xf32>
    %cst_236 = arith.constant 2.500000e-01 : f32
    %526 = vector.broadcast %cst_236 : f32 to vector<8x8xf32>
    %527 = arith.mulf %525, %526 : vector<8x8xf32>
    %cst_237 = arith.constant dense<0xFF800000> : vector<8xf32>
    %528 = vector.multi_reduction <maximumf>, %527, %cst_237 [1] : vector<8x8xf32> to vector<8xf32>
    %cst_238 = arith.constant 0xFF800000 : f32
    %529 = vector.broadcast %cst_238 : f32 to vector<8xf32>
    %530 = arith.maximumf %529, %528 : vector<8xf32>
    %531 = vector.shape_cast %530 : vector<8xf32> to vector<8x1xf32>
    %532 = vector.broadcast %531 : vector<8x1xf32> to vector<8x8xf32>
    %533 = arith.subf %527, %532 : vector<8x8xf32>
    %534 = math.exp %533 : vector<8x8xf32>
    %cst_239 = arith.constant dense<0.000000e+00> : vector<8xf32>
    %535 = vector.multi_reduction <add>, %534, %cst_239 [1] : vector<8x8xf32> to vector<8xf32>
    %536 = vector.shape_cast %535 : vector<8xf32> to vector<8x1xf32>
    %537 = vector.broadcast %536 : vector<8x1xf32> to vector<8x8xf32>
    %538 = arith.divf %534, %537 : vector<8x8xf32>
    %539 = vector.extract_strided_slice %464 {offsets = [0, 48], sizes = [8, 16], strides = [1, 1]} : vector<8x64xf32> to vector<8x16xf32>
    %cst_240 = arith.constant dense<0.000000e+00> : vector<8x16xf32>
    %540 = tpu.matmul %538, %539, %cst_240 {dimension_numbers = #tpu.dot_dimension_numbers<[1], [0], [0], [1], [0, 0, 1, 1], [], []>} : vector<8x8xf32>, vector<8x16xf32>, vector<8x16xf32> -> vector<8x16xf32>
    %541 = tpu.concatenate %483, %502, %521, %540 in 1 : vector<8x16xf32>, vector<8x16xf32>, vector<8x16xf32>, vector<8x16xf32> -> vector<8x64xf32>
    %542 = math.tanh %541 : vector<8x64xf32>
    %543 = tpu.concatenate %446, %542 in 1 : vector<8x64xf32>, vector<8x64xf32> -> vector<8x128xf32>
    %c0_241 = arith.constant 0 : index
    %c0_242 = arith.constant 0 : index
    %544 = vector.load %arg56[%c0_241, %c0_242] : memref<128x32xbf16, #tpu.memory_space<vmem>>, vector<128x32xbf16>
    %c0_243 = arith.constant 0 : index
    %c0_244 = arith.constant 0 : index
    %545 = vector.load %arg57[%c0_243, %c0_244] : memref<1x32xf32, #tpu.memory_space<vmem>>, vector<1x32xf32>
    %c0_245 = arith.constant 0 : index
    %c0_246 = arith.constant 0 : index
    %546 = vector.load %arg58[%c0_245, %c0_246] : memref<1x32xf32, #tpu.memory_space<vmem>>, vector<1x32xf32>
    %c0_247 = arith.constant 0 : index
    %c0_248 = arith.constant 0 : index
    %547 = vector.load %arg12[%c0_247, %c0_248] : memref<1x8xf32, #tpu.memory_space<vmem>>, vector<1x8xf32>
    %548 = arith.truncf %543 : vector<8x128xf32> to vector<8x128xbf16>
    %cst_249 = arith.constant dense<0.000000e+00> : vector<8x32xf32>
    %549 = tpu.matmul %548, %544, %cst_249 {dimension_numbers = #tpu.dot_dimension_numbers<[1], [0], [0], [1], [0, 0, 1, 1], [], []>} : vector<8x128xbf16>, vector<128x32xbf16>, vector<8x32xf32> -> vector<8x32xf32>
    %550 = vector.broadcast %545 : vector<1x32xf32> to vector<8x32xf32>
    %551 = arith.addf %549, %550 : vector<8x32xf32>
    %552 = math.tanh %551 : vector<8x32xf32>
    %553 = vector.broadcast %546 : vector<1x32xf32> to vector<8x32xf32>
    %554 = arith.mulf %552, %553 : vector<8x32xf32>
    %cst_250 = arith.constant dense<0.000000e+00> : vector<8xf32>
    %555 = vector.multi_reduction <add>, %554, %cst_250 [1] : vector<8x32xf32> to vector<8xf32>
    %556 = vector.shape_cast %555 : vector<8xf32> to vector<8x1xf32>
    %cst_251 = arith.constant dense<0xFF800000> : vector<1xf32>
    %557 = vector.multi_reduction <maximumf>, %556, %cst_251 [0] : vector<8x1xf32> to vector<1xf32>
    %558 = vector.shape_cast %557 : vector<1xf32> to vector<1x1xf32>
    %559 = vector.broadcast %558 : vector<1x1xf32> to vector<8x1xf32>
    %560 = arith.subf %556, %559 : vector<8x1xf32>
    %561 = math.exp %560 : vector<8x1xf32>
    %562 = vector.broadcast %561 : vector<8x1xf32> to vector<8x128xf32>
    %563 = arith.mulf %562, %543 : vector<8x128xf32>
    %cst_252 = arith.constant dense<0.000000e+00> : vector<1x128xf32>
    %564 = tpu.matmul %547, %563, %cst_252 {dimension_numbers = #tpu.dot_dimension_numbers<[1], [0], [0], [1], [0, 0, 1, 1], [], []>} : vector<1x8xf32>, vector<8x128xf32>, vector<1x128xf32> -> vector<1x128xf32>
    %cst_253 = arith.constant dense<0.000000e+00> : vector<1x1xf32>
    %565 = tpu.matmul %547, %561, %cst_253 {dimension_numbers = #tpu.dot_dimension_numbers<[1], [0], [0], [1], [0, 0, 1, 1], [], []>} : vector<1x8xf32>, vector<8x1xf32>, vector<1x1xf32> -> vector<1x1xf32>
    %566 = tpu.reciprocal %565 : vector<1x1xf32> -> vector<1x1xf32>
    %567 = vector.broadcast %566 : vector<1x1xf32> to vector<1x128xf32>
    %568 = arith.mulf %564, %567 : vector<1x128xf32>
    %569 = math.tanh %568 : vector<1x128xf32>
    %c0_254 = arith.constant 0 : index
    %c0_255 = arith.constant 0 : index
    %570 = vector.load %arg59[%c0_254, %c0_255] : memref<1x128xf32, #tpu.memory_space<vmem>>, vector<1x128xf32>
    tpu.vector_store %arg59[%c0_254, %c0_255], %569 {strides = array<i32>} : memref<1x128xf32, #tpu.memory_space<vmem>>, vector<1x128xf32>,
    return
  }
}

</mosaic_0001>

<llo_original>
// kernel: tile.9
$region0: #{tile.9}
  %s0 = inlined_call_operand.vmem [shape: f32[8,4,8], index: 0, kind: input, shape index: {}]
  %s1 = inlined_call_operand.vmem [shape: f32[8,32], index: 1, kind: output, shape index: {}]
  $region1: #{tile.9} parent=0
    #allocation0 [shape = 'u8[32768]{0}', space=vmem, size = 0x8000, scoped, tag = 'scoped mem for input reshape']
    %s3 = sshllo.u32 0, 4
    %s4 = smul.addr 4, 7
    %s5 = scalar_lea.vmem %s0, %s4
    %v6 = vld [vmem:[%s5] sm:%s3]
    %s7 = scalar_lea.vmem [#allocation0], 56
    %8 = vst [vmem:[%s7] sm:%s3] %v6
    %s9 = smul.addr 4, 6
    %s10 = scalar_lea.vmem %s0, %s9
    %v11 = vld [vmem:[%s10] sm:%s3]
    %s12 = scalar_lea.vmem [#allocation0], 48
    %13 = vst [vmem:[%s12] sm:%s3] %v11
    %s14 = smul.addr 4, 5
    %s15 = scalar_lea.vmem %s0, %s14
    %v16 = vld [vmem:[%s15] sm:%s3]
    %s17 = scalar_lea.vmem [#allocation0], 40
    %18 = vst [vmem:[%s17] sm:%s3] %v16
    %s19 = smul.addr 4, 4
    %s20 = scalar_lea.vmem %s0, %s19
    %v21 = vld [vmem:[%s20] sm:%s3]
    %s22 = scalar_lea.vmem [#allocation0], 32
    %23 = vst [vmem:[%s22] sm:%s3] %v21
    %s24 = smul.addr 4, 3
    %s25 = scalar_lea.vmem %s0, %s24
    %v26 = vld [vmem:[%s25] sm:%s3]
    %s27 = scalar_lea.vmem [#allocation0], 24
    %28 = vst [vmem:[%s27] sm:%s3] %v26
    %s29 = smul.addr 4, 2
    %s30 = scalar_lea.vmem %s0, %s29
    %v31 = vld [vmem:[%s30] sm:%s3]
    %s32 = scalar_lea.vmem [#allocation0], 16
    %33 = vst [vmem:[%s32] sm:%s3] %v31
    %s34 = scalar_lea.vmem %s0, 4
    %v35 = vld [vmem:[%s34] sm:%s3]
    %s36 = scalar_lea.vmem [#allocation0], 8
    %37 = vst [vmem:[%s36] sm:%s3] %v35
    %v38 = vld [vmem:[%s0] sm:%s3]
    %39 = vst [vmem:[#allocation0] sm:%s3] %v38
    %v40 = vld [vmem:[#allocation0] ss:$8 sm:$0xf]
    %v41 = vld [vmem:[#allocation0] ss:$8 sm:$0xf0]
    %vm42 = vcmask 1047556
    %v43 = vsel %vm42, %v41, %v40
    %vm44 = vcmask 64512
    %45 = vst.msk [vmem:[%s1] sm:$0xff] %vm44, %v43
    %s46 = scalar_lea.vmem [#allocation0], 3
    %v47 = vld [vmem:[%s46] ss:$8 sm:$0xf]
    %s48 = scalar_lea.vmem [#allocation0], 3
    %v49 = vld [vmem:[%s48] ss:$8 sm:$0xf0]
    %vm50 = vcmask 1047556
    %v51 = vsel %vm50, %v49, %v47
    %52 = vrot.lane.b32.xlu0 %v51, 24
    %v53 = vpop.permute.xlu0 %52
    %vm54 = vcmask 261312
    %55 = vst.msk [vmem:[%s1] sm:$0xff] %vm54, %v53
    %s56 = scalar_lea.vmem [#allocation0], 2
    %v57 = vld [vmem:[%s56] ss:$8 sm:$0xf]
    %s58 = scalar_lea.vmem [#allocation0], 2
    %v59 = vld [vmem:[%s58] ss:$8 sm:$0xf0]
    %vm60 = vcmask 1047556
    %v61 = vsel %vm60, %v59, %v57
    %62 = vrot.lane.b32.xlu0 %v61, 16
    %v63 = vpop.permute.xlu0 %62
    %vm64 = vcmask 195712
    %65 = vst.msk [vmem:[%s1] sm:$0xff] %vm64, %v63
    %s66 = scalar_lea.vmem [#allocation0], 1
    %v67 = vld [vmem:[%s66] ss:$8 sm:$0xf]
    %s68 = scalar_lea.vmem [#allocation0], 1
    %v69 = vld [vmem:[%s68] ss:$8 sm:$0xf0]
    %vm70 = vcmask 1047556
    %v71 = vsel %vm70, %v69, %v67
    %72 = vrot.lane.b32.xlu0 %v71, 8
    %v73 = vpop.permute.xlu0 %72
    %vm74 = vcmask 130112
    %75 = vst.msk [vmem:[%s1] sm:$0xff] %vm74, %v73

// kernel: user_encoder_forward.1
$region0: #{user_encoder_forward.1}
  #allocation0 [shape = 'u32[]', space=smem, size = 0x4, offset = 0x4, fixed_abs, tag = 'smem constant byte address 0x4 - core index']
  #allocation1 [shape = 'u32[144,128]{1,0:T(1,128)}', space=vmem, size = 0x12000, scoped, tag = 'internal scratch']
  #allocation2 [shape = 'f32[1,1]{1,0:T(1,128)S(1)}', space=vmem, size = 0x200, scoped, tag = 'scoped memory for user_encoder_forward.1']
  %s0 = inlined_call_operand.smem [shape: u32[60], index: -1, kind: input, shape index: {}]
  %s1 = sld [smem:[%s0]]
  %s2 = scalar_lea.smem %s0, 1
  %s3 = sld [smem:[%s2]]
  %s4 = scalar_lea.smem %s0, 2
  %s5 = sld [smem:[%s4]]
  %s6 = scalar_lea.smem %s0, 3
  %s7 = sld [smem:[%s6]]
  %s8 = scalar_lea.smem %s0, 4
  %s9 = sld [smem:[%s8]]
  %s10 = scalar_lea.smem %s0, 5
  %s11 = sld [smem:[%s10]]
  %s12 = scalar_lea.smem %s0, 6
  %s13 = sld [smem:[%s12]]
  %s14 = scalar_lea.smem %s0, 7
  %s15 = sld [smem:[%s14]]
  %s16 = scalar_lea.smem %s0, 8
  %s17 = sld [smem:[%s16]]
  %s18 = scalar_lea.smem %s0, 9
  %s19 = sld [smem:[%s18]]
  %s20 = scalar_lea.smem %s0, 10
  %s21 = sld [smem:[%s20]]
  %s22 = scalar_lea.smem %s0, 11
  %s23 = sld [smem:[%s22]]
  %s24 = scalar_lea.smem %s0, 12
  %s25 = sld [smem:[%s24]]
  %s26 = scalar_lea.smem %s0, 13
  %s27 = sld [smem:[%s26]]
  %s28 = scalar_lea.smem %s0, 14
  %s29 = sld [smem:[%s28]]
  %s30 = scalar_lea.smem %s0, 15
  %s31 = sld [smem:[%s30]]
  %s32 = scalar_lea.smem %s0, 16
  %s33 = sld [smem:[%s32]]
  %s34 = scalar_lea.smem %s0, 17
  %s35 = sld [smem:[%s34]]
  %s36 = scalar_lea.smem %s0, 18
  %s37 = sld [smem:[%s36]]
  %s38 = scalar_lea.smem %s0, 19
  %s39 = sld [smem:[%s38]]
  %s40 = scalar_lea.smem %s0, 20
  %s41 = sld [smem:[%s40]]
  %s42 = scalar_lea.smem %s0, 21
  %s43 = sld [smem:[%s42]]
  %s44 = scalar_lea.smem %s0, 22
  %s45 = sld [smem:[%s44]]
  %s46 = scalar_lea.smem %s0, 23
  %s47 = sld [smem:[%s46]]
  %s48 = scalar_lea.smem %s0, 24
  %s49 = sld [smem:[%s48]]
  %s50 = scalar_lea.smem %s0, 25
  %s51 = sld [smem:[%s50]]
  %s52 = scalar_lea.smem %s0, 26
  %s53 = sld [smem:[%s52]]
  %s54 = scalar_lea.smem %s0, 27
  %s55 = sld [smem:[%s54]]
  %s56 = scalar_lea.smem %s0, 28
  %s57 = sld [smem:[%s56]]
  %s58 = scalar_lea.smem %s0, 29
  %s59 = sld [smem:[%s58]]
  %s60 = scalar_lea.smem %s0, 30
  %s61 = sld [smem:[%s60]]
  %s62 = scalar_lea.smem %s0, 31
  %s63 = sld [smem:[%s62]]
  %s64 = scalar_lea.smem %s0, 32
  %s65 = sld [smem:[%s64]]
  %s66 = scalar_lea.smem %s0, 33
  %s67 = sld [smem:[%s66]]
  %s68 = scalar_lea.smem %s0, 34
  %s69 = sld [smem:[%s68]]
  %s70 = scalar_lea.smem %s0, 35
  %s71 = sld [smem:[%s70]]
  %s72 = scalar_lea.smem %s0, 36
  %s73 = sld [smem:[%s72]]
  %s74 = scalar_lea.smem %s0, 37
  %s75 = sld [smem:[%s74]]
  %s76 = scalar_lea.smem %s0, 38
  %s77 = sld [smem:[%s76]]
  %s78 = scalar_lea.smem %s0, 39
  %s79 = sld [smem:[%s78]]
  %s80 = scalar_lea.smem %s0, 40
  %s81 = sld [smem:[%s80]]
  %s82 = scalar_lea.smem %s0, 41
  %s83 = sld [smem:[%s82]]
  %s84 = scalar_lea.smem %s0, 42
  %s85 = sld [smem:[%s84]]
  %s86 = scalar_lea.smem %s0, 43
  %s87 = sld [smem:[%s86]]
  %s88 = scalar_lea.smem %s0, 44
  %s89 = sld [smem:[%s88]]
  %s90 = scalar_lea.smem %s0, 45
  %s91 = sld [smem:[%s90]]
  %s92 = scalar_lea.smem %s0, 46
  %s93 = sld [smem:[%s92]]
  %s94 = scalar_lea.smem %s0, 47
  %s95 = sld [smem:[%s94]]
  %s96 = scalar_lea.smem %s0, 48
  %s97 = sld [smem:[%s96]]
  %s98 = scalar_lea.smem %s0, 49
  %s99 = sld [smem:[%s98]]
  %s100 = scalar_lea.smem %s0, 50
  %s101 = sld [smem:[%s100]]
  %s102 = scalar_lea.smem %s0, 51
  %s103 = sld [smem:[%s102]]
  %s104 = scalar_lea.smem %s0, 52
  %s105 = sld [smem:[%s104]]
  %s106 = scalar_lea.smem %s0, 53
  %s107 = sld [smem:[%s106]]
  %s108 = scalar_lea.smem %s0, 54
  %s109 = sld [smem:[%s108]]
  %s110 = scalar_lea.smem %s0, 55
  %s111 = sld [smem:[%s110]]
  %s112 = scalar_lea.smem %s0, 56
  %s113 = sld [smem:[%s112]]
  %s114 = scalar_lea.smem %s0, 57
  %s115 = sld [smem:[%s114]]
  %s116 = scalar_lea.smem %s0, 58
  %s117 = sld [smem:[%s116]]
  %s118 = scalar_lea.smem %s0, 59
  %s119 = sld [smem:[%s118]]
  %s120 = sld [smem:[#allocation0]]
  $region246: #{user_encoder_forward.1} parent=0
    _
  %s122 = ssub.s32 1, %s120
  %s123 = scalar_select 0, %s122, %s120
  %v124 = vstv %s63
  %125 = vst [vmem:[#allocation2] sm:$0x1] %v124
  $region1: #{user_encoder_forward.1} parent=0
    #allocation3 [shape = 'u8[512]{0}', space=vmem, size = 0x400, scoped, tag = 'output window, operand 0, single buffered']
    #allocation4 [shape = 's32[1]{0}', space=sflag, size = 0x4, scoped, tag = 'scoped memory for user_encoder_forward.1']
    %126 = vsyncpa [#allocation4], 0
    // Predicated region
    $region2: #{user_encoder_forward.1} parent=1 // pred_check
      _
    $region3: #{user_encoder_forward.1} parent=1 // pred_check_branch
      %128 = sbr.rel (0) target = $region5
    $region4: #{user_encoder_forward.1} parent=1 // pred_region
      _
    $region5: #{user_encoder_forward.1} parent=1 // pred_fallthru
      _
    // Predicated region
    $region6: #{user_encoder_forward.1} parent=1 // pred_check
      _
    $region7: #{user_encoder_forward.1} parent=1 // pred_check_branch
      %130 = sbr.rel (0) target = $region9
    $region8: #{user_encoder_forward.1} parent=1 // pred_region
      _
    $region9: #{user_encoder_forward.1} parent=1 // pred_fallthru
      _
    // Predicated region
    $region10: #{user_encoder_forward.1} parent=1 // pred_check
      _
    $region11: #{user_encoder_forward.1} parent=1 // pred_check_branch
      %132 = sbr.rel (0) target = $region13
    $region12: #{user_encoder_forward.1} parent=1 // pred_region
      _
    $region13: #{user_encoder_forward.1} parent=1 // pred_fallthru
      _
    // Predicated region
    $region14: #{user_encoder_forward.1} parent=1 // pred_check
      _
    $region15: #{user_encoder_forward.1} parent=1 // pred_check_branch
      %134 = sbr.rel (0) target = $region17
    $region16: #{user_encoder_forward.1} parent=1 // pred_region
      _
    $region17: #{user_encoder_forward.1} parent=1 // pred_fallthru
      _
    // Predicated region
    $region18: #{user_encoder_forward.1} parent=1 // pred_check
      _
    $region19: #{user_encoder_forward.1} parent=1 // pred_check_branch
      %136 = sbr.rel (0) target = $region21
    $region20: #{user_encoder_forward.1} parent=1 // pred_region
      _
    $region21: #{user_encoder_forward.1} parent=1 // pred_fallthru
      _
    // Predicated region
    $region22: #{user_encoder_forward.1} parent=1 // pred_check
      _
    $region23: #{user_encoder_forward.1} parent=1 // pred_check_branch
      %138 = sbr.rel (0) target = $region25
    $region24: #{user_encoder_forward.1} parent=1 // pred_region
      _
    $region25: #{user_encoder_forward.1} parent=1 // pred_fallthru
      _
    // Predicated region
    $region26: #{user_encoder_forward.1} parent=1 // pred_check
      _
    $region27: #{user_encoder_forward.1} parent=1 // pred_check_branch
      %140 = sbr.rel (0) target = $region29
    $region28: #{user_encoder_forward.1} parent=1 // pred_region
      _
    $region29: #{user_encoder_forward.1} parent=1 // pred_fallthru
      _
    // Predicated region
    $region30: #{user_encoder_forward.1} parent=1 // pred_check
      _
    $region31: #{user_encoder_forward.1} parent=1 // pred_check_branch
      %142 = sbr.rel (0) target = $region33
    $region32: #{user_encoder_forward.1} parent=1 // pred_region
      _
    $region33: #{user_encoder_forward.1} parent=1 // pred_fallthru
      _
    // Predicated region
    $region34: #{user_encoder_forward.1} parent=1 // pred_check
      _
    $region35: #{user_encoder_forward.1} parent=1 // pred_check_branch
      %144 = sbr.rel (0) target = $region37
    $region36: #{user_encoder_forward.1} parent=1 // pred_region
      _
    $region37: #{user_encoder_forward.1} parent=1 // pred_fallthru
      _
    // Predicated region
    $region38: #{user_encoder_forward.1} parent=1 // pred_check
      _
    $region39: #{user_encoder_forward.1} parent=1 // pred_check_branch
      %146 = sbr.rel (0) target = $region41
    $region40: #{user_encoder_forward.1} parent=1 // pred_region
      _
    $region41: #{user_encoder_forward.1} parent=1 // pred_fallthru
      _
    // Predicated region
    $region42: #{user_encoder_forward.1} parent=1 // pred_check
      _
    $region43: #{user_encoder_forward.1} parent=1 // pred_check_branch
      %148 = sbr.rel (0) target = $region45
    $region44: #{user_encoder_forward.1} parent=1 // pred_region
      _
    $region45: #{user_encoder_forward.1} parent=1 // pred_fallthru
      _
    // Predicated region
    $region46: #{user_encoder_forward.1} parent=1 // pred_check
      _
    $region47: #{user_encoder_forward.1} parent=1 // pred_check_branch
      %150 = sbr.rel (0) target = $region49
    $region48: #{user_encoder_forward.1} parent=1 // pred_region
      _
    $region49: #{user_encoder_forward.1} parent=1 // pred_fallthru
      _
    // Predicated region
    $region50: #{user_encoder_forward.1} parent=1 // pred_check
      _
    $region51: #{user_encoder_forward.1} parent=1 // pred_check_branch
      %152 = sbr.rel (0) target = $region53
    $region52: #{user_encoder_forward.1} parent=1 // pred_region
      _
    $region53: #{user_encoder_forward.1} parent=1 // pred_fallthru
      _
    // Predicated region
    $region54: #{user_encoder_forward.1} parent=1 // pred_check
      _
    $region55: #{user_encoder_forward.1} parent=1 // pred_check_branch
      %154 = sbr.rel (0) target = $region57
    $region56: #{user_encoder_forward.1} parent=1 // pred_region
      _
    $region57: #{user_encoder_forward.1} parent=1 // pred_fallthru
      _
    // Predicated region
    $region58: #{user_encoder_forward.1} parent=1 // pred_check
      _
    $region59: #{user_encoder_forward.1} parent=1 // pred_check_branch
      %156 = sbr.rel (0) target = $region61
    $region60: #{user_encoder_forward.1} parent=1 // pred_region
      _
    $region61: #{user_encoder_forward.1} parent=1 // pred_fallthru
      _
    // Predicated region
    $region62: #{user_encoder_forward.1} parent=1 // pred_check
      _
    $region63: #{user_encoder_forward.1} parent=1 // pred_check_branch
      %158 = sbr.rel (0) target = $region65
    $region64: #{user_encoder_forward.1} parent=1 // pred_region
      _
    $region65: #{user_encoder_forward.1} parent=1 // pred_fallthru
      _
    // Predicated region
    $region66: #{user_encoder_forward.1} parent=1 // pred_check
      _
    $region67: #{user_encoder_forward.1} parent=1 // pred_check_branch
      %160 = sbr.rel (0) target = $region69
    $region68: #{user_encoder_forward.1} parent=1 // pred_region
      _
    $region69: #{user_encoder_forward.1} parent=1 // pred_fallthru
      _
    // Predicated region
    $region70: #{user_encoder_forward.1} parent=1 // pred_check
      _
    $region71: #{user_encoder_forward.1} parent=1 // pred_check_branch
      %162 = sbr.rel (0) target = $region73
    $region72: #{user_encoder_forward.1} parent=1 // pred_region
      _
    $region73: #{user_encoder_forward.1} parent=1 // pred_fallthru
      _
    // Predicated region
    $region74: #{user_encoder_forward.1} parent=1 // pred_check
      _
    $region75: #{user_encoder_forward.1} parent=1 // pred_check_branch
      %164 = sbr.rel (0) target = $region77
    $region76: #{user_encoder_forward.1} parent=1 // pred_region
      _
    $region77: #{user_encoder_forward.1} parent=1 // pred_fallthru
      _
    // Predicated region
    $region78: #{user_encoder_forward.1} parent=1 // pred_check
      _
    $region79: #{user_encoder_forward.1} parent=1 // pred_check_branch
      %166 = sbr.rel (0) target = $region81
    $region80: #{user_encoder_forward.1} parent=1 // pred_region
      _
    $region81: #{user_encoder_forward.1} parent=1 // pred_fallthru
      _
    // Predicated region
    $region82: #{user_encoder_forward.1} parent=1 // pred_check
      _
    $region83: #{user_encoder_forward.1} parent=1 // pred_check_branch
      %168 = sbr.rel (0) target = $region85
    $region84: #{user_encoder_forward.1} parent=1 // pred_region
      _
    $region85: #{user_encoder_forward.1} parent=1 // pred_fallthru
      _
    // Predicated region
    $region86: #{user_encoder_forward.1} parent=1 // pred_check
      _
    $region87: #{user_encoder_forward.1} parent=1 // pred_check_branch
      %170 = sbr.rel (0) target = $region89
    $region88: #{user_encoder_forward.1} parent=1 // pred_region
      _
    $region89: #{user_encoder_forward.1} parent=1 // pred_fallthru
      _
    // Predicated region
    $region90: #{user_encoder_forward.1} parent=1 // pred_check
      _
    $region91: #{user_encoder_forward.1} parent=1 // pred_check_branch
      %172 = sbr.rel (0) target = $region93
    $region92: #{user_encoder_forward.1} parent=1 // pred_region
      _
    $region93: #{user_encoder_forward.1} parent=1 // pred_fallthru
      _
    // Predicated region
    $region94: #{user_encoder_forward.1} parent=1 // pred_check
      _
    $region95: #{user_encoder_forward.1} parent=1 // pred_check_branch
      %174 = sbr.rel (0) target = $region97
    $region96: #{user_encoder_forward.1} parent=1 // pred_region
      _
    $region97: #{user_encoder_forward.1} parent=1 // pred_fallthru
      _
    // Predicated region
    $region98: #{user_encoder_forward.1} parent=1 // pred_check
      _
    $region99: #{user_encoder_forward.1} parent=1 // pred_check_branch
      %176 = sbr.rel (0) target = $region101
    $region100: #{user_encoder_forward.1} parent=1 // pred_region
      _
    $region101: #{user_encoder_forward.1} parent=1 // pred_fallthru
      _
    // Predicated region
    $region102: #{user_encoder_forward.1} parent=1 // pred_check
      _
    $region103: #{user_encoder_forward.1} parent=1 // pred_check_branch
      %178 = sbr.rel (0) target = $region105
    $region104: #{user_encoder_forward.1} parent=1 // pred_region
      _
    $region105: #{user_encoder_forward.1} parent=1 // pred_fallthru
      _
    // Predicated region
    $region106: #{user_encoder_forward.1} parent=1 // pred_check
      _
    $region107: #{user_encoder_forward.1} parent=1 // pred_check_branch
      %180 = sbr.rel (0) target = $region109
    $region108: #{user_encoder_forward.1} parent=1 // pred_region
      _
    $region109: #{user_encoder_forward.1} parent=1 // pred_fallthru
      _
    // Predicated region
    $region110: #{user_encoder_forward.1} parent=1 // pred_check
      _
    $region111: #{user_encoder_forward.1} parent=1 // pred_check_branch
      %182 = sbr.rel (0) target = $region113
    $region112: #{user_encoder_forward.1} parent=1 // pred_region
      _
    $region113: #{user_encoder_forward.1} parent=1 // pred_fallthru
      _
    // Predicated region
    $region114: #{user_encoder_forward.1} parent=1 // pred_check
      _
    $region115: #{user_encoder_forward.1} parent=1 // pred_check_branch
      %184 = sbr.rel (0) target = $region117
    $region116: #{user_encoder_forward.1} parent=1 // pred_region
      _
    $region117: #{user_encoder_forward.1} parent=1 // pred_fallthru
      _
    // Predicated region
    $region118: #{user_encoder_forward.1} parent=1 // pred_check
      _
    $region119: #{user_encoder_forward.1} parent=1 // pred_check_branch
      %186 = sbr.rel (0) target = $region121
    $region120: #{user_encoder_forward.1} parent=1 // pred_region
      _
    $region121: #{user_encoder_forward.1} parent=1 // pred_fallthru
      _
    // Predicated region
    $region122: #{user_encoder_forward.1} parent=1 // pred_check
      _
    $region123: #{user_encoder_forward.1} parent=1 // pred_check_branch
      %188 = sbr.rel (0) target = $region125
    $region124: #{user_encoder_forward.1} parent=1 // pred_region
      _
    $region125: #{user_encoder_forward.1} parent=1 // pred_fallthru
      _
    // Predicated region
    $region126: #{user_encoder_forward.1} parent=1 // pred_check
      _
    $region127: #{user_encoder_forward.1} parent=1 // pred_check_branch
      %190 = sbr.rel (0) target = $region129
    $region128: #{user_encoder_forward.1} parent=1 // pred_region
      _
    $region129: #{user_encoder_forward.1} parent=1 // pred_fallthru
      _
    // Predicated region
    $region130: #{user_encoder_forward.1} parent=1 // pred_check
      _
    $region131: #{user_encoder_forward.1} parent=1 // pred_check_branch
      %192 = sbr.rel (0) target = $region133
    $region132: #{user_encoder_forward.1} parent=1 // pred_region
      _
    $region133: #{user_encoder_forward.1} parent=1 // pred_fallthru
      _
    // Predicated region
    $region134: #{user_encoder_forward.1} parent=1 // pred_check
      _
    $region135: #{user_encoder_forward.1} parent=1 // pred_check_branch
      %194 = sbr.rel (0) target = $region137
    $region136: #{user_encoder_forward.1} parent=1 // pred_region
      _
    $region137: #{user_encoder_forward.1} parent=1 // pred_fallthru
      _
    // Predicated region
    $region138: #{user_encoder_forward.1} parent=1 // pred_check
      _
    $region139: #{user_encoder_forward.1} parent=1 // pred_check_branch
      %196 = sbr.rel (0) target = $region141
    $region140: #{user_encoder_forward.1} parent=1 // pred_region
      _
    $region141: #{user_encoder_forward.1} parent=1 // pred_fallthru
      _
    // Predicated region
    $region142: #{user_encoder_forward.1} parent=1 // pred_check
      _
    $region143: #{user_encoder_forward.1} parent=1 // pred_check_branch
      %198 = sbr.rel (0) target = $region145
    $region144: #{user_encoder_forward.1} parent=1 // pred_region
      _
    $region145: #{user_encoder_forward.1} parent=1 // pred_fallthru
      _
    // Predicated region
    $region146: #{user_encoder_forward.1} parent=1 // pred_check
      _
    $region147: #{user_encoder_forward.1} parent=1 // pred_check_branch
      %200 = sbr.rel (0) target = $region149
    $region148: #{user_encoder_forward.1} parent=1 // pred_region
      _
    $region149: #{user_encoder_forward.1} parent=1 // pred_fallthru
      _
    // Predicated region
    $region150: #{user_encoder_forward.1} parent=1 // pred_check
      _
    $region151: #{user_encoder_forward.1} parent=1 // pred_check_branch
      %202 = sbr.rel (0) target = $region153
    $region152: #{user_encoder_forward.1} parent=1 // pred_region
      _
    $region153: #{user_encoder_forward.1} parent=1 // pred_fallthru
      _
    // Predicated region
    $region154: #{user_encoder_forward.1} parent=1 // pred_check
      _
    $region155: #{user_encoder_forward.1} parent=1 // pred_check_branch
      %204 = sbr.rel (0) target = $region157
    $region156: #{user_encoder_forward.1} parent=1 // pred_region
      _
    $region157: #{user_encoder_forward.1} parent=1 // pred_fallthru
      _
    // Predicated region
    $region158: #{user_encoder_forward.1} parent=1 // pred_check
      _
    $region159: #{user_encoder_forward.1} parent=1 // pred_check_branch
      %206 = sbr.rel (0) target = $region161
    $region160: #{user_encoder_forward.1} parent=1 // pred_region
      _
    $region161: #{user_encoder_forward.1} parent=1 // pred_fallthru
      _
    // Predicated region
    $region162: #{user_encoder_forward.1} parent=1 // pred_check
      _
    $region163: #{user_encoder_forward.1} parent=1 // pred_check_branch
      %208 = sbr.rel (0) target = $region165
    $region164: #{user_encoder_forward.1} parent=1 // pred_region
      _
    $region165: #{user_encoder_forward.1} parent=1 // pred_fallthru
      _
    // Predicated region
    $region166: #{user_encoder_forward.1} parent=1 // pred_check
      _
    $region167: #{user_encoder_forward.1} parent=1 // pred_check_branch
      %210 = sbr.rel (0) target = $region169
    $region168: #{user_encoder_forward.1} parent=1 // pred_region
      _
    $region169: #{user_encoder_forward.1} parent=1 // pred_fallthru
      _
    // Predicated region
    $region170: #{user_encoder_forward.1} parent=1 // pred_check
      _
    $region171: #{user_encoder_forward.1} parent=1 // pred_check_branch
      %212 = sbr.rel (0) target = $region173
    $region172: #{user_encoder_forward.1} parent=1 // pred_region
      _
    $region173: #{user_encoder_forward.1} parent=1 // pred_fallthru
      _
    // Predicated region
    $region174: #{user_encoder_forward.1} parent=1 // pred_check
      _
    $region175: #{user_encoder_forward.1} parent=1 // pred_check_branch
      %214 = sbr.rel (0) target = $region177
    $region176: #{user_encoder_forward.1} parent=1 // pred_region
      _
    $region177: #{user_encoder_forward.1} parent=1 // pred_fallthru
      _
    // Predicated region
    $region178: #{user_encoder_forward.1} parent=1 // pred_check
      _
    $region179: #{user_encoder_forward.1} parent=1 // pred_check_branch
      %216 = sbr.rel (0) target = $region181
    $region180: #{user_encoder_forward.1} parent=1 // pred_region
      _
    $region181: #{user_encoder_forward.1} parent=1 // pred_fallthru
      _
    // Predicated region
    $region182: #{user_encoder_forward.1} parent=1 // pred_check
      _
    $region183: #{user_encoder_forward.1} parent=1 // pred_check_branch
      %218 = sbr.rel (0) target = $region185
    $region184: #{user_encoder_forward.1} parent=1 // pred_region
      _
    $region185: #{user_encoder_forward.1} parent=1 // pred_fallthru
      _
    // Predicated region
    $region186: #{user_encoder_forward.1} parent=1 // pred_check
      _
    $region187: #{user_encoder_forward.1} parent=1 // pred_check_branch
      %220 = sbr.rel (0) target = $region189
    $region188: #{user_encoder_forward.1} parent=1 // pred_region
      _
    $region189: #{user_encoder_forward.1} parent=1 // pred_fallthru
      _
    // Predicated region
    $region190: #{user_encoder_forward.1} parent=1 // pred_check
      _
    $region191: #{user_encoder_forward.1} parent=1 // pred_check_branch
      %222 = sbr.rel (0) target = $region193
    $region192: #{user_encoder_forward.1} parent=1 // pred_region
      _
    $region193: #{user_encoder_forward.1} parent=1 // pred_fallthru
      _
    // Predicated region
    $region194: #{user_encoder_forward.1} parent=1 // pred_check
      _
    $region195: #{user_encoder_forward.1} parent=1 // pred_check_branch
      %224 = sbr.rel (0) target = $region197
    $region196: #{user_encoder_forward.1} parent=1 // pred_region
      _
    $region197: #{user_encoder_forward.1} parent=1 // pred_fallthru
      _
    // Predicated region
    $region198: #{user_encoder_forward.1} parent=1 // pred_check
      _
    $region199: #{user_encoder_forward.1} parent=1 // pred_check_branch
      %226 = sbr.rel (0) target = $region201
    $region200: #{user_encoder_forward.1} parent=1 // pred_region
      _
    $region201: #{user_encoder_forward.1} parent=1 // pred_fallthru
      _
    // Predicated region
    $region202: #{user_encoder_forward.1} parent=1 // pred_check
      _
    $region203: #{user_encoder_forward.1} parent=1 // pred_check_branch
      %228 = sbr.rel (0) target = $region205
    $region204: #{user_encoder_forward.1} parent=1 // pred_region
      _
    $region205: #{user_encoder_forward.1} parent=1 // pred_fallthru
      _
    // Predicated region
    $region206: #{user_encoder_forward.1} parent=1 // pred_check
      _
    $region207: #{user_encoder_forward.1} parent=1 // pred_check_branch
      %230 = sbr.rel (0) target = $region209
    $region208: #{user_encoder_forward.1} parent=1 // pred_region
      _
    $region209: #{user_encoder_forward.1} parent=1 // pred_fallthru
      _
    // Predicated region
    $region210: #{user_encoder_forward.1} parent=1 // pred_check
      _
    $region211: #{user_encoder_forward.1} parent=1 // pred_check_branch
      %232 = sbr.rel (0) target = $region213
    $region212: #{user_encoder_forward.1} parent=1 // pred_region
      _
    $region213: #{user_encoder_forward.1} parent=1 // pred_fallthru
      _
    // Predicated region
    $region214: #{user_encoder_forward.1} parent=1 // pred_check
      _
    $region215: #{user_encoder_forward.1} parent=1 // pred_check_branch
      %234 = sbr.rel (0) target = $region217
    $region216: #{user_encoder_forward.1} parent=1 // pred_region
      _
    $region217: #{user_encoder_forward.1} parent=1 // pred_fallthru
      _
    // Predicated region
    $region218: #{user_encoder_forward.1} parent=1 // pred_check
      _
    $region219: #{user_encoder_forward.1} parent=1 // pred_check_branch
      %236 = sbr.rel (0) target = $region221
    $region220: #{user_encoder_forward.1} parent=1 // pred_region
      _
    $region221: #{user_encoder_forward.1} parent=1 // pred_fallthru
      _
    // Predicated region
    $region222: #{user_encoder_forward.1} parent=1 // pred_check
      _
    $region223: #{user_encoder_forward.1} parent=1 // pred_check_branch
      %238 = sbr.rel (0) target = $region225
    $region224: #{user_encoder_forward.1} parent=1 // pred_region
      _
    $region225: #{user_encoder_forward.1} parent=1 // pred_fallthru
      _
    // Predicated region
    $region226: #{user_encoder_forward.1} parent=1 // pred_check
      _
    $region227: #{user_encoder_forward.1} parent=1 // pred_check_branch
      %240 = sbr.rel (0) target = $region229
    $region228: #{user_encoder_forward.1} parent=1 // pred_region
      _
    $region229: #{user_encoder_forward.1} parent=1 // pred_fallthru
      _
    // Predicated region
    $region230: #{user_encoder_forward.1} parent=1 // pred_check
      _
    $region231: #{user_encoder_forward.1} parent=1 // pred_check_branch
      %242 = sbr.rel (0) target = $region233
    $region232: #{user_encoder_forward.1} parent=1 // pred_region
      _
    $region233: #{user_encoder_forward.1} parent=1 // pred_fallthru
      _
    // Predicated region
    $region234: #{user_encoder_forward.1} parent=1 // pred_check
      _
    $region235: #{user_encoder_forward.1} parent=1 // pred_check_branch
      %244 = sbr.rel (0) target = $region237
    $region236: #{user_encoder_forward.1} parent=1 // pred_region
      _
    $region237: #{user_encoder_forward.1} parent=1 // pred_fallthru
      _
    %v246 = vld [vmem:[%s3] sm:$0xff]
    %v247 = vld [vmem:[%s27] sm:$0xf]
    %v248 = vld [vmem:[%s27 + $0x4] sm:$0xf]
    %v249 = vpack.c.bf16 %v246, %v246
    %v250 = vld [vmem:[%s29] sm:$0x1]
    %v252 = vlaneseq
    %v253 = vshrl.u32 %v252, 7
    %v254 = vsub.s32 0, %v253
    %v255 = vrot.slane %v250, %v254
    %v259 = vunpack.c.l.b16 %v247
    %v260 = vunpack.c.l.b16 %v248
    %v261 = vpack.c.b16 %v260, %v259
    %vm263 = vcmask 130048
    %v265 = vsel %vm263, %v249, 0
    %267 = vmatprep.subr.bf16.mxu0 0
    %268 = vmatpush1.bf16.msra.mxu0 %v261
    %269 = vmatprep.subr.bf16.mxu0 0
    %270 = vmatpush1.bf16.msra.mxu0 0
    %271 = vmatprep.subr.bf16.mxu0 0
    %272 = vmatpush1.bf16.msra.mxu0 0
    %273 = vmatprep.subr.bf16.mxu0 0
    %274 = vmatpush1.bf16.msra.mxu0 0
    %275 = vmatprep.subr.bf16.mxu0 0
    %276 = vmatpush1.bf16.msra.mxu0 0
    %277 = vmatprep.subr.bf16.mxu0 0
    %278 = vmatpush1.bf16.msra.mxu0 0
    %279 = vmatprep.subr.bf16.mxu0 0
    %280 = vmatpush1.bf16.msra.mxu0 0
    %281 = vmatprep.subr.bf16.mxu0 0
    %282 = vmatpush1.bf16.msra.mxu0 0
    %283 = vmatprep.subr.bf16.mxu0 0
    %284 = vmatpush1.bf16.msra.mxu0 0
    %285 = vmatprep.subr.bf16.mxu0 0
    %286 = vmatpush1.bf16.msra.mxu0 0
    %287 = vmatprep.subr.bf16.mxu0 0
    %288 = vmatpush1.bf16.msra.mxu0 0
    %289 = vmatprep.subr.bf16.mxu0 0
    %290 = vmatpush1.bf16.msra.mxu0 0
    %291 = vmatprep.subr.bf16.mxu0 0
    %292 = vmatpush1.bf16.msra.mxu0 0
    %293 = vmatprep.subr.bf16.mxu0 0
    %294 = vmatpush1.bf16.msra.mxu0 0
    %295 = vmatprep.subr.bf16.mxu0 0
    %296 = vmatpush1.bf16.msra.mxu0 0
    %297 = vmatprep.subr.bf16.mxu0 0
    %298 = vmatpush1.bf16.msra.mxu0 0
    %299 = vmatprep.mubr.bf16.mxu0 0
    %300 = vmatmul.mubr.bf16.gmra.mrb[0].mxu0 %v265
    %v301 = vpop.f32.mrb[0].mxu0
    %v302 = vadd.f32 %v255, %v301
    %v303 = vpop.f32.mrb[0].mxu0
    %v304 = vpop.f32.mrb[0].mxu0
    %v305 = vpop.f32.mrb[0].mxu0
    %306 = vdwg.mxu0
    %v307 = vtanh.pop %v302
    %v308 = vld [vmem:[%s5] sm:$0xff]
    %v309 = vld [vmem:[%s31] sm:$0xf]
    %v310 = vld [vmem:[%s31 + $0x4] sm:$0xf]
    %v311 = vpack.c.bf16 %v308, %v308
    %v312 = vld [vmem:[%s33] sm:$0x1]
    %v314 = vlaneseq
    %v315 = vshrl.u32 %v314, 7
    %v316 = vsub.s32 0, %v315
    %v317 = vrot.slane %v312, %v316
    %v321 = vunpack.c.l.b16 %v309
    %v322 = vunpack.c.l.b16 %v310
    %v323 = vpack.c.b16 %v322, %v321
    %v326 = vsel %vm263, %v311, 0
    %328 = vmatprep.subr.bf16.mxu0 0
    %329 = vmatpush1.bf16.msra.mxu0 %v323
    %330 = vmatprep.subr.bf16.mxu0 0
    %331 = vmatpush1.bf16.msra.mxu0 0
    %332 = vmatprep.subr.bf16.mxu0 0
    %333 = vmatpush1.bf16.msra.mxu0 0
    %334 = vmatprep.subr.bf16.mxu0 0
    %335 = vmatpush1.bf16.msra.mxu0 0
    %336 = vmatprep.subr.bf16.mxu0 0
    %337 = vmatpush1.bf16.msra.mxu0 0
    %338 = vmatprep.subr.bf16.mxu0 0
    %339 = vmatpush1.bf16.msra.mxu0 0
    %340 = vmatprep.subr.bf16.mxu0 0
    %341 = vmatpush1.bf16.msra.mxu0 0
    %342 = vmatprep.subr.bf16.mxu0 0
    %343 = vmatpush1.bf16.msra.mxu0 0
    %344 = vmatprep.subr.bf16.mxu0 0
    %345 = vmatpush1.bf16.msra.mxu0 0
    %346 = vmatprep.subr.bf16.mxu0 0
    %347 = vmatpush1.bf16.msra.mxu0 0
    %348 = vmatprep.subr.bf16.mxu0 0
    %349 = vmatpush1.bf16.msra.mxu0 0
    %350 = vmatprep.subr.bf16.mxu0 0
    %351 = vmatpush1.bf16.msra.mxu0 0
    %352 = vmatprep.subr.bf16.mxu0 0
    %353 = vmatpush1.bf16.msra.mxu0 0
    %354 = vmatprep.subr.bf16.mxu0 0
    %355 = vmatpush1.bf16.msra.mxu0 0
    %356 = vmatprep.subr.bf16.mxu0 0
    %357 = vmatpush1.bf16.msra.mxu0 0
    %358 = vmatprep.subr.bf16.mxu0 0
    %359 = vmatpush1.bf16.msra.mxu0 0
    %360 = vmatprep.mubr.bf16.mxu0 0
    %361 = vmatmul.mubr.bf16.gmra.mrb[0].mxu0 %v326
    %v362 = vpop.f32.mrb[0].mxu0
    %v363 = vadd.f32 %v317, %v362
    %v364 = vpop.f32.mrb[0].mxu0
    %v365 = vpop.f32.mrb[0].mxu0
    %v366 = vpop.f32.mrb[0].mxu0
    %367 = vdwg.mxu0
    %v368 = vtanh.pop %v363
    %v369 = vld [vmem:[%s1] sm:$0xf]
    %v370 = vld [vmem:[%s1 + $0x4] sm:$0xf]
    %v371 = vld [vmem:[%s1 + $0x8] sm:$0xf]
    %v372 = vld [vmem:[%s1 + $0xc] sm:$0xf]
    %v373 = vld [vmem:[%s1 + $0x10] sm:$0xf]
    %v374 = vld [vmem:[%s1 + $0x14] sm:$0xf]
    %v375 = vld [vmem:[%s1 + $0x18] sm:$0xf]
    %v376 = vld [vmem:[%s1 + $0x1c] sm:$0xf]
    %v377 = vld [vmem:[%s35] sm:$0xf]
    %v378 = vld [vmem:[%s35 + $0x4] sm:$0xf]
    %v379 = vld [vmem:[%s35 + $0x8] sm:$0xf]
    %v380 = vld [vmem:[%s35 + $0xc] sm:$0xf]
    %v381 = vld [vmem:[%s37] sm:$0x1]
    %v382 = vld [vmem:[%s39] sm:$0xf]
    %v383 = vld [vmem:[%s39 + $0x4] sm:$0xf]
    %v384 = vld [vmem:[%s39 + $0x8] sm:$0xf]
    %v385 = vld [vmem:[%s39 + $0xc] sm:$0xf]
    %v386 = vld [vmem:[%s41] sm:$0x1]
    %v387 = vld [vmem:[%s43] sm:$0xf]
    %v388 = vld [vmem:[%s43 + $0x4] sm:$0xf]
    %v389 = vld [vmem:[%s43 + $0x8] sm:$0xf]
    %v390 = vld [vmem:[%s43 + $0xc] sm:$0xf]
    %v391 = vld [vmem:[%s45] sm:$0x1]
    %v392 = vld [vmem:[%s15] sm:$0xff]
    %v393 = vld [vmem:[%s15 + $0x8] sm:$0xff]
    %v394 = vld [vmem:[%s15 + $0x10] sm:$0xff]
    %v395 = vld [vmem:[%s15 + $0x18] sm:$0xff]
    %v396 = vld [vmem:[%s15 + $0x20] sm:$0xff]
    %v397 = vld [vmem:[%s15 + $0x28] sm:$0xff]
    %v398 = vld [vmem:[%s15 + $0x30] sm:$0xff]
    %v399 = vld [vmem:[%s15 + $0x38] sm:$0xff]
    %v401 = vlaneseq
    %v402 = vshrl.u32 %v401, 7
    %v403 = vsub.s32 0, %v402
    %v404 = vrot.slane %v381, %v403
    %v414 = vunpack.c.l.b16 %v369
    %v415 = vunpack.c.l.b16 %v370
    %v416 = vunpack.c.l.b16 %v371
    %v417 = vunpack.c.l.b16 %v372
    %v418 = vunpack.c.l.b16 %v373
    %v419 = vunpack.c.l.b16 %v374
    %v420 = vunpack.c.l.b16 %v375
    %v421 = vunpack.c.l.b16 %v376
    %v422 = vpack.c.b16 %v415, %v414
    %v423 = vpack.c.b16 %v417, %v416
    %v424 = vpack.c.b16 %v419, %v418
    %v425 = vpack.c.b16 %v421, %v420
    %v430 = vunpack.c.l.b16 %v377
    %v431 = vunpack.c.l.b16 %v378
    %v432 = vunpack.c.l.b16 %v379
    %v433 = vunpack.c.l.b16 %v380
    %v434 = vpack.c.b16 %v431, %v430
    %v435 = vpack.c.b16 %v433, %v432
    %vm438 = vcmask 261120
    %v440 = vsel %vm438, %v422, 0
    %v443 = vsel %vm438, %v423, 0
    %v446 = vsel %vm438, %v424, 0
    %v449 = vsel %vm438, %v425, 0
    %451 = vmatprep.subr.bf16.mxu0 0
    %452 = vmatpush1.bf16.msra.mxu0 %v434
    %453 = vmatprep.subr.bf16.mxu0 0
    %454 = vmatpush1.bf16.msra.mxu0 %v435
    %455 = vmatprep.subr.bf16.mxu0 0
    %456 = vmatpush1.bf16.msra.mxu0 0
    %457 = vmatprep.subr.bf16.mxu0 0
    %458 = vmatpush1.bf16.msra.mxu0 0
    %459 = vmatprep.subr.bf16.mxu0 0
    %460 = vmatpush1.bf16.msra.mxu0 0
    %461 = vmatprep.subr.bf16.mxu0 0
    %462 = vmatpush1.bf16.msra.mxu0 0
    %463 = vmatprep.subr.bf16.mxu0 0
    %464 = vmatpush1.bf16.msra.mxu0 0
    %465 = vmatprep.subr.bf16.mxu0 0
    %466 = vmatpush1.bf16.msra.mxu0 0
    %467 = vmatprep.subr.bf16.mxu0 0
    %468 = vmatpush1.bf16.msra.mxu0 0
    %469 = vmatprep.subr.bf16.mxu0 0
    %470 = vmatpush1.bf16.msra.mxu0 0
    %471 = vmatprep.subr.bf16.mxu0 0
    %472 = vmatpush1.bf16.msra.mxu0 0
    %473 = vmatprep.subr.bf16.mxu0 0
    %474 = vmatpush1.bf16.msra.mxu0 0
    %475 = vmatprep.subr.bf16.mxu0 0
    %476 = vmatpush1.bf16.msra.mxu0 0
    %477 = vmatprep.subr.bf16.mxu0 0
    %478 = vmatpush1.bf16.msra.mxu0 0
    %479 = vmatprep.subr.bf16.mxu0 0
    %480 = vmatpush1.bf16.msra.mxu0 0
    %481 = vmatprep.subr.bf16.mxu0 0
    %482 = vmatpush1.bf16.msra.mxu0 0
    %483 = vmatprep.mubr.bf16.mxu0 0
    %484 = vmatmul.mubr.bf16.gmra.mrb[0].mxu0 %v440
    %v485 = vpop.f32.mrb[0].mxu0
    %v486 = vadd.f32 %v404, %v485
    %v487 = vpop.f32.mrb[0].mxu0
    %v488 = vpop.f32.mrb[0].mxu0
    %v489 = vadd.f32 %v404, %v488
    %v490 = vpop.f32.mrb[0].mxu0
    %491 = vmatprep.mubr.bf16.mxu0 0
    %492 = vmatmul.mubr.bf16.gmra.mrb[0].mxu0 %v443
    %v493 = vpop.f32.mrb[0].mxu0
    %v494 = vadd.f32 %v404, %v493
    %v495 = vpop.f32.mrb[0].mxu0
    %v496 = vpop.f32.mrb[0].mxu0
    %v497 = vadd.f32 %v404, %v496
    %v498 = vpop.f32.mrb[0].mxu0
    %499 = vmatprep.mubr.bf16.mxu0 0
    %500 = vmatmul.mubr.bf16.gmra.mrb[0].mxu0 %v446
    %v501 = vpop.f32.mrb[0].mxu0
    %v502 = vadd.f32 %v404, %v501
    %v503 = vpop.f32.mrb[0].mxu0
    %v504 = vpop.f32.mrb[0].mxu0
    %v505 = vadd.f32 %v404, %v504
    %v506 = vpop.f32.mrb[0].mxu0
    %507 = vmatprep.mubr.bf16.mxu0 0
    %508 = vmatmul.mubr.bf16.gmra.mrb[0].mxu0 %v449
    %v509 = vpop.f32.mrb[0].mxu0
    %v510 = vadd.f32 %v404, %v509
    %v511 = vpop.f32.mrb[0].mxu0
    %v512 = vpop.f32.mrb[0].mxu0
    %v513 = vadd.f32 %v404, %v512
    %v514 = vpop.f32.mrb[0].mxu0
    %515 = vdwg.mxu0
    %v517 = vlaneseq
    %v518 = vshrl.u32 %v517, 7
    %v519 = vsub.s32 0, %v518
    %v520 = vrot.slane %v386, %v519
    %v526 = vunpack.c.l.b16 %v382
    %v527 = vunpack.c.l.b16 %v383
    %v528 = vunpack.c.l.b16 %v384
    %v529 = vunpack.c.l.b16 %v385
    %v530 = vpack.c.b16 %v527, %v526
    %v531 = vpack.c.b16 %v529, %v528
    %534 = vmatprep.subr.bf16.mxu0 0
    %535 = vmatpush1.bf16.msra.mxu0 %v530
    %536 = vmatprep.subr.bf16.mxu0 0
    %537 = vmatpush1.bf16.msra.mxu0 %v531
    %538 = vmatprep.subr.bf16.mxu0 0
    %539 = vmatpush1.bf16.msra.mxu0 0
    %540 = vmatprep.subr.bf16.mxu0 0
    %541 = vmatpush1.bf16.msra.mxu0 0
    %542 = vmatprep.subr.bf16.mxu0 0
    %543 = vmatpush1.bf16.msra.mxu0 0
    %544 = vmatprep.subr.bf16.mxu0 0
    %545 = vmatpush1.bf16.msra.mxu0 0
    %546 = vmatprep.subr.bf16.mxu0 0
    %547 = vmatpush1.bf16.msra.mxu0 0
    %548 = vmatprep.subr.bf16.mxu0 0
    %549 = vmatpush1.bf16.msra.mxu0 0
    %550 = vmatprep.subr.bf16.mxu0 0
    %551 = vmatpush1.bf16.msra.mxu0 0
    %552 = vmatprep.subr.bf16.mxu0 0
    %553 = vmatpush1.bf16.msra.mxu0 0
    %554 = vmatprep.subr.bf16.mxu0 0
    %555 = vmatpush1.bf16.msra.mxu0 0
    %556 = vmatprep.subr.bf16.mxu0 0
    %557 = vmatpush1.bf16.msra.mxu0 0
    %558 = vmatprep.subr.bf16.mxu0 0
    %559 = vmatpush1.bf16.msra.mxu0 0
    %560 = vmatprep.subr.bf16.mxu0 0
    %561 = vmatpush1.bf16.msra.mxu0 0
    %562 = vmatprep.subr.bf16.mxu0 0
    %563 = vmatpush1.bf16.msra.mxu0 0
    %564 = vmatprep.subr.bf16.mxu0 0
    %565 = vmatpush1.bf16.msra.mxu0 0
    %566 = vmatprep.mubr.bf16.mxu0 0
    %567 = vmatmul.mubr.bf16.gmra.mrb[0].mxu0 %v440
    %v568 = vpop.f32.mrb[0].mxu0
    %v569 = vadd.f32 %v520, %v568
    %v570 = vpop.f32.mrb[0].mxu0
    %v571 = vpop.f32.mrb[0].mxu0
    %v572 = vadd.f32 %v520, %v571
    %v573 = vpop.f32.mrb[0].mxu0
    %574 = vmatprep.mubr.bf16.mxu0 0
    %575 = vmatmul.mubr.bf16.gmra.mrb[0].mxu0 %v443
    %v576 = vpop.f32.mrb[0].mxu0
    %v577 = vadd.f32 %v520, %v576
    %v578 = vpop.f32.mrb[0].mxu0
    %v579 = vpop.f32.mrb[0].mxu0
    %v580 = vadd.f32 %v520, %v579
    %v581 = vpop.f32.mrb[0].mxu0
    %582 = vmatprep.mubr.bf16.mxu0 0
    %583 = vmatmul.mubr.bf16.gmra.mrb[0].mxu0 %v446
    %v584 = vpop.f32.mrb[0].mxu0
    %v585 = vadd.f32 %v520, %v584
    %v586 = vpop.f32.mrb[0].mxu0
    %v587 = vpop.f32.mrb[0].mxu0
    %v588 = vadd.f32 %v520, %v587
    %v589 = vpop.f32.mrb[0].mxu0
    %590 = vmatprep.mubr.bf16.mxu0 0
    %591 = vmatmul.mubr.bf16.gmra.mrb[0].mxu0 %v449
    %v592 = vpop.f32.mrb[0].mxu0
    %v593 = vadd.f32 %v520, %v592
    %v594 = vpop.f32.mrb[0].mxu0
    %v595 = vpop.f32.mrb[0].mxu0
    %v596 = vadd.f32 %v520, %v595
    %v597 = vpop.f32.mrb[0].mxu0
    %598 = vdwg.mxu0
    %v600 = vlaneseq
    %v601 = vshrl.u32 %v600, 7
    %v602 = vsub.s32 0, %v601
    %v603 = vrot.slane %v391, %v602
    %v609 = vunpack.c.l.b16 %v387
    %v610 = vunpack.c.l.b16 %v388
    %v611 = vunpack.c.l.b16 %v389
    %v612 = vunpack.c.l.b16 %v390
    %v613 = vpack.c.b16 %v610, %v609
    %v614 = vpack.c.b16 %v612, %v611
    %617 = vmatprep.subr.bf16.mxu0 0
    %618 = vmatpush1.bf16.msra.mxu0 %v613
    %619 = vmatprep.subr.bf16.mxu0 0
    %620 = vmatpush1.bf16.msra.mxu0 %v614
    %621 = vmatprep.subr.bf16.mxu0 0
    %622 = vmatpush1.bf16.msra.mxu0 0
    %623 = vmatprep.subr.bf16.mxu0 0
    %624 = vmatpush1.bf16.msra.mxu0 0
    %625 = vmatprep.subr.bf16.mxu0 0
    %626 = vmatpush1.bf16.msra.mxu0 0
    %627 = vmatprep.subr.bf16.mxu0 0
    %628 = vmatpush1.bf16.msra.mxu0 0
    %629 = vmatprep.subr.bf16.mxu0 0
    %630 = vmatpush1.bf16.msra.mxu0 0
    %631 = vmatprep.subr.bf16.mxu0 0
    %632 = vmatpush1.bf16.msra.mxu0 0
    %633 = vmatprep.subr.bf16.mxu0 0
    %634 = vmatpush1.bf16.msra.mxu0 0
    %635 = vmatprep.subr.bf16.mxu0 0
    %636 = vmatpush1.bf16.msra.mxu0 0
    %637 = vmatprep.subr.bf16.mxu0 0
    %638 = vmatpush1.bf16.msra.mxu0 0
    %639 = vmatprep.subr.bf16.mxu0 0
    %640 = vmatpush1.bf16.msra.mxu0 0
    %641 = vmatprep.subr.bf16.mxu0 0
    %642 = vmatpush1.bf16.msra.mxu0 0
    %643 = vmatprep.subr.bf16.mxu0 0
    %644 = vmatpush1.bf16.msra.mxu0 0
    %645 = vmatprep.subr.bf16.mxu0 0
    %646 = vmatpush1.bf16.msra.mxu0 0
    %647 = vmatprep.subr.bf16.mxu0 0
    %648 = vmatpush1.bf16.msra.mxu0 0
    %649 = vmatprep.mubr.bf16.mxu0 0
    %650 = vmatmul.mubr.bf16.gmra.mrb[0].mxu0 %v440
    %v651 = vpop.f32.mrb[0].mxu0
    %v652 = vadd.f32 %v603, %v651
    %v653 = vpop.f32.mrb[0].mxu0
    %v654 = vpop.f32.mrb[0].mxu0
    %v655 = vadd.f32 %v603, %v654
    %v656 = vpop.f32.mrb[0].mxu0
    %657 = vmatprep.mubr.bf16.mxu0 0
    %658 = vmatmul.mubr.bf16.gmra.mrb[0].mxu0 %v443
    %v659 = vpop.f32.mrb[0].mxu0
    %v660 = vadd.f32 %v603, %v659
    %v661 = vpop.f32.mrb[0].mxu0
    %v662 = vpop.f32.mrb[0].mxu0
    %v663 = vadd.f32 %v603, %v662
    %v664 = vpop.f32.mrb[0].mxu0
    %665 = vmatprep.mubr.bf16.mxu0 0
    %666 = vmatmul.mubr.bf16.gmra.mrb[0].mxu0 %v446
    %v667 = vpop.f32.mrb[0].mxu0
    %v668 = vadd.f32 %v603, %v667
    %v669 = vpop.f32.mrb[0].mxu0
    %v670 = vpop.f32.mrb[0].mxu0
    %v671 = vadd.f32 %v603, %v670
    %v672 = vpop.f32.mrb[0].mxu0
    %673 = vmatprep.mubr.bf16.mxu0 0
    %674 = vmatmul.mubr.bf16.gmra.mrb[0].mxu0 %v449
    %v675 = vpop.f32.mrb[0].mxu0
    %v676 = vadd.f32 %v603, %v675
    %v677 = vpop.f32.mrb[0].mxu0
    %v678 = vpop.f32.mrb[0].mxu0
    %v679 = vadd.f32 %v603, %v678
    %v680 = vpop.f32.mrb[0].mxu0
    %681 = vdwg.mxu0
    %v683 = vsel %vm263, %v486, 0
    %v686 = vsel %vm263, %v489, 0
    %v689 = vsel %vm263, %v494, 0
    %v692 = vsel %vm263, %v497, 0
    %v695 = vsel %vm263, %v502, 0
    %v698 = vsel %vm263, %v505, 0
    %v701 = vsel %vm263, %v510, 0
    %v704 = vsel %vm263, %v513, 0
    %v707 = vsel %vm263, %v569, 0
    %v710 = vsel %vm263, %v572, 0
    %v713 = vsel %vm263, %v577, 0
    %v716 = vsel %vm263, %v580, 0
    %v719 = vsel %vm263, %v585, 0
    %v722 = vsel %vm263, %v588, 0
    %v725 = vsel %vm263, %v593, 0
    %v728 = vsel %vm263, %v596, 0
    %730 = vmatprep.subr.mxu0 0.0
    %731 = vmatpush1.xpose.msra.mxu0 %v707
    %732 = vmatprep.subr.mxu0 0.0
    %733 = vmatpush1.xpose.msra.mxu0 %v710
    %734 = vmatprep.subr.mxu0 0.0
    %735 = vmatpush1.xpose.msra.mxu0 %v713
    %736 = vmatprep.subr.mxu0 0.0
    %737 = vmatpush1.xpose.msra.mxu0 %v716
    %738 = vmatprep.subr.mxu0 0.0
    %739 = vmatpush1.xpose.msra.mxu0 %v719
    %740 = vmatprep.subr.mxu0 0.0
    %741 = vmatpush1.xpose.msra.mxu0 %v722
    %742 = vmatprep.subr.mxu0 0.0
    %743 = vmatpush1.xpose.msra.mxu0 %v725
    %744 = vmatprep.subr.mxu0 0.0
    %745 = vmatpush1.xpose.msra.mxu0 %v728
    %746 = vmatprep.subr.mxu0 0.0
    %747 = vmatpush1.xpose.msra.mxu0 0.0
    %748 = vmatprep.subr.mxu0 0.0
    %749 = vmatpush1.xpose.msra.mxu0 0.0
    %750 = vmatprep.subr.mxu0 0.0
    %751 = vmatpush1.xpose.msra.mxu0 0.0
    %752 = vmatprep.subr.mxu0 0.0
    %753 = vmatpush1.xpose.msra.mxu0 0.0
    %754 = vmatprep.subr.mxu0 0.0
    %755 = vmatpush1.xpose.msra.mxu0 0.0
    %756 = vmatprep.subr.mxu0 0.0
    %757 = vmatpush1.xpose.msra.mxu0 0.0
    %758 = vmatprep.subr.mxu0 0.0
    %759 = vmatpush1.xpose.msra.mxu0 0.0
    %760 = vmatprep.subr.mxu0 0.0
    %761 = vmatpush1.xpose.msra.mxu0 0.0
    %762 = vmatprep.subr.mxu0 0.0
    %763 = vmatpush1.xpose.msra.mxu0 0.0
    %764 = vmatprep.subr.mxu0 0.0
    %765 = vmatpush1.xpose.msra.mxu0 0.0
    %766 = vmatprep.subr.mxu0 0.0
    %767 = vmatpush1.xpose.msra.mxu0 0.0
    %768 = vmatprep.subr.mxu0 0.0
    %769 = vmatpush1.xpose.msra.mxu0 0.0
    %770 = vmatprep.subr.mxu0 0.0
    %771 = vmatpush1.xpose.msra.mxu0 0.0
    %772 = vmatprep.subr.mxu0 0.0
    %773 = vmatpush1.xpose.msra.mxu0 0.0
    %774 = vmatprep.subr.mxu0 0.0
    %775 = vmatpush1.xpose.msra.mxu0 0.0
    %776 = vmatprep.subr.mxu0 0.0
    %777 = vmatpush1.xpose.msra.mxu0 0.0
    %778 = vmatprep.subr.mxu0 0.0
    %779 = vmatpush1.xpose.msra.mxu0 0.0
    %780 = vmatprep.subr.mxu0 0.0
    %781 = vmatpush1.xpose.msra.mxu0 0.0
    %782 = vmatprep.subr.mxu0 0.0
    %783 = vmatpush1.xpose.msra.mxu0 0.0
    %784 = vmatprep.subr.mxu0 0.0
    %785 = vmatpush1.xpose.msra.mxu0 0.0
    %786 = vmatprep.subr.mxu0 0.0
    %787 = vmatpush1.xpose.msra.mxu0 0.0
    %788 = vmatprep.subr.mxu0 0.0
    %789 = vmatpush1.xpose.msra.mxu0 0.0
    %790 = vmatprep.subr.mxu0 0.0
    %791 = vmatpush1.xpose.msra.mxu0 0.0
    %792 = vmatprep.subr.mxu0 0.0
    %793 = vmatpush1.xpose.msra.mxu0 0.0
    %794 = vmatprep.mubr.f32.mxu0 0.0
    %795 = vmatmul.mubr.f32.gmra.mrb[0].mxu0 %v683
    %v796 = vpop.f32.mrb[0].mxu0
    %v797 = vadd.f32 0.0, %v796
    %v798 = vpop.f32.mrb[0].mxu0
    %799 = vmatprep.mubr.f32.mxu0 0.0
    %800 = vmatmul.mubr.f32.gmra.mrb[0].mxu0 %v686
    %v801 = vpop.f32.mrb[0].mxu0
    %v802 = vadd.f32 0.0, %v801
    %v803 = vpop.f32.mrb[0].mxu0
    %804 = vmatprep.mubr.f32.mxu0 0.0
    %805 = vmatmul.mubr.f32.gmra.mrb[0].mxu0 %v689
    %v806 = vpop.f32.mrb[0].mxu0
    %v807 = vadd.f32 0.0, %v806
    %v808 = vpop.f32.mrb[0].mxu0
    %809 = vmatprep.mubr.f32.mxu0 0.0
    %810 = vmatmul.mubr.f32.gmra.mrb[0].mxu0 %v692
    %v811 = vpop.f32.mrb[0].mxu0
    %v812 = vadd.f32 0.0, %v811
    %v813 = vpop.f32.mrb[0].mxu0
    %814 = vmatprep.mubr.f32.mxu0 0.0
    %815 = vmatmul.mubr.f32.gmra.mrb[0].mxu0 %v695
    %v816 = vpop.f32.mrb[0].mxu0
    %v817 = vadd.f32 0.0, %v816
    %v818 = vpop.f32.mrb[0].mxu0
    %819 = vmatprep.mubr.f32.mxu0 0.0
    %820 = vmatmul.mubr.f32.gmra.mrb[0].mxu0 %v698
    %v821 = vpop.f32.mrb[0].mxu0
    %v822 = vadd.f32 0.0, %v821
    %v823 = vpop.f32.mrb[0].mxu0
    %824 = vmatprep.mubr.f32.mxu0 0.0
    %825 = vmatmul.mubr.f32.gmra.mrb[0].mxu0 %v701
    %v826 = vpop.f32.mrb[0].mxu0
    %v827 = vadd.f32 0.0, %v826
    %v828 = vpop.f32.mrb[0].mxu0
    %829 = vmatprep.mubr.f32.mxu0 0.0
    %830 = vmatmul.mubr.f32.gmra.mrb[0].mxu0 %v704
    %v831 = vpop.f32.mrb[0].mxu0
    %v832 = vadd.f32 0.0, %v831
    %v833 = vpop.f32.mrb[0].mxu0
    %834 = vdwg.mxu0
    %v835 = vmul.f32 %v797, 0.25
    %v836 = vmul.f32 %v802, 0.25
    %v837 = vmul.f32 %v807, 0.25
    %v838 = vmul.f32 %v812, 0.25
    %v839 = vmul.f32 %v817, 0.25
    %v840 = vmul.f32 %v822, 0.25
    %v841 = vmul.f32 %v827, 0.25
    %v842 = vmul.f32 %v832, 0.25
    %v843 = vadd.f32 %v835, %v392
    %v844 = vadd.f32 %v836, %v393
    %v845 = vadd.f32 %v837, %v394
    %v846 = vadd.f32 %v838, %v395
    %v847 = vadd.f32 %v839, %v396
    %v848 = vadd.f32 %v840, %v397
    %v849 = vadd.f32 %v841, %v398
    %v850 = vadd.f32 %v842, %v399
    %vm851 = vcmask 523264
    %v852 = vsel %vm851, %v843, -inf
    %853 = vmax.xlane.f32.xlu0 %v852
    %v854 = vpop.xlane.xlu0 %853
    %v855 = vsel %vm851, %v844, -inf
    %856 = vmax.xlane.f32.xlu0 %v855
    %v857 = vpop.xlane.xlu0 %856
    %v858 = vsel %vm851, %v845, -inf
    %859 = vmax.xlane.f32.xlu0 %v858
    %v860 = vpop.xlane.xlu0 %859
    %v861 = vsel %vm851, %v846, -inf
    %862 = vmax.xlane.f32.xlu0 %v861
    %v863 = vpop.xlane.xlu0 %862
    %v864 = vsel %vm851, %v847, -inf
    %865 = vmax.xlane.f32.xlu0 %v864
    %v866 = vpop.xlane.xlu0 %865
    %v867 = vsel %vm851, %v848, -inf
    %868 = vmax.xlane.f32.xlu0 %v867
    %v869 = vpop.xlane.xlu0 %868
    %v870 = vsel %vm851, %v849, -inf
    %871 = vmax.xlane.f32.xlu0 %v870
    %v872 = vpop.xlane.xlu0 %871
    %v873 = vsel %vm851, %v850, -inf
    %874 = vmax.xlane.f32.xlu0 %v873
    %v875 = vpop.xlane.xlu0 %874
    %v876 = vsub.f32 %v843, %v854
    %v877 = vsub.f32 %v844, %v857
    %v878 = vsub.f32 %v845, %v860
    %v879 = vsub.f32 %v846, %v863
    %v880 = vsub.f32 %v847, %v866
    %v881 = vsub.f32 %v848, %v869
    %v882 = vsub.f32 %v849, %v872
    %v883 = vsub.f32 %v850, %v875
    %v884 = vmul.f32 %v876, 1.442695
    %v885 = vpow.pop %v884
    %v886 = vmul.f32 %v877, 1.442695
    %v887 = vpow.pop %v886
    %v888 = vmul.f32 %v878, 1.442695
    %v889 = vpow.pop %v888
    %v890 = vmul.f32 %v879, 1.442695
    %v891 = vpow.pop %v890
    %v892 = vmul.f32 %v880, 1.442695
    %v893 = vpow.pop %v892
    %v894 = vmul.f32 %v881, 1.442695
    %v895 = vpow.pop %v894
    %v896 = vmul.f32 %v882, 1.442695
    %v897 = vpow.pop %v896
    %v898 = vmul.f32 %v883, 1.442695
    %v899 = vpow.pop %v898
    %v900 = vsel %vm851, %v885, 0.0
    %901 = vadd.xlane.f32.xlu0 %v900
    %v902 = vpop.xlane.xlu0 %901
    %v903 = vsel %vm851, %v887, 0.0
    %904 = vadd.xlane.f32.xlu0 %v903
    %v905 = vpop.xlane.xlu0 %904
    %v906 = vsel %vm851, %v889, 0.0
    %907 = vadd.xlane.f32.xlu0 %v906
    %v908 = vpop.xlane.xlu0 %907
    %v909 = vsel %vm851, %v891, 0.0
    %910 = vadd.xlane.f32.xlu0 %v909
    %v911 = vpop.xlane.xlu0 %910
    %v912 = vsel %vm851, %v893, 0.0
    %913 = vadd.xlane.f32.xlu0 %v912
    %v914 = vpop.xlane.xlu0 %913
    %v915 = vsel %vm851, %v895, 0.0
    %916 = vadd.xlane.f32.xlu0 %v915
    %v917 = vpop.xlane.xlu0 %916
    %v918 = vsel %vm851, %v897, 0.0
    %919 = vadd.xlane.f32.xlu0 %v918
    %v920 = vpop.xlane.xlu0 %919
    %v921 = vsel %vm851, %v899, 0.0
    %922 = vadd.xlane.f32.xlu0 %v921
    %v923 = vpop.xlane.xlu0 %922
    %v924 = vrcp.pop %v902
    %v925 = vmul.f32 %v885, %v924
    %v926 = vrcp.pop %v905
    %v927 = vmul.f32 %v887, %v926
    %v928 = vrcp.pop %v908
    %v929 = vmul.f32 %v889, %v928
    %v930 = vrcp.pop %v911
    %v931 = vmul.f32 %v891, %v930
    %v932 = vrcp.pop %v914
    %v933 = vmul.f32 %v893, %v932
    %v934 = vrcp.pop %v917
    %v935 = vmul.f32 %v895, %v934
    %v936 = vrcp.pop %v920
    %v937 = vmul.f32 %v897, %v936
    %v938 = vrcp.pop %v923
    %v939 = vmul.f32 %v899, %v938
    %v941 = vsel %vm851, %v925, 0
    %v944 = vsel %vm851, %v927, 0
    %v947 = vsel %vm851, %v929, 0
    %v950 = vsel %vm851, %v931, 0
    %v953 = vsel %vm851, %v933, 0
    %v956 = vsel %vm851, %v935, 0
    %v959 = vsel %vm851, %v937, 0
    %v962 = vsel %vm851, %v939, 0
    %964 = vmatprep.subr.mxu0 0.0
    %965 = vmatpush1.msra.mxu0 %v652
    %966 = vmatprep.subr.mxu0 0.0
    %967 = vmatpush1.msra.mxu0 %v655
    %968 = vmatprep.subr.mxu0 0.0
    %969 = vmatpush1.msra.mxu0 %v660
    %970 = vmatprep.subr.mxu0 0.0
    %971 = vmatpush1.msra.mxu0 %v663
    %972 = vmatprep.subr.mxu0 0.0
    %973 = vmatpush1.msra.mxu0 %v668
    %974 = vmatprep.subr.mxu0 0.0
    %975 = vmatpush1.msra.mxu0 %v671
    %976 = vmatprep.subr.mxu0 0.0
    %977 = vmatpush1.msra.mxu0 %v676
    %978 = vmatprep.subr.mxu0 0.0
    %979 = vmatpush1.msra.mxu0 %v679
    %980 = vmatprep.subr.mxu0 0.0
    %981 = vmatpush1.msra.mxu0 0.0
    %982 = vmatprep.subr.mxu0 0.0
    %983 = vmatpush1.msra.mxu0 0.0
    %984 = vmatprep.subr.mxu0 0.0
    %985 = vmatpush1.msra.mxu0 0.0
    %986 = vmatprep.subr.mxu0 0.0
    %987 = vmatpush1.msra.mxu0 0.0
    %988 = vmatprep.subr.mxu0 0.0
    %989 = vmatpush1.msra.mxu0 0.0
    %990 = vmatprep.subr.mxu0 0.0
    %991 = vmatpush1.msra.mxu0 0.0
    %992 = vmatprep.subr.mxu0 0.0
    %993 = vmatpush1.msra.mxu0 0.0
    %994 = vmatprep.subr.mxu0 0.0
    %995 = vmatpush1.msra.mxu0 0.0
    %996 = vmatprep.subr.mxu0 0.0
    %997 = vmatpush1.msra.mxu0 0.0
    %998 = vmatprep.subr.mxu0 0.0
    %999 = vmatpush1.msra.mxu0 0.0
    %1000 = vmatprep.subr.mxu0 0.0
    %1001 = vmatpush1.msra.mxu0 0.0
    %1002 = vmatprep.subr.mxu0 0.0
    %1003 = vmatpush1.msra.mxu0 0.0
    %1004 = vmatprep.subr.mxu0 0.0
    %1005 = vmatpush1.msra.mxu0 0.0
    %1006 = vmatprep.subr.mxu0 0.0
    %1007 = vmatpush1.msra.mxu0 0.0
    %1008 = vmatprep.subr.mxu0 0.0
    %1009 = vmatpush1.msra.mxu0 0.0
    %1010 = vmatprep.subr.mxu0 0.0
    %1011 = vmatpush1.msra.mxu0 0.0
    %1012 = vmatprep.subr.mxu0 0.0
    %1013 = vmatpush1.msra.mxu0 0.0
    %1014 = vmatprep.subr.mxu0 0.0
    %1015 = vmatpush1.msra.mxu0 0.0
    %1016 = vmatprep.subr.mxu0 0.0
    %1017 = vmatpush1.msra.mxu0 0.0
    %1018 = vmatprep.subr.mxu0 0.0
    %1019 = vmatpush1.msra.mxu0 0.0
    %1020 = vmatprep.subr.mxu0 0.0
    %1021 = vmatpush1.msra.mxu0 0.0
    %1022 = vmatprep.subr.mxu0 0.0
    %1023 = vmatpush1.msra.mxu0 0.0
    %1024 = vmatprep.subr.mxu0 0.0
    %1025 = vmatpush1.msra.mxu0 0.0
    %1026 = vmatprep.subr.mxu0 0.0
    %1027 = vmatpush1.msra.mxu0 0.0
    %1028 = vmatprep.mubr.f32.mxu0 0.0
    %1029 = vmatmul.mubr.f32.gmra.mrb[0].mxu0 %v941
    %v1030 = vpop.f32.mrb[0].mxu0
    %v1031 = vadd.f32 0.0, %v1030
    %v1032 = vpop.f32.mrb[0].mxu0
    %1033 = vmatprep.mubr.f32.mxu0 0.0
    %1034 = vmatmul.mubr.f32.gmra.mrb[0].mxu0 %v944
    %v1035 = vpop.f32.mrb[0].mxu0
    %v1036 = vadd.f32 0.0, %v1035
    %v1037 = vpop.f32.mrb[0].mxu0
    %1038 = vmatprep.mubr.f32.mxu0 0.0
    %1039 = vmatmul.mubr.f32.gmra.mrb[0].mxu0 %v947
    %v1040 = vpop.f32.mrb[0].mxu0
    %v1041 = vadd.f32 0.0, %v1040
    %v1042 = vpop.f32.mrb[0].mxu0
    %1043 = vmatprep.mubr.f32.mxu0 0.0
    %1044 = vmatmul.mubr.f32.gmra.mrb[0].mxu0 %v950
    %v1045 = vpop.f32.mrb[0].mxu0
    %v1046 = vadd.f32 0.0, %v1045
    %v1047 = vpop.f32.mrb[0].mxu0
    %1048 = vmatprep.mubr.f32.mxu0 0.0
    %1049 = vmatmul.mubr.f32.gmra.mrb[0].mxu0 %v953
    %v1050 = vpop.f32.mrb[0].mxu0
    %v1051 = vadd.f32 0.0, %v1050
    %v1052 = vpop.f32.mrb[0].mxu0
    %1053 = vmatprep.mubr.f32.mxu0 0.0
    %1054 = vmatmul.mubr.f32.gmra.mrb[0].mxu0 %v956
    %v1055 = vpop.f32.mrb[0].mxu0
    %v1056 = vadd.f32 0.0, %v1055
    %v1057 = vpop.f32.mrb[0].mxu0
    %1058 = vmatprep.mubr.f32.mxu0 0.0
    %1059 = vmatmul.mubr.f32.gmra.mrb[0].mxu0 %v959
    %v1060 = vpop.f32.mrb[0].mxu0
    %v1061 = vadd.f32 0.0, %v1060
    %v1062 = vpop.f32.mrb[0].mxu0
    %1063 = vmatprep.mubr.f32.mxu0 0.0
    %1064 = vmatmul.mubr.f32.gmra.mrb[0].mxu0 %v962
    %v1065 = vpop.f32.mrb[0].mxu0
    %v1066 = vadd.f32 0.0, %v1065
    %v1067 = vpop.f32.mrb[0].mxu0
    %1068 = vdwg.mxu0
    %1069 = vrot.lane.b32.xlu0 %v486, 112
    %v1070 = vpop.permute.xlu0 %1069
    %1071 = vrot.lane.b32.xlu0 %v489, 112
    %v1072 = vpop.permute.xlu0 %1071
    %1073 = vrot.lane.b32.xlu0 %v494, 112
    %v1074 = vpop.permute.xlu0 %1073
    %1075 = vrot.lane.b32.xlu0 %v497, 112
    %v1076 = vpop.permute.xlu0 %1075
    %1077 = vrot.lane.b32.xlu0 %v502, 112
    %v1078 = vpop.permute.xlu0 %1077
    %1079 = vrot.lane.b32.xlu0 %v505, 112
    %v1080 = vpop.permute.xlu0 %1079
    %1081 = vrot.lane.b32.xlu0 %v510, 112
    %v1082 = vpop.permute.xlu0 %1081
    %1083 = vrot.lane.b32.xlu0 %v513, 112
    %v1084 = vpop.permute.xlu0 %1083
    %1085 = vrot.lane.b32.xlu0 %v569, 112
    %v1086 = vpop.permute.xlu0 %1085
    %1087 = vrot.lane.b32.xlu0 %v572, 112
    %v1088 = vpop.permute.xlu0 %1087
    %1089 = vrot.lane.b32.xlu0 %v577, 112
    %v1090 = vpop.permute.xlu0 %1089
    %1091 = vrot.lane.b32.xlu0 %v580, 112
    %v1092 = vpop.permute.xlu0 %1091
    %1093 = vrot.lane.b32.xlu0 %v585, 112
    %v1094 = vpop.permute.xlu0 %1093
    %1095 = vrot.lane.b32.xlu0 %v588, 112
    %v1096 = vpop.permute.xlu0 %1095
    %1097 = vrot.lane.b32.xlu0 %v593, 112
    %v1098 = vpop.permute.xlu0 %1097
    %1099 = vrot.lane.b32.xlu0 %v596, 112
    %v1100 = vpop.permute.xlu0 %1099
    %v1101 = vsel %vm263, %v1070, 0
    %v1103 = vsel %vm263, %v1072, 0
    %v1105 = vsel %vm263, %v1074, 0
    %v1107 = vsel %vm263, %v1076, 0
    %v1109 = vsel %vm263, %v1078, 0
    %v1111 = vsel %vm263, %v1080, 0
    %v1113 = vsel %vm263, %v1082, 0
    %v1115 = vsel %vm263, %v1084, 0
    %v1117 = vsel %vm263, %v1086, 0
    %v1119 = vsel %vm263, %v1088, 0
    %v1121 = vsel %vm263, %v1090, 0
    %v1123 = vsel %vm263, %v1092, 0
    %v1125 = vsel %vm263, %v1094, 0
    %v1127 = vsel %vm263, %v1096, 0
    %v1129 = vsel %vm263, %v1098, 0
    %v1131 = vsel %vm263, %v1100, 0
    %1133 = vmatprep.subr.mxu0 0.0
    %1134 = vmatpush1.xpose.msra.mxu0 %v1117
    %1135 = vmatprep.subr.mxu0 0.0
    %1136 = vmatpush1.xpose.msra.mxu0 %v1119
    %1137 = vmatprep.subr.mxu0 0.0
    %1138 = vmatpush1.xpose.msra.mxu0 %v1121
    %1139 = vmatprep.subr.mxu0 0.0
    %1140 = vmatpush1.xpose.msra.mxu0 %v1123
    %1141 = vmatprep.subr.mxu0 0.0
    %1142 = vmatpush1.xpose.msra.mxu0 %v1125
    %1143 = vmatprep.subr.mxu0 0.0
    %1144 = vmatpush1.xpose.msra.mxu0 %v1127
    %1145 = vmatprep.subr.mxu0 0.0
    %1146 = vmatpush1.xpose.msra.mxu0 %v1129
    %1147 = vmatprep.subr.mxu0 0.0
    %1148 = vmatpush1.xpose.msra.mxu0 %v1131
    %1149 = vmatprep.subr.mxu0 0.0
    %1150 = vmatpush1.xpose.msra.mxu0 0.0
    %1151 = vmatprep.subr.mxu0 0.0
    %1152 = vmatpush1.xpose.msra.mxu0 0.0
    %1153 = vmatprep.subr.mxu0 0.0
    %1154 = vmatpush1.xpose.msra.mxu0 0.0
    %1155 = vmatprep.subr.mxu0 0.0
    %1156 = vmatpush1.xpose.msra.mxu0 0.0
    %1157 = vmatprep.subr.mxu0 0.0
    %1158 = vmatpush1.xpose.msra.mxu0 0.0
    %1159 = vmatprep.subr.mxu0 0.0
    %1160 = vmatpush1.xpose.msra.mxu0 0.0
    %1161 = vmatprep.subr.mxu0 0.0
    %1162 = vmatpush1.xpose.msra.mxu0 0.0
    %1163 = vmatprep.subr.mxu0 0.0
    %1164 = vmatpush1.xpose.msra.mxu0 0.0
    %1165 = vmatprep.subr.mxu0 0.0
    %1166 = vmatpush1.xpose.msra.mxu0 0.0
    %1167 = vmatprep.subr.mxu0 0.0
    %1168 = vmatpush1.xpose.msra.mxu0 0.0
    %1169 = vmatprep.subr.mxu0 0.0
    %1170 = vmatpush1.xpose.msra.mxu0 0.0
    %1171 = vmatprep.subr.mxu0 0.0
    %1172 = vmatpush1.xpose.msra.mxu0 0.0
    %1173 = vmatprep.subr.mxu0 0.0
    %1174 = vmatpush1.xpose.msra.mxu0 0.0
    %1175 = vmatprep.subr.mxu0 0.0
    %1176 = vmatpush1.xpose.msra.mxu0 0.0
    %1177 = vmatprep.subr.mxu0 0.0
    %1178 = vmatpush1.xpose.msra.mxu0 0.0
    %1179 = vmatprep.subr.mxu0 0.0
    %1180 = vmatpush1.xpose.msra.mxu0 0.0
    %1181 = vmatprep.subr.mxu0 0.0
    %1182 = vmatpush1.xpose.msra.mxu0 0.0
    %1183 = vmatprep.subr.mxu0 0.0
    %1184 = vmatpush1.xpose.msra.mxu0 0.0
    %1185 = vmatprep.subr.mxu0 0.0
    %1186 = vmatpush1.xpose.msra.mxu0 0.0
    %1187 = vmatprep.subr.mxu0 0.0
    %1188 = vmatpush1.xpose.msra.mxu0 0.0
    %1189 = vmatprep.subr.mxu0 0.0
    %1190 = vmatpush1.xpose.msra.mxu0 0.0
    %1191 = vmatprep.subr.mxu0 0.0
    %1192 = vmatpush1.xpose.msra.mxu0 0.0
    %1193 = vmatprep.subr.mxu0 0.0
    %1194 = vmatpush1.xpose.msra.mxu0 0.0
    %1195 = vmatprep.subr.mxu0 0.0
    %1196 = vmatpush1.xpose.msra.mxu0 0.0
    %1197 = vmatprep.mubr.f32.mxu0 0.0
    %1198 = vmatmul.mubr.f32.gmra.mrb[0].mxu0 %v1101
    %v1199 = vpop.f32.mrb[0].mxu0
    %v1200 = vadd.f32 0.0, %v1199
    %v1201 = vpop.f32.mrb[0].mxu0
    %1202 = vmatprep.mubr.f32.mxu0 0.0
    %1203 = vmatmul.mubr.f32.gmra.mrb[0].mxu0 %v1103
    %v1204 = vpop.f32.mrb[0].mxu0
    %v1205 = vadd.f32 0.0, %v1204
    %v1206 = vpop.f32.mrb[0].mxu0
    %1207 = vmatprep.mubr.f32.mxu0 0.0
    %1208 = vmatmul.mubr.f32.gmra.mrb[0].mxu0 %v1105
    %v1209 = vpop.f32.mrb[0].mxu0
    %v1210 = vadd.f32 0.0, %v1209
    %v1211 = vpop.f32.mrb[0].mxu0
    %1212 = vmatprep.mubr.f32.mxu0 0.0
    %1213 = vmatmul.mubr.f32.gmra.mrb[0].mxu0 %v1107
    %v1214 = vpop.f32.mrb[0].mxu0
    %v1215 = vadd.f32 0.0, %v1214
    %v1216 = vpop.f32.mrb[0].mxu0
    %1217 = vmatprep.mubr.f32.mxu0 0.0
    %1218 = vmatmul.mubr.f32.gmra.mrb[0].mxu0 %v1109
    %v1219 = vpop.f32.mrb[0].mxu0
    %v1220 = vadd.f32 0.0, %v1219
    %v1221 = vpop.f32.mrb[0].mxu0
    %1222 = vmatprep.mubr.f32.mxu0 0.0
    %1223 = vmatmul.mubr.f32.gmra.mrb[0].mxu0 %v1111
    %v1224 = vpop.f32.mrb[0].mxu0
    %v1225 = vadd.f32 0.0, %v1224
    %v1226 = vpop.f32.mrb[0].mxu0
    %1227 = vmatprep.mubr.f32.mxu0 0.0
    %1228 = vmatmul.mubr.f32.gmra.mrb[0].mxu0 %v1113
    %v1229 = vpop.f32.mrb[0].mxu0
    %v1230 = vadd.f32 0.0, %v1229
    %v1231 = vpop.f32.mrb[0].mxu0
    %1232 = vmatprep.mubr.f32.mxu0 0.0
    %1233 = vmatmul.mubr.f32.gmra.mrb[0].mxu0 %v1115
    %v1234 = vpop.f32.mrb[0].mxu0
    %v1235 = vadd.f32 0.0, %v1234
    %v1236 = vpop.f32.mrb[0].mxu0
    %1237 = vdwg.mxu0
    %v1238 = vmul.f32 %v1200, 0.25
    %v1239 = vmul.f32 %v1205, 0.25
    %v1240 = vmul.f32 %v1210, 0.25
    %v1241 = vmul.f32 %v1215, 0.25
    %v1242 = vmul.f32 %v1220, 0.25
    %v1243 = vmul.f32 %v1225, 0.25
    %v1244 = vmul.f32 %v1230, 0.25
    %v1245 = vmul.f32 %v1235, 0.25
    %v1246 = vadd.f32 %v1238, %v392
    %v1247 = vadd.f32 %v1239, %v393
    %v1248 = vadd.f32 %v1240, %v394
    %v1249 = vadd.f32 %v1241, %v395
    %v1250 = vadd.f32 %v1242, %v396
    %v1251 = vadd.f32 %v1243, %v397
    %v1252 = vadd.f32 %v1244, %v398
    %v1253 = vadd.f32 %v1245, %v399
    %v1254 = vsel %vm851, %v1246, -inf
    %1255 = vmax.xlane.f32.xlu0 %v1254
    %v1256 = vpop.xlane.xlu0 %1255
    %v1257 = vsel %vm851, %v1247, -inf
    %1258 = vmax.xlane.f32.xlu0 %v1257
    %v1259 = vpop.xlane.xlu0 %1258
    %v1260 = vsel %vm851, %v1248, -inf
    %1261 = vmax.xlane.f32.xlu0 %v1260
    %v1262 = vpop.xlane.xlu0 %1261
    %v1263 = vsel %vm851, %v1249, -inf
    %1264 = vmax.xlane.f32.xlu0 %v1263
    %v1265 = vpop.xlane.xlu0 %1264
    %v1266 = vsel %vm851, %v1250, -inf
    %1267 = vmax.xlane.f32.xlu0 %v1266
    %v1268 = vpop.xlane.xlu0 %1267
    %v1269 = vsel %vm851, %v1251, -inf
    %1270 = vmax.xlane.f32.xlu0 %v1269
    %v1271 = vpop.xlane.xlu0 %1270
    %v1272 = vsel %vm851, %v1252, -inf
    %1273 = vmax.xlane.f32.xlu0 %v1272
    %v1274 = vpop.xlane.xlu0 %1273
    %v1275 = vsel %vm851, %v1253, -inf
    %1276 = vmax.xlane.f32.xlu0 %v1275
    %v1277 = vpop.xlane.xlu0 %1276
    %v1278 = vsub.f32 %v1246, %v1256
    %v1279 = vsub.f32 %v1247, %v1259
    %v1280 = vsub.f32 %v1248, %v1262
    %v1281 = vsub.f32 %v1249, %v1265
    %v1282 = vsub.f32 %v1250, %v1268
    %v1283 = vsub.f32 %v1251, %v1271
    %v1284 = vsub.f32 %v1252, %v1274
    %v1285 = vsub.f32 %v1253, %v1277
    %v1286 = vmul.f32 %v1278, 1.442695
    %v1287 = vpow.pop %v1286
    %v1288 = vmul.f32 %v1279, 1.442695
    %v1289 = vpow.pop %v1288
    %v1290 = vmul.f32 %v1280, 1.442695
    %v1291 = vpow.pop %v1290
    %v1292 = vmul.f32 %v1281, 1.442695
    %v1293 = vpow.pop %v1292
    %v1294 = vmul.f32 %v1282, 1.442695
    %v1295 = vpow.pop %v1294
    %v1296 = vmul.f32 %v1283, 1.442695
    %v1297 = vpow.pop %v1296
    %v1298 = vmul.f32 %v1284, 1.442695
    %v1299 = vpow.pop %v1298
    %v1300 = vmul.f32 %v1285, 1.442695
    %v1301 = vpow.pop %v1300
    %v1302 = vsel %vm851, %v1287, 0.0
    %1303 = vadd.xlane.f32.xlu0 %v1302
    %v1304 = vpop.xlane.xlu0 %1303
    %v1305 = vsel %vm851, %v1289, 0.0
    %1306 = vadd.xlane.f32.xlu0 %v1305
    %v1307 = vpop.xlane.xlu0 %1306
    %v1308 = vsel %vm851, %v1291, 0.0
    %1309 = vadd.xlane.f32.xlu0 %v1308
    %v1310 = vpop.xlane.xlu0 %1309
    %v1311 = vsel %vm851, %v1293, 0.0
    %1312 = vadd.xlane.f32.xlu0 %v1311
    %v1313 = vpop.xlane.xlu0 %1312
    %v1314 = vsel %vm851, %v1295, 0.0
    %1315 = vadd.xlane.f32.xlu0 %v1314
    %v1316 = vpop.xlane.xlu0 %1315
    %v1317 = vsel %vm851, %v1297, 0.0
    %1318 = vadd.xlane.f32.xlu0 %v1317
    %v1319 = vpop.xlane.xlu0 %1318
    %v1320 = vsel %vm851, %v1299, 0.0
    %1321 = vadd.xlane.f32.xlu0 %v1320
    %v1322 = vpop.xlane.xlu0 %1321
    %v1323 = vsel %vm851, %v1301, 0.0
    %1324 = vadd.xlane.f32.xlu0 %v1323
    %v1325 = vpop.xlane.xlu0 %1324
    %v1326 = vrcp.pop %v1304
    %v1327 = vmul.f32 %v1287, %v1326
    %v1328 = vrcp.pop %v1307
    %v1329 = vmul.f32 %v1289, %v1328
    %v1330 = vrcp.pop %v1310
    %v1331 = vmul.f32 %v1291, %v1330
    %v1332 = vrcp.pop %v1313
    %v1333 = vmul.f32 %v1293, %v1332
    %v1334 = vrcp.pop %v1316
    %v1335 = vmul.f32 %v1295, %v1334
    %v1336 = vrcp.pop %v1319
    %v1337 = vmul.f32 %v1297, %v1336
    %v1338 = vrcp.pop %v1322
    %v1339 = vmul.f32 %v1299, %v1338
    %v1340 = vrcp.pop %v1325
    %v1341 = vmul.f32 %v1301, %v1340
    %1350 = vrot.lane.b32.xlu0 %v652, 112
    %v1351 = vpop.permute.xlu0 %1350
    %1352 = vrot.lane.b32.xlu0 %v655, 112
    %v1353 = vpop.permute.xlu0 %1352
    %1354 = vrot.lane.b32.xlu0 %v660, 112
    %v1355 = vpop.permute.xlu0 %1354
    %1356 = vrot.lane.b32.xlu0 %v663, 112
    %v1357 = vpop.permute.xlu0 %1356
    %1358 = vrot.lane.b32.xlu0 %v668, 112
    %v1359 = vpop.permute.xlu0 %1358
    %1360 = vrot.lane.b32.xlu0 %v671, 112
    %v1361 = vpop.permute.xlu0 %1360
    %1362 = vrot.lane.b32.xlu0 %v676, 112
    %v1363 = vpop.permute.xlu0 %1362
    %1364 = vrot.lane.b32.xlu0 %v679, 112
    %v1365 = vpop.permute.xlu0 %1364
    %v1375 = vsel %vm851, %v1327, 0
    %v1378 = vsel %vm851, %v1329, 0
    %v1381 = vsel %vm851, %v1331, 0
    %v1384 = vsel %vm851, %v1333, 0
    %v1387 = vsel %vm851, %v1335, 0
    %v1390 = vsel %vm851, %v1337, 0
    %v1393 = vsel %vm851, %v1339, 0
    %v1396 = vsel %vm851, %v1341, 0
    %1398 = vmatprep.subr.mxu0 0.0
    %1399 = vmatpush1.msra.mxu0 %v1351
    %1400 = vmatprep.subr.mxu0 0.0
    %1401 = vmatpush1.msra.mxu0 %v1353
    %1402 = vmatprep.subr.mxu0 0.0
    %1403 = vmatpush1.msra.mxu0 %v1355
    %1404 = vmatprep.subr.mxu0 0.0
    %1405 = vmatpush1.msra.mxu0 %v1357
    %1406 = vmatprep.subr.mxu0 0.0
    %1407 = vmatpush1.msra.mxu0 %v1359
    %1408 = vmatprep.subr.mxu0 0.0
    %1409 = vmatpush1.msra.mxu0 %v1361
    %1410 = vmatprep.subr.mxu0 0.0
    %1411 = vmatpush1.msra.mxu0 %v1363
    %1412 = vmatprep.subr.mxu0 0.0
    %1413 = vmatpush1.msra.mxu0 %v1365
    %1414 = vmatprep.subr.mxu0 0.0
    %1415 = vmatpush1.msra.mxu0 0.0
    %1416 = vmatprep.subr.mxu0 0.0
    %1417 = vmatpush1.msra.mxu0 0.0
    %1418 = vmatprep.subr.mxu0 0.0
    %1419 = vmatpush1.msra.mxu0 0.0
    %1420 = vmatprep.subr.mxu0 0.0
    %1421 = vmatpush1.msra.mxu0 0.0
    %1422 = vmatprep.subr.mxu0 0.0
    %1423 = vmatpush1.msra.mxu0 0.0
    %1424 = vmatprep.subr.mxu0 0.0
    %1425 = vmatpush1.msra.mxu0 0.0
    %1426 = vmatprep.subr.mxu0 0.0
    %1427 = vmatpush1.msra.mxu0 0.0
    %1428 = vmatprep.subr.mxu0 0.0
    %1429 = vmatpush1.msra.mxu0 0.0
    %1430 = vmatprep.subr.mxu0 0.0
    %1431 = vmatpush1.msra.mxu0 0.0
    %1432 = vmatprep.subr.mxu0 0.0
    %1433 = vmatpush1.msra.mxu0 0.0
    %1434 = vmatprep.subr.mxu0 0.0
    %1435 = vmatpush1.msra.mxu0 0.0
    %1436 = vmatprep.subr.mxu0 0.0
    %1437 = vmatpush1.msra.mxu0 0.0
    %1438 = vmatprep.subr.mxu0 0.0
    %1439 = vmatpush1.msra.mxu0 0.0
    %1440 = vmatprep.subr.mxu0 0.0
    %1441 = vmatpush1.msra.mxu0 0.0
    %1442 = vmatprep.subr.mxu0 0.0
    %1443 = vmatpush1.msra.mxu0 0.0
    %1444 = vmatprep.subr.mxu0 0.0
    %1445 = vmatpush1.msra.mxu0 0.0
    %1446 = vmatprep.subr.mxu0 0.0
    %1447 = vmatpush1.msra.mxu0 0.0
    %1448 = vmatprep.subr.mxu0 0.0
    %1449 = vmatpush1.msra.mxu0 0.0
    %1450 = vmatprep.subr.mxu0 0.0
    %1451 = vmatpush1.msra.mxu0 0.0
    %1452 = vmatprep.subr.mxu0 0.0
    %1453 = vmatpush1.msra.mxu0 0.0
    %1454 = vmatprep.subr.mxu0 0.0
    %1455 = vmatpush1.msra.mxu0 0.0
    %1456 = vmatprep.subr.mxu0 0.0
    %1457 = vmatpush1.msra.mxu0 0.0
    %1458 = vmatprep.subr.mxu0 0.0
    %1459 = vmatpush1.msra.mxu0 0.0
    %1460 = vmatprep.subr.mxu0 0.0
    %1461 = vmatpush1.msra.mxu0 0.0
    %1462 = vmatprep.mubr.f32.mxu0 0.0
    %1463 = vmatmul.mubr.f32.gmra.mrb[0].mxu0 %v1375
    %v1464 = vpop.f32.mrb[0].mxu0
    %v1465 = vadd.f32 0.0, %v1464
    %v1466 = vpop.f32.mrb[0].mxu0
    %1467 = vmatprep.mubr.f32.mxu0 0.0
    %1468 = vmatmul.mubr.f32.gmra.mrb[0].mxu0 %v1378
    %v1469 = vpop.f32.mrb[0].mxu0
    %v1470 = vadd.f32 0.0, %v1469
    %v1471 = vpop.f32.mrb[0].mxu0
    %1472 = vmatprep.mubr.f32.mxu0 0.0
    %1473 = vmatmul.mubr.f32.gmra.mrb[0].mxu0 %v1381
    %v1474 = vpop.f32.mrb[0].mxu0
    %v1475 = vadd.f32 0.0, %v1474
    %v1476 = vpop.f32.mrb[0].mxu0
    %1477 = vmatprep.mubr.f32.mxu0 0.0
    %1478 = vmatmul.mubr.f32.gmra.mrb[0].mxu0 %v1384
    %v1479 = vpop.f32.mrb[0].mxu0
    %v1480 = vadd.f32 0.0, %v1479
    %v1481 = vpop.f32.mrb[0].mxu0
    %1482 = vmatprep.mubr.f32.mxu0 0.0
    %1483 = vmatmul.mubr.f32.gmra.mrb[0].mxu0 %v1387
    %v1484 = vpop.f32.mrb[0].mxu0
    %v1485 = vadd.f32 0.0, %v1484
    %v1486 = vpop.f32.mrb[0].mxu0
    %1487 = vmatprep.mubr.f32.mxu0 0.0
    %1488 = vmatmul.mubr.f32.gmra.mrb[0].mxu0 %v1390
    %v1489 = vpop.f32.mrb[0].mxu0
    %v1490 = vadd.f32 0.0, %v1489
    %v1491 = vpop.f32.mrb[0].mxu0
    %1492 = vmatprep.mubr.f32.mxu0 0.0
    %1493 = vmatmul.mubr.f32.gmra.mrb[0].mxu0 %v1393
    %v1494 = vpop.f32.mrb[0].mxu0
    %v1495 = vadd.f32 0.0, %v1494
    %v1496 = vpop.f32.mrb[0].mxu0
    %1497 = vmatprep.mubr.f32.mxu0 0.0
    %1498 = vmatmul.mubr.f32.gmra.mrb[0].mxu0 %v1396
    %v1499 = vpop.f32.mrb[0].mxu0
    %v1500 = vadd.f32 0.0, %v1499
    %v1501 = vpop.f32.mrb[0].mxu0
    %1502 = vdwg.mxu0
    %1503 = vrot.lane.b32.xlu0 %v486, 96
    %v1504 = vpop.permute.xlu0 %1503
    %1505 = vrot.lane.b32.xlu0 %v489, 96
    %v1506 = vpop.permute.xlu0 %1505
    %1507 = vrot.lane.b32.xlu0 %v494, 96
    %v1508 = vpop.permute.xlu0 %1507
    %1509 = vrot.lane.b32.xlu0 %v497, 96
    %v1510 = vpop.permute.xlu0 %1509
    %1511 = vrot.lane.b32.xlu0 %v502, 96
    %v1512 = vpop.permute.xlu0 %1511
    %1513 = vrot.lane.b32.xlu0 %v505, 96
    %v1514 = vpop.permute.xlu0 %1513
    %1515 = vrot.lane.b32.xlu0 %v510, 96
    %v1516 = vpop.permute.xlu0 %1515
    %1517 = vrot.lane.b32.xlu0 %v513, 96
    %v1518 = vpop.permute.xlu0 %1517
    %1519 = vrot.lane.b32.xlu0 %v569, 96
    %v1520 = vpop.permute.xlu0 %1519
    %1521 = vrot.lane.b32.xlu0 %v572, 96
    %v1522 = vpop.permute.xlu0 %1521
    %1523 = vrot.lane.b32.xlu0 %v577, 96
    %v1524 = vpop.permute.xlu0 %1523
    %1525 = vrot.lane.b32.xlu0 %v580, 96
    %v1526 = vpop.permute.xlu0 %1525
    %1527 = vrot.lane.b32.xlu0 %v585, 96
    %v1528 = vpop.permute.xlu0 %1527
    %1529 = vrot.lane.b32.xlu0 %v588, 96
    %v1530 = vpop.permute.xlu0 %1529
    %1531 = vrot.lane.b32.xlu0 %v593, 96
    %v1532 = vpop.permute.xlu0 %1531
    %1533 = vrot.lane.b32.xlu0 %v596, 96
    %v1534 = vpop.permute.xlu0 %1533
    %v1535 = vsel %vm263, %v1504, 0
    %v1537 = vsel %vm263, %v1506, 0
    %v1539 = vsel %vm263, %v1508, 0
    %v1541 = vsel %vm263, %v1510, 0
    %v1543 = vsel %vm263, %v1512, 0
    %v1545 = vsel %vm263, %v1514, 0
    %v1547 = vsel %vm263, %v1516, 0
    %v1549 = vsel %vm263, %v1518, 0
    %v1551 = vsel %vm263, %v1520, 0
    %v1553 = vsel %vm263, %v1522, 0
    %v1555 = vsel %vm263, %v1524, 0
    %v1557 = vsel %vm263, %v1526, 0
    %v1559 = vsel %vm263, %v1528, 0
    %v1561 = vsel %vm263, %v1530, 0
    %v1563 = vsel %vm263, %v1532, 0
    %v1565 = vsel %vm263, %v1534, 0
    %1567 = vmatprep.subr.mxu0 0.0
    %1568 = vmatpush1.xpose.msra.mxu0 %v1551
    %1569 = vmatprep.subr.mxu0 0.0
    %1570 = vmatpush1.xpose.msra.mxu0 %v1553
    %1571 = vmatprep.subr.mxu0 0.0
    %1572 = vmatpush1.xpose.msra.mxu0 %v1555
    %1573 = vmatprep.subr.mxu0 0.0
    %1574 = vmatpush1.xpose.msra.mxu0 %v1557
    %1575 = vmatprep.subr.mxu0 0.0
    %1576 = vmatpush1.xpose.msra.mxu0 %v1559
    %1577 = vmatprep.subr.mxu0 0.0
    %1578 = vmatpush1.xpose.msra.mxu0 %v1561
    %1579 = vmatprep.subr.mxu0 0.0
    %1580 = vmatpush1.xpose.msra.mxu0 %v1563
    %1581 = vmatprep.subr.mxu0 0.0
    %1582 = vmatpush1.xpose.msra.mxu0 %v1565
    %1583 = vmatprep.subr.mxu0 0.0
    %1584 = vmatpush1.xpose.msra.mxu0 0.0
    %1585 = vmatprep.subr.mxu0 0.0
    %1586 = vmatpush1.xpose.msra.mxu0 0.0
    %1587 = vmatprep.subr.mxu0 0.0
    %1588 = vmatpush1.xpose.msra.mxu0 0.0
    %1589 = vmatprep.subr.mxu0 0.0
    %1590 = vmatpush1.xpose.msra.mxu0 0.0
    %1591 = vmatprep.subr.mxu0 0.0
    %1592 = vmatpush1.xpose.msra.mxu0 0.0
    %1593 = vmatprep.subr.mxu0 0.0
    %1594 = vmatpush1.xpose.msra.mxu0 0.0
    %1595 = vmatprep.subr.mxu0 0.0
    %1596 = vmatpush1.xpose.msra.mxu0 0.0
    %1597 = vmatprep.subr.mxu0 0.0
    %1598 = vmatpush1.xpose.msra.mxu0 0.0
    %1599 = vmatprep.subr.mxu0 0.0
    %1600 = vmatpush1.xpose.msra.mxu0 0.0
    %1601 = vmatprep.subr.mxu0 0.0
    %1602 = vmatpush1.xpose.msra.mxu0 0.0
    %1603 = vmatprep.subr.mxu0 0.0
    %1604 = vmatpush1.xpose.msra.mxu0 0.0
    %1605 = vmatprep.subr.mxu0 0.0
    %1606 = vmatpush1.xpose.msra.mxu0 0.0
    %1607 = vmatprep.subr.mxu0 0.0
    %1608 = vmatpush1.xpose.msra.mxu0 0.0
    %1609 = vmatprep.subr.mxu0 0.0
    %1610 = vmatpush1.xpose.msra.mxu0 0.0
    %1611 = vmatprep.subr.mxu0 0.0
    %1612 = vmatpush1.xpose.msra.mxu0 0.0
    %1613 = vmatprep.subr.mxu0 0.0
    %1614 = vmatpush1.xpose.msra.mxu0 0.0
    %1615 = vmatprep.subr.mxu0 0.0
    %1616 = vmatpush1.xpose.msra.mxu0 0.0
    %1617 = vmatprep.subr.mxu0 0.0
    %1618 = vmatpush1.xpose.msra.mxu0 0.0
    %1619 = vmatprep.subr.mxu0 0.0
    %1620 = vmatpush1.xpose.msra.mxu0 0.0
    %1621 = vmatprep.subr.mxu0 0.0
    %1622 = vmatpush1.xpose.msra.mxu0 0.0
    %1623 = vmatprep.subr.mxu0 0.0
    %1624 = vmatpush1.xpose.msra.mxu0 0.0
    %1625 = vmatprep.subr.mxu0 0.0
    %1626 = vmatpush1.xpose.msra.mxu0 0.0
    %1627 = vmatprep.subr.mxu0 0.0
    %1628 = vmatpush1.xpose.msra.mxu0 0.0
    %1629 = vmatprep.subr.mxu0 0.0
    %1630 = vmatpush1.xpose.msra.mxu0 0.0
    %1631 = vmatprep.mubr.f32.mxu0 0.0
    %1632 = vmatmul.mubr.f32.gmra.mrb[0].mxu0 %v1535
    %v1633 = vpop.f32.mrb[0].mxu0
    %v1634 = vadd.f32 0.0, %v1633
    %v1635 = vpop.f32.mrb[0].mxu0
    %1636 = vmatprep.mubr.f32.mxu0 0.0
    %1637 = vmatmul.mubr.f32.gmra.mrb[0].mxu0 %v1537
    %v1638 = vpop.f32.mrb[0].mxu0
    %v1639 = vadd.f32 0.0, %v1638
    %v1640 = vpop.f32.mrb[0].mxu0
    %1641 = vmatprep.mubr.f32.mxu0 0.0
    %1642 = vmatmul.mubr.f32.gmra.mrb[0].mxu0 %v1539
    %v1643 = vpop.f32.mrb[0].mxu0
    %v1644 = vadd.f32 0.0, %v1643
    %v1645 = vpop.f32.mrb[0].mxu0
    %1646 = vmatprep.mubr.f32.mxu0 0.0
    %1647 = vmatmul.mubr.f32.gmra.mrb[0].mxu0 %v1541
    %v1648 = vpop.f32.mrb[0].mxu0
    %v1649 = vadd.f32 0.0, %v1648
    %v1650 = vpop.f32.mrb[0].mxu0
    %1651 = vmatprep.mubr.f32.mxu0 0.0
    %1652 = vmatmul.mubr.f32.gmra.mrb[0].mxu0 %v1543
    %v1653 = vpop.f32.mrb[0].mxu0
    %v1654 = vadd.f32 0.0, %v1653
    %v1655 = vpop.f32.mrb[0].mxu0
    %1656 = vmatprep.mubr.f32.mxu0 0.0
    %1657 = vmatmul.mubr.f32.gmra.mrb[0].mxu0 %v1545
    %v1658 = vpop.f32.mrb[0].mxu0
    %v1659 = vadd.f32 0.0, %v1658
    %v1660 = vpop.f32.mrb[0].mxu0
    %1661 = vmatprep.mubr.f32.mxu0 0.0
    %1662 = vmatmul.mubr.f32.gmra.mrb[0].mxu0 %v1547
    %v1663 = vpop.f32.mrb[0].mxu0
    %v1664 = vadd.f32 0.0, %v1663
    %v1665 = vpop.f32.mrb[0].mxu0
    %1666 = vmatprep.mubr.f32.mxu0 0.0
    %1667 = vmatmul.mubr.f32.gmra.mrb[0].mxu0 %v1549
    %v1668 = vpop.f32.mrb[0].mxu0
    %v1669 = vadd.f32 0.0, %v1668
    %v1670 = vpop.f32.mrb[0].mxu0
    %1671 = vdwg.mxu0
    %v1672 = vmul.f32 %v1634, 0.25
    %v1673 = vmul.f32 %v1639, 0.25
    %v1674 = vmul.f32 %v1644, 0.25
    %v1675 = vmul.f32 %v1649, 0.25
    %v1676 = vmul.f32 %v1654, 0.25
    %v1677 = vmul.f32 %v1659, 0.25
    %v1678 = vmul.f32 %v1664, 0.25
    %v1679 = vmul.f32 %v1669, 0.25
    %v1680 = vadd.f32 %v1672, %v392
    %v1681 = vadd.f32 %v1673, %v393
    %v1682 = vadd.f32 %v1674, %v394
    %v1683 = vadd.f32 %v1675, %v395
    %v1684 = vadd.f32 %v1676, %v396
    %v1685 = vadd.f32 %v1677, %v397
    %v1686 = vadd.f32 %v1678, %v398
    %v1687 = vadd.f32 %v1679, %v399
    %v1688 = vsel %vm851, %v1680, -inf
    %1689 = vmax.xlane.f32.xlu0 %v1688
    %v1690 = vpop.xlane.xlu0 %1689
    %v1691 = vsel %vm851, %v1681, -inf
    %1692 = vmax.xlane.f32.xlu0 %v1691
    %v1693 = vpop.xlane.xlu0 %1692
    %v1694 = vsel %vm851, %v1682, -inf
    %1695 = vmax.xlane.f32.xlu0 %v1694
    %v1696 = vpop.xlane.xlu0 %1695
    %v1697 = vsel %vm851, %v1683, -inf
    %1698 = vmax.xlane.f32.xlu0 %v1697
    %v1699 = vpop.xlane.xlu0 %1698
    %v1700 = vsel %vm851, %v1684, -inf
    %1701 = vmax.xlane.f32.xlu0 %v1700
    %v1702 = vpop.xlane.xlu0 %1701
    %v1703 = vsel %vm851, %v1685, -inf
    %1704 = vmax.xlane.f32.xlu0 %v1703
    %v1705 = vpop.xlane.xlu0 %1704
    %v1706 = vsel %vm851, %v1686, -inf
    %1707 = vmax.xlane.f32.xlu0 %v1706
    %v1708 = vpop.xlane.xlu0 %1707
    %v1709 = vsel %vm851, %v1687, -inf
    %1710 = vmax.xlane.f32.xlu0 %v1709
    %v1711 = vpop.xlane.xlu0 %1710
    %v1712 = vsub.f32 %v1680, %v1690
    %v1713 = vsub.f32 %v1681, %v1693
    %v1714 = vsub.f32 %v1682, %v1696
    %v1715 = vsub.f32 %v1683, %v1699
    %v1716 = vsub.f32 %v1684, %v1702
    %v1717 = vsub.f32 %v1685, %v1705
    %v1718 = vsub.f32 %v1686, %v1708
    %v1719 = vsub.f32 %v1687, %v1711
    %v1720 = vmul.f32 %v1712, 1.442695
    %v1721 = vpow.pop %v1720
    %v1722 = vmul.f32 %v1713, 1.442695
    %v1723 = vpow.pop %v1722
    %v1724 = vmul.f32 %v1714, 1.442695
    %v1725 = vpow.pop %v1724
    %v1726 = vmul.f32 %v1715, 1.442695
    %v1727 = vpow.pop %v1726
    %v1728 = vmul.f32 %v1716, 1.442695
    %v1729 = vpow.pop %v1728
    %v1730 = vmul.f32 %v1717, 1.442695
    %v1731 = vpow.pop %v1730
    %v1732 = vmul.f32 %v1718, 1.442695
    %v1733 = vpow.pop %v1732
    %v1734 = vmul.f32 %v1719, 1.442695
    %v1735 = vpow.pop %v1734
    %v1736 = vsel %vm851, %v1721, 0.0
    %1737 = vadd.xlane.f32.xlu0 %v1736
    %v1738 = vpop.xlane.xlu0 %1737
    %v1739 = vsel %vm851, %v1723, 0.0
    %1740 = vadd.xlane.f32.xlu0 %v1739
    %v1741 = vpop.xlane.xlu0 %1740
    %v1742 = vsel %vm851, %v1725, 0.0
    %1743 = vadd.xlane.f32.xlu0 %v1742
    %v1744 = vpop.xlane.xlu0 %1743
    %v1745 = vsel %vm851, %v1727, 0.0
    %1746 = vadd.xlane.f32.xlu0 %v1745
    %v1747 = vpop.xlane.xlu0 %1746
    %v1748 = vsel %vm851, %v1729, 0.0
    %1749 = vadd.xlane.f32.xlu0 %v1748
    %v1750 = vpop.xlane.xlu0 %1749
    %v1751 = vsel %vm851, %v1731, 0.0
    %1752 = vadd.xlane.f32.xlu0 %v1751
    %v1753 = vpop.xlane.xlu0 %1752
    %v1754 = vsel %vm851, %v1733, 0.0
    %1755 = vadd.xlane.f32.xlu0 %v1754
    %v1756 = vpop.xlane.xlu0 %1755
    %v1757 = vsel %vm851, %v1735, 0.0
    %1758 = vadd.xlane.f32.xlu0 %v1757
    %v1759 = vpop.xlane.xlu0 %1758
    %v1760 = vrcp.pop %v1738
    %v1761 = vmul.f32 %v1721, %v1760
    %v1762 = vrcp.pop %v1741
    %v1763 = vmul.f32 %v1723, %v1762
    %v1764 = vrcp.pop %v1744
    %v1765 = vmul.f32 %v1725, %v1764
    %v1766 = vrcp.pop %v1747
    %v1767 = vmul.f32 %v1727, %v1766
    %v1768 = vrcp.pop %v1750
    %v1769 = vmul.f32 %v1729, %v1768
    %v1770 = vrcp.pop %v1753
    %v1771 = vmul.f32 %v1731, %v1770
    %v1772 = vrcp.pop %v1756
    %v1773 = vmul.f32 %v1733, %v1772
    %v1774 = vrcp.pop %v1759
    %v1775 = vmul.f32 %v1735, %v1774
    %1776 = vrot.lane.b32.xlu0 %v652, 96
    %v1777 = vpop.permute.xlu0 %1776
    %1778 = vrot.lane.b32.xlu0 %v655, 96
    %v1779 = vpop.permute.xlu0 %1778
    %1780 = vrot.lane.b32.xlu0 %v660, 96
    %v1781 = vpop.permute.xlu0 %1780
    %1782 = vrot.lane.b32.xlu0 %v663, 96
    %v1783 = vpop.permute.xlu0 %1782
    %1784 = vrot.lane.b32.xlu0 %v668, 96
    %v1785 = vpop.permute.xlu0 %1784
    %1786 = vrot.lane.b32.xlu0 %v671, 96
    %v1787 = vpop.permute.xlu0 %1786
    %1788 = vrot.lane.b32.xlu0 %v676, 96
    %v1789 = vpop.permute.xlu0 %1788
    %1790 = vrot.lane.b32.xlu0 %v679, 96
    %v1791 = vpop.permute.xlu0 %1790
    %v1801 = vsel %vm851, %v1761, 0
    %v1804 = vsel %vm851, %v1763, 0
    %v1807 = vsel %vm851, %v1765, 0
    %v1810 = vsel %vm851, %v1767, 0
    %v1813 = vsel %vm851, %v1769, 0
    %v1816 = vsel %vm851, %v1771, 0
    %v1819 = vsel %vm851, %v1773, 0
    %v1822 = vsel %vm851, %v1775, 0
    %1824 = vmatprep.subr.mxu0 0.0
    %1825 = vmatpush1.msra.mxu0 %v1777
    %1826 = vmatprep.subr.mxu0 0.0
    %1827 = vmatpush1.msra.mxu0 %v1779
    %1828 = vmatprep.subr.mxu0 0.0
    %1829 = vmatpush1.msra.mxu0 %v1781
    %1830 = vmatprep.subr.mxu0 0.0
    %1831 = vmatpush1.msra.mxu0 %v1783
    %1832 = vmatprep.subr.mxu0 0.0
    %1833 = vmatpush1.msra.mxu0 %v1785
    %1834 = vmatprep.subr.mxu0 0.0
    %1835 = vmatpush1.msra.mxu0 %v1787
    %1836 = vmatprep.subr.mxu0 0.0
    %1837 = vmatpush1.msra.mxu0 %v1789
    %1838 = vmatprep.subr.mxu0 0.0
    %1839 = vmatpush1.msra.mxu0 %v1791
    %1840 = vmatprep.subr.mxu0 0.0
    %1841 = vmatpush1.msra.mxu0 0.0
    %1842 = vmatprep.subr.mxu0 0.0
    %1843 = vmatpush1.msra.mxu0 0.0
    %1844 = vmatprep.subr.mxu0 0.0
    %1845 = vmatpush1.msra.mxu0 0.0
    %1846 = vmatprep.subr.mxu0 0.0
    %1847 = vmatpush1.msra.mxu0 0.0
    %1848 = vmatprep.subr.mxu0 0.0
    %1849 = vmatpush1.msra.mxu0 0.0
    %1850 = vmatprep.subr.mxu0 0.0
    %1851 = vmatpush1.msra.mxu0 0.0
    %1852 = vmatprep.subr.mxu0 0.0
    %1853 = vmatpush1.msra.mxu0 0.0
    %1854 = vmatprep.subr.mxu0 0.0
    %1855 = vmatpush1.msra.mxu0 0.0
    %1856 = vmatprep.subr.mxu0 0.0
    %1857 = vmatpush1.msra.mxu0 0.0
    %1858 = vmatprep.subr.mxu0 0.0
    %1859 = vmatpush1.msra.mxu0 0.0
    %1860 = vmatprep.subr.mxu0 0.0
    %1861 = vmatpush1.msra.mxu0 0.0
    %1862 = vmatprep.subr.mxu0 0.0
    %1863 = vmatpush1.msra.mxu0 0.0
    %1864 = vmatprep.subr.mxu0 0.0
    %1865 = vmatpush1.msra.mxu0 0.0
    %1866 = vmatprep.subr.mxu0 0.0
    %1867 = vmatpush1.msra.mxu0 0.0
    %1868 = vmatprep.subr.mxu0 0.0
    %1869 = vmatpush1.msra.mxu0 0.0
    %1870 = vmatprep.subr.mxu0 0.0
    %1871 = vmatpush1.msra.mxu0 0.0
    %1872 = vmatprep.subr.mxu0 0.0
    %1873 = vmatpush1.msra.mxu0 0.0
    %1874 = vmatprep.subr.mxu0 0.0
    %1875 = vmatpush1.msra.mxu0 0.0
    %1876 = vmatprep.subr.mxu0 0.0
    %1877 = vmatpush1.msra.mxu0 0.0
    %1878 = vmatprep.subr.mxu0 0.0
    %1879 = vmatpush1.msra.mxu0 0.0
    %1880 = vmatprep.subr.mxu0 0.0
    %1881 = vmatpush1.msra.mxu0 0.0
    %1882 = vmatprep.subr.mxu0 0.0
    %1883 = vmatpush1.msra.mxu0 0.0
    %1884 = vmatprep.subr.mxu0 0.0
    %1885 = vmatpush1.msra.mxu0 0.0
    %1886 = vmatprep.subr.mxu0 0.0
    %1887 = vmatpush1.msra.mxu0 0.0
    %1888 = vmatprep.mubr.f32.mxu0 0.0
    %1889 = vmatmul.mubr.f32.gmra.mrb[0].mxu0 %v1801
    %v1890 = vpop.f32.mrb[0].mxu0
    %v1891 = vadd.f32 0.0, %v1890
    %v1892 = vpop.f32.mrb[0].mxu0
    %1893 = vmatprep.mubr.f32.mxu0 0.0
    %1894 = vmatmul.mubr.f32.gmra.mrb[0].mxu0 %v1804
    %v1895 = vpop.f32.mrb[0].mxu0
    %v1896 = vadd.f32 0.0, %v1895
    %v1897 = vpop.f32.mrb[0].mxu0
    %1898 = vmatprep.mubr.f32.mxu0 0.0
    %1899 = vmatmul.mubr.f32.gmra.mrb[0].mxu0 %v1807
    %v1900 = vpop.f32.mrb[0].mxu0
    %v1901 = vadd.f32 0.0, %v1900
    %v1902 = vpop.f32.mrb[0].mxu0
    %1903 = vmatprep.mubr.f32.mxu0 0.0
    %1904 = vmatmul.mubr.f32.gmra.mrb[0].mxu0 %v1810
    %v1905 = vpop.f32.mrb[0].mxu0
    %v1906 = vadd.f32 0.0, %v1905
    %v1907 = vpop.f32.mrb[0].mxu0
    %1908 = vmatprep.mubr.f32.mxu0 0.0
    %1909 = vmatmul.mubr.f32.gmra.mrb[0].mxu0 %v1813
    %v1910 = vpop.f32.mrb[0].mxu0
    %v1911 = vadd.f32 0.0, %v1910
    %v1912 = vpop.f32.mrb[0].mxu0
    %1913 = vmatprep.mubr.f32.mxu0 0.0
    %1914 = vmatmul.mubr.f32.gmra.mrb[0].mxu0 %v1816
    %v1915 = vpop.f32.mrb[0].mxu0
    %v1916 = vadd.f32 0.0, %v1915
    %v1917 = vpop.f32.mrb[0].mxu0
    %1918 = vmatprep.mubr.f32.mxu0 0.0
    %1919 = vmatmul.mubr.f32.gmra.mrb[0].mxu0 %v1819
    %v1920 = vpop.f32.mrb[0].mxu0
    %v1921 = vadd.f32 0.0, %v1920
    %v1922 = vpop.f32.mrb[0].mxu0
    %1923 = vmatprep.mubr.f32.mxu0 0.0
    %1924 = vmatmul.mubr.f32.gmra.mrb[0].mxu0 %v1822
    %v1925 = vpop.f32.mrb[0].mxu0
    %v1926 = vadd.f32 0.0, %v1925
    %v1927 = vpop.f32.mrb[0].mxu0
    %1928 = vdwg.mxu0
    %1929 = vrot.lane.b32.xlu0 %v486, 80
    %v1930 = vpop.permute.xlu0 %1929
    %1931 = vrot.lane.b32.xlu0 %v489, 80
    %v1932 = vpop.permute.xlu0 %1931
    %1933 = vrot.lane.b32.xlu0 %v494, 80
    %v1934 = vpop.permute.xlu0 %1933
    %1935 = vrot.lane.b32.xlu0 %v497, 80
    %v1936 = vpop.permute.xlu0 %1935
    %1937 = vrot.lane.b32.xlu0 %v502, 80
    %v1938 = vpop.permute.xlu0 %1937
    %1939 = vrot.lane.b32.xlu0 %v505, 80
    %v1940 = vpop.permute.xlu0 %1939
    %1941 = vrot.lane.b32.xlu0 %v510, 80
    %v1942 = vpop.permute.xlu0 %1941
    %1943 = vrot.lane.b32.xlu0 %v513, 80
    %v1944 = vpop.permute.xlu0 %1943
    %1945 = vrot.lane.b32.xlu0 %v569, 80
    %v1946 = vpop.permute.xlu0 %1945
    %1947 = vrot.lane.b32.xlu0 %v572, 80
    %v1948 = vpop.permute.xlu0 %1947
    %1949 = vrot.lane.b32.xlu0 %v577, 80
    %v1950 = vpop.permute.xlu0 %1949
    %1951 = vrot.lane.b32.xlu0 %v580, 80
    %v1952 = vpop.permute.xlu0 %1951
    %1953 = vrot.lane.b32.xlu0 %v585, 80
    %v1954 = vpop.permute.xlu0 %1953
    %1955 = vrot.lane.b32.xlu0 %v588, 80
    %v1956 = vpop.permute.xlu0 %1955
    %1957 = vrot.lane.b32.xlu0 %v593, 80
    %v1958 = vpop.permute.xlu0 %1957
    %1959 = vrot.lane.b32.xlu0 %v596, 80
    %v1960 = vpop.permute.xlu0 %1959
    %v1961 = vsel %vm263, %v1930, 0
    %v1963 = vsel %vm263, %v1932, 0
    %v1965 = vsel %vm263, %v1934, 0
    %v1967 = vsel %vm263, %v1936, 0
    %v1969 = vsel %vm263, %v1938, 0
    %v1971 = vsel %vm263, %v1940, 0
    %v1973 = vsel %vm263, %v1942, 0
    %v1975 = vsel %vm263, %v1944, 0
    %v1977 = vsel %vm263, %v1946, 0
    %v1979 = vsel %vm263, %v1948, 0
    %v1981 = vsel %vm263, %v1950, 0
    %v1983 = vsel %vm263, %v1952, 0
    %v1985 = vsel %vm263, %v1954, 0
    %v1987 = vsel %vm263, %v1956, 0
    %v1989 = vsel %vm263, %v1958, 0
    %v1991 = vsel %vm263, %v1960, 0
    %1993 = vmatprep.subr.mxu0 0.0
    %1994 = vmatpush1.xpose.msra.mxu0 %v1977
    %1995 = vmatprep.subr.mxu0 0.0
    %1996 = vmatpush1.xpose.msra.mxu0 %v1979
    %1997 = vmatprep.subr.mxu0 0.0
    %1998 = vmatpush1.xpose.msra.mxu0 %v1981
    %1999 = vmatprep.subr.mxu0 0.0
    %2000 = vmatpush1.xpose.msra.mxu0 %v1983
    %2001 = vmatprep.subr.mxu0 0.0
    %2002 = vmatpush1.xpose.msra.mxu0 %v1985
    %2003 = vmatprep.subr.mxu0 0.0
    %2004 = vmatpush1.xpose.msra.mxu0 %v1987
    %2005 = vmatprep.subr.mxu0 0.0
    %2006 = vmatpush1.xpose.msra.mxu0 %v1989
    %2007 = vmatprep.subr.mxu0 0.0
    %2008 = vmatpush1.xpose.msra.mxu0 %v1991
    %2009 = vmatprep.subr.mxu0 0.0
    %2010 = vmatpush1.xpose.msra.mxu0 0.0
    %2011 = vmatprep.subr.mxu0 0.0
    %2012 = vmatpush1.xpose.msra.mxu0 0.0
    %2013 = vmatprep.subr.mxu0 0.0
    %2014 = vmatpush1.xpose.msra.mxu0 0.0
    %2015 = vmatprep.subr.mxu0 0.0
    %2016 = vmatpush1.xpose.msra.mxu0 0.0
    %2017 = vmatprep.subr.mxu0 0.0
    %2018 = vmatpush1.xpose.msra.mxu0 0.0
    %2019 = vmatprep.subr.mxu0 0.0
    %2020 = vmatpush1.xpose.msra.mxu0 0.0
    %2021 = vmatprep.subr.mxu0 0.0
    %2022 = vmatpush1.xpose.msra.mxu0 0.0
    %2023 = vmatprep.subr.mxu0 0.0
    %2024 = vmatpush1.xpose.msra.mxu0 0.0
    %2025 = vmatprep.subr.mxu0 0.0
    %2026 = vmatpush1.xpose.msra.mxu0 0.0
    %2027 = vmatprep.subr.mxu0 0.0
    %2028 = vmatpush1.xpose.msra.mxu0 0.0
    %2029 = vmatprep.subr.mxu0 0.0
    %2030 = vmatpush1.xpose.msra.mxu0 0.0
    %2031 = vmatprep.subr.mxu0 0.0
    %2032 = vmatpush1.xpose.msra.mxu0 0.0
    %2033 = vmatprep.subr.mxu0 0.0
    %2034 = vmatpush1.xpose.msra.mxu0 0.0
    %2035 = vmatprep.subr.mxu0 0.0
    %2036 = vmatpush1.xpose.msra.mxu0 0.0
    %2037 = vmatprep.subr.mxu0 0.0
    %2038 = vmatpush1.xpose.msra.mxu0 0.0
    %2039 = vmatprep.subr.mxu0 0.0
    %2040 = vmatpush1.xpose.msra.mxu0 0.0
    %2041 = vmatprep.subr.mxu0 0.0
    %2042 = vmatpush1.xpose.msra.mxu0 0.0
    %2043 = vmatprep.subr.mxu0 0.0
    %2044 = vmatpush1.xpose.msra.mxu0 0.0
    %2045 = vmatprep.subr.mxu0 0.0
    %2046 = vmatpush1.xpose.msra.mxu0 0.0
    %2047 = vmatprep.subr.mxu0 0.0
    %2048 = vmatpush1.xpose.msra.mxu0 0.0
    %2049 = vmatprep.subr.mxu0 0.0
    %2050 = vmatpush1.xpose.msra.mxu0 0.0
    %2051 = vmatprep.subr.mxu0 0.0
    %2052 = vmatpush1.xpose.msra.mxu0 0.0
    %2053 = vmatprep.subr.mxu0 0.0
    %2054 = vmatpush1.xpose.msra.mxu0 0.0
    %2055 = vmatprep.subr.mxu0 0.0
    %2056 = vmatpush1.xpose.msra.mxu0 0.0
    %2057 = vmatprep.mubr.f32.mxu0 0.0
    %2058 = vmatmul.mubr.f32.gmra.mrb[0].mxu0 %v1961
    %v2059 = vpop.f32.mrb[0].mxu0
    %v2060 = vadd.f32 0.0, %v2059
    %v2061 = vpop.f32.mrb[0].mxu0
    %2062 = vmatprep.mubr.f32.mxu0 0.0
    %2063 = vmatmul.mubr.f32.gmra.mrb[0].mxu0 %v1963
    %v2064 = vpop.f32.mrb[0].mxu0
    %v2065 = vadd.f32 0.0, %v2064
    %v2066 = vpop.f32.mrb[0].mxu0
    %2067 = vmatprep.mubr.f32.mxu0 0.0
    %2068 = vmatmul.mubr.f32.gmra.mrb[0].mxu0 %v1965
    %v2069 = vpop.f32.mrb[0].mxu0
    %v2070 = vadd.f32 0.0, %v2069
    %v2071 = vpop.f32.mrb[0].mxu0
    %2072 = vmatprep.mubr.f32.mxu0 0.0
    %2073 = vmatmul.mubr.f32.gmra.mrb[0].mxu0 %v1967
    %v2074 = vpop.f32.mrb[0].mxu0
    %v2075 = vadd.f32 0.0, %v2074
    %v2076 = vpop.f32.mrb[0].mxu0
    %2077 = vmatprep.mubr.f32.mxu0 0.0
    %2078 = vmatmul.mubr.f32.gmra.mrb[0].mxu0 %v1969
    %v2079 = vpop.f32.mrb[0].mxu0
    %v2080 = vadd.f32 0.0, %v2079
    %v2081 = vpop.f32.mrb[0].mxu0
    %2082 = vmatprep.mubr.f32.mxu0 0.0
    %2083 = vmatmul.mubr.f32.gmra.mrb[0].mxu0 %v1971
    %v2084 = vpop.f32.mrb[0].mxu0
    %v2085 = vadd.f32 0.0, %v2084
    %v2086 = vpop.f32.mrb[0].mxu0
    %2087 = vmatprep.mubr.f32.mxu0 0.0
    %2088 = vmatmul.mubr.f32.gmra.mrb[0].mxu0 %v1973
    %v2089 = vpop.f32.mrb[0].mxu0
    %v2090 = vadd.f32 0.0, %v2089
    %v2091 = vpop.f32.mrb[0].mxu0
    %2092 = vmatprep.mubr.f32.mxu0 0.0
    %2093 = vmatmul.mubr.f32.gmra.mrb[0].mxu0 %v1975
    %v2094 = vpop.f32.mrb[0].mxu0
    %v2095 = vadd.f32 0.0, %v2094
    %v2096 = vpop.f32.mrb[0].mxu0
    %2097 = vdwg.mxu0
    %v2098 = vmul.f32 %v2060, 0.25
    %v2099 = vmul.f32 %v2065, 0.25
    %v2100 = vmul.f32 %v2070, 0.25
    %v2101 = vmul.f32 %v2075, 0.25
    %v2102 = vmul.f32 %v2080, 0.25
    %v2103 = vmul.f32 %v2085, 0.25
    %v2104 = vmul.f32 %v2090, 0.25
    %v2105 = vmul.f32 %v2095, 0.25
    %v2106 = vadd.f32 %v2098, %v392
    %v2107 = vadd.f32 %v2099, %v393
    %v2108 = vadd.f32 %v2100, %v394
    %v2109 = vadd.f32 %v2101, %v395
    %v2110 = vadd.f32 %v2102, %v396
    %v2111 = vadd.f32 %v2103, %v397
    %v2112 = vadd.f32 %v2104, %v398
    %v2113 = vadd.f32 %v2105, %v399
    %v2114 = vsel %vm851, %v2106, -inf
    %2115 = vmax.xlane.f32.xlu0 %v2114
    %v2116 = vpop.xlane.xlu0 %2115
    %v2117 = vsel %vm851, %v2107, -inf
    %2118 = vmax.xlane.f32.xlu0 %v2117
    %v2119 = vpop.xlane.xlu0 %2118
    %v2120 = vsel %vm851, %v2108, -inf
    %2121 = vmax.xlane.f32.xlu0 %v2120
    %v2122 = vpop.xlane.xlu0 %2121
    %v2123 = vsel %vm851, %v2109, -inf
    %2124 = vmax.xlane.f32.xlu0 %v2123
    %v2125 = vpop.xlane.xlu0 %2124
    %v2126 = vsel %vm851, %v2110, -inf
    %2127 = vmax.xlane.f32.xlu0 %v2126
    %v2128 = vpop.xlane.xlu0 %2127
    %v2129 = vsel %vm851, %v2111, -inf
    %2130 = vmax.xlane.f32.xlu0 %v2129
    %v2131 = vpop.xlane.xlu0 %2130
    %v2132 = vsel %vm851, %v2112, -inf
    %2133 = vmax.xlane.f32.xlu0 %v2132
    %v2134 = vpop.xlane.xlu0 %2133
    %v2135 = vsel %vm851, %v2113, -inf
    %2136 = vmax.xlane.f32.xlu0 %v2135
    %v2137 = vpop.xlane.xlu0 %2136
    %v2138 = vsub.f32 %v2106, %v2116
    %v2139 = vsub.f32 %v2107, %v2119
    %v2140 = vsub.f32 %v2108, %v2122
    %v2141 = vsub.f32 %v2109, %v2125
    %v2142 = vsub.f32 %v2110, %v2128
    %v2143 = vsub.f32 %v2111, %v2131
    %v2144 = vsub.f32 %v2112, %v2134
    %v2145 = vsub.f32 %v2113, %v2137
    %v2146 = vmul.f32 %v2138, 1.442695
    %v2147 = vpow.pop %v2146
    %v2148 = vmul.f32 %v2139, 1.442695
    %v2149 = vpow.pop %v2148
    %v2150 = vmul.f32 %v2140, 1.442695
    %v2151 = vpow.pop %v2150
    %v2152 = vmul.f32 %v2141, 1.442695
    %v2153 = vpow.pop %v2152
    %v2154 = vmul.f32 %v2142, 1.442695
    %v2155 = vpow.pop %v2154
    %v2156 = vmul.f32 %v2143, 1.442695
    %v2157 = vpow.pop %v2156
    %v2158 = vmul.f32 %v2144, 1.442695
    %v2159 = vpow.pop %v2158
    %v2160 = vmul.f32 %v2145, 1.442695
    %v2161 = vpow.pop %v2160
    %v2162 = vsel %vm851, %v2147, 0.0
    %2163 = vadd.xlane.f32.xlu0 %v2162
    %v2164 = vpop.xlane.xlu0 %2163
    %v2165 = vsel %vm851, %v2149, 0.0
    %2166 = vadd.xlane.f32.xlu0 %v2165
    %v2167 = vpop.xlane.xlu0 %2166
    %v2168 = vsel %vm851, %v2151, 0.0
    %2169 = vadd.xlane.f32.xlu0 %v2168
    %v2170 = vpop.xlane.xlu0 %2169
    %v2171 = vsel %vm851, %v2153, 0.0
    %2172 = vadd.xlane.f32.xlu0 %v2171
    %v2173 = vpop.xlane.xlu0 %2172
    %v2174 = vsel %vm851, %v2155, 0.0
    %2175 = vadd.xlane.f32.xlu0 %v2174
    %v2176 = vpop.xlane.xlu0 %2175
    %v2177 = vsel %vm851, %v2157, 0.0
    %2178 = vadd.xlane.f32.xlu0 %v2177
    %v2179 = vpop.xlane.xlu0 %2178
    %v2180 = vsel %vm851, %v2159, 0.0
    %2181 = vadd.xlane.f32.xlu0 %v2180
    %v2182 = vpop.xlane.xlu0 %2181
    %v2183 = vsel %vm851, %v2161, 0.0
    %2184 = vadd.xlane.f32.xlu0 %v2183
    %v2185 = vpop.xlane.xlu0 %2184
    %v2186 = vrcp.pop %v2164
    %v2187 = vmul.f32 %v2147, %v2186
    %v2188 = vrcp.pop %v2167
    %v2189 = vmul.f32 %v2149, %v2188
    %v2190 = vrcp.pop %v2170
    %v2191 = vmul.f32 %v2151, %v2190
    %v2192 = vrcp.pop %v2173
    %v2193 = vmul.f32 %v2153, %v2192
    %v2194 = vrcp.pop %v2176
    %v2195 = vmul.f32 %v2155, %v2194
    %v2196 = vrcp.pop %v2179
    %v2197 = vmul.f32 %v2157, %v2196
    %v2198 = vrcp.pop %v2182
    %v2199 = vmul.f32 %v2159, %v2198
    %v2200 = vrcp.pop %v2185
    %v2201 = vmul.f32 %v2161, %v2200
    %2202 = vrot.lane.b32.xlu0 %v652, 80
    %v2203 = vpop.permute.xlu0 %2202
    %2204 = vrot.lane.b32.xlu0 %v655, 80
    %v2205 = vpop.permute.xlu0 %2204
    %2206 = vrot.lane.b32.xlu0 %v660, 80
    %v2207 = vpop.permute.xlu0 %2206
    %2208 = vrot.lane.b32.xlu0 %v663, 80
    %v2209 = vpop.permute.xlu0 %2208
    %2210 = vrot.lane.b32.xlu0 %v668, 80
    %v2211 = vpop.permute.xlu0 %2210
    %2212 = vrot.lane.b32.xlu0 %v671, 80
    %v2213 = vpop.permute.xlu0 %2212
    %2214 = vrot.lane.b32.xlu0 %v676, 80
    %v2215 = vpop.permute.xlu0 %2214
    %2216 = vrot.lane.b32.xlu0 %v679, 80
    %v2217 = vpop.permute.xlu0 %2216
    %v2227 = vsel %vm851, %v2187, 0
    %v2230 = vsel %vm851, %v2189, 0
    %v2233 = vsel %vm851, %v2191, 0
    %v2236 = vsel %vm851, %v2193, 0
    %v2239 = vsel %vm851, %v2195, 0
    %v2242 = vsel %vm851, %v2197, 0
    %v2245 = vsel %vm851, %v2199, 0
    %v2248 = vsel %vm851, %v2201, 0
    %2250 = vmatprep.subr.mxu0 0.0
    %2251 = vmatpush1.msra.mxu0 %v2203
    %2252 = vmatprep.subr.mxu0 0.0
    %2253 = vmatpush1.msra.mxu0 %v2205
    %2254 = vmatprep.subr.mxu0 0.0
    %2255 = vmatpush1.msra.mxu0 %v2207
    %2256 = vmatprep.subr.mxu0 0.0
    %2257 = vmatpush1.msra.mxu0 %v2209
    %2258 = vmatprep.subr.mxu0 0.0
    %2259 = vmatpush1.msra.mxu0 %v2211
    %2260 = vmatprep.subr.mxu0 0.0
    %2261 = vmatpush1.msra.mxu0 %v2213
    %2262 = vmatprep.subr.mxu0 0.0
    %2263 = vmatpush1.msra.mxu0 %v2215
    %2264 = vmatprep.subr.mxu0 0.0
    %2265 = vmatpush1.msra.mxu0 %v2217
    %2266 = vmatprep.subr.mxu0 0.0
    %2267 = vmatpush1.msra.mxu0 0.0
    %2268 = vmatprep.subr.mxu0 0.0
    %2269 = vmatpush1.msra.mxu0 0.0
    %2270 = vmatprep.subr.mxu0 0.0
    %2271 = vmatpush1.msra.mxu0 0.0
    %2272 = vmatprep.subr.mxu0 0.0
    %2273 = vmatpush1.msra.mxu0 0.0
    %2274 = vmatprep.subr.mxu0 0.0
    %2275 = vmatpush1.msra.mxu0 0.0
    %2276 = vmatprep.subr.mxu0 0.0
    %2277 = vmatpush1.msra.mxu0 0.0
    %2278 = vmatprep.subr.mxu0 0.0
    %2279 = vmatpush1.msra.mxu0 0.0
    %2280 = vmatprep.subr.mxu0 0.0
    %2281 = vmatpush1.msra.mxu0 0.0
    %2282 = vmatprep.subr.mxu0 0.0
    %2283 = vmatpush1.msra.mxu0 0.0
    %2284 = vmatprep.subr.mxu0 0.0
    %2285 = vmatpush1.msra.mxu0 0.0
    %2286 = vmatprep.subr.mxu0 0.0
    %2287 = vmatpush1.msra.mxu0 0.0
    %2288 = vmatprep.subr.mxu0 0.0
    %2289 = vmatpush1.msra.mxu0 0.0
    %2290 = vmatprep.subr.mxu0 0.0
    %2291 = vmatpush1.msra.mxu0 0.0
    %2292 = vmatprep.subr.mxu0 0.0
    %2293 = vmatpush1.msra.mxu0 0.0
    %2294 = vmatprep.subr.mxu0 0.0
    %2295 = vmatpush1.msra.mxu0 0.0
    %2296 = vmatprep.subr.mxu0 0.0
    %2297 = vmatpush1.msra.mxu0 0.0
    %2298 = vmatprep.subr.mxu0 0.0
    %2299 = vmatpush1.msra.mxu0 0.0
    %2300 = vmatprep.subr.mxu0 0.0
    %2301 = vmatpush1.msra.mxu0 0.0
    %2302 = vmatprep.subr.mxu0 0.0
    %2303 = vmatpush1.msra.mxu0 0.0
    %2304 = vmatprep.subr.mxu0 0.0
    %2305 = vmatpush1.msra.mxu0 0.0
    %2306 = vmatprep.subr.mxu0 0.0
    %2307 = vmatpush1.msra.mxu0 0.0
    %2308 = vmatprep.subr.mxu0 0.0
    %2309 = vmatpush1.msra.mxu0 0.0
    %2310 = vmatprep.subr.mxu0 0.0
    %2311 = vmatpush1.msra.mxu0 0.0
    %2312 = vmatprep.subr.mxu0 0.0
    %2313 = vmatpush1.msra.mxu0 0.0
    %2314 = vmatprep.mubr.f32.mxu0 0.0
    %2315 = vmatmul.mubr.f32.gmra.mrb[0].mxu0 %v2227
    %v2316 = vpop.f32.mrb[0].mxu0
    %v2317 = vadd.f32 0.0, %v2316
    %v2318 = vpop.f32.mrb[0].mxu0
    %2319 = vmatprep.mubr.f32.mxu0 0.0
    %2320 = vmatmul.mubr.f32.gmra.mrb[0].mxu0 %v2230
    %v2321 = vpop.f32.mrb[0].mxu0
    %v2322 = vadd.f32 0.0, %v2321
    %v2323 = vpop.f32.mrb[0].mxu0
    %2324 = vmatprep.mubr.f32.mxu0 0.0
    %2325 = vmatmul.mubr.f32.gmra.mrb[0].mxu0 %v2233
    %v2326 = vpop.f32.mrb[0].mxu0
    %v2327 = vadd.f32 0.0, %v2326
    %v2328 = vpop.f32.mrb[0].mxu0
    %2329 = vmatprep.mubr.f32.mxu0 0.0
    %2330 = vmatmul.mubr.f32.gmra.mrb[0].mxu0 %v2236
    %v2331 = vpop.f32.mrb[0].mxu0
    %v2332 = vadd.f32 0.0, %v2331
    %v2333 = vpop.f32.mrb[0].mxu0
    %2334 = vmatprep.mubr.f32.mxu0 0.0
    %2335 = vmatmul.mubr.f32.gmra.mrb[0].mxu0 %v2239
    %v2336 = vpop.f32.mrb[0].mxu0
    %v2337 = vadd.f32 0.0, %v2336
    %v2338 = vpop.f32.mrb[0].mxu0
    %2339 = vmatprep.mubr.f32.mxu0 0.0
    %2340 = vmatmul.mubr.f32.gmra.mrb[0].mxu0 %v2242
    %v2341 = vpop.f32.mrb[0].mxu0
    %v2342 = vadd.f32 0.0, %v2341
    %v2343 = vpop.f32.mrb[0].mxu0
    %2344 = vmatprep.mubr.f32.mxu0 0.0
    %2345 = vmatmul.mubr.f32.gmra.mrb[0].mxu0 %v2245
    %v2346 = vpop.f32.mrb[0].mxu0
    %v2347 = vadd.f32 0.0, %v2346
    %v2348 = vpop.f32.mrb[0].mxu0
    %2349 = vmatprep.mubr.f32.mxu0 0.0
    %2350 = vmatmul.mubr.f32.gmra.mrb[0].mxu0 %v2248
    %v2351 = vpop.f32.mrb[0].mxu0
    %v2352 = vadd.f32 0.0, %v2351
    %v2353 = vpop.f32.mrb[0].mxu0
    %2354 = vdwg.mxu0
    %2363 = vrot.lane.b32.xlu0 %v1465, 16
    %v2364 = vpop.permute.xlu0 %2363
    %2365 = vrot.lane.b32.xlu0 %v1470, 16
    %v2366 = vpop.permute.xlu0 %2365
    %2367 = vrot.lane.b32.xlu0 %v1475, 16
    %v2368 = vpop.permute.xlu0 %2367
    %2369 = vrot.lane.b32.xlu0 %v1480, 16
    %v2370 = vpop.permute.xlu0 %2369
    %2371 = vrot.lane.b32.xlu0 %v1485, 16
    %v2372 = vpop.permute.xlu0 %2371
    %2373 = vrot.lane.b32.xlu0 %v1490, 16
    %v2374 = vpop.permute.xlu0 %2373
    %2375 = vrot.lane.b32.xlu0 %v1495, 16
    %v2376 = vpop.permute.xlu0 %2375
    %2377 = vrot.lane.b32.xlu0 %v1500, 16
    %v2378 = vpop.permute.xlu0 %2377
    %2395 = vrot.lane.b32.xlu0 %v1891, 32
    %v2396 = vpop.permute.xlu0 %2395
    %2397 = vrot.lane.b32.xlu0 %v1896, 32
    %v2398 = vpop.permute.xlu0 %2397
    %2399 = vrot.lane.b32.xlu0 %v1901, 32
    %v2400 = vpop.permute.xlu0 %2399
    %2401 = vrot.lane.b32.xlu0 %v1906, 32
    %v2402 = vpop.permute.xlu0 %2401
    %2403 = vrot.lane.b32.xlu0 %v1911, 32
    %v2404 = vpop.permute.xlu0 %2403
    %2405 = vrot.lane.b32.xlu0 %v1916, 32
    %v2406 = vpop.permute.xlu0 %2405
    %2407 = vrot.lane.b32.xlu0 %v1921, 32
    %v2408 = vpop.permute.xlu0 %2407
    %2409 = vrot.lane.b32.xlu0 %v1926, 32
    %v2410 = vpop.permute.xlu0 %2409
    %2427 = vrot.lane.b32.xlu0 %v2317, 48
    %v2428 = vpop.permute.xlu0 %2427
    %2429 = vrot.lane.b32.xlu0 %v2322, 48
    %v2430 = vpop.permute.xlu0 %2429
    %2431 = vrot.lane.b32.xlu0 %v2327, 48
    %v2432 = vpop.permute.xlu0 %2431
    %2433 = vrot.lane.b32.xlu0 %v2332, 48
    %v2434 = vpop.permute.xlu0 %2433
    %2435 = vrot.lane.b32.xlu0 %v2337, 48
    %v2436 = vpop.permute.xlu0 %2435
    %2437 = vrot.lane.b32.xlu0 %v2342, 48
    %v2438 = vpop.permute.xlu0 %2437
    %2439 = vrot.lane.b32.xlu0 %v2347, 48
    %v2440 = vpop.permute.xlu0 %2439
    %2441 = vrot.lane.b32.xlu0 %v2352, 48
    %v2442 = vpop.permute.xlu0 %2441
    %v2451 = vsel %vm263, %v1031, %v2364
    %v2452 = vsel %vm263, %v1036, %v2366
    %v2453 = vsel %vm263, %v1041, %v2368
    %v2454 = vsel %vm263, %v1046, %v2370
    %v2455 = vsel %vm263, %v1051, %v2372
    %v2456 = vsel %vm263, %v1056, %v2374
    %v2457 = vsel %vm263, %v1061, %v2376
    %v2458 = vsel %vm263, %v1066, %v2378
    %v2459 = vsel %vm438, %v2451, %v2396
    %v2460 = vsel %vm438, %v2452, %v2398
    %v2461 = vsel %vm438, %v2453, %v2400
    %v2462 = vsel %vm438, %v2454, %v2402
    %v2463 = vsel %vm438, %v2455, %v2404
    %v2464 = vsel %vm438, %v2456, %v2406
    %v2465 = vsel %vm438, %v2457, %v2408
    %v2466 = vsel %vm438, %v2458, %v2410
    %vm2467 = vcmask 392192
    %v2468 = vsel %vm2467, %v2459, %v2428
    %v2469 = vsel %vm2467, %v2460, %v2430
    %v2470 = vsel %vm2467, %v2461, %v2432
    %v2471 = vsel %vm2467, %v2462, %v2434
    %v2472 = vsel %vm2467, %v2463, %v2436
    %v2473 = vsel %vm2467, %v2464, %v2438
    %v2474 = vsel %vm2467, %v2465, %v2440
    %v2475 = vsel %vm2467, %v2466, %v2442
    %v2476 = vld [vmem:[%s47] sm:$0x1]
    %v2477 = vld [vmem:[%s49] sm:$0x1]
    %v2478 = vsel %vm851, %v2468, 0.0
    %2479 = vadd.xlane.f32.xlu0 %v2478
    %v2480 = vpop.xlane.xlu0 %2479
    %v2481 = vsel %vm851, %v2469, 0.0
    %2482 = vadd.xlane.f32.xlu0 %v2481
    %v2483 = vpop.xlane.xlu0 %2482
    %v2484 = vsel %vm851, %v2470, 0.0
    %2485 = vadd.xlane.f32.xlu0 %v2484
    %v2486 = vpop.xlane.xlu0 %2485
    %v2487 = vsel %vm851, %v2471, 0.0
    %2488 = vadd.xlane.f32.xlu0 %v2487
    %v2489 = vpop.xlane.xlu0 %2488
    %v2490 = vsel %vm851, %v2472, 0.0
    %2491 = vadd.xlane.f32.xlu0 %v2490
    %v2492 = vpop.xlane.xlu0 %2491
    %v2493 = vsel %vm851, %v2473, 0.0
    %2494 = vadd.xlane.f32.xlu0 %v2493
    %v2495 = vpop.xlane.xlu0 %2494
    %v2496 = vsel %vm851, %v2474, 0.0
    %2497 = vadd.xlane.f32.xlu0 %v2496
    %v2498 = vpop.xlane.xlu0 %2497
    %v2499 = vsel %vm851, %v2475, 0.0
    %2500 = vadd.xlane.f32.xlu0 %v2499
    %v2501 = vpop.xlane.xlu0 %2500
    %v2502 = vrcp.pop 64.0
    %v2503 = vmul.f32 %v2480, %v2502
    %v2504 = vmul.f32 %v2483, %v2502
    %v2505 = vmul.f32 %v2486, %v2502
    %v2506 = vmul.f32 %v2489, %v2502
    %v2507 = vmul.f32 %v2492, %v2502
    %v2508 = vmul.f32 %v2495, %v2502
    %v2509 = vmul.f32 %v2498, %v2502
    %v2510 = vmul.f32 %v2501, %v2502
    %v2511 = vsub.f32 %v2468, %v2503
    %v2512 = vsub.f32 %v2469, %v2504
    %v2513 = vsub.f32 %v2470, %v2505
    %v2514 = vsub.f32 %v2471, %v2506
    %v2515 = vsub.f32 %v2472, %v2507
    %v2516 = vsub.f32 %v2473, %v2508
    %v2517 = vsub.f32 %v2474, %v2509
    %v2518 = vsub.f32 %v2475, %v2510
    %v2519 = vmul.f32 %v2511, %v2511
    %v2520 = vmul.f32 %v2512, %v2512
    %v2521 = vmul.f32 %v2513, %v2513
    %v2522 = vmul.f32 %v2514, %v2514
    %v2523 = vmul.f32 %v2515, %v2515
    %v2524 = vmul.f32 %v2516, %v2516
    %v2525 = vmul.f32 %v2517, %v2517
    %v2526 = vmul.f32 %v2518, %v2518
    %v2527 = vsel %vm851, %v2519, 0.0
    %2528 = vadd.xlane.f32.xlu0 %v2527
    %v2529 = vpop.xlane.xlu0 %2528
    %v2530 = vsel %vm851, %v2520, 0.0
    %2531 = vadd.xlane.f32.xlu0 %v2530
    %v2532 = vpop.xlane.xlu0 %2531
    %v2533 = vsel %vm851, %v2521, 0.0
    %2534 = vadd.xlane.f32.xlu0 %v2533
    %v2535 = vpop.xlane.xlu0 %2534
    %v2536 = vsel %vm851, %v2522, 0.0
    %2537 = vadd.xlane.f32.xlu0 %v2536
    %v2538 = vpop.xlane.xlu0 %2537
    %v2539 = vsel %vm851, %v2523, 0.0
    %2540 = vadd.xlane.f32.xlu0 %v2539
    %v2541 = vpop.xlane.xlu0 %2540
    %v2542 = vsel %vm851, %v2524, 0.0
    %2543 = vadd.xlane.f32.xlu0 %v2542
    %v2544 = vpop.xlane.xlu0 %2543
    %v2545 = vsel %vm851, %v2525, 0.0
    %2546 = vadd.xlane.f32.xlu0 %v2545
    %v2547 = vpop.xlane.xlu0 %2546
    %v2548 = vsel %vm851, %v2526, 0.0
    %2549 = vadd.xlane.f32.xlu0 %v2548
    %v2550 = vpop.xlane.xlu0 %2549
    %v2551 = vmul.f32 %v2529, %v2502
    %v2552 = vmul.f32 %v2532, %v2502
    %v2553 = vmul.f32 %v2535, %v2502
    %v2554 = vmul.f32 %v2538, %v2502
    %v2555 = vmul.f32 %v2541, %v2502
    %v2556 = vmul.f32 %v2544, %v2502
    %v2557 = vmul.f32 %v2547, %v2502
    %v2558 = vmul.f32 %v2550, %v2502
    %v2559 = vadd.f32 %v2551, 1e-05
    %v2560 = vadd.f32 %v2552, 1e-05
    %v2561 = vadd.f32 %v2553, 1e-05
    %v2562 = vadd.f32 %v2554, 1e-05
    %v2563 = vadd.f32 %v2555, 1e-05
    %v2564 = vadd.f32 %v2556, 1e-05
    %v2565 = vadd.f32 %v2557, 1e-05
    %v2566 = vadd.f32 %v2558, 1e-05
    %v2567 = vrsqrt.pop %v2559
    %v2568 = vrsqrt.pop %v2560
    %v2569 = vrsqrt.pop %v2561
    %v2570 = vrsqrt.pop %v2562
    %v2571 = vrsqrt.pop %v2563
    %v2572 = vrsqrt.pop %v2564
    %v2573 = vrsqrt.pop %v2565
    %v2574 = vrsqrt.pop %v2566
    %v2575 = vmul.f32 %v2511, %v2567
    %v2576 = vmul.f32 %v2512, %v2568
    %v2577 = vmul.f32 %v2513, %v2569
    %v2578 = vmul.f32 %v2514, %v2570
    %v2579 = vmul.f32 %v2515, %v2571
    %v2580 = vmul.f32 %v2516, %v2572
    %v2581 = vmul.f32 %v2517, %v2573
    %v2582 = vmul.f32 %v2518, %v2574
    %v2584 = vlaneseq
    %v2585 = vshrl.u32 %v2584, 7
    %v2586 = vsub.s32 0, %v2585
    %v2587 = vrot.slane %v2476, %v2586
    %v2589 = vmul.f32 %v2575, %v2587
    %v2590 = vmul.f32 %v2576, %v2587
    %v2591 = vmul.f32 %v2577, %v2587
    %v2592 = vmul.f32 %v2578, %v2587
    %v2593 = vmul.f32 %v2579, %v2587
    %v2594 = vmul.f32 %v2580, %v2587
    %v2595 = vmul.f32 %v2581, %v2587
    %v2596 = vmul.f32 %v2582, %v2587
    %v2598 = vlaneseq
    %v2599 = vshrl.u32 %v2598, 7
    %v2600 = vsub.s32 0, %v2599
    %v2601 = vrot.slane %v2477, %v2600
    %v2603 = vadd.f32 %v2589, %v2601
    %v2604 = vadd.f32 %v2590, %v2601
    %v2605 = vadd.f32 %v2591, %v2601
    %v2606 = vadd.f32 %v2592, %v2601
    %v2607 = vadd.f32 %v2593, %v2601
    %v2608 = vadd.f32 %v2594, %v2601
    %v2609 = vadd.f32 %v2595, %v2601
    %v2610 = vadd.f32 %v2596, %v2601
    %v2611 = vld [vmem:[%s51] sm:$0xf]
    %v2612 = vld [vmem:[%s51 + $0x4] sm:$0xf]
    %v2613 = vld [vmem:[%s51 + $0x8] sm:$0xf]
    %v2614 = vld [vmem:[%s51 + $0xc] sm:$0xf]
    %v2615 = vld [vmem:[%s51 + $0x10] sm:$0xf]
    %v2616 = vld [vmem:[%s51 + $0x14] sm:$0xf]
    %v2617 = vld [vmem:[%s51 + $0x18] sm:$0xf]
    %v2618 = vld [vmem:[%s51 + $0x1c] sm:$0xf]
    %v2619 = vld [vmem:[%s53] sm:$0x1]
    %v2620 = vld [vmem:[%s55] sm:$0x1]
    %v2621 = vld [vmem:[%s17] sm:$0xff]
    %v2622 = vpack.c.bf16 %v2604, %v2603
    %v2623 = vpack.c.bf16 %v2606, %v2605
    %v2624 = vpack.c.bf16 %v2608, %v2607
    %v2625 = vpack.c.bf16 %v2610, %v2609
    %v2627 = vlaneseq
    %v2628 = vshrl.u32 %v2627, 7
    %v2629 = vsub.s32 0, %v2628
    %v2630 = vrot.slane %v2619, %v2629
    %v2640 = vunpack.c.l.b16 %v2611
    %v2641 = vunpack.c.l.b16 %v2612
    %v2642 = vunpack.c.l.b16 %v2613
    %v2643 = vunpack.c.l.b16 %v2614
    %v2644 = vunpack.c.l.b16 %v2615
    %v2645 = vunpack.c.l.b16 %v2616
    %v2646 = vunpack.c.l.b16 %v2617
    %v2647 = vunpack.c.l.b16 %v2618
    %v2648 = vpack.c.b16 %v2641, %v2640
    %v2649 = vpack.c.b16 %v2643, %v2642
    %v2650 = vpack.c.b16 %v2645, %v2644
    %v2651 = vpack.c.b16 %v2647, %v2646
    %v2657 = vsel %vm851, %v2622, 0
    %v2660 = vsel %vm851, %v2623, 0
    %v2663 = vsel %vm851, %v2624, 0
    %v2666 = vsel %vm851, %v2625, 0
    %2668 = vmatprep.subr.bf16.mxu0 0
    %2669 = vmatpush1.bf16.msra.mxu0 %v2648
    %2670 = vmatprep.subr.bf16.mxu0 0
    %2671 = vmatpush1.bf16.msra.mxu0 %v2649
    %2672 = vmatprep.subr.bf16.mxu0 0
    %2673 = vmatpush1.bf16.msra.mxu0 %v2650
    %2674 = vmatprep.subr.bf16.mxu0 0
    %2675 = vmatpush1.bf16.msra.mxu0 %v2651
    %2676 = vmatprep.subr.bf16.mxu0 0
    %2677 = vmatpush1.bf16.msra.mxu0 0
    %2678 = vmatprep.subr.bf16.mxu0 0
    %2679 = vmatpush1.bf16.msra.mxu0 0
    %2680 = vmatprep.subr.bf16.mxu0 0
    %2681 = vmatpush1.bf16.msra.mxu0 0
    %2682 = vmatprep.subr.bf16.mxu0 0
    %2683 = vmatpush1.bf16.msra.mxu0 0
    %2684 = vmatprep.subr.bf16.mxu0 0
    %2685 = vmatpush1.bf16.msra.mxu0 0
    %2686 = vmatprep.subr.bf16.mxu0 0
    %2687 = vmatpush1.bf16.msra.mxu0 0
    %2688 = vmatprep.subr.bf16.mxu0 0
    %2689 = vmatpush1.bf16.msra.mxu0 0
    %2690 = vmatprep.subr.bf16.mxu0 0
    %2691 = vmatpush1.bf16.msra.mxu0 0
    %2692 = vmatprep.subr.bf16.mxu0 0
    %2693 = vmatpush1.bf16.msra.mxu0 0
    %2694 = vmatprep.subr.bf16.mxu0 0
    %2695 = vmatpush1.bf16.msra.mxu0 0
    %2696 = vmatprep.subr.bf16.mxu0 0
    %2697 = vmatpush1.bf16.msra.mxu0 0
    %2698 = vmatprep.subr.bf16.mxu0 0
    %2699 = vmatpush1.bf16.msra.mxu0 0
    %2700 = vmatprep.mubr.bf16.mxu0 0
    %2701 = vmatmul.mubr.bf16.gmra.mrb[0].mxu0 %v2657
    %v2702 = vpop.f32.mrb[0].mxu0
    %v2703 = vadd.f32 %v2630, %v2702
    %v2704 = vpop.f32.mrb[0].mxu0
    %v2705 = vpop.f32.mrb[0].mxu0
    %v2706 = vadd.f32 %v2630, %v2705
    %v2707 = vpop.f32.mrb[0].mxu0
    %2708 = vmatprep.mubr.bf16.mxu0 0
    %2709 = vmatmul.mubr.bf16.gmra.mrb[0].mxu0 %v2660
    %v2710 = vpop.f32.mrb[0].mxu0
    %v2711 = vadd.f32 %v2630, %v2710
    %v2712 = vpop.f32.mrb[0].mxu0
    %v2713 = vpop.f32.mrb[0].mxu0
    %v2714 = vadd.f32 %v2630, %v2713
    %v2715 = vpop.f32.mrb[0].mxu0
    %2716 = vmatprep.mubr.bf16.mxu0 0
    %2717 = vmatmul.mubr.bf16.gmra.mrb[0].mxu0 %v2663
    %v2718 = vpop.f32.mrb[0].mxu0
    %v2719 = vadd.f32 %v2630, %v2718
    %v2720 = vpop.f32.mrb[0].mxu0
    %v2721 = vpop.f32.mrb[0].mxu0
    %v2722 = vadd.f32 %v2630, %v2721
    %v2723 = vpop.f32.mrb[0].mxu0
    %2724 = vmatprep.mubr.bf16.mxu0 0
    %2725 = vmatmul.mubr.bf16.gmra.mrb[0].mxu0 %v2666
    %v2726 = vpop.f32.mrb[0].mxu0
    %v2727 = vadd.f32 %v2630, %v2726
    %v2728 = vpop.f32.mrb[0].mxu0
    %v2729 = vpop.f32.mrb[0].mxu0
    %v2730 = vadd.f32 %v2630, %v2729
    %v2731 = vpop.f32.mrb[0].mxu0
    %2732 = vdwg.mxu0
    %v2733 = vtanh.pop %v2703
    %v2734 = vtanh.pop %v2706
    %v2735 = vtanh.pop %v2711
    %v2736 = vtanh.pop %v2714
    %v2737 = vtanh.pop %v2719
    %v2738 = vtanh.pop %v2722
    %v2739 = vtanh.pop %v2727
    %v2740 = vtanh.pop %v2730
    %v2742 = vlaneseq
    %v2743 = vshrl.u32 %v2742, 7
    %v2744 = vsub.s32 0, %v2743
    %v2745 = vrot.slane %v2620, %v2744
    %v2747 = vmul.f32 %v2733, %v2745
    %v2748 = vmul.f32 %v2734, %v2745
    %v2749 = vmul.f32 %v2735, %v2745
    %v2750 = vmul.f32 %v2736, %v2745
    %v2751 = vmul.f32 %v2737, %v2745
    %v2752 = vmul.f32 %v2738, %v2745
    %v2753 = vmul.f32 %v2739, %v2745
    %v2754 = vmul.f32 %v2740, %v2745
    %v2755 = vsel %vm438, %v2747, 0.0
    %2756 = vadd.xlane.f32.xlu0 %v2755
    %v2757 = vpop.xlane.xlu0 %2756
    %v2758 = vsel %vm438, %v2748, 0.0
    %2759 = vadd.xlane.f32.xlu0 %v2758
    %v2760 = vpop.xlane.xlu0 %2759
    %v2761 = vsel %vm438, %v2749, 0.0
    %2762 = vadd.xlane.f32.xlu0 %v2761
    %v2763 = vpop.xlane.xlu0 %2762
    %v2764 = vsel %vm438, %v2750, 0.0
    %2765 = vadd.xlane.f32.xlu0 %v2764
    %v2766 = vpop.xlane.xlu0 %2765
    %v2767 = vsel %vm438, %v2751, 0.0
    %2768 = vadd.xlane.f32.xlu0 %v2767
    %v2769 = vpop.xlane.xlu0 %2768
    %v2770 = vsel %vm438, %v2752, 0.0
    %2771 = vadd.xlane.f32.xlu0 %v2770
    %v2772 = vpop.xlane.xlu0 %2771
    %v2773 = vsel %vm438, %v2753, 0.0
    %2774 = vadd.xlane.f32.xlu0 %v2773
    %v2775 = vpop.xlane.xlu0 %2774
    %v2776 = vsel %vm438, %v2754, 0.0
    %2777 = vadd.xlane.f32.xlu0 %v2776
    %v2778 = vpop.xlane.xlu0 %2777
    %v2779 = vmax.f32 %v2757, %v2769
    %v2780 = vmax.f32 %v2760, %v2772
    %v2781 = vmax.f32 %v2763, %v2775
    %v2782 = vmax.f32 %v2766, %v2778
    %v2783 = vmax.f32 %v2779, %v2780
    %v2784 = vmax.f32 %v2781, %v2782
    %v2785 = vmax.f32 %v2783, %v2784
    %v2786 = vrot.slane %v2785, 4
    %v2787 = vmax.f32 %v2785, %v2786
    %v2788 = vrot.slane %v2787, 2
    %v2789 = vmax.f32 %v2787, %v2788
    %v2790 = vrot.slane %v2789, 1
    %v2791 = vmax.f32 %v2789, %v2790
    %v2792 = vsub.f32 %v2757, %v2791
    %v2793 = vsub.f32 %v2760, %v2791
    %v2794 = vsub.f32 %v2763, %v2791
    %v2795 = vsub.f32 %v2766, %v2791
    %v2796 = vsub.f32 %v2769, %v2791
    %v2797 = vsub.f32 %v2772, %v2791
    %v2798 = vsub.f32 %v2775, %v2791
    %v2799 = vsub.f32 %v2778, %v2791
    %v2800 = vmul.f32 %v2792, 1.442695
    %v2801 = vpow.pop %v2800
    %v2802 = vmul.f32 %v2793, 1.442695
    %v2803 = vpow.pop %v2802
    %v2804 = vmul.f32 %v2794, 1.442695
    %v2805 = vpow.pop %v2804
    %v2806 = vmul.f32 %v2795, 1.442695
    %v2807 = vpow.pop %v2806
    %v2808 = vmul.f32 %v2796, 1.442695
    %v2809 = vpow.pop %v2808
    %v2810 = vmul.f32 %v2797, 1.442695
    %v2811 = vpow.pop %v2810
    %v2812 = vmul.f32 %v2798, 1.442695
    %v2813 = vpow.pop %v2812
    %v2814 = vmul.f32 %v2799, 1.442695
    %v2815 = vpow.pop %v2814
    %v2816 = vmul.f32 %v2801, %v2603
    %v2817 = vmul.f32 %v2803, %v2604
    %v2818 = vmul.f32 %v2805, %v2605
    %v2819 = vmul.f32 %v2807, %v2606
    %v2820 = vmul.f32 %v2809, %v2607
    %v2821 = vmul.f32 %v2811, %v2608
    %v2822 = vmul.f32 %v2813, %v2609
    %v2823 = vmul.f32 %v2815, %v2610
    %v2825 = vsel %vm851, %v2621, 0
    %2827 = vmatprep.subr.mxu0 0.0
    %2828 = vmatpush1.msra.mxu0 %v2816
    %2829 = vmatprep.subr.mxu0 0.0
    %2830 = vmatpush1.msra.mxu0 %v2817
    %2831 = vmatprep.subr.mxu0 0.0
    %2832 = vmatpush1.msra.mxu0 %v2818
    %2833 = vmatprep.subr.mxu0 0.0
    %2834 = vmatpush1.msra.mxu0 %v2819
    %2835 = vmatprep.subr.mxu0 0.0
    %2836 = vmatpush1.msra.mxu0 %v2820
    %2837 = vmatprep.subr.mxu0 0.0
    %2838 = vmatpush1.msra.mxu0 %v2821
    %2839 = vmatprep.subr.mxu0 0.0
    %2840 = vmatpush1.msra.mxu0 %v2822
    %2841 = vmatprep.subr.mxu0 0.0
    %2842 = vmatpush1.msra.mxu0 %v2823
    %2843 = vmatprep.subr.mxu0 0.0
    %2844 = vmatpush1.msra.mxu0 0.0
    %2845 = vmatprep.subr.mxu0 0.0
    %2846 = vmatpush1.msra.mxu0 0.0
    %2847 = vmatprep.subr.mxu0 0.0
    %2848 = vmatpush1.msra.mxu0 0.0
    %2849 = vmatprep.subr.mxu0 0.0
    %2850 = vmatpush1.msra.mxu0 0.0
    %2851 = vmatprep.subr.mxu0 0.0
    %2852 = vmatpush1.msra.mxu0 0.0
    %2853 = vmatprep.subr.mxu0 0.0
    %2854 = vmatpush1.msra.mxu0 0.0
    %2855 = vmatprep.subr.mxu0 0.0
    %2856 = vmatpush1.msra.mxu0 0.0
    %2857 = vmatprep.subr.mxu0 0.0
    %2858 = vmatpush1.msra.mxu0 0.0
    %2859 = vmatprep.subr.mxu0 0.0
    %2860 = vmatpush1.msra.mxu0 0.0
    %2861 = vmatprep.subr.mxu0 0.0
    %2862 = vmatpush1.msra.mxu0 0.0
    %2863 = vmatprep.subr.mxu0 0.0
    %2864 = vmatpush1.msra.mxu0 0.0
    %2865 = vmatprep.subr.mxu0 0.0
    %2866 = vmatpush1.msra.mxu0 0.0
    %2867 = vmatprep.subr.mxu0 0.0
    %2868 = vmatpush1.msra.mxu0 0.0
    %2869 = vmatprep.subr.mxu0 0.0
    %2870 = vmatpush1.msra.mxu0 0.0
    %2871 = vmatprep.subr.mxu0 0.0
    %2872 = vmatpush1.msra.mxu0 0.0
    %2873 = vmatprep.subr.mxu0 0.0
    %2874 = vmatpush1.msra.mxu0 0.0
    %2875 = vmatprep.subr.mxu0 0.0
    %2876 = vmatpush1.msra.mxu0 0.0
    %2877 = vmatprep.subr.mxu0 0.0
    %2878 = vmatpush1.msra.mxu0 0.0
    %2879 = vmatprep.subr.mxu0 0.0
    %2880 = vmatpush1.msra.mxu0 0.0
    %2881 = vmatprep.subr.mxu0 0.0
    %2882 = vmatpush1.msra.mxu0 0.0
    %2883 = vmatprep.subr.mxu0 0.0
    %2884 = vmatpush1.msra.mxu0 0.0
    %2885 = vmatprep.subr.mxu0 0.0
    %2886 = vmatpush1.msra.mxu0 0.0
    %2887 = vmatprep.subr.mxu0 0.0
    %2888 = vmatpush1.msra.mxu0 0.0
    %2889 = vmatprep.subr.mxu0 0.0
    %2890 = vmatpush1.msra.mxu0 0.0
    %2891 = vmatprep.mubr.f32.mxu0 0.0
    %2892 = vmatmul.mubr.f32.gmra.mrb[0].mxu0 %v2825
    %v2893 = vpop.f32.mrb[0].mxu0
    %v2894 = vadd.f32 0.0, %v2893
    %v2895 = vpop.f32.mrb[0].mxu0
    %2896 = vdwg.mxu0
    %2897 = vmatprep.subr.mxu0 0.0
    %2898 = vmatpush1.msra.mxu0 %v2801
    %2899 = vmatprep.subr.mxu0 0.0
    %2900 = vmatpush1.msra.mxu0 %v2803
    %2901 = vmatprep.subr.mxu0 0.0
    %2902 = vmatpush1.msra.mxu0 %v2805
    %2903 = vmatprep.subr.mxu0 0.0
    %2904 = vmatpush1.msra.mxu0 %v2807
    %2905 = vmatprep.subr.mxu0 0.0
    %2906 = vmatpush1.msra.mxu0 %v2809
    %2907 = vmatprep.subr.mxu0 0.0
    %2908 = vmatpush1.msra.mxu0 %v2811
    %2909 = vmatprep.subr.mxu0 0.0
    %2910 = vmatpush1.msra.mxu0 %v2813
    %2911 = vmatprep.subr.mxu0 0.0
    %2912 = vmatpush1.msra.mxu0 %v2815
    %2913 = vmatprep.subr.mxu0 0.0
    %2914 = vmatpush1.msra.mxu0 0.0
    %2915 = vmatprep.subr.mxu0 0.0
    %2916 = vmatpush1.msra.mxu0 0.0
    %2917 = vmatprep.subr.mxu0 0.0
    %2918 = vmatpush1.msra.mxu0 0.0
    %2919 = vmatprep.subr.mxu0 0.0
    %2920 = vmatpush1.msra.mxu0 0.0
    %2921 = vmatprep.subr.mxu0 0.0
    %2922 = vmatpush1.msra.mxu0 0.0
    %2923 = vmatprep.subr.mxu0 0.0
    %2924 = vmatpush1.msra.mxu0 0.0
    %2925 = vmatprep.subr.mxu0 0.0
    %2926 = vmatpush1.msra.mxu0 0.0
    %2927 = vmatprep.subr.mxu0 0.0
    %2928 = vmatpush1.msra.mxu0 0.0
    %2929 = vmatprep.subr.mxu0 0.0
    %2930 = vmatpush1.msra.mxu0 0.0
    %2931 = vmatprep.subr.mxu0 0.0
    %2932 = vmatpush1.msra.mxu0 0.0
    %2933 = vmatprep.subr.mxu0 0.0
    %2934 = vmatpush1.msra.mxu0 0.0
    %2935 = vmatprep.subr.mxu0 0.0
    %2936 = vmatpush1.msra.mxu0 0.0
    %2937 = vmatprep.subr.mxu0 0.0
    %2938 = vmatpush1.msra.mxu0 0.0
    %2939 = vmatprep.subr.mxu0 0.0
    %2940 = vmatpush1.msra.mxu0 0.0
    %2941 = vmatprep.subr.mxu0 0.0
    %2942 = vmatpush1.msra.mxu0 0.0
    %2943 = vmatprep.subr.mxu0 0.0
    %2944 = vmatpush1.msra.mxu0 0.0
    %2945 = vmatprep.subr.mxu0 0.0
    %2946 = vmatpush1.msra.mxu0 0.0
    %2947 = vmatprep.subr.mxu0 0.0
    %2948 = vmatpush1.msra.mxu0 0.0
    %2949 = vmatprep.subr.mxu0 0.0
    %2950 = vmatpush1.msra.mxu0 0.0
    %2951 = vmatprep.subr.mxu0 0.0
    %2952 = vmatpush1.msra.mxu0 0.0
    %2953 = vmatprep.subr.mxu0 0.0
    %2954 = vmatpush1.msra.mxu0 0.0
    %2955 = vmatprep.subr.mxu0 0.0
    %2956 = vmatpush1.msra.mxu0 0.0
    %2957 = vmatprep.subr.mxu0 0.0
    %2958 = vmatpush1.msra.mxu0 0.0
    %2959 = vmatprep.subr.mxu0 0.0
    %2960 = vmatpush1.msra.mxu0 0.0
    %2961 = vmatprep.mubr.f32.mxu0 0.0
    %2962 = vmatmul.mubr.f32.gmra.mrb[0].mxu0 %v2825
    %v2963 = vpop.f32.mrb[0].mxu0
    %v2964 = vadd.f32 0.0, %v2963
    %v2965 = vpop.f32.mrb[0].mxu0
    %2966 = vdwg.mxu0
    %v2967 = vrcp.pop %v2964
    %2969 = vset.pattern.permute.xlu0 0
    %2970 = vperm.xlu0 %2969, %v2967
    %v2971 = vpop.permute.xlu0 %2970
    %v2973 = vmul.f32 %v2894, %v2971
    %v2974 = vtanh.pop %v2973
    %v2975 = vld [vmem:[%s9] sm:$0xff]
    %v2976 = vld [vmem:[%s9 + $0x8] sm:$0xf]
    %v2977 = vld [vmem:[%s9 + $0xc] sm:$0xff]
    %v2978 = vld [vmem:[%s9 + $0x14] sm:$0xf]
    %v2979 = vld [vmem:[%s9 + $0x18] sm:$0xff]
    %v2980 = vld [vmem:[%s9 + $0x20] sm:$0xf]
    %v2981 = vld [vmem:[%s9 + $0x24] sm:$0xff]
    %v2982 = vld [vmem:[%s9 + $0x2c] sm:$0xf]
    %v2983 = vld [vmem:[%s9 + $0x30] sm:$0xff]
    %v2984 = vld [vmem:[%s9 + $0x38] sm:$0xf]
    %v2985 = vld [vmem:[%s9 + $0x3c] sm:$0xff]
    %v2986 = vld [vmem:[%s9 + $0x44] sm:$0xf]
    %v2987 = vld [vmem:[%s9 + $0x48] sm:$0xff]
    %v2988 = vld [vmem:[%s9 + $0x50] sm:$0xf]
    %v2989 = vld [vmem:[%s9 + $0x54] sm:$0xff]
    %v2990 = vld [vmem:[%s9 + $0x5c] sm:$0xf]
    %v2991 = vld [vmem:[%s9 + $0x60] sm:$0xff]
    %v2992 = vld [vmem:[%s9 + $0x68] sm:$0xf]
    %v2993 = vld [vmem:[%s9 + $0x6c] sm:$0xff]
    %v2994 = vld [vmem:[%s9 + $0x74] sm:$0xf]
    %v2995 = vld [vmem:[%s9 + $0x78] sm:$0xff]
    %v2996 = vld [vmem:[%s9 + $0x80] sm:$0xf]
    %v2997 = vld [vmem:[%s9 + $0x84] sm:$0xff]
    %v2998 = vld [vmem:[%s9 + $0x8c] sm:$0xf]
    %v2999 = vld [vmem:[%s9 + $0x90] sm:$0xff]
    %v3000 = vld [vmem:[%s9 + $0x98] sm:$0xf]
    %v3001 = vld [vmem:[%s9 + $0x9c] sm:$0xff]
    %v3002 = vld [vmem:[%s9 + $0xa4] sm:$0xf]
    %v3003 = vld [vmem:[%s9 + $0xa8] sm:$0xff]
    %v3004 = vld [vmem:[%s9 + $0xb0] sm:$0xf]
    %v3005 = vld [vmem:[%s9 + $0xb4] sm:$0xff]
    %v3006 = vld [vmem:[%s9 + $0xbc] sm:$0xf]
    %v3007 = vld [vmem:[%s9 + $0xc0] sm:$0xff]
    %v3008 = vld [vmem:[%s9 + $0xc8] sm:$0xf]
    %v3009 = vld [vmem:[%s9 + $0xcc] sm:$0xff]
    %v3010 = vld [vmem:[%s9 + $0xd4] sm:$0xf]
    %v3011 = vld [vmem:[%s9 + $0xd8] sm:$0xff]
    %v3012 = vld [vmem:[%s9 + $0xe0] sm:$0xf]
    %v3013 = vld [vmem:[%s9 + $0xe4] sm:$0xff]
    %v3014 = vld [vmem:[%s9 + $0xec] sm:$0xf]
    %v3015 = vld [vmem:[%s57] sm:$0xf]
    %v3016 = vld [vmem:[%s57 + $0x4] sm:$0xf]
    %v3017 = vld [vmem:[%s57 + $0x8] sm:$0xf]
    %v3018 = vld [vmem:[%s57 + $0xc] sm:$0xf]
    %v3019 = vld [vmem:[%s57 + $0x10] sm:$0xf]
    %v3020 = vld [vmem:[%s57 + $0x14] sm:$0xf]
    %v3021 = vld [vmem:[%s57 + $0x18] sm:$0xf]
    %v3022 = vld [vmem:[%s57 + $0x1c] sm:$0xf]
    %v3023 = vld [vmem:[%s57 + $0x20] sm:$0xf]
    %v3024 = vld [vmem:[%s57 + $0x24] sm:$0xf]
    %v3025 = vld [vmem:[%s57 + $0x28] sm:$0xf]
    %v3026 = vld [vmem:[%s57 + $0x2c] sm:$0xf]
    %v3027 = vld [vmem:[%s57 + $0x30] sm:$0xf]
    %v3028 = vld [vmem:[%s57 + $0x34] sm:$0xf]
    %v3029 = vld [vmem:[%s57 + $0x38] sm:$0xf]
    %v3030 = vld [vmem:[%s57 + $0x3c] sm:$0xf]
    %v3031 = vld [vmem:[%s57 + $0x40] sm:$0xf]
    %v3032 = vld [vmem:[%s57 + $0x44] sm:$0xf]
    %v3033 = vld [vmem:[%s57 + $0x48] sm:$0xf]
    %v3034 = vld [vmem:[%s57 + $0x4c] sm:$0xf]
    %v3035 = vld [vmem:[%s57 + $0x50] sm:$0xf]
    %v3036 = vld [vmem:[%s57 + $0x54] sm:$0xf]
    %v3037 = vld [vmem:[%s57 + $0x58] sm:$0xf]
    %v3038 = vld [vmem:[%s57 + $0x5c] sm:$0xf]
    %v3039 = vld [vmem:[%s57 + $0x60] sm:$0xf]
    %v3040 = vld [vmem:[%s57 + $0x64] sm:$0xf]
    %v3041 = vld [vmem:[%s57 + $0x68] sm:$0xf]
    %v3042 = vld [vmem:[%s57 + $0x6c] sm:$0xf]
    %v3043 = vld [vmem:[%s57 + $0x70] sm:$0xf]
    %v3044 = vld [vmem:[%s57 + $0x74] sm:$0xf]
    %v3045 = vld [vmem:[%s57 + $0x78] sm:$0xf]
    %v3046 = vld [vmem:[%s57 + $0x7c] sm:$0xf]
    %v3047 = vld [vmem:[%s57 + $0x80] sm:$0xf]
    %v3048 = vld [vmem:[%s57 + $0x84] sm:$0xf]
    %v3049 = vld [vmem:[%s57 + $0x88] sm:$0xf]
    %v3050 = vld [vmem:[%s57 + $0x8c] sm:$0xf]
    %v3051 = vld [vmem:[%s57 + $0x90] sm:$0xf]
    %v3052 = vld [vmem:[%s57 + $0x94] sm:$0x3]
    %v3053 = vld [vmem:[%s59] sm:$0x1]
    %v3055 = vlaneseq
    %v3056 = vshrl.u32 %v3055, 7
    %v3057 = vsub.s32 0, %v3056
    %v3058 = vrot.slane %v3053, %v3057
    %v3100 = vunpack.c.l.b16 %v2975
    %v3101 = vunpack.c.h.b16 %v2975
    %v3102 = vunpack.c.l.b16 %v2976
    %v3103 = vunpack.c.l.b16 %v2977
    %v3104 = vunpack.c.h.b16 %v2977
    %v3105 = vunpack.c.l.b16 %v2978
    %v3106 = vunpack.c.l.b16 %v2979
    %v3107 = vunpack.c.h.b16 %v2979
    %v3108 = vunpack.c.l.b16 %v2980
    %v3109 = vunpack.c.l.b16 %v2981
    %v3110 = vunpack.c.h.b16 %v2981
    %v3111 = vunpack.c.l.b16 %v2982
    %v3112 = vunpack.c.l.b16 %v2983
    %v3113 = vunpack.c.h.b16 %v2983
    %v3114 = vunpack.c.l.b16 %v2984
    %v3115 = vunpack.c.l.b16 %v2985
    %v3116 = vunpack.c.h.b16 %v2985
    %v3117 = vunpack.c.l.b16 %v2986
    %v3118 = vunpack.c.l.b16 %v2987
    %v3119 = vunpack.c.h.b16 %v2987
    %v3120 = vunpack.c.l.b16 %v2988
    %v3121 = vunpack.c.l.b16 %v2989
    %v3122 = vunpack.c.h.b16 %v2989
    %v3123 = vunpack.c.l.b16 %v2990
    %v3124 = vunpack.c.l.b16 %v2991
    %v3125 = vunpack.c.h.b16 %v2991
    %v3126 = vunpack.c.l.b16 %v2992
    %v3127 = vunpack.c.l.b16 %v2993
    %v3128 = vunpack.c.h.b16 %v2993
    %v3129 = vunpack.c.l.b16 %v2994
    %v3130 = vunpack.c.l.b16 %v2995
    %v3131 = vunpack.c.h.b16 %v2995
    %v3132 = vunpack.c.l.b16 %v2996
    %v3133 = vunpack.c.l.b16 %v2997
    %v3134 = vunpack.c.h.b16 %v2997
    %v3135 = vunpack.c.l.b16 %v2998
    %v3136 = vunpack.c.l.b16 %v2999
    %v3137 = vunpack.c.h.b16 %v2999
    %v3138 = vunpack.c.l.b16 %v3000
    %v3139 = vunpack.c.l.b16 %v3001
    %v3140 = vunpack.c.h.b16 %v3001
    %v3141 = vunpack.c.l.b16 %v3002
    %v3142 = vunpack.c.l.b16 %v3003
    %v3143 = vunpack.c.h.b16 %v3003
    %v3144 = vunpack.c.l.b16 %v3004
    %v3145 = vunpack.c.l.b16 %v3005
    %v3146 = vunpack.c.h.b16 %v3005
    %v3147 = vunpack.c.l.b16 %v3006
    %v3148 = vunpack.c.l.b16 %v3007
    %v3149 = vunpack.c.h.b16 %v3007
    %v3150 = vunpack.c.l.b16 %v3008
    %v3151 = vunpack.c.l.b16 %v3009
    %v3152 = vunpack.c.h.b16 %v3009
    %v3153 = vunpack.c.l.b16 %v3010
    %v3154 = vunpack.c.l.b16 %v3011
    %v3155 = vunpack.c.h.b16 %v3011
    %v3156 = vunpack.c.l.b16 %v3012
    %v3157 = vunpack.c.l.b16 %v3013
    %v3158 = vunpack.c.h.b16 %v3013
    %v3159 = vunpack.c.l.b16 %v3014
    %v3160 = vpack.c.b16 %v3103, %v3100
    %v3161 = vpack.c.b16 %v3104, %v3101
    %v3162 = vpack.c.b16 %v3105, %v3102
    %v3163 = vpack.c.b16 %v3109, %v3106
    %v3164 = vpack.c.b16 %v3110, %v3107
    %v3165 = vpack.c.b16 %v3111, %v3108
    %v3166 = vpack.c.b16 %v3115, %v3112
    %v3167 = vpack.c.b16 %v3116, %v3113
    %v3168 = vpack.c.b16 %v3117, %v3114
    %v3169 = vpack.c.b16 %v3121, %v3118
    %v3170 = vpack.c.b16 %v3122, %v3119
    %v3171 = vpack.c.b16 %v3123, %v3120
    %v3172 = vpack.c.b16 %v3127, %v3124
    %v3173 = vpack.c.b16 %v3128, %v3125
    %v3174 = vpack.c.b16 %v3129, %v3126
    %v3175 = vpack.c.b16 %v3133, %v3130
    %v3176 = vpack.c.b16 %v3134, %v3131
    %v3177 = vpack.c.b16 %v3135, %v3132
    %v3178 = vpack.c.b16 %v3139, %v3136
    %v3179 = vpack.c.b16 %v3140, %v3137
    %v3180 = vpack.c.b16 %v3141, %v3138
    %v3181 = vpack.c.b16 %v3145, %v3142
    %v3182 = vpack.c.b16 %v3146, %v3143
    %v3183 = vpack.c.b16 %v3147, %v3144
    %v3184 = vpack.c.b16 %v3151, %v3148
    %v3185 = vpack.c.b16 %v3152, %v3149
    %v3186 = vpack.c.b16 %v3153, %v3150
    %v3187 = vpack.c.b16 %v3157, %v3154
    %v3188 = vpack.c.b16 %v3158, %v3155
    %v3189 = vpack.c.b16 %v3159, %v3156
    %v3248 = vunpack.c.l.b16 %v3015
    %v3249 = vunpack.c.l.b16 %v3016
    %v3250 = vunpack.c.l.b16 %v3017
    %v3251 = vunpack.c.l.b16 %v3018
    %v3252 = vunpack.c.l.b16 %v3019
    %v3253 = vunpack.c.l.b16 %v3020
    %v3254 = vunpack.c.l.b16 %v3021
    %v3255 = vunpack.c.l.b16 %v3022
    %v3256 = vunpack.c.l.b16 %v3023
    %v3257 = vunpack.c.l.b16 %v3024
    %v3258 = vunpack.c.l.b16 %v3025
    %v3259 = vunpack.c.l.b16 %v3026
    %v3260 = vunpack.c.l.b16 %v3027
    %v3261 = vunpack.c.l.b16 %v3028
    %v3262 = vunpack.c.l.b16 %v3029
    %v3263 = vunpack.c.l.b16 %v3030
    %v3264 = vunpack.c.l.b16 %v3031
    %v3265 = vunpack.c.l.b16 %v3032
    %v3266 = vunpack.c.l.b16 %v3033
    %v3267 = vunpack.c.l.b16 %v3034
    %v3268 = vunpack.c.l.b16 %v3035
    %v3269 = vunpack.c.l.b16 %v3036
    %v3270 = vunpack.c.l.b16 %v3037
    %v3271 = vunpack.c.l.b16 %v3038
    %v3272 = vunpack.c.l.b16 %v3039
    %v3273 = vunpack.c.l.b16 %v3040
    %v3274 = vunpack.c.l.b16 %v3041
    %v3275 = vunpack.c.l.b16 %v3042
    %v3276 = vunpack.c.l.b16 %v3043
    %v3277 = vunpack.c.l.b16 %v3044
    %v3278 = vunpack.c.l.b16 %v3045
    %v3279 = vunpack.c.l.b16 %v3046
    %v3280 = vunpack.c.l.b16 %v3047
    %v3281 = vunpack.c.l.b16 %v3048
    %v3282 = vunpack.c.l.b16 %v3049
    %v3283 = vunpack.c.l.b16 %v3050
    %v3284 = vunpack.c.l.b16 %v3051
    %v3285 = vunpack.c.l.b16 %v3052
    %v3286 = vpack.c.b16 %v3249, %v3248
    %v3287 = vpack.c.b16 %v3251, %v3250
    %v3288 = vpack.c.b16 %v3253, %v3252
    %v3289 = vpack.c.b16 %v3255, %v3254
    %v3290 = vpack.c.b16 %v3257, %v3256
    %v3291 = vpack.c.b16 %v3259, %v3258
    %v3292 = vpack.c.b16 %v3261, %v3260
    %v3293 = vpack.c.b16 %v3263, %v3262
    %v3294 = vpack.c.b16 %v3265, %v3264
    %v3295 = vpack.c.b16 %v3267, %v3266
    %v3296 = vpack.c.b16 %v3269, %v3268
    %v3297 = vpack.c.b16 %v3271, %v3270
    %v3298 = vpack.c.b16 %v3273, %v3272
    %v3299 = vpack.c.b16 %v3275, %v3274
    %v3300 = vpack.c.b16 %v3277, %v3276
    %v3301 = vpack.c.b16 %v3279, %v3278
    %v3302 = vpack.c.b16 %v3281, %v3280
    %v3303 = vpack.c.b16 %v3283, %v3282
    %v3304 = vpack.c.b16 %v3285, %v3284
    %vm3323 = vcmask 359424
    %v3325 = vsel %vm3323, %v3162, 0
    %v3328 = vsel %vm3323, %v3165, 0
    %v3331 = vsel %vm3323, %v3168, 0
    %v3334 = vsel %vm3323, %v3171, 0
    %v3337 = vsel %vm3323, %v3174, 0
    %v3340 = vsel %vm3323, %v3177, 0
    %v3343 = vsel %vm3323, %v3180, 0
    %v3346 = vsel %vm3323, %v3183, 0
    %v3349 = vsel %vm3323, %v3186, 0
    %v3352 = vsel %vm3323, %v3189, 0
    %vm3354 = vcmask 1045504
    %v3356 = vsel %vm3354, %v3304, 0
    %3358 = vmatprep.subr.bf16.mxu0 0
    %3359 = vmatpush1.bf16.msra.mxu0 %v3286
    %3360 = vmatprep.subr.bf16.mxu0 0
    %3361 = vmatpush1.bf16.msra.mxu0 %v3287
    %3362 = vmatprep.subr.bf16.mxu0 0
    %3363 = vmatpush1.bf16.msra.mxu0 %v3288
    %3364 = vmatprep.subr.bf16.mxu0 0
    %3365 = vmatpush1.bf16.msra.mxu0 %v3289
    %3366 = vmatprep.subr.bf16.mxu0 0
    %3367 = vmatpush1.bf16.msra.mxu0 %v3290
    %3368 = vmatprep.subr.bf16.mxu0 0
    %3369 = vmatpush1.bf16.msra.mxu0 %v3291
    %3370 = vmatprep.subr.bf16.mxu0 0
    %3371 = vmatpush1.bf16.msra.mxu0 %v3292
    %3372 = vmatprep.subr.bf16.mxu0 0
    %3373 = vmatpush1.bf16.msra.mxu0 %v3293
    %3374 = vmatprep.subr.bf16.mxu0 0
    %3375 = vmatpush1.bf16.msra.mxu0 %v3294
    %3376 = vmatprep.subr.bf16.mxu0 0
    %3377 = vmatpush1.bf16.msra.mxu0 %v3295
    %3378 = vmatprep.subr.bf16.mxu0 0
    %3379 = vmatpush1.bf16.msra.mxu0 %v3296
    %3380 = vmatprep.subr.bf16.mxu0 0
    %3381 = vmatpush1.bf16.msra.mxu0 %v3297
    %3382 = vmatprep.subr.bf16.mxu0 0
    %3383 = vmatpush1.bf16.msra.mxu0 %v3298
    %3384 = vmatprep.subr.bf16.mxu0 0
    %3385 = vmatpush1.bf16.msra.mxu0 %v3299
    %3386 = vmatprep.subr.bf16.mxu0 0
    %3387 = vmatpush1.bf16.msra.mxu0 %v3300
    %3388 = vmatprep.subr.bf16.mxu0 0
    %3389 = vmatpush1.bf16.msra.mxu0 %v3301
    %3390 = vmatprep.mubr.bf16.mxu0 %v3161
    %3391 = vmatmul.mubr.bf16.gmra.mrb[0].mxu0 %v3160
    %v3392 = vpop.f32.mrb[0].mxu0
    %v3393 = vadd.f32 %v3058, %v3392
    %v3394 = vpop.f32.mrb[0].mxu0
    %v3395 = vpop.f32.mrb[0].mxu0
    %v3396 = vadd.f32 %v3058, %v3395
    %v3397 = vpop.f32.mrb[0].mxu0
    %3398 = vmatprep.mubr.bf16.mxu0 %v3164
    %3399 = vmatmul.mubr.bf16.gmra.mrb[0].mxu0 %v3163
    %v3400 = vpop.f32.mrb[0].mxu0
    %v3401 = vadd.f32 %v3058, %v3400
    %v3402 = vpop.f32.mrb[0].mxu0
    %v3403 = vpop.f32.mrb[0].mxu0
    %v3404 = vadd.f32 %v3058, %v3403
    %v3405 = vpop.f32.mrb[0].mxu0
    %3406 = vmatprep.mubr.bf16.mxu0 %v3167
    %3407 = vmatmul.mubr.bf16.gmra.mrb[0].mxu0 %v3166
    %v3408 = vpop.f32.mrb[0].mxu0
    %v3409 = vadd.f32 %v3058, %v3408
    %v3410 = vpop.f32.mrb[0].mxu0
    %v3411 = vpop.f32.mrb[0].mxu0
    %v3412 = vadd.f32 %v3058, %v3411
    %v3413 = vpop.f32.mrb[0].mxu0
    %3414 = vmatprep.mubr.bf16.mxu0 %v3170
    %3415 = vmatmul.mubr.bf16.gmra.mrb[0].mxu0 %v3169
    %v3416 = vpop.f32.mrb[0].mxu0
    %v3417 = vadd.f32 %v3058, %v3416
    %v3418 = vpop.f32.mrb[0].mxu0
    %v3419 = vpop.f32.mrb[0].mxu0
    %v3420 = vadd.f32 %v3058, %v3419
    %v3421 = vpop.f32.mrb[0].mxu0
    %3422 = vmatprep.mubr.bf16.mxu0 %v3173
    %3423 = vmatmul.mubr.bf16.gmra.mrb[0].mxu0 %v3172
    %v3424 = vpop.f32.mrb[0].mxu0
    %v3425 = vadd.f32 %v3058, %v3424
    %v3426 = vpop.f32.mrb[0].mxu0
    %v3427 = vpop.f32.mrb[0].mxu0
    %v3428 = vadd.f32 %v3058, %v3427
    %v3429 = vpop.f32.mrb[0].mxu0
    %3430 = vmatprep.mubr.bf16.mxu0 %v3176
    %3431 = vmatmul.mubr.bf16.gmra.mrb[0].mxu0 %v3175
    %v3432 = vpop.f32.mrb[0].mxu0
    %v3433 = vadd.f32 %v3058, %v3432
    %v3434 = vpop.f32.mrb[0].mxu0
    %v3435 = vpop.f32.mrb[0].mxu0
    %v3436 = vadd.f32 %v3058, %v3435
    %v3437 = vpop.f32.mrb[0].mxu0
    %3438 = vmatprep.mubr.bf16.mxu0 %v3179
    %3439 = vmatmul.mubr.bf16.gmra.mrb[0].mxu0 %v3178
    %v3440 = vpop.f32.mrb[0].mxu0
    %v3441 = vadd.f32 %v3058, %v3440
    %v3442 = vpop.f32.mrb[0].mxu0
    %v3443 = vpop.f32.mrb[0].mxu0
    %v3444 = vadd.f32 %v3058, %v3443
    %v3445 = vpop.f32.mrb[0].mxu0
    %3446 = vmatprep.mubr.bf16.mxu0 %v3182
    %3447 = vmatmul.mubr.bf16.gmra.mrb[0].mxu0 %v3181
    %v3448 = vpop.f32.mrb[0].mxu0
    %v3449 = vadd.f32 %v3058, %v3448
    %v3450 = vpop.f32.mrb[0].mxu0
    %v3451 = vpop.f32.mrb[0].mxu0
    %v3452 = vadd.f32 %v3058, %v3451
    %v3453 = vpop.f32.mrb[0].mxu0
    %3454 = vmatprep.mubr.bf16.mxu0 %v3185
    %3455 = vmatmul.mubr.bf16.gmra.mrb[0].mxu0 %v3184
    %v3456 = vpop.f32.mrb[0].mxu0
    %v3457 = vadd.f32 %v3058, %v3456
    %v3458 = vpop.f32.mrb[0].mxu0
    %v3459 = vpop.f32.mrb[0].mxu0
    %v3460 = vadd.f32 %v3058, %v3459
    %v3461 = vpop.f32.mrb[0].mxu0
    %3462 = vmatprep.mubr.bf16.mxu0 %v3188
    %3463 = vmatmul.mubr.bf16.gmra.mrb[0].mxu0 %v3187
    %v3464 = vpop.f32.mrb[0].mxu0
    %v3465 = vadd.f32 %v3058, %v3464
    %v3466 = vpop.f32.mrb[0].mxu0
    %v3467 = vpop.f32.mrb[0].mxu0
    %v3468 = vadd.f32 %v3058, %v3467
    %v3469 = vpop.f32.mrb[0].mxu0
    %3470 = vdwg.mxu0
    %3471 = vmatprep.subr.bf16.mxu0 0
    %3472 = vmatpush1.bf16.msra.mxu0 %v3302
    %3473 = vmatprep.subr.bf16.mxu0 0
    %3474 = vmatpush1.bf16.msra.mxu0 %v3303
    %3475 = vmatprep.subr.bf16.mxu0 0
    %3476 = vmatpush1.bf16.msra.mxu0 %v3356
    %3477 = vmatprep.subr.bf16.mxu0 0
    %3478 = vmatpush1.bf16.msra.mxu0 0
    %3479 = vmatprep.subr.bf16.mxu0 0
    %3480 = vmatpush1.bf16.msra.mxu0 0
    %3481 = vmatprep.subr.bf16.mxu0 0
    %3482 = vmatpush1.bf16.msra.mxu0 0
    %3483 = vmatprep.subr.bf16.mxu0 0
    %3484 = vmatpush1.bf16.msra.mxu0 0
    %3485 = vmatprep.subr.bf16.mxu0 0
    %3486 = vmatpush1.bf16.msra.mxu0 0
    %3487 = vmatprep.subr.bf16.mxu0 0
    %3488 = vmatpush1.bf16.msra.mxu0 0
    %3489 = vmatprep.subr.bf16.mxu0 0
    %3490 = vmatpush1.bf16.msra.mxu0 0
    %3491 = vmatprep.subr.bf16.mxu0 0
    %3492 = vmatpush1.bf16.msra.mxu0 0
    %3493 = vmatprep.subr.bf16.mxu0 0
    %3494 = vmatpush1.bf16.msra.mxu0 0
    %3495 = vmatprep.subr.bf16.mxu0 0
    %3496 = vmatpush1.bf16.msra.mxu0 0
    %3497 = vmatprep.subr.bf16.mxu0 0
    %3498 = vmatpush1.bf16.msra.mxu0 0
    %3499 = vmatprep.subr.bf16.mxu0 0
    %3500 = vmatpush1.bf16.msra.mxu0 0
    %3501 = vmatprep.subr.bf16.mxu0 0
    %3502 = vmatpush1.bf16.msra.mxu0 0
    %3503 = vmatprep.mubr.bf16.mxu0 0
    %3504 = vmatmul.mubr.bf16.gmra.mrb[0].mxu0 %v3325
    %v3505 = vpop.f32.mrb[0].mxu0
    %v3506 = vadd.f32 %v3393, %v3505
    %v3507 = vpop.f32.mrb[0].mxu0
    %v3508 = vpop.f32.mrb[0].mxu0
    %v3509 = vadd.f32 %v3396, %v3508
    %v3510 = vpop.f32.mrb[0].mxu0
    %3511 = vmatprep.mubr.bf16.mxu0 0
    %3512 = vmatmul.mubr.bf16.gmra.mrb[0].mxu0 %v3328
    %v3513 = vpop.f32.mrb[0].mxu0
    %v3514 = vadd.f32 %v3401, %v3513
    %v3515 = vpop.f32.mrb[0].mxu0
    %v3516 = vpop.f32.mrb[0].mxu0
    %v3517 = vadd.f32 %v3404, %v3516
    %v3518 = vpop.f32.mrb[0].mxu0
    %3519 = vmatprep.mubr.bf16.mxu0 0
    %3520 = vmatmul.mubr.bf16.gmra.mrb[0].mxu0 %v3331
    %v3521 = vpop.f32.mrb[0].mxu0
    %v3522 = vadd.f32 %v3409, %v3521
    %v3523 = vpop.f32.mrb[0].mxu0
    %v3524 = vpop.f32.mrb[0].mxu0
    %v3525 = vadd.f32 %v3412, %v3524
    %v3526 = vpop.f32.mrb[0].mxu0
    %3527 = vmatprep.mubr.bf16.mxu0 0
    %3528 = vmatmul.mubr.bf16.gmra.mrb[0].mxu0 %v3334
    %v3529 = vpop.f32.mrb[0].mxu0
    %v3530 = vadd.f32 %v3417, %v3529
    %v3531 = vpop.f32.mrb[0].mxu0
    %v3532 = vpop.f32.mrb[0].mxu0
    %v3533 = vadd.f32 %v3420, %v3532
    %v3534 = vpop.f32.mrb[0].mxu0
    %3535 = vmatprep.mubr.bf16.mxu0 0
    %3536 = vmatmul.mubr.bf16.gmra.mrb[0].mxu0 %v3337
    %v3537 = vpop.f32.mrb[0].mxu0
    %v3538 = vadd.f32 %v3425, %v3537
    %v3539 = vpop.f32.mrb[0].mxu0
    %v3540 = vpop.f32.mrb[0].mxu0
    %v3541 = vadd.f32 %v3428, %v3540
    %v3542 = vpop.f32.mrb[0].mxu0
    %3543 = vmatprep.mubr.bf16.mxu0 0
    %3544 = vmatmul.mubr.bf16.gmra.mrb[0].mxu0 %v3340
    %v3545 = vpop.f32.mrb[0].mxu0
    %v3546 = vadd.f32 %v3433, %v3545
    %v3547 = vpop.f32.mrb[0].mxu0
    %v3548 = vpop.f32.mrb[0].mxu0
    %v3549 = vadd.f32 %v3436, %v3548
    %v3550 = vpop.f32.mrb[0].mxu0
    %3551 = vmatprep.mubr.bf16.mxu0 0
    %3552 = vmatmul.mubr.bf16.gmra.mrb[0].mxu0 %v3343
    %v3553 = vpop.f32.mrb[0].mxu0
    %v3554 = vadd.f32 %v3441, %v3553
    %v3555 = vpop.f32.mrb[0].mxu0
    %v3556 = vpop.f32.mrb[0].mxu0
    %v3557 = vadd.f32 %v3444, %v3556
    %v3558 = vpop.f32.mrb[0].mxu0
    %3559 = vmatprep.mubr.bf16.mxu0 0
    %3560 = vmatmul.mubr.bf16.gmra.mrb[0].mxu0 %v3346
    %v3561 = vpop.f32.mrb[0].mxu0
    %v3562 = vadd.f32 %v3449, %v3561
    %v3563 = vpop.f32.mrb[0].mxu0
    %v3564 = vpop.f32.mrb[0].mxu0
    %v3565 = vadd.f32 %v3452, %v3564
    %v3566 = vpop.f32.mrb[0].mxu0
    %3567 = vmatprep.mubr.bf16.mxu0 0
    %3568 = vmatmul.mubr.bf16.gmra.mrb[0].mxu0 %v3349
    %v3569 = vpop.f32.mrb[0].mxu0
    %v3570 = vadd.f32 %v3457, %v3569
    %v3571 = vpop.f32.mrb[0].mxu0
    %v3572 = vpop.f32.mrb[0].mxu0
    %v3573 = vadd.f32 %v3460, %v3572
    %v3574 = vpop.f32.mrb[0].mxu0
    %3575 = vmatprep.mubr.bf16.mxu0 0
    %3576 = vmatmul.mubr.bf16.gmra.mrb[0].mxu0 %v3352
    %v3577 = vpop.f32.mrb[0].mxu0
    %v3578 = vadd.f32 %v3465, %v3577
    %v3579 = vpop.f32.mrb[0].mxu0
    %v3580 = vpop.f32.mrb[0].mxu0
    %v3581 = vadd.f32 %v3468, %v3580
    %v3582 = vpop.f32.mrb[0].mxu0
    %3583 = vdwg.mxu0
    %v3584 = vmax.f32 %v3506, 0.0
    %v3585 = vmax.f32 %v3509, 0.0
    %v3586 = vmax.f32 %v3514, 0.0
    %v3587 = vmax.f32 %v3517, 0.0
    %v3588 = vmax.f32 %v3522, 0.0
    %v3589 = vmax.f32 %v3525, 0.0
    %v3590 = vmax.f32 %v3530, 0.0
    %v3591 = vmax.f32 %v3533, 0.0
    %v3592 = vmax.f32 %v3538, 0.0
    %v3593 = vmax.f32 %v3541, 0.0
    %v3594 = vmax.f32 %v3546, 0.0
    %v3595 = vmax.f32 %v3549, 0.0
    %v3596 = vmax.f32 %v3554, 0.0
    %v3597 = vmax.f32 %v3557, 0.0
    %v3598 = vmax.f32 %v3562, 0.0
    %v3599 = vmax.f32 %v3565, 0.0
    %v3600 = vmax.f32 %v3570, 0.0
    %v3601 = vmax.f32 %v3573, 0.0
    %v3602 = vmax.f32 %v3578, 0.0
    %v3603 = vmax.f32 %v3581, 0.0
    %v3604 = vld [vmem:[%s61] sm:$0x1]
    %v3606 = vlaneseq
    %v3607 = vshrl.u32 %v3606, 7
    %v3608 = vsub.s32 0, %v3607
    %v3609 = vrot.slane %v3604, %v3608
    %v3611 = vmul.f32 %v3584, %v3609
    %v3612 = vmul.f32 %v3585, %v3609
    %v3613 = vmul.f32 %v3586, %v3609
    %v3614 = vmul.f32 %v3587, %v3609
    %v3615 = vmul.f32 %v3588, %v3609
    %v3616 = vsel %vm851, %v3611, 0.0
    %3617 = vadd.xlane.f32.xlu0 %v3616
    %v3618 = vpop.xlane.xlu0 %3617
    %v3619 = vsel %vm851, %v3612, 0.0
    %3620 = vadd.xlane.f32.xlu0 %v3619
    %v3621 = vpop.xlane.xlu0 %3620
    %v3622 = vsel %vm851, %v3613, 0.0
    %3623 = vadd.xlane.f32.xlu0 %v3622
    %v3624 = vpop.xlane.xlu0 %3623
    %v3625 = vsel %vm851, %v3614, 0.0
    %3626 = vadd.xlane.f32.xlu0 %v3625
    %v3627 = vpop.xlane.xlu0 %3626
    %v3628 = vsel %vm851, %v3615, 0.0
    %3629 = vadd.xlane.f32.xlu0 %v3628
    %v3630 = vpop.xlane.xlu0 %3629
    %v3631 = vmul.f32 %v3589, %v3609
    %v3632 = vmul.f32 %v3590, %v3609
    %v3633 = vmul.f32 %v3591, %v3609
    %v3634 = vmul.f32 %v3592, %v3609
    %v3635 = vmul.f32 %v3593, %v3609
    %v3636 = vsel %vm851, %v3631, 0.0
    %3637 = vadd.xlane.f32.xlu0 %v3636
    %v3638 = vpop.xlane.xlu0 %3637
    %v3639 = vsel %vm851, %v3632, 0.0
    %3640 = vadd.xlane.f32.xlu0 %v3639
    %v3641 = vpop.xlane.xlu0 %3640
    %v3642 = vsel %vm851, %v3633, 0.0
    %3643 = vadd.xlane.f32.xlu0 %v3642
    %v3644 = vpop.xlane.xlu0 %3643
    %v3645 = vsel %vm851, %v3634, 0.0
    %3646 = vadd.xlane.f32.xlu0 %v3645
    %v3647 = vpop.xlane.xlu0 %3646
    %v3648 = vsel %vm851, %v3635, 0.0
    %3649 = vadd.xlane.f32.xlu0 %v3648
    %v3650 = vpop.xlane.xlu0 %3649
    %v3651 = vmul.f32 %v3594, %v3609
    %v3652 = vmul.f32 %v3595, %v3609
    %v3653 = vmul.f32 %v3596, %v3609
    %v3654 = vmul.f32 %v3597, %v3609
    %v3655 = vmul.f32 %v3598, %v3609
    %v3656 = vsel %vm851, %v3651, 0.0
    %3657 = vadd.xlane.f32.xlu0 %v3656
    %v3658 = vpop.xlane.xlu0 %3657
    %v3659 = vsel %vm851, %v3652, 0.0
    %3660 = vadd.xlane.f32.xlu0 %v3659
    %v3661 = vpop.xlane.xlu0 %3660
    %v3662 = vsel %vm851, %v3653, 0.0
    %3663 = vadd.xlane.f32.xlu0 %v3662
    %v3664 = vpop.xlane.xlu0 %3663
    %v3665 = vsel %vm851, %v3654, 0.0
    %3666 = vadd.xlane.f32.xlu0 %v3665
    %v3667 = vpop.xlane.xlu0 %3666
    %v3668 = vsel %vm851, %v3655, 0.0
    %3669 = vadd.xlane.f32.xlu0 %v3668
    %v3670 = vpop.xlane.xlu0 %3669
    %v3671 = vmul.f32 %v3599, %v3609
    %v3672 = vmul.f32 %v3600, %v3609
    %v3673 = vmul.f32 %v3601, %v3609
    %v3674 = vmul.f32 %v3602, %v3609
    %v3675 = vmul.f32 %v3603, %v3609
    %v3676 = vsel %vm851, %v3671, 0.0
    %3677 = vadd.xlane.f32.xlu0 %v3676
    %v3678 = vpop.xlane.xlu0 %3677
    %v3679 = vsel %vm851, %v3672, 0.0
    %3680 = vadd.xlane.f32.xlu0 %v3679
    %v3681 = vpop.xlane.xlu0 %3680
    %v3682 = vsel %vm851, %v3673, 0.0
    %3683 = vadd.xlane.f32.xlu0 %v3682
    %v3684 = vpop.xlane.xlu0 %3683
    %v3685 = vsel %vm851, %v3674, 0.0
    %3686 = vadd.xlane.f32.xlu0 %v3685
    %v3687 = vpop.xlane.xlu0 %3686
    %v3688 = vsel %vm851, %v3675, 0.0
    %3689 = vadd.xlane.f32.xlu0 %v3688
    %v3690 = vpop.xlane.xlu0 %3689
    %vm3691 = vcmask 7168
    %v3692 = vsel %vm3691, %v3618, %v3638
    %v3693 = vsel %vm3691, %v3621, %v3641
    %v3694 = vsel %vm3691, %v3624, %v3644
    %v3695 = vsel %vm3691, %v3627, %v3647
    %v3696 = vsel %vm3691, %v3630, %v3650
    %vm3697 = vcmask 15360
    %v3698 = vsel %vm3697, %v3692, %v3658
    %v3699 = vsel %vm3697, %v3693, %v3661
    %v3700 = vsel %vm3697, %v3694, %v3664
    %v3701 = vsel %vm3697, %v3695, %v3667
    %v3702 = vsel %vm3697, %v3696, %v3670
    %vm3703 = vcmask 23552
    %v3704 = vsel %vm3703, %v3698, %v3678
    %v3705 = vsel %vm3703, %v3699, %v3681
    %v3706 = vsel %vm3703, %v3700, %v3684
    %v3707 = vsel %vm3703, %v3701, %v3687
    %v3708 = vsel %vm3703, %v3702, %v3690
    %v3709 = vld [vmem:[#allocation2] sm:$0x1]
    %v3711 = vlaneseq
    %v3712 = vshrl.u32 %v3711, 7
    %v3713 = vsub.s32 0, %v3712
    %v3714 = vrot.slane %v3709, %v3713
    %3715 = vset.pattern.permute.xlu0 0
    %3716 = vperm.xlu0 %3715, %v3714
    %v3717 = vpop.permute.xlu0 %3716
    %v3719 = vadd.f32 %v3704, %v3717
    %v3720 = vadd.f32 %v3705, %v3717
    %v3721 = vadd.f32 %v3706, %v3717
    %v3722 = vadd.f32 %v3707, %v3717
    %v3723 = vadd.f32 %v3708, %v3717
    %vm3724 = vcmask 31744
    %v3725 = vsel %vm3724, %v3719, -inf
    %3726 = vmax.xlane.f32.xlu0 %v3725
    %v3727 = vpop.xlane.xlu0 %3726
    %v3728 = vsel %vm3724, %v3720, -inf
    %3729 = vmax.xlane.f32.xlu0 %v3728
    %v3730 = vpop.xlane.xlu0 %3729
    %v3731 = vsel %vm3724, %v3721, -inf
    %3732 = vmax.xlane.f32.xlu0 %v3731
    %v3733 = vpop.xlane.xlu0 %3732
    %v3734 = vsel %vm3724, %v3722, -inf
    %3735 = vmax.xlane.f32.xlu0 %v3734
    %v3736 = vpop.xlane.xlu0 %3735
    %v3737 = vsel %vm3724, %v3723, -inf
    %3738 = vmax.xlane.f32.xlu0 %v3737
    %v3739 = vpop.xlane.xlu0 %3738
    %v3740 = vsub.f32 %v3719, %v3727
    %v3741 = vsub.f32 %v3720, %v3730
    %v3742 = vsub.f32 %v3721, %v3733
    %v3743 = vsub.f32 %v3722, %v3736
    %v3744 = vsub.f32 %v3723, %v3739
    %v3745 = vmul.f32 %v3740, 1.442695
    %v3746 = vpow.pop %v3745
    %v3747 = vmul.f32 %v3741, 1.442695
    %v3748 = vpow.pop %v3747
    %v3749 = vmul.f32 %v3742, 1.442695
    %v3750 = vpow.pop %v3749
    %v3751 = vmul.f32 %v3743, 1.442695
    %v3752 = vpow.pop %v3751
    %v3753 = vmul.f32 %v3744, 1.442695
    %v3754 = vpow.pop %v3753
    %v3755 = vsel %vm3724, %v3746, 0.0
    %3756 = vadd.xlane.f32.xlu0 %v3755
    %v3757 = vpop.xlane.xlu0 %3756
    %v3758 = vsel %vm3724, %v3748, 0.0
    %3759 = vadd.xlane.f32.xlu0 %v3758
    %v3760 = vpop.xlane.xlu0 %3759
    %v3761 = vsel %vm3724, %v3750, 0.0
    %3762 = vadd.xlane.f32.xlu0 %v3761
    %v3763 = vpop.xlane.xlu0 %3762
    %v3764 = vsel %vm3724, %v3752, 0.0
    %3765 = vadd.xlane.f32.xlu0 %v3764
    %v3766 = vpop.xlane.xlu0 %3765
    %v3767 = vsel %vm3724, %v3754, 0.0
    %3768 = vadd.xlane.f32.xlu0 %v3767
    %v3769 = vpop.xlane.xlu0 %3768
    %v3770 = vrcp.pop %v3757
    %v3771 = vmul.f32 %v3746, %v3770
    %v3772 = vrcp.pop %v3760
    %v3773 = vmul.f32 %v3748, %v3772
    %v3774 = vrcp.pop %v3763
    %v3775 = vmul.f32 %v3750, %v3774
    %v3776 = vrcp.pop %v3766
    %v3777 = vmul.f32 %v3752, %v3776
    %v3778 = vrcp.pop %v3769
    %v3779 = vmul.f32 %v3754, %v3778
    %v3780 = vld [vmem:[%s11] sm:$0xff]
    %v3781 = vld [vmem:[%s11 + $0x8] sm:$0xff]
    %v3782 = vld [vmem:[%s11 + $0x10] sm:$0xff]
    %v3783 = vld [vmem:[%s11 + $0x18] sm:$0xff]
    %v3784 = vld [vmem:[%s11 + $0x20] sm:$0xff]
    %v3785 = vld [vmem:[%s11 + $0x28] sm:$0xff]
    %v3786 = vld [vmem:[%s11 + $0x30] sm:$0xff]
    %v3787 = vld [vmem:[%s11 + $0x38] sm:$0xff]
    %v3788 = vld [vmem:[%s11 + $0x40] sm:$0xff]
    %v3789 = vld [vmem:[%s11 + $0x48] sm:$0xff]
    %v3790 = vld [vmem:[%s11 + $0x50] sm:$0xff]
    %v3791 = vld [vmem:[%s11 + $0x58] sm:$0xff]
    %v3792 = vld [vmem:[%s11 + $0x60] sm:$0xff]
    %v3793 = vld [vmem:[%s11 + $0x68] sm:$0xff]
    %v3794 = vld [vmem:[%s11 + $0x70] sm:$0xff]
    %v3795 = vld [vmem:[%s11 + $0x78] sm:$0xff]
    %v3796 = vld [vmem:[%s11 + $0x80] sm:$0xff]
    %v3797 = vld [vmem:[%s11 + $0x88] sm:$0xff]
    %v3798 = vld [vmem:[%s11 + $0x90] sm:$0xff]
    %v3799 = vld [vmem:[%s11 + $0x98] sm:$0xff]
    %3801 = vset.pattern.permute.xlu0 0
    %3802 = vperm.xlu0 %3801, %v3771
    %v3803 = vpop.permute.xlu0 %3802
    %3806 = vset.pattern.permute.xlu0 0
    %3807 = vperm.xlu0 %3806, %v3773
    %v3808 = vpop.permute.xlu0 %3807
    %3811 = vset.pattern.permute.xlu0 0
    %3812 = vperm.xlu0 %3811, %v3775
    %v3813 = vpop.permute.xlu0 %3812
    %3816 = vset.pattern.permute.xlu0 0
    %3817 = vperm.xlu0 %3816, %v3777
    %v3818 = vpop.permute.xlu0 %3817
    %3821 = vset.pattern.permute.xlu0 0
    %3822 = vperm.xlu0 %3821, %v3779
    %v3823 = vpop.permute.xlu0 %3822
    %v3825 = vmul.f32 %v3803, %v3780
    %v3826 = vmul.f32 %v3808, %v3781
    %v3827 = vmul.f32 %v3813, %v3782
    %v3828 = vmul.f32 %v3818, %v3783
    %v3829 = vmul.f32 %v3823, %v3784
    %3830 = vset.pattern.permute.xlu0 1
    %3831 = vperm.xlu0 %3830, %v3771
    %v3832 = vpop.permute.xlu0 %3831
    %3834 = vset.pattern.permute.xlu0 1
    %3835 = vperm.xlu0 %3834, %v3773
    %v3836 = vpop.permute.xlu0 %3835
    %3838 = vset.pattern.permute.xlu0 1
    %3839 = vperm.xlu0 %3838, %v3775
    %v3840 = vpop.permute.xlu0 %3839
    %3842 = vset.pattern.permute.xlu0 1
    %3843 = vperm.xlu0 %3842, %v3777
    %v3844 = vpop.permute.xlu0 %3843
    %3846 = vset.pattern.permute.xlu0 1
    %3847 = vperm.xlu0 %3846, %v3779
    %v3848 = vpop.permute.xlu0 %3847
    %v3850 = vmul.f32 %v3832, %v3785
    %v3851 = vmul.f32 %v3836, %v3786
    %v3852 = vmul.f32 %v3840, %v3787
    %v3853 = vmul.f32 %v3844, %v3788
    %v3854 = vmul.f32 %v3848, %v3789
    %v3855 = vadd.f32 %v3825, %v3850
    %v3856 = vadd.f32 %v3826, %v3851
    %v3857 = vadd.f32 %v3827, %v3852
    %v3858 = vadd.f32 %v3828, %v3853
    %v3859 = vadd.f32 %v3829, %v3854
    %3860 = vset.pattern.permute.xlu0 2
    %3861 = vperm.xlu0 %3860, %v3771
    %v3862 = vpop.permute.xlu0 %3861
    %3864 = vset.pattern.permute.xlu0 2
    %3865 = vperm.xlu0 %3864, %v3773
    %v3866 = vpop.permute.xlu0 %3865
    %3868 = vset.pattern.permute.xlu0 2
    %3869 = vperm.xlu0 %3868, %v3775
    %v3870 = vpop.permute.xlu0 %3869
    %3872 = vset.pattern.permute.xlu0 2
    %3873 = vperm.xlu0 %3872, %v3777
    %v3874 = vpop.permute.xlu0 %3873
    %3876 = vset.pattern.permute.xlu0 2
    %3877 = vperm.xlu0 %3876, %v3779
    %v3878 = vpop.permute.xlu0 %3877
    %v3880 = vmul.f32 %v3862, %v3790
    %v3881 = vmul.f32 %v3866, %v3791
    %v3882 = vmul.f32 %v3870, %v3792
    %v3883 = vmul.f32 %v3874, %v3793
    %v3884 = vmul.f32 %v3878, %v3794
    %v3885 = vadd.f32 %v3855, %v3880
    %v3886 = vadd.f32 %v3856, %v3881
    %v3887 = vadd.f32 %v3857, %v3882
    %v3888 = vadd.f32 %v3858, %v3883
    %v3889 = vadd.f32 %v3859, %v3884
    %3890 = vset.pattern.permute.xlu0 3
    %3891 = vperm.xlu0 %3890, %v3771
    %v3892 = vpop.permute.xlu0 %3891
    %3894 = vset.pattern.permute.xlu0 3
    %3895 = vperm.xlu0 %3894, %v3773
    %v3896 = vpop.permute.xlu0 %3895
    %3898 = vset.pattern.permute.xlu0 3
    %3899 = vperm.xlu0 %3898, %v3775
    %v3900 = vpop.permute.xlu0 %3899
    %3902 = vset.pattern.permute.xlu0 3
    %3903 = vperm.xlu0 %3902, %v3777
    %v3904 = vpop.permute.xlu0 %3903
    %3906 = vset.pattern.permute.xlu0 3
    %3907 = vperm.xlu0 %3906, %v3779
    %v3908 = vpop.permute.xlu0 %3907
    %v3910 = vmul.f32 %v3892, %v3795
    %v3911 = vmul.f32 %v3896, %v3796
    %v3912 = vmul.f32 %v3900, %v3797
    %v3913 = vmul.f32 %v3904, %v3798
    %v3914 = vmul.f32 %v3908, %v3799
    %v3915 = vadd.f32 %v3885, %v3910
    %v3916 = vadd.f32 %v3886, %v3911
    %v3917 = vadd.f32 %v3887, %v3912
    %v3918 = vadd.f32 %v3888, %v3913
    %v3919 = vadd.f32 %v3889, %v3914
    %v3920 = vld [vmem:[%s7] sm:$0xff]
    %v3921 = vld [vmem:[%s7 + $0x8] sm:$0xff]
    %v3922 = vld [vmem:[%s7 + $0x10] sm:$0xff]
    %v3923 = vld [vmem:[%s7 + $0x18] sm:$0xff]
    %v3924 = vld [vmem:[%s7 + $0x20] sm:$0xff]
    %3930 = vrot.lane.b32.xlu0 %v3915, 100
    %v3931 = vpop.permute.xlu0 %3930
    %3932 = vrot.lane.b32.xlu0 %v3916, 100
    %v3933 = vpop.permute.xlu0 %3932
    %3934 = vrot.lane.b32.xlu0 %v3917, 100
    %v3935 = vpop.permute.xlu0 %3934
    %3936 = vrot.lane.b32.xlu0 %v3918, 100
    %v3937 = vpop.permute.xlu0 %3936
    %3938 = vrot.lane.b32.xlu0 %v3919, 100
    %v3939 = vpop.permute.xlu0 %3938
    %vm3945 = vcmask 818176
    %v3946 = vsel %vm3945, %v3920, %v3931
    %v3947 = vsel %vm3945, %v3921, %v3933
    %v3948 = vsel %vm3945, %v3922, %v3935
    %v3949 = vsel %vm3945, %v3923, %v3937
    %v3950 = vsel %vm3945, %v3924, %v3939
    %v3951 = vld [vmem:[%s65] sm:$0xf]
    %v3952 = vld [vmem:[%s65 + $0x4] sm:$0xf]
    %v3953 = vld [vmem:[%s65 + $0x8] sm:$0xf]
    %v3954 = vld [vmem:[%s65 + $0xc] sm:$0xf]
    %v3955 = vld [vmem:[%s65 + $0x10] sm:$0xf]
    %v3956 = vld [vmem:[%s65 + $0x14] sm:$0xf]
    %v3957 = vld [vmem:[%s65 + $0x18] sm:$0xf]
    %v3958 = vld [vmem:[%s65 + $0x1c] sm:$0xf]
    %v3959 = vld [vmem:[%s65 + $0x20] sm:$0xf]
    %v3960 = vld [vmem:[%s65 + $0x24] sm:$0xf]
    %v3961 = vld [vmem:[%s65 + $0x28] sm:$0xf]
    %v3962 = vld [vmem:[%s65 + $0x2c] sm:$0xf]
    %v3963 = vld [vmem:[%s65 + $0x30] sm:$0xf]
    %v3964 = vld [vmem:[%s65 + $0x34] sm:$0xf]
    %v3965 = vld [vmem:[%s65 + $0x38] sm:$0xf]
    %v3966 = vld [vmem:[%s65 + $0x3c] sm:$0xf]
    %v3967 = vld [vmem:[%s65 + $0x40] sm:$0xf]
    %v3968 = vld [vmem:[%s65 + $0x44] sm:$0xf]
    %v3969 = vld [vmem:[%s65 + $0x48] sm:$0xf]
    %v3970 = vld [vmem:[%s65 + $0x4c] sm:$0xf]
    %v3971 = vld [vmem:[%s65 + $0x50] sm:$0xf]
    %v3972 = vld [vmem:[%s65 + $0x54] sm:$0xf]
    %v3973 = vld [vmem:[%s65 + $0x58] sm:$0xf]
    %v3974 = vld [vmem:[%s65 + $0x5c] sm:$0xf]
    %v3975 = vld [vmem:[%s65 + $0x60] sm:$0xf]
    %v3976 = vpack.c.bf16 %v3947, %v3946
    %v3977 = vpack.c.bf16 %v3933, %v3931
    %v3978 = vpack.c.bf16 %v3949, %v3948
    %v3979 = vpack.c.bf16 %v3937, %v3935
    %v3980 = vpack.c.bf16 %v3950, %v3950
    %v3981 = vpack.c.bf16 %v3939, %v3939
    %v3982 = vld [vmem:[%s67] sm:$0x1]
    %v3984 = vlaneseq
    %v3985 = vshrl.u32 %v3984, 7
    %v3986 = vsub.s32 0, %v3985
    %v3987 = vrot.slane %v3982, %v3986
    %v4014 = vunpack.c.l.b16 %v3951
    %v4015 = vunpack.c.l.b16 %v3952
    %v4016 = vunpack.c.l.b16 %v3953
    %v4017 = vunpack.c.l.b16 %v3954
    %v4018 = vunpack.c.l.b16 %v3955
    %v4019 = vunpack.c.l.b16 %v3956
    %v4020 = vunpack.c.l.b16 %v3957
    %v4021 = vunpack.c.l.b16 %v3958
    %v4022 = vunpack.c.l.b16 %v3959
    %v4023 = vunpack.c.l.b16 %v3960
    %v4024 = vunpack.c.l.b16 %v3961
    %v4025 = vunpack.c.l.b16 %v3962
    %v4026 = vunpack.c.l.b16 %v3963
    %v4027 = vunpack.c.l.b16 %v3964
    %v4028 = vunpack.c.l.b16 %v3965
    %v4029 = vunpack.c.l.b16 %v3966
    %v4030 = vunpack.c.l.b16 %v3967
    %v4031 = vunpack.c.l.b16 %v3968
    %v4032 = vunpack.c.l.b16 %v3969
    %v4033 = vunpack.c.l.b16 %v3970
    %v4034 = vunpack.c.l.b16 %v3971
    %v4035 = vunpack.c.l.b16 %v3972
    %v4036 = vunpack.c.l.b16 %v3973
    %v4037 = vunpack.c.l.b16 %v3974
    %v4038 = vunpack.c.l.b16 %v3975
    %v4039 = vpack.c.b16 %v4015, %v4014
    %v4040 = vpack.c.b16 %v4017, %v4016
    %v4041 = vpack.c.b16 %v4019, %v4018
    %v4042 = vpack.c.b16 %v4021, %v4020
    %v4043 = vpack.c.b16 %v4023, %v4022
    %v4044 = vpack.c.b16 %v4025, %v4024
    %v4045 = vpack.c.b16 %v4027, %v4026
    %v4046 = vpack.c.b16 %v4029, %v4028
    %v4047 = vpack.c.b16 %v4031, %v4030
    %v4048 = vpack.c.b16 %v4033, %v4032
    %v4049 = vpack.c.b16 %v4035, %v4034
    %v4050 = vpack.c.b16 %v4037, %v4036
    %v4051 = vpack.c.b16 %v4038, %v4038
    %vm4064 = vcmask 588800
    %v4066 = vsel %vm4064, %v3977, 0
    %v4069 = vsel %vm4064, %v3979, 0
    %v4072 = vsel %vm4064, %v3981, 0
    %vm4074 = vcmask 1043456
    %v4076 = vsel %vm4074, %v4051, 0
    %4078 = vmatprep.subr.bf16.mxu0 0
    %4079 = vmatpush1.bf16.msra.mxu0 %v4039
    %4080 = vmatprep.subr.bf16.mxu0 0
    %4081 = vmatpush1.bf16.msra.mxu0 %v4040
    %4082 = vmatprep.subr.bf16.mxu0 0
    %4083 = vmatpush1.bf16.msra.mxu0 %v4041
    %4084 = vmatprep.subr.bf16.mxu0 0
    %4085 = vmatpush1.bf16.msra.mxu0 %v4042
    %4086 = vmatprep.subr.bf16.mxu0 0
    %4087 = vmatpush1.bf16.msra.mxu0 %v4043
    %4088 = vmatprep.subr.bf16.mxu0 0
    %4089 = vmatpush1.bf16.msra.mxu0 %v4044
    %4090 = vmatprep.subr.bf16.mxu0 0
    %4091 = vmatpush1.bf16.msra.mxu0 %v4045
    %4092 = vmatprep.subr.bf16.mxu0 0
    %4093 = vmatpush1.bf16.msra.mxu0 %v4046
    %4094 = vmatprep.subr.bf16.mxu0 0
    %4095 = vmatpush1.bf16.msra.mxu0 %v4047
    %4096 = vmatprep.subr.bf16.mxu0 0
    %4097 = vmatpush1.bf16.msra.mxu0 %v4048
    %4098 = vmatprep.subr.bf16.mxu0 0
    %4099 = vmatpush1.bf16.msra.mxu0 %v4049
    %4100 = vmatprep.subr.bf16.mxu0 0
    %4101 = vmatpush1.bf16.msra.mxu0 %v4050
    %4102 = vmatprep.subr.bf16.mxu0 0
    %4103 = vmatpush1.bf16.msra.mxu0 %v4076
    %4104 = vmatprep.subr.bf16.mxu0 0
    %4105 = vmatpush1.bf16.msra.mxu0 0
    %4106 = vmatprep.subr.bf16.mxu0 0
    %4107 = vmatpush1.bf16.msra.mxu0 0
    %4108 = vmatprep.subr.bf16.mxu0 0
    %4109 = vmatpush1.bf16.msra.mxu0 0
    %4110 = vmatprep.mubr.bf16.mxu0 %v4066
    %4111 = vmatmul.mubr.bf16.gmra.mrb[0].mxu0 %v3976
    %v4112 = vpop.f32.mrb[0].mxu0
    %v4113 = vadd.f32 %v3987, %v4112
    %v4114 = vpop.f32.mrb[0].mxu0
    %v4115 = vpop.f32.mrb[0].mxu0
    %v4116 = vadd.f32 %v3987, %v4115
    %v4117 = vpop.f32.mrb[0].mxu0
    %4118 = vmatprep.mubr.bf16.mxu0 %v4069
    %4119 = vmatmul.mubr.bf16.gmra.mrb[0].mxu0 %v3978
    %v4120 = vpop.f32.mrb[0].mxu0
    %v4121 = vadd.f32 %v3987, %v4120
    %v4122 = vpop.f32.mrb[0].mxu0
    %v4123 = vpop.f32.mrb[0].mxu0
    %v4124 = vadd.f32 %v3987, %v4123
    %v4125 = vpop.f32.mrb[0].mxu0
    %4126 = vmatprep.mubr.bf16.mxu0 %v4072
    %4127 = vmatmul.mubr.bf16.gmra.mrb[0].mxu0 %v3980
    %v4128 = vpop.f32.mrb[0].mxu0
    %v4129 = vadd.f32 %v3987, %v4128
    %v4130 = vpop.f32.mrb[0].mxu0
    %v4131 = vpop.f32.mrb[0].mxu0
    %v4132 = vpop.f32.mrb[0].mxu0
    %4133 = vdwg.mxu0
    %v4134 = vtanh.pop %v4113
    %v4135 = vtanh.pop %v4116
    %v4136 = vtanh.pop %v4121
    %v4137 = vtanh.pop %v4124
    %v4138 = vtanh.pop %v4129
    %v4139 = vld [vmem:[%s13] sm:$0xff]
    %v4140 = vld [vmem:[%s13 + $0x8] sm:$0xff]
    %v4141 = vld [vmem:[%s13 + $0x10] sm:$0xff]
    %v4142 = vld [vmem:[%s13 + $0x18] sm:$0xff]
    %v4143 = vld [vmem:[%s13 + $0x20] sm:$0xff]
    %vm4144 = vcmask 326656
    %v4146 = vsel %vm4144, %v4139, 0
    %v4149 = vsel %vm4144, %v4140, 0
    %v4152 = vsel %vm4144, %v4141, 0
    %v4155 = vsel %vm4144, %v4142, 0
    %v4158 = vsel %vm4144, %v4143, 0
    %4160 = vmatprep.subr.mxu0 0.0
    %4161 = vmatpush1.msra.mxu0 %v4134
    %4162 = vmatprep.subr.mxu0 0.0
    %4163 = vmatpush1.msra.mxu0 %v4135
    %4164 = vmatprep.subr.mxu0 0.0
    %4165 = vmatpush1.msra.mxu0 %v4136
    %4166 = vmatprep.subr.mxu0 0.0
    %4167 = vmatpush1.msra.mxu0 %v4137
    %4168 = vmatprep.subr.mxu0 0.0
    %4169 = vmatpush1.msra.mxu0 %v4138
    %4170 = vmatprep.subr.mxu0 0.0
    %4171 = vmatpush1.msra.mxu0 0.0
    %4172 = vmatprep.subr.mxu0 0.0
    %4173 = vmatpush1.msra.mxu0 0.0
    %4174 = vmatprep.subr.mxu0 0.0
    %4175 = vmatpush1.msra.mxu0 0.0
    %4176 = vmatprep.subr.mxu0 0.0
    %4177 = vmatpush1.msra.mxu0 0.0
    %4178 = vmatprep.subr.mxu0 0.0
    %4179 = vmatpush1.msra.mxu0 0.0
    %4180 = vmatprep.subr.mxu0 0.0
    %4181 = vmatpush1.msra.mxu0 0.0
    %4182 = vmatprep.subr.mxu0 0.0
    %4183 = vmatpush1.msra.mxu0 0.0
    %4184 = vmatprep.subr.mxu0 0.0
    %4185 = vmatpush1.msra.mxu0 0.0
    %4186 = vmatprep.subr.mxu0 0.0
    %4187 = vmatpush1.msra.mxu0 0.0
    %4188 = vmatprep.subr.mxu0 0.0
    %4189 = vmatpush1.msra.mxu0 0.0
    %4190 = vmatprep.subr.mxu0 0.0
    %4191 = vmatpush1.msra.mxu0 0.0
    %4192 = vmatprep.subr.mxu0 0.0
    %4193 = vmatpush1.msra.mxu0 0.0
    %4194 = vmatprep.subr.mxu0 0.0
    %4195 = vmatpush1.msra.mxu0 0.0
    %4196 = vmatprep.subr.mxu0 0.0
    %4197 = vmatpush1.msra.mxu0 0.0
    %4198 = vmatprep.subr.mxu0 0.0
    %4199 = vmatpush1.msra.mxu0 0.0
    %4200 = vmatprep.subr.mxu0 0.0
    %4201 = vmatpush1.msra.mxu0 0.0
    %4202 = vmatprep.subr.mxu0 0.0
    %4203 = vmatpush1.msra.mxu0 0.0
    %4204 = vmatprep.subr.mxu0 0.0
    %4205 = vmatpush1.msra.mxu0 0.0
    %4206 = vmatprep.subr.mxu0 0.0
    %4207 = vmatpush1.msra.mxu0 0.0
    %4208 = vmatprep.subr.mxu0 0.0
    %4209 = vmatpush1.msra.mxu0 0.0
    %4210 = vmatprep.subr.mxu0 0.0
    %4211 = vmatpush1.msra.mxu0 0.0
    %4212 = vmatprep.subr.mxu0 0.0
    %4213 = vmatpush1.msra.mxu0 0.0
    %4214 = vmatprep.subr.mxu0 0.0
    %4215 = vmatpush1.msra.mxu0 0.0
    %4216 = vmatprep.subr.mxu0 0.0
    %4217 = vmatpush1.msra.mxu0 0.0
    %4218 = vmatprep.subr.mxu0 0.0
    %4219 = vmatpush1.msra.mxu0 0.0
    %4220 = vmatprep.subr.mxu0 0.0
    %4221 = vmatpush1.msra.mxu0 0.0
    %4222 = vmatprep.subr.mxu0 0.0
    %4223 = vmatpush1.msra.mxu0 0.0
    %4224 = vmatprep.mubr.f32.mxu0 0.0
    %4225 = vmatmul.mubr.f32.gmra.mrb[0].mxu0 %v4146
    %v4226 = vpop.f32.mrb[0].mxu0
    %v4227 = vadd.f32 0.0, %v4226
    %v4228 = vpop.f32.mrb[0].mxu0
    %4229 = vmatprep.mubr.f32.mxu0 0.0
    %4230 = vmatmul.mubr.f32.gmra.mrb[0].mxu0 %v4149
    %v4231 = vpop.f32.mrb[0].mxu0
    %v4232 = vadd.f32 0.0, %v4231
    %v4233 = vpop.f32.mrb[0].mxu0
    %4234 = vmatprep.mubr.f32.mxu0 0.0
    %4235 = vmatmul.mubr.f32.gmra.mrb[0].mxu0 %v4152
    %v4236 = vpop.f32.mrb[0].mxu0
    %v4237 = vadd.f32 0.0, %v4236
    %v4238 = vpop.f32.mrb[0].mxu0
    %4239 = vmatprep.mubr.f32.mxu0 0.0
    %4240 = vmatmul.mubr.f32.gmra.mrb[0].mxu0 %v4155
    %v4241 = vpop.f32.mrb[0].mxu0
    %v4242 = vadd.f32 0.0, %v4241
    %v4243 = vpop.f32.mrb[0].mxu0
    %4244 = vmatprep.mubr.f32.mxu0 0.0
    %4245 = vmatmul.mubr.f32.gmra.mrb[0].mxu0 %v4158
    %v4246 = vpop.f32.mrb[0].mxu0
    %v4247 = vadd.f32 0.0, %v4246
    %v4248 = vpop.f32.mrb[0].mxu0
    %4249 = vdwg.mxu0
    %v4250 = vld [vmem:[%s69] sm:$0xf]
    %v4251 = vld [vmem:[%s69 + $0x4] sm:$0xf]
    %v4252 = vld [vmem:[%s69 + $0x8] sm:$0xf]
    %v4253 = vld [vmem:[%s69 + $0xc] sm:$0xf]
    %v4254 = vld [vmem:[%s69 + $0x10] sm:$0xf]
    %v4255 = vld [vmem:[%s69 + $0x14] sm:$0xf]
    %v4256 = vld [vmem:[%s69 + $0x18] sm:$0xf]
    %v4257 = vld [vmem:[%s69 + $0x1c] sm:$0xf]
    %v4258 = vld [vmem:[%s69 + $0x20] sm:$0xf]
    %v4259 = vld [vmem:[%s69 + $0x24] sm:$0xf]
    %v4260 = vld [vmem:[%s69 + $0x28] sm:$0xf]
    %v4261 = vld [vmem:[%s69 + $0x2c] sm:$0xf]
    %v4262 = vld [vmem:[%s69 + $0x30] sm:$0x3]
    %v4263 = vpack.c.bf16 %v4232, %v4227
    %v4264 = vpack.c.bf16 %v4242, %v4237
    %v4265 = vpack.c.bf16 %v4247, %v4247
    %v4266 = vld [vmem:[%s71] sm:$0x1]
    %v4268 = vlaneseq
    %v4269 = vshrl.u32 %v4268, 7
    %v4270 = vsub.s32 0, %v4269
    %v4271 = vrot.slane %v4266, %v4270
    %v4286 = vunpack.c.l.b16 %v4250
    %v4287 = vunpack.c.l.b16 %v4251
    %v4288 = vunpack.c.l.b16 %v4252
    %v4289 = vunpack.c.l.b16 %v4253
    %v4290 = vunpack.c.l.b16 %v4254
    %v4291 = vunpack.c.l.b16 %v4255
    %v4292 = vunpack.c.l.b16 %v4256
    %v4293 = vunpack.c.l.b16 %v4257
    %v4294 = vunpack.c.l.b16 %v4258
    %v4295 = vunpack.c.l.b16 %v4259
    %v4296 = vunpack.c.l.b16 %v4260
    %v4297 = vunpack.c.l.b16 %v4261
    %v4298 = vunpack.c.l.b16 %v4262
    %v4299 = vpack.c.b16 %v4287, %v4286
    %v4300 = vpack.c.b16 %v4289, %v4288
    %v4301 = vpack.c.b16 %v4291, %v4290
    %v4302 = vpack.c.b16 %v4293, %v4292
    %v4303 = vpack.c.b16 %v4295, %v4294
    %v4304 = vpack.c.b16 %v4297, %v4296
    %v4305 = vpack.c.b16 %v4298, %v4298
    %v4313 = vsel %vm3945, %v4263, 0
    %v4316 = vsel %vm3945, %v4264, 0
    %v4319 = vsel %vm3945, %v4265, 0
    %vm4321 = vcmask 1041408
    %v4323 = vsel %vm4321, %v4305, 0
    %4325 = vmatprep.subr.bf16.mxu0 0
    %4326 = vmatpush1.bf16.msra.mxu0 %v4299
    %4327 = vmatprep.subr.bf16.mxu0 0
    %4328 = vmatpush1.bf16.msra.mxu0 %v4300
    %4329 = vmatprep.subr.bf16.mxu0 0
    %4330 = vmatpush1.bf16.msra.mxu0 %v4301
    %4331 = vmatprep.subr.bf16.mxu0 0
    %4332 = vmatpush1.bf16.msra.mxu0 %v4302
    %4333 = vmatprep.subr.bf16.mxu0 0
    %4334 = vmatpush1.bf16.msra.mxu0 %v4303
    %4335 = vmatprep.subr.bf16.mxu0 0
    %4336 = vmatpush1.bf16.msra.mxu0 %v4304
    %4337 = vmatprep.subr.bf16.mxu0 0
    %4338 = vmatpush1.bf16.msra.mxu0 %v4323
    %4339 = vmatprep.subr.bf16.mxu0 0
    %4340 = vmatpush1.bf16.msra.mxu0 0
    %4341 = vmatprep.subr.bf16.mxu0 0
    %4342 = vmatpush1.bf16.msra.mxu0 0
    %4343 = vmatprep.subr.bf16.mxu0 0
    %4344 = vmatpush1.bf16.msra.mxu0 0
    %4345 = vmatprep.subr.bf16.mxu0 0
    %4346 = vmatpush1.bf16.msra.mxu0 0
    %4347 = vmatprep.subr.bf16.mxu0 0
    %4348 = vmatpush1.bf16.msra.mxu0 0
    %4349 = vmatprep.subr.bf16.mxu0 0
    %4350 = vmatpush1.bf16.msra.mxu0 0
    %4351 = vmatprep.subr.bf16.mxu0 0
    %4352 = vmatpush1.bf16.msra.mxu0 0
    %4353 = vmatprep.subr.bf16.mxu0 0
    %4354 = vmatpush1.bf16.msra.mxu0 0
    %4355 = vmatprep.subr.bf16.mxu0 0
    %4356 = vmatpush1.bf16.msra.mxu0 0
    %4357 = vmatprep.mubr.bf16.mxu0 0
    %4358 = vmatmul.mubr.bf16.gmra.mrb[0].mxu0 %v4313
    %v4359 = vpop.f32.mrb[0].mxu0
    %v4360 = vadd.f32 %v4271, %v4359
    %v4361 = vpop.f32.mrb[0].mxu0
    %v4362 = vpop.f32.mrb[0].mxu0
    %v4363 = vadd.f32 %v4271, %v4362
    %v4364 = vpop.f32.mrb[0].mxu0
    %4365 = vmatprep.mubr.bf16.mxu0 0
    %4366 = vmatmul.mubr.bf16.gmra.mrb[0].mxu0 %v4316
    %v4367 = vpop.f32.mrb[0].mxu0
    %v4368 = vadd.f32 %v4271, %v4367
    %v4369 = vpop.f32.mrb[0].mxu0
    %v4370 = vpop.f32.mrb[0].mxu0
    %v4371 = vadd.f32 %v4271, %v4370
    %v4372 = vpop.f32.mrb[0].mxu0
    %4373 = vmatprep.mubr.bf16.mxu0 0
    %4374 = vmatmul.mubr.bf16.gmra.mrb[0].mxu0 %v4319
    %v4375 = vpop.f32.mrb[0].mxu0
    %v4376 = vadd.f32 %v4271, %v4375
    %v4377 = vpop.f32.mrb[0].mxu0
    %v4378 = vpop.f32.mrb[0].mxu0
    %v4379 = vpop.f32.mrb[0].mxu0
    %4380 = vdwg.mxu0
    %v4381 = vmax.f32 %v4360, 0.0
    %v4382 = vmax.f32 %v4363, 0.0
    %v4383 = vmax.f32 %v4368, 0.0
    %v4384 = vmax.f32 %v4371, 0.0
    %v4385 = vmax.f32 %v4376, 0.0
    %v4386 = vsel %vm851, %v4381, 0.0
    %4387 = vadd.xlane.f32.xlu0 %v4386
    %v4388 = vpop.xlane.xlu0 %4387
    %v4389 = vsel %vm851, %v4382, 0.0
    %4390 = vadd.xlane.f32.xlu0 %v4389
    %v4391 = vpop.xlane.xlu0 %4390
    %v4392 = vsel %vm851, %v4383, 0.0
    %4393 = vadd.xlane.f32.xlu0 %v4392
    %v4394 = vpop.xlane.xlu0 %4393
    %v4395 = vsel %vm851, %v4384, 0.0
    %4396 = vadd.xlane.f32.xlu0 %v4395
    %v4397 = vpop.xlane.xlu0 %4396
    %v4398 = vsel %vm851, %v4385, 0.0
    %4399 = vadd.xlane.f32.xlu0 %v4398
    %v4400 = vpop.xlane.xlu0 %4399
    %v4401 = vmul.f32 %v4388, %v2502
    %v4402 = vmul.f32 %v4391, %v2502
    %v4403 = vmul.f32 %v4394, %v2502
    %v4404 = vmul.f32 %v4397, %v2502
    %v4405 = vmul.f32 %v4400, %v2502
    %v4406 = vsub.f32 %v4381, %v4401
    %v4407 = vsub.f32 %v4382, %v4402
    %v4408 = vsub.f32 %v4383, %v4403
    %v4409 = vsub.f32 %v4384, %v4404
    %v4410 = vsub.f32 %v4385, %v4405
    %v4411 = vmul.f32 %v4406, %v4406
    %v4412 = vmul.f32 %v4407, %v4407
    %v4413 = vmul.f32 %v4408, %v4408
    %v4414 = vmul.f32 %v4409, %v4409
    %v4415 = vmul.f32 %v4410, %v4410
    %v4416 = vsel %vm851, %v4411, 0.0
    %4417 = vadd.xlane.f32.xlu0 %v4416
    %v4418 = vpop.xlane.xlu0 %4417
    %v4419 = vsel %vm851, %v4412, 0.0
    %4420 = vadd.xlane.f32.xlu0 %v4419
    %v4421 = vpop.xlane.xlu0 %4420
    %v4422 = vsel %vm851, %v4413, 0.0
    %4423 = vadd.xlane.f32.xlu0 %v4422
    %v4424 = vpop.xlane.xlu0 %4423
    %v4425 = vsel %vm851, %v4414, 0.0
    %4426 = vadd.xlane.f32.xlu0 %v4425
    %v4427 = vpop.xlane.xlu0 %4426
    %v4428 = vsel %vm851, %v4415, 0.0
    %4429 = vadd.xlane.f32.xlu0 %v4428
    %v4430 = vpop.xlane.xlu0 %4429
    %v4431 = vmul.f32 %v4418, %v2502
    %v4432 = vmul.f32 %v4421, %v2502
    %v4433 = vmul.f32 %v4424, %v2502
    %v4434 = vmul.f32 %v4427, %v2502
    %v4435 = vmul.f32 %v4430, %v2502
    %v4436 = vadd.f32 %v4431, 1e-05
    %v4437 = vadd.f32 %v4432, 1e-05
    %v4438 = vadd.f32 %v4433, 1e-05
    %v4439 = vadd.f32 %v4434, 1e-05
    %v4440 = vadd.f32 %v4435, 1e-05
    %v4441 = vrsqrt.pop %v4436
    %v4442 = vrsqrt.pop %v4437
    %v4443 = vrsqrt.pop %v4438
    %v4444 = vrsqrt.pop %v4439
    %v4445 = vrsqrt.pop %v4440
    %v4446 = vmul.f32 %v4406, %v4441
    %v4447 = vmul.f32 %v4407, %v4442
    %v4448 = vmul.f32 %v4408, %v4443
    %v4449 = vmul.f32 %v4409, %v4444
    %v4450 = vmul.f32 %v4410, %v4445
    %v4451 = vmul.f32 %v4446, %v2587
    %v4452 = vmul.f32 %v4447, %v2587
    %v4453 = vmul.f32 %v4448, %v2587
    %v4454 = vmul.f32 %v4449, %v2587
    %v4455 = vmul.f32 %v4450, %v2587
    %v4456 = vadd.f32 %v4451, %v2601
    %v4457 = vadd.f32 %v4452, %v2601
    %v4458 = vadd.f32 %v4453, %v2601
    %v4459 = vadd.f32 %v4454, %v2601
    %v4460 = vadd.f32 %v4455, %v2601
    %v4461 = vld [vmem:[%s73] sm:$0xf]
    %v4462 = vld [vmem:[%s73 + $0x4] sm:$0xf]
    %v4463 = vld [vmem:[%s73 + $0x8] sm:$0xf]
    %v4464 = vld [vmem:[%s73 + $0xc] sm:$0xf]
    %v4465 = vld [vmem:[%s73 + $0x10] sm:$0xf]
    %v4466 = vld [vmem:[%s73 + $0x14] sm:$0xf]
    %v4467 = vld [vmem:[%s73 + $0x18] sm:$0xf]
    %v4468 = vld [vmem:[%s73 + $0x1c] sm:$0xf]
    %v4469 = vld [vmem:[%s75] sm:$0x1]
    %v4470 = vld [vmem:[%s77] sm:$0x1]
    %v4471 = vld [vmem:[%s19] sm:$0xff]
    %v4472 = vpack.c.bf16 %v4457, %v4456
    %v4473 = vpack.c.bf16 %v4459, %v4458
    %v4474 = vpack.c.bf16 %v4460, %v4460
    %v4476 = vlaneseq
    %v4477 = vshrl.u32 %v4476, 7
    %v4478 = vsub.s32 0, %v4477
    %v4479 = vrot.slane %v4469, %v4478
    %v4489 = vunpack.c.l.b16 %v4461
    %v4490 = vunpack.c.l.b16 %v4462
    %v4491 = vunpack.c.l.b16 %v4463
    %v4492 = vunpack.c.l.b16 %v4464
    %v4493 = vunpack.c.l.b16 %v4465
    %v4494 = vunpack.c.l.b16 %v4466
    %v4495 = vunpack.c.l.b16 %v4467
    %v4496 = vunpack.c.l.b16 %v4468
    %v4497 = vpack.c.b16 %v4490, %v4489
    %v4498 = vpack.c.b16 %v4492, %v4491
    %v4499 = vpack.c.b16 %v4494, %v4493
    %v4500 = vpack.c.b16 %v4496, %v4495
    %v4506 = vsel %vm851, %v4472, 0
    %v4509 = vsel %vm851, %v4473, 0
    %v4512 = vsel %vm851, %v4474, 0
    %4514 = vmatprep.subr.bf16.mxu0 0
    %4515 = vmatpush1.bf16.msra.mxu0 %v4497
    %4516 = vmatprep.subr.bf16.mxu0 0
    %4517 = vmatpush1.bf16.msra.mxu0 %v4498
    %4518 = vmatprep.subr.bf16.mxu0 0
    %4519 = vmatpush1.bf16.msra.mxu0 %v4499
    %4520 = vmatprep.subr.bf16.mxu0 0
    %4521 = vmatpush1.bf16.msra.mxu0 %v4500
    %4522 = vmatprep.subr.bf16.mxu0 0
    %4523 = vmatpush1.bf16.msra.mxu0 0
    %4524 = vmatprep.subr.bf16.mxu0 0
    %4525 = vmatpush1.bf16.msra.mxu0 0
    %4526 = vmatprep.subr.bf16.mxu0 0
    %4527 = vmatpush1.bf16.msra.mxu0 0
    %4528 = vmatprep.subr.bf16.mxu0 0
    %4529 = vmatpush1.bf16.msra.mxu0 0
    %4530 = vmatprep.subr.bf16.mxu0 0
    %4531 = vmatpush1.bf16.msra.mxu0 0
    %4532 = vmatprep.subr.bf16.mxu0 0
    %4533 = vmatpush1.bf16.msra.mxu0 0
    %4534 = vmatprep.subr.bf16.mxu0 0
    %4535 = vmatpush1.bf16.msra.mxu0 0
    %4536 = vmatprep.subr.bf16.mxu0 0
    %4537 = vmatpush1.bf16.msra.mxu0 0
    %4538 = vmatprep.subr.bf16.mxu0 0
    %4539 = vmatpush1.bf16.msra.mxu0 0
    %4540 = vmatprep.subr.bf16.mxu0 0
    %4541 = vmatpush1.bf16.msra.mxu0 0
    %4542 = vmatprep.subr.bf16.mxu0 0
    %4543 = vmatpush1.bf16.msra.mxu0 0
    %4544 = vmatprep.subr.bf16.mxu0 0
    %4545 = vmatpush1.bf16.msra.mxu0 0
    %4546 = vmatprep.mubr.bf16.mxu0 0
    %4547 = vmatmul.mubr.bf16.gmra.mrb[0].mxu0 %v4506
    %v4548 = vpop.f32.mrb[0].mxu0
    %v4549 = vadd.f32 %v4479, %v4548
    %v4550 = vpop.f32.mrb[0].mxu0
    %v4551 = vpop.f32.mrb[0].mxu0
    %v4552 = vadd.f32 %v4479, %v4551
    %v4553 = vpop.f32.mrb[0].mxu0
    %4554 = vmatprep.mubr.bf16.mxu0 0
    %4555 = vmatmul.mubr.bf16.gmra.mrb[0].mxu0 %v4509
    %v4556 = vpop.f32.mrb[0].mxu0
    %v4557 = vadd.f32 %v4479, %v4556
    %v4558 = vpop.f32.mrb[0].mxu0
    %v4559 = vpop.f32.mrb[0].mxu0
    %v4560 = vadd.f32 %v4479, %v4559
    %v4561 = vpop.f32.mrb[0].mxu0
    %4562 = vmatprep.mubr.bf16.mxu0 0
    %4563 = vmatmul.mubr.bf16.gmra.mrb[0].mxu0 %v4512
    %v4564 = vpop.f32.mrb[0].mxu0
    %v4565 = vadd.f32 %v4479, %v4564
    %v4566 = vpop.f32.mrb[0].mxu0
    %v4567 = vpop.f32.mrb[0].mxu0
    %v4568 = vpop.f32.mrb[0].mxu0
    %4569 = vdwg.mxu0
    %v4570 = vtanh.pop %v4549
    %v4571 = vtanh.pop %v4552
    %v4572 = vtanh.pop %v4557
    %v4573 = vtanh.pop %v4560
    %v4574 = vtanh.pop %v4565
    %v4576 = vlaneseq
    %v4577 = vshrl.u32 %v4576, 7
    %v4578 = vsub.s32 0, %v4577
    %v4579 = vrot.slane %v4470, %v4578
    %v4581 = vmul.f32 %v4570, %v4579
    %v4582 = vmul.f32 %v4571, %v4579
    %v4583 = vmul.f32 %v4572, %v4579
    %v4584 = vmul.f32 %v4573, %v4579
    %v4585 = vmul.f32 %v4574, %v4579
    %v4586 = vsel %vm438, %v4581, 0.0
    %4587 = vadd.xlane.f32.xlu0 %v4586
    %v4588 = vpop.xlane.xlu0 %4587
    %v4589 = vsel %vm438, %v4582, 0.0
    %4590 = vadd.xlane.f32.xlu0 %v4589
    %v4591 = vpop.xlane.xlu0 %4590
    %v4592 = vsel %vm438, %v4583, 0.0
    %4593 = vadd.xlane.f32.xlu0 %v4592
    %v4594 = vpop.xlane.xlu0 %4593
    %v4595 = vsel %vm438, %v4584, 0.0
    %4596 = vadd.xlane.f32.xlu0 %v4595
    %v4597 = vpop.xlane.xlu0 %4596
    %v4598 = vsel %vm438, %v4585, 0.0
    %4599 = vadd.xlane.f32.xlu0 %v4598
    %v4600 = vpop.xlane.xlu0 %4599
    %v4601 = vmax.f32 %v4588, %v4600
    %v4602 = vmax.f32 %v4601, %v4591
    %v4603 = vmax.f32 %v4594, %v4597
    %v4604 = vmax.f32 %v4602, %v4603
    %v4605 = vrot.slane %v4604, 4
    %v4606 = vmax.f32 %v4604, %v4605
    %v4607 = vrot.slane %v4606, 2
    %v4608 = vmax.f32 %v4606, %v4607
    %v4609 = vrot.slane %v4608, 1
    %v4610 = vmax.f32 %v4608, %v4609
    %v4611 = vsub.f32 %v4588, %v4610
    %v4612 = vsub.f32 %v4591, %v4610
    %v4613 = vsub.f32 %v4594, %v4610
    %v4614 = vsub.f32 %v4597, %v4610
    %v4615 = vsub.f32 %v4600, %v4610
    %v4616 = vmul.f32 %v4611, 1.442695
    %v4617 = vpow.pop %v4616
    %v4618 = vmul.f32 %v4612, 1.442695
    %v4619 = vpow.pop %v4618
    %v4620 = vmul.f32 %v4613, 1.442695
    %v4621 = vpow.pop %v4620
    %v4622 = vmul.f32 %v4614, 1.442695
    %v4623 = vpow.pop %v4622
    %v4624 = vmul.f32 %v4615, 1.442695
    %v4625 = vpow.pop %v4624
    %v4626 = vmul.f32 %v4617, %v4456
    %v4627 = vmul.f32 %v4619, %v4457
    %v4628 = vmul.f32 %v4621, %v4458
    %v4629 = vmul.f32 %v4623, %v4459
    %v4630 = vmul.f32 %v4625, %v4460
    %v4632 = vsel %vm4144, %v4471, 0
    %4634 = vmatprep.subr.mxu0 0.0
    %4635 = vmatpush1.msra.mxu0 %v4626
    %4636 = vmatprep.subr.mxu0 0.0
    %4637 = vmatpush1.msra.mxu0 %v4627
    %4638 = vmatprep.subr.mxu0 0.0
    %4639 = vmatpush1.msra.mxu0 %v4628
    %4640 = vmatprep.subr.mxu0 0.0
    %4641 = vmatpush1.msra.mxu0 %v4629
    %4642 = vmatprep.subr.mxu0 0.0
    %4643 = vmatpush1.msra.mxu0 %v4630
    %4644 = vmatprep.subr.mxu0 0.0
    %4645 = vmatpush1.msra.mxu0 0.0
    %4646 = vmatprep.subr.mxu0 0.0
    %4647 = vmatpush1.msra.mxu0 0.0
    %4648 = vmatprep.subr.mxu0 0.0
    %4649 = vmatpush1.msra.mxu0 0.0
    %4650 = vmatprep.subr.mxu0 0.0
    %4651 = vmatpush1.msra.mxu0 0.0
    %4652 = vmatprep.subr.mxu0 0.0
    %4653 = vmatpush1.msra.mxu0 0.0
    %4654 = vmatprep.subr.mxu0 0.0
    %4655 = vmatpush1.msra.mxu0 0.0
    %4656 = vmatprep.subr.mxu0 0.0
    %4657 = vmatpush1.msra.mxu0 0.0
    %4658 = vmatprep.subr.mxu0 0.0
    %4659 = vmatpush1.msra.mxu0 0.0
    %4660 = vmatprep.subr.mxu0 0.0
    %4661 = vmatpush1.msra.mxu0 0.0
    %4662 = vmatprep.subr.mxu0 0.0
    %4663 = vmatpush1.msra.mxu0 0.0
    %4664 = vmatprep.subr.mxu0 0.0
    %4665 = vmatpush1.msra.mxu0 0.0
    %4666 = vmatprep.subr.mxu0 0.0
    %4667 = vmatpush1.msra.mxu0 0.0
    %4668 = vmatprep.subr.mxu0 0.0
    %4669 = vmatpush1.msra.mxu0 0.0
    %4670 = vmatprep.subr.mxu0 0.0
    %4671 = vmatpush1.msra.mxu0 0.0
    %4672 = vmatprep.subr.mxu0 0.0
    %4673 = vmatpush1.msra.mxu0 0.0
    %4674 = vmatprep.subr.mxu0 0.0
    %4675 = vmatpush1.msra.mxu0 0.0
    %4676 = vmatprep.subr.mxu0 0.0
    %4677 = vmatpush1.msra.mxu0 0.0
    %4678 = vmatprep.subr.mxu0 0.0
    %4679 = vmatpush1.msra.mxu0 0.0
    %4680 = vmatprep.subr.mxu0 0.0
    %4681 = vmatpush1.msra.mxu0 0.0
    %4682 = vmatprep.subr.mxu0 0.0
    %4683 = vmatpush1.msra.mxu0 0.0
    %4684 = vmatprep.subr.mxu0 0.0
    %4685 = vmatpush1.msra.mxu0 0.0
    %4686 = vmatprep.subr.mxu0 0.0
    %4687 = vmatpush1.msra.mxu0 0.0
    %4688 = vmatprep.subr.mxu0 0.0
    %4689 = vmatpush1.msra.mxu0 0.0
    %4690 = vmatprep.subr.mxu0 0.0
    %4691 = vmatpush1.msra.mxu0 0.0
    %4692 = vmatprep.subr.mxu0 0.0
    %4693 = vmatpush1.msra.mxu0 0.0
    %4694 = vmatprep.subr.mxu0 0.0
    %4695 = vmatpush1.msra.mxu0 0.0
    %4696 = vmatprep.subr.mxu0 0.0
    %4697 = vmatpush1.msra.mxu0 0.0
    %4698 = vmatprep.mubr.f32.mxu0 0.0
    %4699 = vmatmul.mubr.f32.gmra.mrb[0].mxu0 %v4632
    %v4700 = vpop.f32.mrb[0].mxu0
    %v4701 = vadd.f32 0.0, %v4700
    %v4702 = vpop.f32.mrb[0].mxu0
    %4703 = vdwg.mxu0
    %4704 = vmatprep.subr.mxu0 0.0
    %4705 = vmatpush1.msra.mxu0 %v4617
    %4706 = vmatprep.subr.mxu0 0.0
    %4707 = vmatpush1.msra.mxu0 %v4619
    %4708 = vmatprep.subr.mxu0 0.0
    %4709 = vmatpush1.msra.mxu0 %v4621
    %4710 = vmatprep.subr.mxu0 0.0
    %4711 = vmatpush1.msra.mxu0 %v4623
    %4712 = vmatprep.subr.mxu0 0.0
    %4713 = vmatpush1.msra.mxu0 %v4625
    %4714 = vmatprep.subr.mxu0 0.0
    %4715 = vmatpush1.msra.mxu0 0.0
    %4716 = vmatprep.subr.mxu0 0.0
    %4717 = vmatpush1.msra.mxu0 0.0
    %4718 = vmatprep.subr.mxu0 0.0
    %4719 = vmatpush1.msra.mxu0 0.0
    %4720 = vmatprep.subr.mxu0 0.0
    %4721 = vmatpush1.msra.mxu0 0.0
    %4722 = vmatprep.subr.mxu0 0.0
    %4723 = vmatpush1.msra.mxu0 0.0
    %4724 = vmatprep.subr.mxu0 0.0
    %4725 = vmatpush1.msra.mxu0 0.0
    %4726 = vmatprep.subr.mxu0 0.0
    %4727 = vmatpush1.msra.mxu0 0.0
    %4728 = vmatprep.subr.mxu0 0.0
    %4729 = vmatpush1.msra.mxu0 0.0
    %4730 = vmatprep.subr.mxu0 0.0
    %4731 = vmatpush1.msra.mxu0 0.0
    %4732 = vmatprep.subr.mxu0 0.0
    %4733 = vmatpush1.msra.mxu0 0.0
    %4734 = vmatprep.subr.mxu0 0.0
    %4735 = vmatpush1.msra.mxu0 0.0
    %4736 = vmatprep.subr.mxu0 0.0
    %4737 = vmatpush1.msra.mxu0 0.0
    %4738 = vmatprep.subr.mxu0 0.0
    %4739 = vmatpush1.msra.mxu0 0.0
    %4740 = vmatprep.subr.mxu0 0.0
    %4741 = vmatpush1.msra.mxu0 0.0
    %4742 = vmatprep.subr.mxu0 0.0
    %4743 = vmatpush1.msra.mxu0 0.0
    %4744 = vmatprep.subr.mxu0 0.0
    %4745 = vmatpush1.msra.mxu0 0.0
    %4746 = vmatprep.subr.mxu0 0.0
    %4747 = vmatpush1.msra.mxu0 0.0
    %4748 = vmatprep.subr.mxu0 0.0
    %4749 = vmatpush1.msra.mxu0 0.0
    %4750 = vmatprep.subr.mxu0 0.0
    %4751 = vmatpush1.msra.mxu0 0.0
    %4752 = vmatprep.subr.mxu0 0.0
    %4753 = vmatpush1.msra.mxu0 0.0
    %4754 = vmatprep.subr.mxu0 0.0
    %4755 = vmatpush1.msra.mxu0 0.0
    %4756 = vmatprep.subr.mxu0 0.0
    %4757 = vmatpush1.msra.mxu0 0.0
    %4758 = vmatprep.subr.mxu0 0.0
    %4759 = vmatpush1.msra.mxu0 0.0
    %4760 = vmatprep.subr.mxu0 0.0
    %4761 = vmatpush1.msra.mxu0 0.0
    %4762 = vmatprep.subr.mxu0 0.0
    %4763 = vmatpush1.msra.mxu0 0.0
    %4764 = vmatprep.subr.mxu0 0.0
    %4765 = vmatpush1.msra.mxu0 0.0
    %4766 = vmatprep.subr.mxu0 0.0
    %4767 = vmatpush1.msra.mxu0 0.0
    %4768 = vmatprep.mubr.f32.mxu0 0.0
    %4769 = vmatmul.mubr.f32.gmra.mrb[0].mxu0 %v4632
    %v4770 = vpop.f32.mrb[0].mxu0
    %v4771 = vadd.f32 0.0, %v4770
    %v4772 = vpop.f32.mrb[0].mxu0
    %4773 = vdwg.mxu0
    %v4774 = vrcp.pop %v4771
    %4776 = vset.pattern.permute.xlu0 0
    %4777 = vperm.xlu0 %4776, %v4774
    %v4778 = vpop.permute.xlu0 %4777
    %v4780 = vmul.f32 %v4701, %v4778
    %v4781 = vtanh.pop %v4780
    %v4782 = vld [vmem:[%s79] sm:$0xf]
    %v4783 = vld [vmem:[%s79 + $0x4] sm:$0xf]
    %v4784 = vld [vmem:[%s79 + $0x8] sm:$0xf]
    %v4785 = vld [vmem:[%s79 + $0xc] sm:$0xf]
    %v4786 = vld [vmem:[%s79 + $0x10] sm:$0xf]
    %v4787 = vld [vmem:[%s79 + $0x14] sm:$0xf]
    %v4788 = vld [vmem:[%s79 + $0x18] sm:$0xf]
    %v4789 = vld [vmem:[%s79 + $0x1c] sm:$0xf]
    %v4790 = vld [vmem:[%s81] sm:$0x1]
    %v4791 = vld [vmem:[%s83] sm:$0x1]
    %v4792 = vld [vmem:[%s23] sm:$0xff]
    %v4793 = vpack.c.bf16 %v4781, %v2974
    %v4794 = vpack.c.bf16 %v368, %v307
    %v4796 = vlaneseq
    %v4797 = vshrl.u32 %v4796, 7
    %v4798 = vsub.s32 0, %v4797
    %v4799 = vrot.slane %v4790, %v4798
    %v4809 = vunpack.c.l.b16 %v4782
    %v4810 = vunpack.c.l.b16 %v4783
    %v4811 = vunpack.c.l.b16 %v4784
    %v4812 = vunpack.c.l.b16 %v4785
    %v4813 = vunpack.c.l.b16 %v4786
    %v4814 = vunpack.c.l.b16 %v4787
    %v4815 = vunpack.c.l.b16 %v4788
    %v4816 = vunpack.c.l.b16 %v4789
    %v4817 = vpack.c.b16 %v4810, %v4809
    %v4818 = vpack.c.b16 %v4812, %v4811
    %v4819 = vpack.c.b16 %v4814, %v4813
    %v4820 = vpack.c.b16 %v4816, %v4815
    %v4826 = vsel %vm851, %v4793, 0
    %v4829 = vsel %vm851, %v4794, 0
    %4831 = vmatprep.subr.bf16.mxu0 0
    %4832 = vmatpush1.bf16.msra.mxu0 %v4817
    %4833 = vmatprep.subr.bf16.mxu0 0
    %4834 = vmatpush1.bf16.msra.mxu0 %v4818
    %4835 = vmatprep.subr.bf16.mxu0 0
    %4836 = vmatpush1.bf16.msra.mxu0 %v4819
    %4837 = vmatprep.subr.bf16.mxu0 0
    %4838 = vmatpush1.bf16.msra.mxu0 %v4820
    %4839 = vmatprep.subr.bf16.mxu0 0
    %4840 = vmatpush1.bf16.msra.mxu0 0
    %4841 = vmatprep.subr.bf16.mxu0 0
    %4842 = vmatpush1.bf16.msra.mxu0 0
    %4843 = vmatprep.subr.bf16.mxu0 0
    %4844 = vmatpush1.bf16.msra.mxu0 0
    %4845 = vmatprep.subr.bf16.mxu0 0
    %4846 = vmatpush1.bf16.msra.mxu0 0
    %4847 = vmatprep.subr.bf16.mxu0 0
    %4848 = vmatpush1.bf16.msra.mxu0 0
    %4849 = vmatprep.subr.bf16.mxu0 0
    %4850 = vmatpush1.bf16.msra.mxu0 0
    %4851 = vmatprep.subr.bf16.mxu0 0
    %4852 = vmatpush1.bf16.msra.mxu0 0
    %4853 = vmatprep.subr.bf16.mxu0 0
    %4854 = vmatpush1.bf16.msra.mxu0 0
    %4855 = vmatprep.subr.bf16.mxu0 0
    %4856 = vmatpush1.bf16.msra.mxu0 0
    %4857 = vmatprep.subr.bf16.mxu0 0
    %4858 = vmatpush1.bf16.msra.mxu0 0
    %4859 = vmatprep.subr.bf16.mxu0 0
    %4860 = vmatpush1.bf16.msra.mxu0 0
    %4861 = vmatprep.subr.bf16.mxu0 0
    %4862 = vmatpush1.bf16.msra.mxu0 0
    %4863 = vmatprep.mubr.bf16.mxu0 0
    %4864 = vmatmul.mubr.bf16.gmra.mrb[0].mxu0 %v4826
    %v4865 = vpop.f32.mrb[0].mxu0
    %v4866 = vadd.f32 %v4799, %v4865
    %v4867 = vpop.f32.mrb[0].mxu0
    %v4868 = vpop.f32.mrb[0].mxu0
    %v4869 = vadd.f32 %v4799, %v4868
    %v4870 = vpop.f32.mrb[0].mxu0
    %4871 = vmatprep.mubr.bf16.mxu0 0
    %4872 = vmatmul.mubr.bf16.gmra.mrb[0].mxu0 %v4829
    %v4873 = vpop.f32.mrb[0].mxu0
    %v4874 = vadd.f32 %v4799, %v4873
    %v4875 = vpop.f32.mrb[0].mxu0
    %v4876 = vpop.f32.mrb[0].mxu0
    %v4877 = vadd.f32 %v4799, %v4876
    %v4878 = vpop.f32.mrb[0].mxu0
    %4879 = vdwg.mxu0
    %v4880 = vtanh.pop %v4866
    %v4881 = vtanh.pop %v4869
    %v4882 = vtanh.pop %v4874
    %v4883 = vtanh.pop %v4877
    %v4885 = vlaneseq
    %v4886 = vshrl.u32 %v4885, 7
    %v4887 = vsub.s32 0, %v4886
    %v4888 = vrot.slane %v4791, %v4887
    %v4890 = vmul.f32 %v4880, %v4888
    %v4891 = vmul.f32 %v4881, %v4888
    %v4892 = vmul.f32 %v4882, %v4888
    %v4893 = vmul.f32 %v4883, %v4888
    %v4894 = vsel %vm438, %v4890, 0.0
    %4895 = vadd.xlane.f32.xlu0 %v4894
    %v4896 = vpop.xlane.xlu0 %4895
    %v4897 = vsel %vm438, %v4891, 0.0
    %4898 = vadd.xlane.f32.xlu0 %v4897
    %v4899 = vpop.xlane.xlu0 %4898
    %v4900 = vsel %vm438, %v4892, 0.0
    %4901 = vadd.xlane.f32.xlu0 %v4900
    %v4902 = vpop.xlane.xlu0 %4901
    %v4903 = vsel %vm438, %v4893, 0.0
    %4904 = vadd.xlane.f32.xlu0 %v4903
    %v4905 = vpop.xlane.xlu0 %4904
    %v4906 = vmax.f32 %v4896, %v4899
    %v4907 = vmax.f32 %v4902, %v4905
    %v4908 = vmax.f32 %v4906, %v4907
    %v4909 = vrot.slane %v4908, 4
    %v4910 = vmax.f32 %v4908, %v4909
    %v4911 = vrot.slane %v4910, 2
    %v4912 = vmax.f32 %v4910, %v4911
    %v4913 = vrot.slane %v4912, 1
    %v4914 = vmax.f32 %v4912, %v4913
    %v4915 = vsub.f32 %v4896, %v4914
    %v4916 = vsub.f32 %v4899, %v4914
    %v4917 = vsub.f32 %v4902, %v4914
    %v4918 = vsub.f32 %v4905, %v4914
    %v4919 = vmul.f32 %v4915, 1.442695
    %v4920 = vpow.pop %v4919
    %v4921 = vmul.f32 %v4916, 1.442695
    %v4922 = vpow.pop %v4921
    %v4923 = vmul.f32 %v4917, 1.442695
    %v4924 = vpow.pop %v4923
    %v4925 = vmul.f32 %v4918, 1.442695
    %v4926 = vpow.pop %v4925
    %v4927 = vmul.f32 %v4920, %v2974
    %v4928 = vmul.f32 %v4922, %v4781
    %v4929 = vmul.f32 %v4924, %v307
    %v4930 = vmul.f32 %v4926, %v368
    %v4932 = vsel %vm438, %v4792, 0
    %4934 = vmatprep.subr.mxu0 0.0
    %4935 = vmatpush1.msra.mxu0 %v4927
    %4936 = vmatprep.subr.mxu0 0.0
    %4937 = vmatpush1.msra.mxu0 %v4928
    %4938 = vmatprep.subr.mxu0 0.0
    %4939 = vmatpush1.msra.mxu0 %v4929
    %4940 = vmatprep.subr.mxu0 0.0
    %4941 = vmatpush1.msra.mxu0 %v4930
    %4942 = vmatprep.subr.mxu0 0.0
    %4943 = vmatpush1.msra.mxu0 0.0
    %4944 = vmatprep.subr.mxu0 0.0
    %4945 = vmatpush1.msra.mxu0 0.0
    %4946 = vmatprep.subr.mxu0 0.0
    %4947 = vmatpush1.msra.mxu0 0.0
    %4948 = vmatprep.subr.mxu0 0.0
    %4949 = vmatpush1.msra.mxu0 0.0
    %4950 = vmatprep.subr.mxu0 0.0
    %4951 = vmatpush1.msra.mxu0 0.0
    %4952 = vmatprep.subr.mxu0 0.0
    %4953 = vmatpush1.msra.mxu0 0.0
    %4954 = vmatprep.subr.mxu0 0.0
    %4955 = vmatpush1.msra.mxu0 0.0
    %4956 = vmatprep.subr.mxu0 0.0
    %4957 = vmatpush1.msra.mxu0 0.0
    %4958 = vmatprep.subr.mxu0 0.0
    %4959 = vmatpush1.msra.mxu0 0.0
    %4960 = vmatprep.subr.mxu0 0.0
    %4961 = vmatpush1.msra.mxu0 0.0
    %4962 = vmatprep.subr.mxu0 0.0
    %4963 = vmatpush1.msra.mxu0 0.0
    %4964 = vmatprep.subr.mxu0 0.0
    %4965 = vmatpush1.msra.mxu0 0.0
    %4966 = vmatprep.subr.mxu0 0.0
    %4967 = vmatpush1.msra.mxu0 0.0
    %4968 = vmatprep.subr.mxu0 0.0
    %4969 = vmatpush1.msra.mxu0 0.0
    %4970 = vmatprep.subr.mxu0 0.0
    %4971 = vmatpush1.msra.mxu0 0.0
    %4972 = vmatprep.subr.mxu0 0.0
    %4973 = vmatpush1.msra.mxu0 0.0
    %4974 = vmatprep.subr.mxu0 0.0
    %4975 = vmatpush1.msra.mxu0 0.0
    %4976 = vmatprep.subr.mxu0 0.0
    %4977 = vmatpush1.msra.mxu0 0.0
    %4978 = vmatprep.subr.mxu0 0.0
    %4979 = vmatpush1.msra.mxu0 0.0
    %4980 = vmatprep.subr.mxu0 0.0
    %4981 = vmatpush1.msra.mxu0 0.0
    %4982 = vmatprep.subr.mxu0 0.0
    %4983 = vmatpush1.msra.mxu0 0.0
    %4984 = vmatprep.subr.mxu0 0.0
    %4985 = vmatpush1.msra.mxu0 0.0
    %4986 = vmatprep.subr.mxu0 0.0
    %4987 = vmatpush1.msra.mxu0 0.0
    %4988 = vmatprep.subr.mxu0 0.0
    %4989 = vmatpush1.msra.mxu0 0.0
    %4990 = vmatprep.subr.mxu0 0.0
    %4991 = vmatpush1.msra.mxu0 0.0
    %4992 = vmatprep.subr.mxu0 0.0
    %4993 = vmatpush1.msra.mxu0 0.0
    %4994 = vmatprep.subr.mxu0 0.0
    %4995 = vmatpush1.msra.mxu0 0.0
    %4996 = vmatprep.subr.mxu0 0.0
    %4997 = vmatpush1.msra.mxu0 0.0
    %4998 = vmatprep.mubr.f32.mxu0 0.0
    %4999 = vmatmul.mubr.f32.gmra.mrb[0].mxu0 %v4932
    %v5000 = vpop.f32.mrb[0].mxu0
    %v5001 = vadd.f32 0.0, %v5000
    %v5002 = vpop.f32.mrb[0].mxu0
    %5003 = vdwg.mxu0
    %5004 = vmatprep.subr.mxu0 0.0
    %5005 = vmatpush1.msra.mxu0 %v4920
    %5006 = vmatprep.subr.mxu0 0.0
    %5007 = vmatpush1.msra.mxu0 %v4922
    %5008 = vmatprep.subr.mxu0 0.0
    %5009 = vmatpush1.msra.mxu0 %v4924
    %5010 = vmatprep.subr.mxu0 0.0
    %5011 = vmatpush1.msra.mxu0 %v4926
    %5012 = vmatprep.subr.mxu0 0.0
    %5013 = vmatpush1.msra.mxu0 0.0
    %5014 = vmatprep.subr.mxu0 0.0
    %5015 = vmatpush1.msra.mxu0 0.0
    %5016 = vmatprep.subr.mxu0 0.0
    %5017 = vmatpush1.msra.mxu0 0.0
    %5018 = vmatprep.subr.mxu0 0.0
    %5019 = vmatpush1.msra.mxu0 0.0
    %5020 = vmatprep.subr.mxu0 0.0
    %5021 = vmatpush1.msra.mxu0 0.0
    %5022 = vmatprep.subr.mxu0 0.0
    %5023 = vmatpush1.msra.mxu0 0.0
    %5024 = vmatprep.subr.mxu0 0.0
    %5025 = vmatpush1.msra.mxu0 0.0
    %5026 = vmatprep.subr.mxu0 0.0
    %5027 = vmatpush1.msra.mxu0 0.0
    %5028 = vmatprep.subr.mxu0 0.0
    %5029 = vmatpush1.msra.mxu0 0.0
    %5030 = vmatprep.subr.mxu0 0.0
    %5031 = vmatpush1.msra.mxu0 0.0
    %5032 = vmatprep.subr.mxu0 0.0
    %5033 = vmatpush1.msra.mxu0 0.0
    %5034 = vmatprep.subr.mxu0 0.0
    %5035 = vmatpush1.msra.mxu0 0.0
    %5036 = vmatprep.subr.mxu0 0.0
    %5037 = vmatpush1.msra.mxu0 0.0
    %5038 = vmatprep.subr.mxu0 0.0
    %5039 = vmatpush1.msra.mxu0 0.0
    %5040 = vmatprep.subr.mxu0 0.0
    %5041 = vmatpush1.msra.mxu0 0.0
    %5042 = vmatprep.subr.mxu0 0.0
    %5043 = vmatpush1.msra.mxu0 0.0
    %5044 = vmatprep.subr.mxu0 0.0
    %5045 = vmatpush1.msra.mxu0 0.0
    %5046 = vmatprep.subr.mxu0 0.0
    %5047 = vmatpush1.msra.mxu0 0.0
    %5048 = vmatprep.subr.mxu0 0.0
    %5049 = vmatpush1.msra.mxu0 0.0
    %5050 = vmatprep.subr.mxu0 0.0
    %5051 = vmatpush1.msra.mxu0 0.0
    %5052 = vmatprep.subr.mxu0 0.0
    %5053 = vmatpush1.msra.mxu0 0.0
    %5054 = vmatprep.subr.mxu0 0.0
    %5055 = vmatpush1.msra.mxu0 0.0
    %5056 = vmatprep.subr.mxu0 0.0
    %5057 = vmatpush1.msra.mxu0 0.0
    %5058 = vmatprep.subr.mxu0 0.0
    %5059 = vmatpush1.msra.mxu0 0.0
    %5060 = vmatprep.subr.mxu0 0.0
    %5061 = vmatpush1.msra.mxu0 0.0
    %5062 = vmatprep.subr.mxu0 0.0
    %5063 = vmatpush1.msra.mxu0 0.0
    %5064 = vmatprep.subr.mxu0 0.0
    %5065 = vmatpush1.msra.mxu0 0.0
    %5066 = vmatprep.subr.mxu0 0.0
    %5067 = vmatpush1.msra.mxu0 0.0
    %5068 = vmatprep.mubr.f32.mxu0 0.0
    %5069 = vmatmul.mubr.f32.gmra.mrb[0].mxu0 %v4932
    %v5070 = vpop.f32.mrb[0].mxu0
    %v5071 = vadd.f32 0.0, %v5070
    %v5072 = vpop.f32.mrb[0].mxu0
    %5073 = vdwg.mxu0
    %v5074 = vrcp.pop %v5071
    %5076 = vset.pattern.permute.xlu0 0
    %5077 = vperm.xlu0 %5076, %v5074
    %v5078 = vpop.permute.xlu0 %5077
    %v5080 = vmul.f32 %v5001, %v5078
    %v5081 = vtanh.pop %v5080
    %v5082 = vld [vmem:[%s85] sm:$0xf]
    %v5083 = vld [vmem:[%s85 + $0x4] sm:$0xf]
    %v5084 = vld [vmem:[%s85 + $0x8] sm:$0xf]
    %v5085 = vld [vmem:[%s85 + $0xc] sm:$0xf]
    %v5086 = vld [vmem:[%s85 + $0x10] sm:$0xf]
    %v5087 = vld [vmem:[%s85 + $0x14] sm:$0xf]
    %v5088 = vld [vmem:[%s85 + $0x18] sm:$0xf]
    %v5089 = vld [vmem:[%s85 + $0x1c] sm:$0xf]
    %v5090 = vld [vmem:[%s85 + $0x20] sm:$0xf]
    %v5091 = vld [vmem:[%s85 + $0x24] sm:$0xf]
    %v5092 = vld [vmem:[%s85 + $0x28] sm:$0xf]
    %v5093 = vld [vmem:[%s85 + $0x2c] sm:$0xf]
    %v5094 = vld [vmem:[%s85 + $0x30] sm:$0xf]
    %v5095 = vld [vmem:[%s85 + $0x34] sm:$0xf]
    %v5096 = vld [vmem:[%s85 + $0x38] sm:$0xf]
    %v5097 = vld [vmem:[%s85 + $0x3c] sm:$0xf]
    %v5098 = vld [vmem:[%s85 + $0x40] sm:$0xf]
    %v5099 = vld [vmem:[%s85 + $0x44] sm:$0xf]
    %v5100 = vld [vmem:[%s85 + $0x48] sm:$0xf]
    %v5101 = vld [vmem:[%s85 + $0x4c] sm:$0xf]
    %v5102 = vld [vmem:[%s85 + $0x50] sm:$0xf]
    %v5103 = vld [vmem:[%s85 + $0x54] sm:$0xf]
    %v5104 = vld [vmem:[%s85 + $0x58] sm:$0xf]
    %v5105 = vld [vmem:[%s85 + $0x5c] sm:$0xf]
    %v5106 = vld [vmem:[%s85 + $0x60] sm:$0xf]
    %v5107 = vld [vmem:[%s87] sm:$0x1]
    %v5109 = vlaneseq
    %v5110 = vshrl.u32 %v5109, 7
    %v5111 = vsub.s32 0, %v5110
    %v5112 = vrot.slane %v5107, %v5111
    %v5139 = vunpack.c.l.b16 %v5082
    %v5140 = vunpack.c.l.b16 %v5083
    %v5141 = vunpack.c.l.b16 %v5084
    %v5142 = vunpack.c.l.b16 %v5085
    %v5143 = vunpack.c.l.b16 %v5086
    %v5144 = vunpack.c.l.b16 %v5087
    %v5145 = vunpack.c.l.b16 %v5088
    %v5146 = vunpack.c.l.b16 %v5089
    %v5147 = vunpack.c.l.b16 %v5090
    %v5148 = vunpack.c.l.b16 %v5091
    %v5149 = vunpack.c.l.b16 %v5092
    %v5150 = vunpack.c.l.b16 %v5093
    %v5151 = vunpack.c.l.b16 %v5094
    %v5152 = vunpack.c.l.b16 %v5095
    %v5153 = vunpack.c.l.b16 %v5096
    %v5154 = vunpack.c.l.b16 %v5097
    %v5155 = vunpack.c.l.b16 %v5098
    %v5156 = vunpack.c.l.b16 %v5099
    %v5157 = vunpack.c.l.b16 %v5100
    %v5158 = vunpack.c.l.b16 %v5101
    %v5159 = vunpack.c.l.b16 %v5102
    %v5160 = vunpack.c.l.b16 %v5103
    %v5161 = vunpack.c.l.b16 %v5104
    %v5162 = vunpack.c.l.b16 %v5105
    %v5163 = vunpack.c.l.b16 %v5106
    %v5164 = vpack.c.b16 %v5140, %v5139
    %v5165 = vpack.c.b16 %v5142, %v5141
    %v5166 = vpack.c.b16 %v5144, %v5143
    %v5167 = vpack.c.b16 %v5146, %v5145
    %v5168 = vpack.c.b16 %v5148, %v5147
    %v5169 = vpack.c.b16 %v5150, %v5149
    %v5170 = vpack.c.b16 %v5152, %v5151
    %v5171 = vpack.c.b16 %v5154, %v5153
    %v5172 = vpack.c.b16 %v5156, %v5155
    %v5173 = vpack.c.b16 %v5158, %v5157
    %v5174 = vpack.c.b16 %v5160, %v5159
    %v5175 = vpack.c.b16 %v5162, %v5161
    %v5176 = vpack.c.b16 %v5163, %v5163
    %v5190 = vsel %vm4074, %v5176, 0
    %5192 = vmatprep.subr.bf16.mxu0 0
    %5193 = vmatpush1.bf16.msra.mxu0 %v5164
    %5194 = vmatprep.subr.bf16.mxu0 0
    %5195 = vmatpush1.bf16.msra.mxu0 %v5165
    %5196 = vmatprep.subr.bf16.mxu0 0
    %5197 = vmatpush1.bf16.msra.mxu0 %v5166
    %5198 = vmatprep.subr.bf16.mxu0 0
    %5199 = vmatpush1.bf16.msra.mxu0 %v5167
    %5200 = vmatprep.subr.bf16.mxu0 0
    %5201 = vmatpush1.bf16.msra.mxu0 %v5168
    %5202 = vmatprep.subr.bf16.mxu0 0
    %5203 = vmatpush1.bf16.msra.mxu0 %v5169
    %5204 = vmatprep.subr.bf16.mxu0 0
    %5205 = vmatpush1.bf16.msra.mxu0 %v5170
    %5206 = vmatprep.subr.bf16.mxu0 0
    %5207 = vmatpush1.bf16.msra.mxu0 %v5171
    %5208 = vmatprep.subr.bf16.mxu0 0
    %5209 = vmatpush1.bf16.msra.mxu0 %v5172
    %5210 = vmatprep.subr.bf16.mxu0 0
    %5211 = vmatpush1.bf16.msra.mxu0 %v5173
    %5212 = vmatprep.subr.bf16.mxu0 0
    %5213 = vmatpush1.bf16.msra.mxu0 %v5174
    %5214 = vmatprep.subr.bf16.mxu0 0
    %5215 = vmatpush1.bf16.msra.mxu0 %v5175
    %5216 = vmatprep.subr.bf16.mxu0 0
    %5217 = vmatpush1.bf16.msra.mxu0 %v5190
    %5218 = vmatprep.subr.bf16.mxu0 0
    %5219 = vmatpush1.bf16.msra.mxu0 0
    %5220 = vmatprep.subr.bf16.mxu0 0
    %5221 = vmatpush1.bf16.msra.mxu0 0
    %5222 = vmatprep.subr.bf16.mxu0 0
    %5223 = vmatpush1.bf16.msra.mxu0 0
    %5224 = vmatprep.mubr.bf16.mxu0 %v4066
    %5225 = vmatmul.mubr.bf16.gmra.mrb[0].mxu0 %v3976
    %v5226 = vpop.f32.mrb[0].mxu0
    %v5227 = vadd.f32 %v5112, %v5226
    %v5228 = vpop.f32.mrb[0].mxu0
    %v5229 = vpop.f32.mrb[0].mxu0
    %v5230 = vadd.f32 %v5112, %v5229
    %v5231 = vpop.f32.mrb[0].mxu0
    %5232 = vmatprep.mubr.bf16.mxu0 %v4069
    %5233 = vmatmul.mubr.bf16.gmra.mrb[0].mxu0 %v3978
    %v5234 = vpop.f32.mrb[0].mxu0
    %v5235 = vadd.f32 %v5112, %v5234
    %v5236 = vpop.f32.mrb[0].mxu0
    %v5237 = vpop.f32.mrb[0].mxu0
    %v5238 = vadd.f32 %v5112, %v5237
    %v5239 = vpop.f32.mrb[0].mxu0
    %5240 = vmatprep.mubr.bf16.mxu0 %v4072
    %5241 = vmatmul.mubr.bf16.gmra.mrb[0].mxu0 %v3980
    %v5242 = vpop.f32.mrb[0].mxu0
    %v5243 = vadd.f32 %v5112, %v5242
    %v5244 = vpop.f32.mrb[0].mxu0
    %v5245 = vpop.f32.mrb[0].mxu0
    %v5246 = vpop.f32.mrb[0].mxu0
    %5247 = vdwg.mxu0
    %v5248 = vld [vmem:[%s21] sm:$0xff]
    %v5249 = vld [vmem:[%s21 + $0x8] sm:$0xff]
    %v5250 = vld [vmem:[%s21 + $0x10] sm:$0xff]
    %v5251 = vld [vmem:[%s21 + $0x18] sm:$0xff]
    %v5252 = vld [vmem:[%s21 + $0x20] sm:$0xff]
    %vm5253 = vcmask 64512
    %v5255 = vsel %vm5253, %v5248, 0
    %v5258 = vsel %vm5253, %v5249, 0
    %v5261 = vsel %vm5253, %v5250, 0
    %v5264 = vsel %vm5253, %v5251, 0
    %v5267 = vsel %vm5253, %v5252, 0
    %5269 = vmatprep.subr.mxu0 0.0
    %5270 = vmatpush1.msra.mxu0 %v5081
    %5271 = vmatprep.subr.mxu0 0.0
    %5272 = vmatpush1.msra.mxu0 0.0
    %5273 = vmatprep.subr.mxu0 0.0
    %5274 = vmatpush1.msra.mxu0 0.0
    %5275 = vmatprep.subr.mxu0 0.0
    %5276 = vmatpush1.msra.mxu0 0.0
    %5277 = vmatprep.subr.mxu0 0.0
    %5278 = vmatpush1.msra.mxu0 0.0
    %5279 = vmatprep.subr.mxu0 0.0
    %5280 = vmatpush1.msra.mxu0 0.0
    %5281 = vmatprep.subr.mxu0 0.0
    %5282 = vmatpush1.msra.mxu0 0.0
    %5283 = vmatprep.subr.mxu0 0.0
    %5284 = vmatpush1.msra.mxu0 0.0
    %5285 = vmatprep.subr.mxu0 0.0
    %5286 = vmatpush1.msra.mxu0 0.0
    %5287 = vmatprep.subr.mxu0 0.0
    %5288 = vmatpush1.msra.mxu0 0.0
    %5289 = vmatprep.subr.mxu0 0.0
    %5290 = vmatpush1.msra.mxu0 0.0
    %5291 = vmatprep.subr.mxu0 0.0
    %5292 = vmatpush1.msra.mxu0 0.0
    %5293 = vmatprep.subr.mxu0 0.0
    %5294 = vmatpush1.msra.mxu0 0.0
    %5295 = vmatprep.subr.mxu0 0.0
    %5296 = vmatpush1.msra.mxu0 0.0
    %5297 = vmatprep.subr.mxu0 0.0
    %5298 = vmatpush1.msra.mxu0 0.0
    %5299 = vmatprep.subr.mxu0 0.0
    %5300 = vmatpush1.msra.mxu0 0.0
    %5301 = vmatprep.subr.mxu0 0.0
    %5302 = vmatpush1.msra.mxu0 0.0
    %5303 = vmatprep.subr.mxu0 0.0
    %5304 = vmatpush1.msra.mxu0 0.0
    %5305 = vmatprep.subr.mxu0 0.0
    %5306 = vmatpush1.msra.mxu0 0.0
    %5307 = vmatprep.subr.mxu0 0.0
    %5308 = vmatpush1.msra.mxu0 0.0
    %5309 = vmatprep.subr.mxu0 0.0
    %5310 = vmatpush1.msra.mxu0 0.0
    %5311 = vmatprep.subr.mxu0 0.0
    %5312 = vmatpush1.msra.mxu0 0.0
    %5313 = vmatprep.subr.mxu0 0.0
    %5314 = vmatpush1.msra.mxu0 0.0
    %5315 = vmatprep.subr.mxu0 0.0
    %5316 = vmatpush1.msra.mxu0 0.0
    %5317 = vmatprep.subr.mxu0 0.0
    %5318 = vmatpush1.msra.mxu0 0.0
    %5319 = vmatprep.subr.mxu0 0.0
    %5320 = vmatpush1.msra.mxu0 0.0
    %5321 = vmatprep.subr.mxu0 0.0
    %5322 = vmatpush1.msra.mxu0 0.0
    %5323 = vmatprep.subr.mxu0 0.0
    %5324 = vmatpush1.msra.mxu0 0.0
    %5325 = vmatprep.subr.mxu0 0.0
    %5326 = vmatpush1.msra.mxu0 0.0
    %5327 = vmatprep.subr.mxu0 0.0
    %5328 = vmatpush1.msra.mxu0 0.0
    %5329 = vmatprep.subr.mxu0 0.0
    %5330 = vmatpush1.msra.mxu0 0.0
    %5331 = vmatprep.subr.mxu0 0.0
    %5332 = vmatpush1.msra.mxu0 0.0
    %5333 = vmatprep.mubr.f32.mxu0 0.0
    %5334 = vmatmul.mubr.f32.gmra.mrb[0].mxu0 %v5255
    %v5335 = vpop.f32.mrb[0].mxu0
    %v5336 = vadd.f32 0.0, %v5335
    %v5337 = vpop.f32.mrb[0].mxu0
    %5338 = vmatprep.mubr.f32.mxu0 0.0
    %5339 = vmatmul.mubr.f32.gmra.mrb[0].mxu0 %v5258
    %v5340 = vpop.f32.mrb[0].mxu0
    %v5341 = vadd.f32 0.0, %v5340
    %v5342 = vpop.f32.mrb[0].mxu0
    %5343 = vmatprep.mubr.f32.mxu0 0.0
    %5344 = vmatmul.mubr.f32.gmra.mrb[0].mxu0 %v5261
    %v5345 = vpop.f32.mrb[0].mxu0
    %v5346 = vadd.f32 0.0, %v5345
    %v5347 = vpop.f32.mrb[0].mxu0
    %5348 = vmatprep.mubr.f32.mxu0 0.0
    %5349 = vmatmul.mubr.f32.gmra.mrb[0].mxu0 %v5264
    %v5350 = vpop.f32.mrb[0].mxu0
    %v5351 = vadd.f32 0.0, %v5350
    %v5352 = vpop.f32.mrb[0].mxu0
    %5353 = vmatprep.mubr.f32.mxu0 0.0
    %5354 = vmatmul.mubr.f32.gmra.mrb[0].mxu0 %v5267
    %v5355 = vpop.f32.mrb[0].mxu0
    %v5356 = vadd.f32 0.0, %v5355
    %v5357 = vpop.f32.mrb[0].mxu0
    %5358 = vdwg.mxu0
    %v5359 = vmul.f32 %v5227, %v5336
    %v5360 = vmul.f32 %v5230, %v5341
    %v5361 = vmul.f32 %v5235, %v5346
    %v5362 = vmul.f32 %v5238, %v5351
    %v5363 = vmul.f32 %v5243, %v5356
    %v5364 = vsel %vm851, %v5359, 0.0
    %5365 = vadd.xlane.f32.xlu0 %v5364
    %v5366 = vpop.xlane.xlu0 %5365
    %v5367 = vsel %vm851, %v5360, 0.0
    %5368 = vadd.xlane.f32.xlu0 %v5367
    %v5369 = vpop.xlane.xlu0 %5368
    %v5370 = vsel %vm851, %v5361, 0.0
    %5371 = vadd.xlane.f32.xlu0 %v5370
    %v5372 = vpop.xlane.xlu0 %5371
    %v5373 = vsel %vm851, %v5362, 0.0
    %5374 = vadd.xlane.f32.xlu0 %v5373
    %v5375 = vpop.xlane.xlu0 %5374
    %v5376 = vsel %vm851, %v5363, 0.0
    %5377 = vadd.xlane.f32.xlu0 %v5376
    %v5378 = vpop.xlane.xlu0 %5377
    %v5379 = vmax.f32 %v5366, %v5378
    %v5380 = vmax.f32 %v5379, %v5369
    %v5381 = vmax.f32 %v5372, %v5375
    %v5382 = vmax.f32 %v5380, %v5381
    %v5383 = vrot.slane %v5382, 4
    %v5384 = vmax.f32 %v5382, %v5383
    %v5385 = vrot.slane %v5384, 2
    %v5386 = vmax.f32 %v5384, %v5385
    %v5387 = vrot.slane %v5386, 1
    %v5388 = vmax.f32 %v5386, %v5387
    %v5389 = vsub.f32 %v5366, %v5388
    %v5390 = vsub.f32 %v5369, %v5388
    %v5391 = vsub.f32 %v5372, %v5388
    %v5392 = vsub.f32 %v5375, %v5388
    %v5393 = vsub.f32 %v5378, %v5388
    %v5394 = vmul.f32 %v5389, 1.442695
    %v5395 = vpow.pop %v5394
    %v5396 = vmul.f32 %v5390, 1.442695
    %v5397 = vpow.pop %v5396
    %v5398 = vmul.f32 %v5391, 1.442695
    %v5399 = vpow.pop %v5398
    %v5400 = vmul.f32 %v5392, 1.442695
    %v5401 = vpow.pop %v5400
    %v5402 = vmul.f32 %v5393, 1.442695
    %v5403 = vpow.pop %v5402
    %v5404 = vmul.f32 %v5395, %v5227
    %v5405 = vmul.f32 %v5397, %v5230
    %v5406 = vmul.f32 %v5399, %v5235
    %v5407 = vmul.f32 %v5401, %v5238
    %v5408 = vmul.f32 %v5403, %v5243
    %5409 = vmatprep.subr.mxu0 0.0
    %5410 = vmatpush1.msra.mxu0 %v5404
    %5411 = vmatprep.subr.mxu0 0.0
    %5412 = vmatpush1.msra.mxu0 %v5405
    %5413 = vmatprep.subr.mxu0 0.0
    %5414 = vmatpush1.msra.mxu0 %v5406
    %5415 = vmatprep.subr.mxu0 0.0
    %5416 = vmatpush1.msra.mxu0 %v5407
    %5417 = vmatprep.subr.mxu0 0.0
    %5418 = vmatpush1.msra.mxu0 %v5408
    %5419 = vmatprep.subr.mxu0 0.0
    %5420 = vmatpush1.msra.mxu0 0.0
    %5421 = vmatprep.subr.mxu0 0.0
    %5422 = vmatpush1.msra.mxu0 0.0
    %5423 = vmatprep.subr.mxu0 0.0
    %5424 = vmatpush1.msra.mxu0 0.0
    %5425 = vmatprep.subr.mxu0 0.0
    %5426 = vmatpush1.msra.mxu0 0.0
    %5427 = vmatprep.subr.mxu0 0.0
    %5428 = vmatpush1.msra.mxu0 0.0
    %5429 = vmatprep.subr.mxu0 0.0
    %5430 = vmatpush1.msra.mxu0 0.0
    %5431 = vmatprep.subr.mxu0 0.0
    %5432 = vmatpush1.msra.mxu0 0.0
    %5433 = vmatprep.subr.mxu0 0.0
    %5434 = vmatpush1.msra.mxu0 0.0
    %5435 = vmatprep.subr.mxu0 0.0
    %5436 = vmatpush1.msra.mxu0 0.0
    %5437 = vmatprep.subr.mxu0 0.0
    %5438 = vmatpush1.msra.mxu0 0.0
    %5439 = vmatprep.subr.mxu0 0.0
    %5440 = vmatpush1.msra.mxu0 0.0
    %5441 = vmatprep.subr.mxu0 0.0
    %5442 = vmatpush1.msra.mxu0 0.0
    %5443 = vmatprep.subr.mxu0 0.0
    %5444 = vmatpush1.msra.mxu0 0.0
    %5445 = vmatprep.subr.mxu0 0.0
    %5446 = vmatpush1.msra.mxu0 0.0
    %5447 = vmatprep.subr.mxu0 0.0
    %5448 = vmatpush1.msra.mxu0 0.0
    %5449 = vmatprep.subr.mxu0 0.0
    %5450 = vmatpush1.msra.mxu0 0.0
    %5451 = vmatprep.subr.mxu0 0.0
    %5452 = vmatpush1.msra.mxu0 0.0
    %5453 = vmatprep.subr.mxu0 0.0
    %5454 = vmatpush1.msra.mxu0 0.0
    %5455 = vmatprep.subr.mxu0 0.0
    %5456 = vmatpush1.msra.mxu0 0.0
    %5457 = vmatprep.subr.mxu0 0.0
    %5458 = vmatpush1.msra.mxu0 0.0
    %5459 = vmatprep.subr.mxu0 0.0
    %5460 = vmatpush1.msra.mxu0 0.0
    %5461 = vmatprep.subr.mxu0 0.0
    %5462 = vmatpush1.msra.mxu0 0.0
    %5463 = vmatprep.subr.mxu0 0.0
    %5464 = vmatpush1.msra.mxu0 0.0
    %5465 = vmatprep.subr.mxu0 0.0
    %5466 = vmatpush1.msra.mxu0 0.0
    %5467 = vmatprep.subr.mxu0 0.0
    %5468 = vmatpush1.msra.mxu0 0.0
    %5469 = vmatprep.subr.mxu0 0.0
    %5470 = vmatpush1.msra.mxu0 0.0
    %5471 = vmatprep.subr.mxu0 0.0
    %5472 = vmatpush1.msra.mxu0 0.0
    %5473 = vmatprep.mubr.f32.mxu0 0.0
    %5474 = vmatmul.mubr.f32.gmra.mrb[0].mxu0 %v4632
    %v5475 = vpop.f32.mrb[0].mxu0
    %v5476 = vadd.f32 0.0, %v5475
    %v5477 = vpop.f32.mrb[0].mxu0
    %5478 = vdwg.mxu0
    %5479 = vmatprep.subr.mxu0 0.0
    %5480 = vmatpush1.msra.mxu0 %v5395
    %5481 = vmatprep.subr.mxu0 0.0
    %5482 = vmatpush1.msra.mxu0 %v5397
    %5483 = vmatprep.subr.mxu0 0.0
    %5484 = vmatpush1.msra.mxu0 %v5399
    %5485 = vmatprep.subr.mxu0 0.0
    %5486 = vmatpush1.msra.mxu0 %v5401
    %5487 = vmatprep.subr.mxu0 0.0
    %5488 = vmatpush1.msra.mxu0 %v5403
    %5489 = vmatprep.subr.mxu0 0.0
    %5490 = vmatpush1.msra.mxu0 0.0
    %5491 = vmatprep.subr.mxu0 0.0
    %5492 = vmatpush1.msra.mxu0 0.0
    %5493 = vmatprep.subr.mxu0 0.0
    %5494 = vmatpush1.msra.mxu0 0.0
    %5495 = vmatprep.subr.mxu0 0.0
    %5496 = vmatpush1.msra.mxu0 0.0
    %5497 = vmatprep.subr.mxu0 0.0
    %5498 = vmatpush1.msra.mxu0 0.0
    %5499 = vmatprep.subr.mxu0 0.0
    %5500 = vmatpush1.msra.mxu0 0.0
    %5501 = vmatprep.subr.mxu0 0.0
    %5502 = vmatpush1.msra.mxu0 0.0
    %5503 = vmatprep.subr.mxu0 0.0
    %5504 = vmatpush1.msra.mxu0 0.0
    %5505 = vmatprep.subr.mxu0 0.0
    %5506 = vmatpush1.msra.mxu0 0.0
    %5507 = vmatprep.subr.mxu0 0.0
    %5508 = vmatpush1.msra.mxu0 0.0
    %5509 = vmatprep.subr.mxu0 0.0
    %5510 = vmatpush1.msra.mxu0 0.0
    %5511 = vmatprep.subr.mxu0 0.0
    %5512 = vmatpush1.msra.mxu0 0.0
    %5513 = vmatprep.subr.mxu0 0.0
    %5514 = vmatpush1.msra.mxu0 0.0
    %5515 = vmatprep.subr.mxu0 0.0
    %5516 = vmatpush1.msra.mxu0 0.0
    %5517 = vmatprep.subr.mxu0 0.0
    %5518 = vmatpush1.msra.mxu0 0.0
    %5519 = vmatprep.subr.mxu0 0.0
    %5520 = vmatpush1.msra.mxu0 0.0
    %5521 = vmatprep.subr.mxu0 0.0
    %5522 = vmatpush1.msra.mxu0 0.0
    %5523 = vmatprep.subr.mxu0 0.0
    %5524 = vmatpush1.msra.mxu0 0.0
    %5525 = vmatprep.subr.mxu0 0.0
    %5526 = vmatpush1.msra.mxu0 0.0
    %5527 = vmatprep.subr.mxu0 0.0
    %5528 = vmatpush1.msra.mxu0 0.0
    %5529 = vmatprep.subr.mxu0 0.0
    %5530 = vmatpush1.msra.mxu0 0.0
    %5531 = vmatprep.subr.mxu0 0.0
    %5532 = vmatpush1.msra.mxu0 0.0
    %5533 = vmatprep.subr.mxu0 0.0
    %5534 = vmatpush1.msra.mxu0 0.0
    %5535 = vmatprep.subr.mxu0 0.0
    %5536 = vmatpush1.msra.mxu0 0.0
    %5537 = vmatprep.subr.mxu0 0.0
    %5538 = vmatpush1.msra.mxu0 0.0
    %5539 = vmatprep.subr.mxu0 0.0
    %5540 = vmatpush1.msra.mxu0 0.0
    %5541 = vmatprep.subr.mxu0 0.0
    %5542 = vmatpush1.msra.mxu0 0.0
    %5543 = vmatprep.mubr.f32.mxu0 0.0
    %5544 = vmatmul.mubr.f32.gmra.mrb[0].mxu0 %v4632
    %v5545 = vpop.f32.mrb[0].mxu0
    %v5546 = vadd.f32 0.0, %v5545
    %v5547 = vpop.f32.mrb[0].mxu0
    %5548 = vdwg.mxu0
    %v5549 = vrcp.pop %v5546
    %5551 = vset.pattern.permute.xlu0 0
    %5552 = vperm.xlu0 %5551, %v5549
    %v5553 = vpop.permute.xlu0 %5552
    %v5555 = vmul.f32 %v5476, %v5553
    %v5556 = vtanh.pop %v5555
    %v5557 = vtanh.pop %v5081
    %v5558 = vtanh.pop %v5556
    %v5559 = vld [vmem:[%s89] sm:$0xf]
    %v5560 = vld [vmem:[%s89 + $0x4] sm:$0xf]
    %v5561 = vld [vmem:[%s89 + $0x8] sm:$0xf]
    %v5562 = vld [vmem:[%s89 + $0xc] sm:$0xf]
    %v5563 = vld [vmem:[%s89 + $0x10] sm:$0xf]
    %v5564 = vld [vmem:[%s89 + $0x14] sm:$0xf]
    %v5565 = vld [vmem:[%s89 + $0x18] sm:$0xf]
    %v5566 = vld [vmem:[%s89 + $0x1c] sm:$0xf]
    %v5567 = vld [vmem:[%s91] sm:$0x1]
    %v5568 = vld [vmem:[%s93] sm:$0xf]
    %v5569 = vld [vmem:[%s93 + $0x4] sm:$0xf]
    %v5570 = vld [vmem:[%s93 + $0x8] sm:$0xf]
    %v5571 = vld [vmem:[%s93 + $0xc] sm:$0xf]
    %v5572 = vld [vmem:[%s93 + $0x10] sm:$0xf]
    %v5573 = vld [vmem:[%s93 + $0x14] sm:$0xf]
    %v5574 = vld [vmem:[%s93 + $0x18] sm:$0xf]
    %v5575 = vld [vmem:[%s93 + $0x1c] sm:$0xf]
    %v5576 = vld [vmem:[%s95] sm:$0x1]
    %v5577 = vld [vmem:[%s97] sm:$0xf]
    %v5578 = vld [vmem:[%s97 + $0x4] sm:$0xf]
    %v5579 = vld [vmem:[%s97 + $0x8] sm:$0xf]
    %v5580 = vld [vmem:[%s97 + $0xc] sm:$0xf]
    %v5581 = vld [vmem:[%s97 + $0x10] sm:$0xf]
    %v5582 = vld [vmem:[%s97 + $0x14] sm:$0xf]
    %v5583 = vld [vmem:[%s97 + $0x18] sm:$0xf]
    %v5584 = vld [vmem:[%s97 + $0x1c] sm:$0xf]
    %v5585 = vld [vmem:[%s99] sm:$0x1]
    %v5586 = vpack.c.bf16 %v5557, %v5557
    %v5588 = vlaneseq
    %v5589 = vshrl.u32 %v5588, 7
    %v5590 = vsub.s32 0, %v5589
    %v5591 = vrot.slane %v5567, %v5590
    %v5601 = vunpack.c.l.b16 %v5559
    %v5602 = vunpack.c.l.b16 %v5560
    %v5603 = vunpack.c.l.b16 %v5561
    %v5604 = vunpack.c.l.b16 %v5562
    %v5605 = vunpack.c.l.b16 %v5563
    %v5606 = vunpack.c.l.b16 %v5564
    %v5607 = vunpack.c.l.b16 %v5565
    %v5608 = vunpack.c.l.b16 %v5566
    %v5609 = vpack.c.b16 %v5602, %v5601
    %v5610 = vpack.c.b16 %v5604, %v5603
    %v5611 = vpack.c.b16 %v5606, %v5605
    %v5612 = vpack.c.b16 %v5608, %v5607
    %v5618 = vsel %vm851, %v5586, 0
    %5620 = vmatprep.subr.bf16.mxu0 0
    %5621 = vmatpush1.bf16.msra.mxu0 %v5609
    %5622 = vmatprep.subr.bf16.mxu0 0
    %5623 = vmatpush1.bf16.msra.mxu0 %v5610
    %5624 = vmatprep.subr.bf16.mxu0 0
    %5625 = vmatpush1.bf16.msra.mxu0 %v5611
    %5626 = vmatprep.subr.bf16.mxu0 0
    %5627 = vmatpush1.bf16.msra.mxu0 %v5612
    %5628 = vmatprep.subr.bf16.mxu0 0
    %5629 = vmatpush1.bf16.msra.mxu0 0
    %5630 = vmatprep.subr.bf16.mxu0 0
    %5631 = vmatpush1.bf16.msra.mxu0 0
    %5632 = vmatprep.subr.bf16.mxu0 0
    %5633 = vmatpush1.bf16.msra.mxu0 0
    %5634 = vmatprep.subr.bf16.mxu0 0
    %5635 = vmatpush1.bf16.msra.mxu0 0
    %5636 = vmatprep.subr.bf16.mxu0 0
    %5637 = vmatpush1.bf16.msra.mxu0 0
    %5638 = vmatprep.subr.bf16.mxu0 0
    %5639 = vmatpush1.bf16.msra.mxu0 0
    %5640 = vmatprep.subr.bf16.mxu0 0
    %5641 = vmatpush1.bf16.msra.mxu0 0
    %5642 = vmatprep.subr.bf16.mxu0 0
    %5643 = vmatpush1.bf16.msra.mxu0 0
    %5644 = vmatprep.subr.bf16.mxu0 0
    %5645 = vmatpush1.bf16.msra.mxu0 0
    %5646 = vmatprep.subr.bf16.mxu0 0
    %5647 = vmatpush1.bf16.msra.mxu0 0
    %5648 = vmatprep.subr.bf16.mxu0 0
    %5649 = vmatpush1.bf16.msra.mxu0 0
    %5650 = vmatprep.subr.bf16.mxu0 0
    %5651 = vmatpush1.bf16.msra.mxu0 0
    %5652 = vmatprep.mubr.bf16.mxu0 0
    %5653 = vmatmul.mubr.bf16.gmra.mrb[0].mxu0 %v5618
    %v5654 = vpop.f32.mrb[0].mxu0
    %v5655 = vadd.f32 %v5591, %v5654
    %v5656 = vpop.f32.mrb[0].mxu0
    %v5657 = vpop.f32.mrb[0].mxu0
    %v5658 = vpop.f32.mrb[0].mxu0
    %5659 = vdwg.mxu0
    %v5661 = vlaneseq
    %v5662 = vshrl.u32 %v5661, 7
    %v5663 = vsub.s32 0, %v5662
    %v5664 = vrot.slane %v5576, %v5663
    %v5674 = vunpack.c.l.b16 %v5568
    %v5675 = vunpack.c.l.b16 %v5569
    %v5676 = vunpack.c.l.b16 %v5570
    %v5677 = vunpack.c.l.b16 %v5571
    %v5678 = vunpack.c.l.b16 %v5572
    %v5679 = vunpack.c.l.b16 %v5573
    %v5680 = vunpack.c.l.b16 %v5574
    %v5681 = vunpack.c.l.b16 %v5575
    %v5682 = vpack.c.b16 %v5675, %v5674
    %v5683 = vpack.c.b16 %v5677, %v5676
    %v5684 = vpack.c.b16 %v5679, %v5678
    %v5685 = vpack.c.b16 %v5681, %v5680
    %5690 = vmatprep.subr.bf16.mxu0 0
    %5691 = vmatpush1.bf16.msra.mxu0 %v5682
    %5692 = vmatprep.subr.bf16.mxu0 0
    %5693 = vmatpush1.bf16.msra.mxu0 %v5683
    %5694 = vmatprep.subr.bf16.mxu0 0
    %5695 = vmatpush1.bf16.msra.mxu0 %v5684
    %5696 = vmatprep.subr.bf16.mxu0 0
    %5697 = vmatpush1.bf16.msra.mxu0 %v5685
    %5698 = vmatprep.subr.bf16.mxu0 0
    %5699 = vmatpush1.bf16.msra.mxu0 0
    %5700 = vmatprep.subr.bf16.mxu0 0
    %5701 = vmatpush1.bf16.msra.mxu0 0
    %5702 = vmatprep.subr.bf16.mxu0 0
    %5703 = vmatpush1.bf16.msra.mxu0 0
    %5704 = vmatprep.subr.bf16.mxu0 0
    %5705 = vmatpush1.bf16.msra.mxu0 0
    %5706 = vmatprep.subr.bf16.mxu0 0
    %5707 = vmatpush1.bf16.msra.mxu0 0
    %5708 = vmatprep.subr.bf16.mxu0 0
    %5709 = vmatpush1.bf16.msra.mxu0 0
    %5710 = vmatprep.subr.bf16.mxu0 0
    %5711 = vmatpush1.bf16.msra.mxu0 0
    %5712 = vmatprep.subr.bf16.mxu0 0
    %5713 = vmatpush1.bf16.msra.mxu0 0
    %5714 = vmatprep.subr.bf16.mxu0 0
    %5715 = vmatpush1.bf16.msra.mxu0 0
    %5716 = vmatprep.subr.bf16.mxu0 0
    %5717 = vmatpush1.bf16.msra.mxu0 0
    %5718 = vmatprep.subr.bf16.mxu0 0
    %5719 = vmatpush1.bf16.msra.mxu0 0
    %5720 = vmatprep.subr.bf16.mxu0 0
    %5721 = vmatpush1.bf16.msra.mxu0 0
    %5722 = vmatprep.mubr.bf16.mxu0 0
    %5723 = vmatmul.mubr.bf16.gmra.mrb[0].mxu0 %v5618
    %v5724 = vpop.f32.mrb[0].mxu0
    %v5725 = vadd.f32 %v5664, %v5724
    %v5726 = vpop.f32.mrb[0].mxu0
    %v5727 = vpop.f32.mrb[0].mxu0
    %v5728 = vpop.f32.mrb[0].mxu0
    %5729 = vdwg.mxu0
    %v5731 = vlaneseq
    %v5732 = vshrl.u32 %v5731, 7
    %v5733 = vsub.s32 0, %v5732
    %v5734 = vrot.slane %v5585, %v5733
    %v5744 = vunpack.c.l.b16 %v5577
    %v5745 = vunpack.c.l.b16 %v5578
    %v5746 = vunpack.c.l.b16 %v5579
    %v5747 = vunpack.c.l.b16 %v5580
    %v5748 = vunpack.c.l.b16 %v5581
    %v5749 = vunpack.c.l.b16 %v5582
    %v5750 = vunpack.c.l.b16 %v5583
    %v5751 = vunpack.c.l.b16 %v5584
    %v5752 = vpack.c.b16 %v5745, %v5744
    %v5753 = vpack.c.b16 %v5747, %v5746
    %v5754 = vpack.c.b16 %v5749, %v5748
    %v5755 = vpack.c.b16 %v5751, %v5750
    %5760 = vmatprep.subr.bf16.mxu0 0
    %5761 = vmatpush1.bf16.msra.mxu0 %v5752
    %5762 = vmatprep.subr.bf16.mxu0 0
    %5763 = vmatpush1.bf16.msra.mxu0 %v5753
    %5764 = vmatprep.subr.bf16.mxu0 0
    %5765 = vmatpush1.bf16.msra.mxu0 %v5754
    %5766 = vmatprep.subr.bf16.mxu0 0
    %5767 = vmatpush1.bf16.msra.mxu0 %v5755
    %5768 = vmatprep.subr.bf16.mxu0 0
    %5769 = vmatpush1.bf16.msra.mxu0 0
    %5770 = vmatprep.subr.bf16.mxu0 0
    %5771 = vmatpush1.bf16.msra.mxu0 0
    %5772 = vmatprep.subr.bf16.mxu0 0
    %5773 = vmatpush1.bf16.msra.mxu0 0
    %5774 = vmatprep.subr.bf16.mxu0 0
    %5775 = vmatpush1.bf16.msra.mxu0 0
    %5776 = vmatprep.subr.bf16.mxu0 0
    %5777 = vmatpush1.bf16.msra.mxu0 0
    %5778 = vmatprep.subr.bf16.mxu0 0
    %5779 = vmatpush1.bf16.msra.mxu0 0
    %5780 = vmatprep.subr.bf16.mxu0 0
    %5781 = vmatpush1.bf16.msra.mxu0 0
    %5782 = vmatprep.subr.bf16.mxu0 0
    %5783 = vmatpush1.bf16.msra.mxu0 0
    %5784 = vmatprep.subr.bf16.mxu0 0
    %5785 = vmatpush1.bf16.msra.mxu0 0
    %5786 = vmatprep.subr.bf16.mxu0 0
    %5787 = vmatpush1.bf16.msra.mxu0 0
    %5788 = vmatprep.subr.bf16.mxu0 0
    %5789 = vmatpush1.bf16.msra.mxu0 0
    %5790 = vmatprep.subr.bf16.mxu0 0
    %5791 = vmatpush1.bf16.msra.mxu0 0
    %5792 = vmatprep.mubr.bf16.mxu0 0
    %5793 = vmatmul.mubr.bf16.gmra.mrb[0].mxu0 %v5618
    %v5794 = vpop.f32.mrb[0].mxu0
    %v5795 = vadd.f32 %v5734, %v5794
    %v5796 = vpop.f32.mrb[0].mxu0
    %v5797 = vpop.f32.mrb[0].mxu0
    %v5798 = vpop.f32.mrb[0].mxu0
    %5799 = vdwg.mxu0
    %v5801 = vsel %vm263, %v5655, 0
    %v5804 = vsel %vm263, %v5725, 0
    %5806 = vmatprep.subr.mxu0 0.0
    %5807 = vmatpush1.xpose.msra.mxu0 %v5804
    %5808 = vmatprep.subr.mxu0 0.0
    %5809 = vmatpush1.xpose.msra.mxu0 0.0
    %5810 = vmatprep.subr.mxu0 0.0
    %5811 = vmatpush1.xpose.msra.mxu0 0.0
    %5812 = vmatprep.subr.mxu0 0.0
    %5813 = vmatpush1.xpose.msra.mxu0 0.0
    %5814 = vmatprep.subr.mxu0 0.0
    %5815 = vmatpush1.xpose.msra.mxu0 0.0
    %5816 = vmatprep.subr.mxu0 0.0
    %5817 = vmatpush1.xpose.msra.mxu0 0.0
    %5818 = vmatprep.subr.mxu0 0.0
    %5819 = vmatpush1.xpose.msra.mxu0 0.0
    %5820 = vmatprep.subr.mxu0 0.0
    %5821 = vmatpush1.xpose.msra.mxu0 0.0
    %5822 = vmatprep.subr.mxu0 0.0
    %5823 = vmatpush1.xpose.msra.mxu0 0.0
    %5824 = vmatprep.subr.mxu0 0.0
    %5825 = vmatpush1.xpose.msra.mxu0 0.0
    %5826 = vmatprep.subr.mxu0 0.0
    %5827 = vmatpush1.xpose.msra.mxu0 0.0
    %5828 = vmatprep.subr.mxu0 0.0
    %5829 = vmatpush1.xpose.msra.mxu0 0.0
    %5830 = vmatprep.subr.mxu0 0.0
    %5831 = vmatpush1.xpose.msra.mxu0 0.0
    %5832 = vmatprep.subr.mxu0 0.0
    %5833 = vmatpush1.xpose.msra.mxu0 0.0
    %5834 = vmatprep.subr.mxu0 0.0
    %5835 = vmatpush1.xpose.msra.mxu0 0.0
    %5836 = vmatprep.subr.mxu0 0.0
    %5837 = vmatpush1.xpose.msra.mxu0 0.0
    %5838 = vmatprep.subr.mxu0 0.0
    %5839 = vmatpush1.xpose.msra.mxu0 0.0
    %5840 = vmatprep.subr.mxu0 0.0
    %5841 = vmatpush1.xpose.msra.mxu0 0.0
    %5842 = vmatprep.subr.mxu0 0.0
    %5843 = vmatpush1.xpose.msra.mxu0 0.0
    %5844 = vmatprep.subr.mxu0 0.0
    %5845 = vmatpush1.xpose.msra.mxu0 0.0
    %5846 = vmatprep.subr.mxu0 0.0
    %5847 = vmatpush1.xpose.msra.mxu0 0.0
    %5848 = vmatprep.subr.mxu0 0.0
    %5849 = vmatpush1.xpose.msra.mxu0 0.0
    %5850 = vmatprep.subr.mxu0 0.0
    %5851 = vmatpush1.xpose.msra.mxu0 0.0
    %5852 = vmatprep.subr.mxu0 0.0
    %5853 = vmatpush1.xpose.msra.mxu0 0.0
    %5854 = vmatprep.subr.mxu0 0.0
    %5855 = vmatpush1.xpose.msra.mxu0 0.0
    %5856 = vmatprep.subr.mxu0 0.0
    %5857 = vmatpush1.xpose.msra.mxu0 0.0
    %5858 = vmatprep.subr.mxu0 0.0
    %5859 = vmatpush1.xpose.msra.mxu0 0.0
    %5860 = vmatprep.subr.mxu0 0.0
    %5861 = vmatpush1.xpose.msra.mxu0 0.0
    %5862 = vmatprep.subr.mxu0 0.0
    %5863 = vmatpush1.xpose.msra.mxu0 0.0
    %5864 = vmatprep.subr.mxu0 0.0
    %5865 = vmatpush1.xpose.msra.mxu0 0.0
    %5866 = vmatprep.subr.mxu0 0.0
    %5867 = vmatpush1.xpose.msra.mxu0 0.0
    %5868 = vmatprep.subr.mxu0 0.0
    %5869 = vmatpush1.xpose.msra.mxu0 0.0
    %5870 = vmatprep.mubr.f32.mxu0 0.0
    %5871 = vmatmul.mubr.f32.gmra.mrb[0].mxu0 %v5801
    %v5872 = vpop.f32.mrb[0].mxu0
    %v5873 = vadd.f32 0.0, %v5872
    %v5874 = vpop.f32.mrb[0].mxu0
    %5875 = vdwg.mxu0
    %v5876 = vmul.f32 %v5873, 0.25
    %v5877 = vsel %vm5253, %v5876, -inf
    %5878 = vmax.xlane.f32.xlu0 %v5877
    %v5879 = vpop.xlane.xlu0 %5878
    %v5880 = vsub.f32 %v5876, %v5879
    %v5881 = vmul.f32 %v5880, 1.442695
    %v5882 = vpow.pop %v5881
    %v5883 = vsel %vm5253, %v5882, 0.0
    %5884 = vadd.xlane.f32.xlu0 %v5883
    %v5885 = vpop.xlane.xlu0 %5884
    %v5886 = vrcp.pop %v5885
    %v5887 = vmul.f32 %v5882, %v5886
    %v5889 = vsel %vm5253, %v5887, 0
    %5891 = vmatprep.subr.mxu0 0.0
    %5892 = vmatpush1.msra.mxu0 %v5795
    %5893 = vmatprep.subr.mxu0 0.0
    %5894 = vmatpush1.msra.mxu0 0.0
    %5895 = vmatprep.subr.mxu0 0.0
    %5896 = vmatpush1.msra.mxu0 0.0
    %5897 = vmatprep.subr.mxu0 0.0
    %5898 = vmatpush1.msra.mxu0 0.0
    %5899 = vmatprep.subr.mxu0 0.0
    %5900 = vmatpush1.msra.mxu0 0.0
    %5901 = vmatprep.subr.mxu0 0.0
    %5902 = vmatpush1.msra.mxu0 0.0
    %5903 = vmatprep.subr.mxu0 0.0
    %5904 = vmatpush1.msra.mxu0 0.0
    %5905 = vmatprep.subr.mxu0 0.0
    %5906 = vmatpush1.msra.mxu0 0.0
    %5907 = vmatprep.subr.mxu0 0.0
    %5908 = vmatpush1.msra.mxu0 0.0
    %5909 = vmatprep.subr.mxu0 0.0
    %5910 = vmatpush1.msra.mxu0 0.0
    %5911 = vmatprep.subr.mxu0 0.0
    %5912 = vmatpush1.msra.mxu0 0.0
    %5913 = vmatprep.subr.mxu0 0.0
    %5914 = vmatpush1.msra.mxu0 0.0
    %5915 = vmatprep.subr.mxu0 0.0
    %5916 = vmatpush1.msra.mxu0 0.0
    %5917 = vmatprep.subr.mxu0 0.0
    %5918 = vmatpush1.msra.mxu0 0.0
    %5919 = vmatprep.subr.mxu0 0.0
    %5920 = vmatpush1.msra.mxu0 0.0
    %5921 = vmatprep.subr.mxu0 0.0
    %5922 = vmatpush1.msra.mxu0 0.0
    %5923 = vmatprep.subr.mxu0 0.0
    %5924 = vmatpush1.msra.mxu0 0.0
    %5925 = vmatprep.subr.mxu0 0.0
    %5926 = vmatpush1.msra.mxu0 0.0
    %5927 = vmatprep.subr.mxu0 0.0
    %5928 = vmatpush1.msra.mxu0 0.0
    %5929 = vmatprep.subr.mxu0 0.0
    %5930 = vmatpush1.msra.mxu0 0.0
    %5931 = vmatprep.subr.mxu0 0.0
    %5932 = vmatpush1.msra.mxu0 0.0
    %5933 = vmatprep.subr.mxu0 0.0
    %5934 = vmatpush1.msra.mxu0 0.0
    %5935 = vmatprep.subr.mxu0 0.0
    %5936 = vmatpush1.msra.mxu0 0.0
    %5937 = vmatprep.subr.mxu0 0.0
    %5938 = vmatpush1.msra.mxu0 0.0
    %5939 = vmatprep.subr.mxu0 0.0
    %5940 = vmatpush1.msra.mxu0 0.0
    %5941 = vmatprep.subr.mxu0 0.0
    %5942 = vmatpush1.msra.mxu0 0.0
    %5943 = vmatprep.subr.mxu0 0.0
    %5944 = vmatpush1.msra.mxu0 0.0
    %5945 = vmatprep.subr.mxu0 0.0
    %5946 = vmatpush1.msra.mxu0 0.0
    %5947 = vmatprep.subr.mxu0 0.0
    %5948 = vmatpush1.msra.mxu0 0.0
    %5949 = vmatprep.subr.mxu0 0.0
    %5950 = vmatpush1.msra.mxu0 0.0
    %5951 = vmatprep.subr.mxu0 0.0
    %5952 = vmatpush1.msra.mxu0 0.0
    %5953 = vmatprep.subr.mxu0 0.0
    %5954 = vmatpush1.msra.mxu0 0.0
    %5955 = vmatprep.mubr.f32.mxu0 0.0
    %5956 = vmatmul.mubr.f32.gmra.mrb[0].mxu0 %v5889
    %v5957 = vpop.f32.mrb[0].mxu0
    %v5958 = vadd.f32 0.0, %v5957
    %v5959 = vpop.f32.mrb[0].mxu0
    %5960 = vdwg.mxu0
    %5961 = vrot.lane.b32.xlu0 %v5655, 112
    %v5962 = vpop.permute.xlu0 %5961
    %5963 = vrot.lane.b32.xlu0 %v5725, 112
    %v5964 = vpop.permute.xlu0 %5963
    %v5965 = vsel %vm263, %v5962, 0
    %v5967 = vsel %vm263, %v5964, 0
    %5969 = vmatprep.subr.mxu0 0.0
    %5970 = vmatpush1.xpose.msra.mxu0 %v5967
    %5971 = vmatprep.subr.mxu0 0.0
    %5972 = vmatpush1.xpose.msra.mxu0 0.0
    %5973 = vmatprep.subr.mxu0 0.0
    %5974 = vmatpush1.xpose.msra.mxu0 0.0
    %5975 = vmatprep.subr.mxu0 0.0
    %5976 = vmatpush1.xpose.msra.mxu0 0.0
    %5977 = vmatprep.subr.mxu0 0.0
    %5978 = vmatpush1.xpose.msra.mxu0 0.0
    %5979 = vmatprep.subr.mxu0 0.0
    %5980 = vmatpush1.xpose.msra.mxu0 0.0
    %5981 = vmatprep.subr.mxu0 0.0
    %5982 = vmatpush1.xpose.msra.mxu0 0.0
    %5983 = vmatprep.subr.mxu0 0.0
    %5984 = vmatpush1.xpose.msra.mxu0 0.0
    %5985 = vmatprep.subr.mxu0 0.0
    %5986 = vmatpush1.xpose.msra.mxu0 0.0
    %5987 = vmatprep.subr.mxu0 0.0
    %5988 = vmatpush1.xpose.msra.mxu0 0.0
    %5989 = vmatprep.subr.mxu0 0.0
    %5990 = vmatpush1.xpose.msra.mxu0 0.0
    %5991 = vmatprep.subr.mxu0 0.0
    %5992 = vmatpush1.xpose.msra.mxu0 0.0
    %5993 = vmatprep.subr.mxu0 0.0
    %5994 = vmatpush1.xpose.msra.mxu0 0.0
    %5995 = vmatprep.subr.mxu0 0.0
    %5996 = vmatpush1.xpose.msra.mxu0 0.0
    %5997 = vmatprep.subr.mxu0 0.0
    %5998 = vmatpush1.xpose.msra.mxu0 0.0
    %5999 = vmatprep.subr.mxu0 0.0
    %6000 = vmatpush1.xpose.msra.mxu0 0.0
    %6001 = vmatprep.subr.mxu0 0.0
    %6002 = vmatpush1.xpose.msra.mxu0 0.0
    %6003 = vmatprep.subr.mxu0 0.0
    %6004 = vmatpush1.xpose.msra.mxu0 0.0
    %6005 = vmatprep.subr.mxu0 0.0
    %6006 = vmatpush1.xpose.msra.mxu0 0.0
    %6007 = vmatprep.subr.mxu0 0.0
    %6008 = vmatpush1.xpose.msra.mxu0 0.0
    %6009 = vmatprep.subr.mxu0 0.0
    %6010 = vmatpush1.xpose.msra.mxu0 0.0
    %6011 = vmatprep.subr.mxu0 0.0
    %6012 = vmatpush1.xpose.msra.mxu0 0.0
    %6013 = vmatprep.subr.mxu0 0.0
    %6014 = vmatpush1.xpose.msra.mxu0 0.0
    %6015 = vmatprep.subr.mxu0 0.0
    %6016 = vmatpush1.xpose.msra.mxu0 0.0
    %6017 = vmatprep.subr.mxu0 0.0
    %6018 = vmatpush1.xpose.msra.mxu0 0.0
    %6019 = vmatprep.subr.mxu0 0.0
    %6020 = vmatpush1.xpose.msra.mxu0 0.0
    %6021 = vmatprep.subr.mxu0 0.0
    %6022 = vmatpush1.xpose.msra.mxu0 0.0
    %6023 = vmatprep.subr.mxu0 0.0
    %6024 = vmatpush1.xpose.msra.mxu0 0.0
    %6025 = vmatprep.subr.mxu0 0.0
    %6026 = vmatpush1.xpose.msra.mxu0 0.0
    %6027 = vmatprep.subr.mxu0 0.0
    %6028 = vmatpush1.xpose.msra.mxu0 0.0
    %6029 = vmatprep.subr.mxu0 0.0
    %6030 = vmatpush1.xpose.msra.mxu0 0.0
    %6031 = vmatprep.subr.mxu0 0.0
    %6032 = vmatpush1.xpose.msra.mxu0 0.0
    %6033 = vmatprep.mubr.f32.mxu0 0.0
    %6034 = vmatmul.mubr.f32.gmra.mrb[0].mxu0 %v5965
    %v6035 = vpop.f32.mrb[0].mxu0
    %v6036 = vadd.f32 0.0, %v6035
    %v6037 = vpop.f32.mrb[0].mxu0
    %6038 = vdwg.mxu0
    %v6039 = vmul.f32 %v6036, 0.25
    %v6040 = vsel %vm5253, %v6039, -inf
    %6041 = vmax.xlane.f32.xlu0 %v6040
    %v6042 = vpop.xlane.xlu0 %6041
    %v6043 = vsub.f32 %v6039, %v6042
    %v6044 = vmul.f32 %v6043, 1.442695
    %v6045 = vpow.pop %v6044
    %v6046 = vsel %vm5253, %v6045, 0.0
    %6047 = vadd.xlane.f32.xlu0 %v6046
    %v6048 = vpop.xlane.xlu0 %6047
    %v6049 = vrcp.pop %v6048
    %v6050 = vmul.f32 %v6045, %v6049
    %6052 = vrot.lane.b32.xlu0 %v5795, 112
    %v6053 = vpop.permute.xlu0 %6052
    %v6056 = vsel %vm5253, %v6050, 0
    %6058 = vmatprep.subr.mxu0 0.0
    %6059 = vmatpush1.msra.mxu0 %v6053
    %6060 = vmatprep.subr.mxu0 0.0
    %6061 = vmatpush1.msra.mxu0 0.0
    %6062 = vmatprep.subr.mxu0 0.0
    %6063 = vmatpush1.msra.mxu0 0.0
    %6064 = vmatprep.subr.mxu0 0.0
    %6065 = vmatpush1.msra.mxu0 0.0
    %6066 = vmatprep.subr.mxu0 0.0
    %6067 = vmatpush1.msra.mxu0 0.0
    %6068 = vmatprep.subr.mxu0 0.0
    %6069 = vmatpush1.msra.mxu0 0.0
    %6070 = vmatprep.subr.mxu0 0.0
    %6071 = vmatpush1.msra.mxu0 0.0
    %6072 = vmatprep.subr.mxu0 0.0
    %6073 = vmatpush1.msra.mxu0 0.0
    %6074 = vmatprep.subr.mxu0 0.0
    %6075 = vmatpush1.msra.mxu0 0.0
    %6076 = vmatprep.subr.mxu0 0.0
    %6077 = vmatpush1.msra.mxu0 0.0
    %6078 = vmatprep.subr.mxu0 0.0
    %6079 = vmatpush1.msra.mxu0 0.0
    %6080 = vmatprep.subr.mxu0 0.0
    %6081 = vmatpush1.msra.mxu0 0.0
    %6082 = vmatprep.subr.mxu0 0.0
    %6083 = vmatpush1.msra.mxu0 0.0
    %6084 = vmatprep.subr.mxu0 0.0
    %6085 = vmatpush1.msra.mxu0 0.0
    %6086 = vmatprep.subr.mxu0 0.0
    %6087 = vmatpush1.msra.mxu0 0.0
    %6088 = vmatprep.subr.mxu0 0.0
    %6089 = vmatpush1.msra.mxu0 0.0
    %6090 = vmatprep.subr.mxu0 0.0
    %6091 = vmatpush1.msra.mxu0 0.0
    %6092 = vmatprep.subr.mxu0 0.0
    %6093 = vmatpush1.msra.mxu0 0.0
    %6094 = vmatprep.subr.mxu0 0.0
    %6095 = vmatpush1.msra.mxu0 0.0
    %6096 = vmatprep.subr.mxu0 0.0
    %6097 = vmatpush1.msra.mxu0 0.0
    %6098 = vmatprep.subr.mxu0 0.0
    %6099 = vmatpush1.msra.mxu0 0.0
    %6100 = vmatprep.subr.mxu0 0.0
    %6101 = vmatpush1.msra.mxu0 0.0
    %6102 = vmatprep.subr.mxu0 0.0
    %6103 = vmatpush1.msra.mxu0 0.0
    %6104 = vmatprep.subr.mxu0 0.0
    %6105 = vmatpush1.msra.mxu0 0.0
    %6106 = vmatprep.subr.mxu0 0.0
    %6107 = vmatpush1.msra.mxu0 0.0
    %6108 = vmatprep.subr.mxu0 0.0
    %6109 = vmatpush1.msra.mxu0 0.0
    %6110 = vmatprep.subr.mxu0 0.0
    %6111 = vmatpush1.msra.mxu0 0.0
    %6112 = vmatprep.subr.mxu0 0.0
    %6113 = vmatpush1.msra.mxu0 0.0
    %6114 = vmatprep.subr.mxu0 0.0
    %6115 = vmatpush1.msra.mxu0 0.0
    %6116 = vmatprep.subr.mxu0 0.0
    %6117 = vmatpush1.msra.mxu0 0.0
    %6118 = vmatprep.subr.mxu0 0.0
    %6119 = vmatpush1.msra.mxu0 0.0
    %6120 = vmatprep.subr.mxu0 0.0
    %6121 = vmatpush1.msra.mxu0 0.0
    %6122 = vmatprep.mubr.f32.mxu0 0.0
    %6123 = vmatmul.mubr.f32.gmra.mrb[0].mxu0 %v6056
    %v6124 = vpop.f32.mrb[0].mxu0
    %v6125 = vadd.f32 0.0, %v6124
    %v6126 = vpop.f32.mrb[0].mxu0
    %6127 = vdwg.mxu0
    %6128 = vrot.lane.b32.xlu0 %v5655, 96
    %v6129 = vpop.permute.xlu0 %6128
    %6130 = vrot.lane.b32.xlu0 %v5725, 96
    %v6131 = vpop.permute.xlu0 %6130
    %v6132 = vsel %vm263, %v6129, 0
    %v6134 = vsel %vm263, %v6131, 0
    %6136 = vmatprep.subr.mxu0 0.0
    %6137 = vmatpush1.xpose.msra.mxu0 %v6134
    %6138 = vmatprep.subr.mxu0 0.0
    %6139 = vmatpush1.xpose.msra.mxu0 0.0
    %6140 = vmatprep.subr.mxu0 0.0
    %6141 = vmatpush1.xpose.msra.mxu0 0.0
    %6142 = vmatprep.subr.mxu0 0.0
    %6143 = vmatpush1.xpose.msra.mxu0 0.0
    %6144 = vmatprep.subr.mxu0 0.0
    %6145 = vmatpush1.xpose.msra.mxu0 0.0
    %6146 = vmatprep.subr.mxu0 0.0
    %6147 = vmatpush1.xpose.msra.mxu0 0.0
    %6148 = vmatprep.subr.mxu0 0.0
    %6149 = vmatpush1.xpose.msra.mxu0 0.0
    %6150 = vmatprep.subr.mxu0 0.0
    %6151 = vmatpush1.xpose.msra.mxu0 0.0
    %6152 = vmatprep.subr.mxu0 0.0
    %6153 = vmatpush1.xpose.msra.mxu0 0.0
    %6154 = vmatprep.subr.mxu0 0.0
    %6155 = vmatpush1.xpose.msra.mxu0 0.0
    %6156 = vmatprep.subr.mxu0 0.0
    %6157 = vmatpush1.xpose.msra.mxu0 0.0
    %6158 = vmatprep.subr.mxu0 0.0
    %6159 = vmatpush1.xpose.msra.mxu0 0.0
    %6160 = vmatprep.subr.mxu0 0.0
    %6161 = vmatpush1.xpose.msra.mxu0 0.0
    %6162 = vmatprep.subr.mxu0 0.0
    %6163 = vmatpush1.xpose.msra.mxu0 0.0
    %6164 = vmatprep.subr.mxu0 0.0
    %6165 = vmatpush1.xpose.msra.mxu0 0.0
    %6166 = vmatprep.subr.mxu0 0.0
    %6167 = vmatpush1.xpose.msra.mxu0 0.0
    %6168 = vmatprep.subr.mxu0 0.0
    %6169 = vmatpush1.xpose.msra.mxu0 0.0
    %6170 = vmatprep.subr.mxu0 0.0
    %6171 = vmatpush1.xpose.msra.mxu0 0.0
    %6172 = vmatprep.subr.mxu0 0.0
    %6173 = vmatpush1.xpose.msra.mxu0 0.0
    %6174 = vmatprep.subr.mxu0 0.0
    %6175 = vmatpush1.xpose.msra.mxu0 0.0
    %6176 = vmatprep.subr.mxu0 0.0
    %6177 = vmatpush1.xpose.msra.mxu0 0.0
    %6178 = vmatprep.subr.mxu0 0.0
    %6179 = vmatpush1.xpose.msra.mxu0 0.0
    %6180 = vmatprep.subr.mxu0 0.0
    %6181 = vmatpush1.xpose.msra.mxu0 0.0
    %6182 = vmatprep.subr.mxu0 0.0
    %6183 = vmatpush1.xpose.msra.mxu0 0.0
    %6184 = vmatprep.subr.mxu0 0.0
    %6185 = vmatpush1.xpose.msra.mxu0 0.0
    %6186 = vmatprep.subr.mxu0 0.0
    %6187 = vmatpush1.xpose.msra.mxu0 0.0
    %6188 = vmatprep.subr.mxu0 0.0
    %6189 = vmatpush1.xpose.msra.mxu0 0.0
    %6190 = vmatprep.subr.mxu0 0.0
    %6191 = vmatpush1.xpose.msra.mxu0 0.0
    %6192 = vmatprep.subr.mxu0 0.0
    %6193 = vmatpush1.xpose.msra.mxu0 0.0
    %6194 = vmatprep.subr.mxu0 0.0
    %6195 = vmatpush1.xpose.msra.mxu0 0.0
    %6196 = vmatprep.subr.mxu0 0.0
    %6197 = vmatpush1.xpose.msra.mxu0 0.0
    %6198 = vmatprep.subr.mxu0 0.0
    %6199 = vmatpush1.xpose.msra.mxu0 0.0
    %6200 = vmatprep.mubr.f32.mxu0 0.0
    %6201 = vmatmul.mubr.f32.gmra.mrb[0].mxu0 %v6132
    %v6202 = vpop.f32.mrb[0].mxu0
    %v6203 = vadd.f32 0.0, %v6202
    %v6204 = vpop.f32.mrb[0].mxu0
    %6205 = vdwg.mxu0
    %v6206 = vmul.f32 %v6203, 0.25
    %v6207 = vsel %vm5253, %v6206, -inf
    %6208 = vmax.xlane.f32.xlu0 %v6207
    %v6209 = vpop.xlane.xlu0 %6208
    %v6210 = vsub.f32 %v6206, %v6209
    %v6211 = vmul.f32 %v6210, 1.442695
    %v6212 = vpow.pop %v6211
    %v6213 = vsel %vm5253, %v6212, 0.0
    %6214 = vadd.xlane.f32.xlu0 %v6213
    %v6215 = vpop.xlane.xlu0 %6214
    %v6216 = vrcp.pop %v6215
    %v6217 = vmul.f32 %v6212, %v6216
    %6218 = vrot.lane.b32.xlu0 %v5795, 96
    %v6219 = vpop.permute.xlu0 %6218
    %v6222 = vsel %vm5253, %v6217, 0
    %6224 = vmatprep.subr.mxu0 0.0
    %6225 = vmatpush1.msra.mxu0 %v6219
    %6226 = vmatprep.subr.mxu0 0.0
    %6227 = vmatpush1.msra.mxu0 0.0
    %6228 = vmatprep.subr.mxu0 0.0
    %6229 = vmatpush1.msra.mxu0 0.0
    %6230 = vmatprep.subr.mxu0 0.0
    %6231 = vmatpush1.msra.mxu0 0.0
    %6232 = vmatprep.subr.mxu0 0.0
    %6233 = vmatpush1.msra.mxu0 0.0
    %6234 = vmatprep.subr.mxu0 0.0
    %6235 = vmatpush1.msra.mxu0 0.0
    %6236 = vmatprep.subr.mxu0 0.0
    %6237 = vmatpush1.msra.mxu0 0.0
    %6238 = vmatprep.subr.mxu0 0.0
    %6239 = vmatpush1.msra.mxu0 0.0
    %6240 = vmatprep.subr.mxu0 0.0
    %6241 = vmatpush1.msra.mxu0 0.0
    %6242 = vmatprep.subr.mxu0 0.0
    %6243 = vmatpush1.msra.mxu0 0.0
    %6244 = vmatprep.subr.mxu0 0.0
    %6245 = vmatpush1.msra.mxu0 0.0
    %6246 = vmatprep.subr.mxu0 0.0
    %6247 = vmatpush1.msra.mxu0 0.0
    %6248 = vmatprep.subr.mxu0 0.0
    %6249 = vmatpush1.msra.mxu0 0.0
    %6250 = vmatprep.subr.mxu0 0.0
    %6251 = vmatpush1.msra.mxu0 0.0
    %6252 = vmatprep.subr.mxu0 0.0
    %6253 = vmatpush1.msra.mxu0 0.0
    %6254 = vmatprep.subr.mxu0 0.0
    %6255 = vmatpush1.msra.mxu0 0.0
    %6256 = vmatprep.subr.mxu0 0.0
    %6257 = vmatpush1.msra.mxu0 0.0
    %6258 = vmatprep.subr.mxu0 0.0
    %6259 = vmatpush1.msra.mxu0 0.0
    %6260 = vmatprep.subr.mxu0 0.0
    %6261 = vmatpush1.msra.mxu0 0.0
    %6262 = vmatprep.subr.mxu0 0.0
    %6263 = vmatpush1.msra.mxu0 0.0
    %6264 = vmatprep.subr.mxu0 0.0
    %6265 = vmatpush1.msra.mxu0 0.0
    %6266 = vmatprep.subr.mxu0 0.0
    %6267 = vmatpush1.msra.mxu0 0.0
    %6268 = vmatprep.subr.mxu0 0.0
    %6269 = vmatpush1.msra.mxu0 0.0
    %6270 = vmatprep.subr.mxu0 0.0
    %6271 = vmatpush1.msra.mxu0 0.0
    %6272 = vmatprep.subr.mxu0 0.0
    %6273 = vmatpush1.msra.mxu0 0.0
    %6274 = vmatprep.subr.mxu0 0.0
    %6275 = vmatpush1.msra.mxu0 0.0
    %6276 = vmatprep.subr.mxu0 0.0
    %6277 = vmatpush1.msra.mxu0 0.0
    %6278 = vmatprep.subr.mxu0 0.0
    %6279 = vmatpush1.msra.mxu0 0.0
    %6280 = vmatprep.subr.mxu0 0.0
    %6281 = vmatpush1.msra.mxu0 0.0
    %6282 = vmatprep.subr.mxu0 0.0
    %6283 = vmatpush1.msra.mxu0 0.0
    %6284 = vmatprep.subr.mxu0 0.0
    %6285 = vmatpush1.msra.mxu0 0.0
    %6286 = vmatprep.subr.mxu0 0.0
    %6287 = vmatpush1.msra.mxu0 0.0
    %6288 = vmatprep.mubr.f32.mxu0 0.0
    %6289 = vmatmul.mubr.f32.gmra.mrb[0].mxu0 %v6222
    %v6290 = vpop.f32.mrb[0].mxu0
    %v6291 = vadd.f32 0.0, %v6290
    %v6292 = vpop.f32.mrb[0].mxu0
    %6293 = vdwg.mxu0
    %6294 = vrot.lane.b32.xlu0 %v5655, 80
    %v6295 = vpop.permute.xlu0 %6294
    %6296 = vrot.lane.b32.xlu0 %v5725, 80
    %v6297 = vpop.permute.xlu0 %6296
    %v6298 = vsel %vm263, %v6295, 0
    %v6300 = vsel %vm263, %v6297, 0
    %6302 = vmatprep.subr.mxu0 0.0
    %6303 = vmatpush1.xpose.msra.mxu0 %v6300
    %6304 = vmatprep.subr.mxu0 0.0
    %6305 = vmatpush1.xpose.msra.mxu0 0.0
    %6306 = vmatprep.subr.mxu0 0.0
    %6307 = vmatpush1.xpose.msra.mxu0 0.0
    %6308 = vmatprep.subr.mxu0 0.0
    %6309 = vmatpush1.xpose.msra.mxu0 0.0
    %6310 = vmatprep.subr.mxu0 0.0
    %6311 = vmatpush1.xpose.msra.mxu0 0.0
    %6312 = vmatprep.subr.mxu0 0.0
    %6313 = vmatpush1.xpose.msra.mxu0 0.0
    %6314 = vmatprep.subr.mxu0 0.0
    %6315 = vmatpush1.xpose.msra.mxu0 0.0
    %6316 = vmatprep.subr.mxu0 0.0
    %6317 = vmatpush1.xpose.msra.mxu0 0.0
    %6318 = vmatprep.subr.mxu0 0.0
    %6319 = vmatpush1.xpose.msra.mxu0 0.0
    %6320 = vmatprep.subr.mxu0 0.0
    %6321 = vmatpush1.xpose.msra.mxu0 0.0
    %6322 = vmatprep.subr.mxu0 0.0
    %6323 = vmatpush1.xpose.msra.mxu0 0.0
    %6324 = vmatprep.subr.mxu0 0.0
    %6325 = vmatpush1.xpose.msra.mxu0 0.0
    %6326 = vmatprep.subr.mxu0 0.0
    %6327 = vmatpush1.xpose.msra.mxu0 0.0
    %6328 = vmatprep.subr.mxu0 0.0
    %6329 = vmatpush1.xpose.msra.mxu0 0.0
    %6330 = vmatprep.subr.mxu0 0.0
    %6331 = vmatpush1.xpose.msra.mxu0 0.0
    %6332 = vmatprep.subr.mxu0 0.0
    %6333 = vmatpush1.xpose.msra.mxu0 0.0
    %6334 = vmatprep.subr.mxu0 0.0
    %6335 = vmatpush1.xpose.msra.mxu0 0.0
    %6336 = vmatprep.subr.mxu0 0.0
    %6337 = vmatpush1.xpose.msra.mxu0 0.0
    %6338 = vmatprep.subr.mxu0 0.0
    %6339 = vmatpush1.xpose.msra.mxu0 0.0
    %6340 = vmatprep.subr.mxu0 0.0
    %6341 = vmatpush1.xpose.msra.mxu0 0.0
    %6342 = vmatprep.subr.mxu0 0.0
    %6343 = vmatpush1.xpose.msra.mxu0 0.0
    %6344 = vmatprep.subr.mxu0 0.0
    %6345 = vmatpush1.xpose.msra.mxu0 0.0
    %6346 = vmatprep.subr.mxu0 0.0
    %6347 = vmatpush1.xpose.msra.mxu0 0.0
    %6348 = vmatprep.subr.mxu0 0.0
    %6349 = vmatpush1.xpose.msra.mxu0 0.0
    %6350 = vmatprep.subr.mxu0 0.0
    %6351 = vmatpush1.xpose.msra.mxu0 0.0
    %6352 = vmatprep.subr.mxu0 0.0
    %6353 = vmatpush1.xpose.msra.mxu0 0.0
    %6354 = vmatprep.subr.mxu0 0.0
    %6355 = vmatpush1.xpose.msra.mxu0 0.0
    %6356 = vmatprep.subr.mxu0 0.0
    %6357 = vmatpush1.xpose.msra.mxu0 0.0
    %6358 = vmatprep.subr.mxu0 0.0
    %6359 = vmatpush1.xpose.msra.mxu0 0.0
    %6360 = vmatprep.subr.mxu0 0.0
    %6361 = vmatpush1.xpose.msra.mxu0 0.0
    %6362 = vmatprep.subr.mxu0 0.0
    %6363 = vmatpush1.xpose.msra.mxu0 0.0
    %6364 = vmatprep.subr.mxu0 0.0
    %6365 = vmatpush1.xpose.msra.mxu0 0.0
    %6366 = vmatprep.mubr.f32.mxu0 0.0
    %6367 = vmatmul.mubr.f32.gmra.mrb[0].mxu0 %v6298
    %v6368 = vpop.f32.mrb[0].mxu0
    %v6369 = vadd.f32 0.0, %v6368
    %v6370 = vpop.f32.mrb[0].mxu0
    %6371 = vdwg.mxu0
    %v6372 = vmul.f32 %v6369, 0.25
    %v6373 = vsel %vm5253, %v6372, -inf
    %6374 = vmax.xlane.f32.xlu0 %v6373
    %v6375 = vpop.xlane.xlu0 %6374
    %v6376 = vsub.f32 %v6372, %v6375
    %v6377 = vmul.f32 %v6376, 1.442695
    %v6378 = vpow.pop %v6377
    %v6379 = vsel %vm5253, %v6378, 0.0
    %6380 = vadd.xlane.f32.xlu0 %v6379
    %v6381 = vpop.xlane.xlu0 %6380
    %v6382 = vrcp.pop %v6381
    %v6383 = vmul.f32 %v6378, %v6382
    %6384 = vrot.lane.b32.xlu0 %v5795, 80
    %v6385 = vpop.permute.xlu0 %6384
    %v6388 = vsel %vm5253, %v6383, 0
    %6390 = vmatprep.subr.mxu0 0.0
    %6391 = vmatpush1.msra.mxu0 %v6385
    %6392 = vmatprep.subr.mxu0 0.0
    %6393 = vmatpush1.msra.mxu0 0.0
    %6394 = vmatprep.subr.mxu0 0.0
    %6395 = vmatpush1.msra.mxu0 0.0
    %6396 = vmatprep.subr.mxu0 0.0
    %6397 = vmatpush1.msra.mxu0 0.0
    %6398 = vmatprep.subr.mxu0 0.0
    %6399 = vmatpush1.msra.mxu0 0.0
    %6400 = vmatprep.subr.mxu0 0.0
    %6401 = vmatpush1.msra.mxu0 0.0
    %6402 = vmatprep.subr.mxu0 0.0
    %6403 = vmatpush1.msra.mxu0 0.0
    %6404 = vmatprep.subr.mxu0 0.0
    %6405 = vmatpush1.msra.mxu0 0.0
    %6406 = vmatprep.subr.mxu0 0.0
    %6407 = vmatpush1.msra.mxu0 0.0
    %6408 = vmatprep.subr.mxu0 0.0
    %6409 = vmatpush1.msra.mxu0 0.0
    %6410 = vmatprep.subr.mxu0 0.0
    %6411 = vmatpush1.msra.mxu0 0.0
    %6412 = vmatprep.subr.mxu0 0.0
    %6413 = vmatpush1.msra.mxu0 0.0
    %6414 = vmatprep.subr.mxu0 0.0
    %6415 = vmatpush1.msra.mxu0 0.0
    %6416 = vmatprep.subr.mxu0 0.0
    %6417 = vmatpush1.msra.mxu0 0.0
    %6418 = vmatprep.subr.mxu0 0.0
    %6419 = vmatpush1.msra.mxu0 0.0
    %6420 = vmatprep.subr.mxu0 0.0
    %6421 = vmatpush1.msra.mxu0 0.0
    %6422 = vmatprep.subr.mxu0 0.0
    %6423 = vmatpush1.msra.mxu0 0.0
    %6424 = vmatprep.subr.mxu0 0.0
    %6425 = vmatpush1.msra.mxu0 0.0
    %6426 = vmatprep.subr.mxu0 0.0
    %6427 = vmatpush1.msra.mxu0 0.0
    %6428 = vmatprep.subr.mxu0 0.0
    %6429 = vmatpush1.msra.mxu0 0.0
    %6430 = vmatprep.subr.mxu0 0.0
    %6431 = vmatpush1.msra.mxu0 0.0
    %6432 = vmatprep.subr.mxu0 0.0
    %6433 = vmatpush1.msra.mxu0 0.0
    %6434 = vmatprep.subr.mxu0 0.0
    %6435 = vmatpush1.msra.mxu0 0.0
    %6436 = vmatprep.subr.mxu0 0.0
    %6437 = vmatpush1.msra.mxu0 0.0
    %6438 = vmatprep.subr.mxu0 0.0
    %6439 = vmatpush1.msra.mxu0 0.0
    %6440 = vmatprep.subr.mxu0 0.0
    %6441 = vmatpush1.msra.mxu0 0.0
    %6442 = vmatprep.subr.mxu0 0.0
    %6443 = vmatpush1.msra.mxu0 0.0
    %6444 = vmatprep.subr.mxu0 0.0
    %6445 = vmatpush1.msra.mxu0 0.0
    %6446 = vmatprep.subr.mxu0 0.0
    %6447 = vmatpush1.msra.mxu0 0.0
    %6448 = vmatprep.subr.mxu0 0.0
    %6449 = vmatpush1.msra.mxu0 0.0
    %6450 = vmatprep.subr.mxu0 0.0
    %6451 = vmatpush1.msra.mxu0 0.0
    %6452 = vmatprep.subr.mxu0 0.0
    %6453 = vmatpush1.msra.mxu0 0.0
    %6454 = vmatprep.mubr.f32.mxu0 0.0
    %6455 = vmatmul.mubr.f32.gmra.mrb[0].mxu0 %v6388
    %v6456 = vpop.f32.mrb[0].mxu0
    %v6457 = vadd.f32 0.0, %v6456
    %v6458 = vpop.f32.mrb[0].mxu0
    %6459 = vdwg.mxu0
    %6461 = vrot.lane.b32.xlu0 %v6125, 16
    %v6462 = vpop.permute.xlu0 %6461
    %6465 = vrot.lane.b32.xlu0 %v6291, 32
    %v6466 = vpop.permute.xlu0 %6465
    %6469 = vrot.lane.b32.xlu0 %v6457, 48
    %v6470 = vpop.permute.xlu0 %6469
    %v6472 = vsel %vm263, %v5958, %v6462
    %v6473 = vsel %vm438, %v6472, %v6466
    %v6474 = vsel %vm2467, %v6473, %v6470
    %v6475 = vtanh.pop %v6474
    %v6476 = vld [vmem:[%s101] sm:$0xf]
    %v6477 = vld [vmem:[%s101 + $0x4] sm:$0xf]
    %v6478 = vld [vmem:[%s101 + $0x8] sm:$0xf]
    %v6479 = vld [vmem:[%s101 + $0xc] sm:$0xf]
    %v6480 = vld [vmem:[%s101 + $0x10] sm:$0xf]
    %v6481 = vld [vmem:[%s101 + $0x14] sm:$0xf]
    %v6482 = vld [vmem:[%s101 + $0x18] sm:$0xf]
    %v6483 = vld [vmem:[%s101 + $0x1c] sm:$0xf]
    %v6484 = vld [vmem:[%s103] sm:$0x1]
    %v6485 = vld [vmem:[%s105] sm:$0xf]
    %v6486 = vld [vmem:[%s105 + $0x4] sm:$0xf]
    %v6487 = vld [vmem:[%s105 + $0x8] sm:$0xf]
    %v6488 = vld [vmem:[%s105 + $0xc] sm:$0xf]
    %v6489 = vld [vmem:[%s105 + $0x10] sm:$0xf]
    %v6490 = vld [vmem:[%s105 + $0x14] sm:$0xf]
    %v6491 = vld [vmem:[%s105 + $0x18] sm:$0xf]
    %v6492 = vld [vmem:[%s105 + $0x1c] sm:$0xf]
    %v6493 = vld [vmem:[%s107] sm:$0x1]
    %v6494 = vld [vmem:[%s109] sm:$0xf]
    %v6495 = vld [vmem:[%s109 + $0x4] sm:$0xf]
    %v6496 = vld [vmem:[%s109 + $0x8] sm:$0xf]
    %v6497 = vld [vmem:[%s109 + $0xc] sm:$0xf]
    %v6498 = vld [vmem:[%s109 + $0x10] sm:$0xf]
    %v6499 = vld [vmem:[%s109 + $0x14] sm:$0xf]
    %v6500 = vld [vmem:[%s109 + $0x18] sm:$0xf]
    %v6501 = vld [vmem:[%s109 + $0x1c] sm:$0xf]
    %v6502 = vld [vmem:[%s111] sm:$0x1]
    %v6503 = vpack.c.bf16 %v5558, %v5558
    %v6505 = vlaneseq
    %v6506 = vshrl.u32 %v6505, 7
    %v6507 = vsub.s32 0, %v6506
    %v6508 = vrot.slane %v6484, %v6507
    %v6518 = vunpack.c.l.b16 %v6476
    %v6519 = vunpack.c.l.b16 %v6477
    %v6520 = vunpack.c.l.b16 %v6478
    %v6521 = vunpack.c.l.b16 %v6479
    %v6522 = vunpack.c.l.b16 %v6480
    %v6523 = vunpack.c.l.b16 %v6481
    %v6524 = vunpack.c.l.b16 %v6482
    %v6525 = vunpack.c.l.b16 %v6483
    %v6526 = vpack.c.b16 %v6519, %v6518
    %v6527 = vpack.c.b16 %v6521, %v6520
    %v6528 = vpack.c.b16 %v6523, %v6522
    %v6529 = vpack.c.b16 %v6525, %v6524
    %v6535 = vsel %vm851, %v6503, 0
    %6537 = vmatprep.subr.bf16.mxu0 0
    %6538 = vmatpush1.bf16.msra.mxu0 %v6526
    %6539 = vmatprep.subr.bf16.mxu0 0
    %6540 = vmatpush1.bf16.msra.mxu0 %v6527
    %6541 = vmatprep.subr.bf16.mxu0 0
    %6542 = vmatpush1.bf16.msra.mxu0 %v6528
    %6543 = vmatprep.subr.bf16.mxu0 0
    %6544 = vmatpush1.bf16.msra.mxu0 %v6529
    %6545 = vmatprep.subr.bf16.mxu0 0
    %6546 = vmatpush1.bf16.msra.mxu0 0
    %6547 = vmatprep.subr.bf16.mxu0 0
    %6548 = vmatpush1.bf16.msra.mxu0 0
    %6549 = vmatprep.subr.bf16.mxu0 0
    %6550 = vmatpush1.bf16.msra.mxu0 0
    %6551 = vmatprep.subr.bf16.mxu0 0
    %6552 = vmatpush1.bf16.msra.mxu0 0
    %6553 = vmatprep.subr.bf16.mxu0 0
    %6554 = vmatpush1.bf16.msra.mxu0 0
    %6555 = vmatprep.subr.bf16.mxu0 0
    %6556 = vmatpush1.bf16.msra.mxu0 0
    %6557 = vmatprep.subr.bf16.mxu0 0
    %6558 = vmatpush1.bf16.msra.mxu0 0
    %6559 = vmatprep.subr.bf16.mxu0 0
    %6560 = vmatpush1.bf16.msra.mxu0 0
    %6561 = vmatprep.subr.bf16.mxu0 0
    %6562 = vmatpush1.bf16.msra.mxu0 0
    %6563 = vmatprep.subr.bf16.mxu0 0
    %6564 = vmatpush1.bf16.msra.mxu0 0
    %6565 = vmatprep.subr.bf16.mxu0 0
    %6566 = vmatpush1.bf16.msra.mxu0 0
    %6567 = vmatprep.subr.bf16.mxu0 0
    %6568 = vmatpush1.bf16.msra.mxu0 0
    %6569 = vmatprep.mubr.bf16.mxu0 0
    %6570 = vmatmul.mubr.bf16.gmra.mrb[0].mxu0 %v6535
    %v6571 = vpop.f32.mrb[0].mxu0
    %v6572 = vadd.f32 %v6508, %v6571
    %v6573 = vpop.f32.mrb[0].mxu0
    %v6574 = vpop.f32.mrb[0].mxu0
    %v6575 = vpop.f32.mrb[0].mxu0
    %6576 = vdwg.mxu0
    %v6578 = vlaneseq
    %v6579 = vshrl.u32 %v6578, 7
    %v6580 = vsub.s32 0, %v6579
    %v6581 = vrot.slane %v6493, %v6580
    %v6591 = vunpack.c.l.b16 %v6485
    %v6592 = vunpack.c.l.b16 %v6486
    %v6593 = vunpack.c.l.b16 %v6487
    %v6594 = vunpack.c.l.b16 %v6488
    %v6595 = vunpack.c.l.b16 %v6489
    %v6596 = vunpack.c.l.b16 %v6490
    %v6597 = vunpack.c.l.b16 %v6491
    %v6598 = vunpack.c.l.b16 %v6492
    %v6599 = vpack.c.b16 %v6592, %v6591
    %v6600 = vpack.c.b16 %v6594, %v6593
    %v6601 = vpack.c.b16 %v6596, %v6595
    %v6602 = vpack.c.b16 %v6598, %v6597
    %6607 = vmatprep.subr.bf16.mxu0 0
    %6608 = vmatpush1.bf16.msra.mxu0 %v6599
    %6609 = vmatprep.subr.bf16.mxu0 0
    %6610 = vmatpush1.bf16.msra.mxu0 %v6600
    %6611 = vmatprep.subr.bf16.mxu0 0
    %6612 = vmatpush1.bf16.msra.mxu0 %v6601
    %6613 = vmatprep.subr.bf16.mxu0 0
    %6614 = vmatpush1.bf16.msra.mxu0 %v6602
    %6615 = vmatprep.subr.bf16.mxu0 0
    %6616 = vmatpush1.bf16.msra.mxu0 0
    %6617 = vmatprep.subr.bf16.mxu0 0
    %6618 = vmatpush1.bf16.msra.mxu0 0
    %6619 = vmatprep.subr.bf16.mxu0 0
    %6620 = vmatpush1.bf16.msra.mxu0 0
    %6621 = vmatprep.subr.bf16.mxu0 0
    %6622 = vmatpush1.bf16.msra.mxu0 0
    %6623 = vmatprep.subr.bf16.mxu0 0
    %6624 = vmatpush1.bf16.msra.mxu0 0
    %6625 = vmatprep.subr.bf16.mxu0 0
    %6626 = vmatpush1.bf16.msra.mxu0 0
    %6627 = vmatprep.subr.bf16.mxu0 0
    %6628 = vmatpush1.bf16.msra.mxu0 0
    %6629 = vmatprep.subr.bf16.mxu0 0
    %6630 = vmatpush1.bf16.msra.mxu0 0
    %6631 = vmatprep.subr.bf16.mxu0 0
    %6632 = vmatpush1.bf16.msra.mxu0 0
    %6633 = vmatprep.subr.bf16.mxu0 0
    %6634 = vmatpush1.bf16.msra.mxu0 0
    %6635 = vmatprep.subr.bf16.mxu0 0
    %6636 = vmatpush1.bf16.msra.mxu0 0
    %6637 = vmatprep.subr.bf16.mxu0 0
    %6638 = vmatpush1.bf16.msra.mxu0 0
    %6639 = vmatprep.mubr.bf16.mxu0 0
    %6640 = vmatmul.mubr.bf16.gmra.mrb[0].mxu0 %v6535
    %v6641 = vpop.f32.mrb[0].mxu0
    %v6642 = vadd.f32 %v6581, %v6641
    %v6643 = vpop.f32.mrb[0].mxu0
    %v6644 = vpop.f32.mrb[0].mxu0
    %v6645 = vpop.f32.mrb[0].mxu0
    %6646 = vdwg.mxu0
    %v6648 = vlaneseq
    %v6649 = vshrl.u32 %v6648, 7
    %v6650 = vsub.s32 0, %v6649
    %v6651 = vrot.slane %v6502, %v6650
    %v6661 = vunpack.c.l.b16 %v6494
    %v6662 = vunpack.c.l.b16 %v6495
    %v6663 = vunpack.c.l.b16 %v6496
    %v6664 = vunpack.c.l.b16 %v6497
    %v6665 = vunpack.c.l.b16 %v6498
    %v6666 = vunpack.c.l.b16 %v6499
    %v6667 = vunpack.c.l.b16 %v6500
    %v6668 = vunpack.c.l.b16 %v6501
    %v6669 = vpack.c.b16 %v6662, %v6661
    %v6670 = vpack.c.b16 %v6664, %v6663
    %v6671 = vpack.c.b16 %v6666, %v6665
    %v6672 = vpack.c.b16 %v6668, %v6667
    %6677 = vmatprep.subr.bf16.mxu0 0
    %6678 = vmatpush1.bf16.msra.mxu0 %v6669
    %6679 = vmatprep.subr.bf16.mxu0 0
    %6680 = vmatpush1.bf16.msra.mxu0 %v6670
    %6681 = vmatprep.subr.bf16.mxu0 0
    %6682 = vmatpush1.bf16.msra.mxu0 %v6671
    %6683 = vmatprep.subr.bf16.mxu0 0
    %6684 = vmatpush1.bf16.msra.mxu0 %v6672
    %6685 = vmatprep.subr.bf16.mxu0 0
    %6686 = vmatpush1.bf16.msra.mxu0 0
    %6687 = vmatprep.subr.bf16.mxu0 0
    %6688 = vmatpush1.bf16.msra.mxu0 0
    %6689 = vmatprep.subr.bf16.mxu0 0
    %6690 = vmatpush1.bf16.msra.mxu0 0
    %6691 = vmatprep.subr.bf16.mxu0 0
    %6692 = vmatpush1.bf16.msra.mxu0 0
    %6693 = vmatprep.subr.bf16.mxu0 0
    %6694 = vmatpush1.bf16.msra.mxu0 0
    %6695 = vmatprep.subr.bf16.mxu0 0
    %6696 = vmatpush1.bf16.msra.mxu0 0
    %6697 = vmatprep.subr.bf16.mxu0 0
    %6698 = vmatpush1.bf16.msra.mxu0 0
    %6699 = vmatprep.subr.bf16.mxu0 0
    %6700 = vmatpush1.bf16.msra.mxu0 0
    %6701 = vmatprep.subr.bf16.mxu0 0
    %6702 = vmatpush1.bf16.msra.mxu0 0
    %6703 = vmatprep.subr.bf16.mxu0 0
    %6704 = vmatpush1.bf16.msra.mxu0 0
    %6705 = vmatprep.subr.bf16.mxu0 0
    %6706 = vmatpush1.bf16.msra.mxu0 0
    %6707 = vmatprep.subr.bf16.mxu0 0
    %6708 = vmatpush1.bf16.msra.mxu0 0
    %6709 = vmatprep.mubr.bf16.mxu0 0
    %6710 = vmatmul.mubr.bf16.gmra.mrb[0].mxu0 %v6535
    %v6711 = vpop.f32.mrb[0].mxu0
    %v6712 = vadd.f32 %v6651, %v6711
    %v6713 = vpop.f32.mrb[0].mxu0
    %v6714 = vpop.f32.mrb[0].mxu0
    %v6715 = vpop.f32.mrb[0].mxu0
    %6716 = vdwg.mxu0
    %v6718 = vsel %vm263, %v6572, 0
    %v6721 = vsel %vm263, %v6642, 0
    %6723 = vmatprep.subr.mxu0 0.0
    %6724 = vmatpush1.xpose.msra.mxu0 %v6721
    %6725 = vmatprep.subr.mxu0 0.0
    %6726 = vmatpush1.xpose.msra.mxu0 0.0
    %6727 = vmatprep.subr.mxu0 0.0
    %6728 = vmatpush1.xpose.msra.mxu0 0.0
    %6729 = vmatprep.subr.mxu0 0.0
    %6730 = vmatpush1.xpose.msra.mxu0 0.0
    %6731 = vmatprep.subr.mxu0 0.0
    %6732 = vmatpush1.xpose.msra.mxu0 0.0
    %6733 = vmatprep.subr.mxu0 0.0
    %6734 = vmatpush1.xpose.msra.mxu0 0.0
    %6735 = vmatprep.subr.mxu0 0.0
    %6736 = vmatpush1.xpose.msra.mxu0 0.0
    %6737 = vmatprep.subr.mxu0 0.0
    %6738 = vmatpush1.xpose.msra.mxu0 0.0
    %6739 = vmatprep.subr.mxu0 0.0
    %6740 = vmatpush1.xpose.msra.mxu0 0.0
    %6741 = vmatprep.subr.mxu0 0.0
    %6742 = vmatpush1.xpose.msra.mxu0 0.0
    %6743 = vmatprep.subr.mxu0 0.0
    %6744 = vmatpush1.xpose.msra.mxu0 0.0
    %6745 = vmatprep.subr.mxu0 0.0
    %6746 = vmatpush1.xpose.msra.mxu0 0.0
    %6747 = vmatprep.subr.mxu0 0.0
    %6748 = vmatpush1.xpose.msra.mxu0 0.0
    %6749 = vmatprep.subr.mxu0 0.0
    %6750 = vmatpush1.xpose.msra.mxu0 0.0
    %6751 = vmatprep.subr.mxu0 0.0
    %6752 = vmatpush1.xpose.msra.mxu0 0.0
    %6753 = vmatprep.subr.mxu0 0.0
    %6754 = vmatpush1.xpose.msra.mxu0 0.0
    %6755 = vmatprep.subr.mxu0 0.0
    %6756 = vmatpush1.xpose.msra.mxu0 0.0
    %6757 = vmatprep.subr.mxu0 0.0
    %6758 = vmatpush1.xpose.msra.mxu0 0.0
    %6759 = vmatprep.subr.mxu0 0.0
    %6760 = vmatpush1.xpose.msra.mxu0 0.0
    %6761 = vmatprep.subr.mxu0 0.0
    %6762 = vmatpush1.xpose.msra.mxu0 0.0
    %6763 = vmatprep.subr.mxu0 0.0
    %6764 = vmatpush1.xpose.msra.mxu0 0.0
    %6765 = vmatprep.subr.mxu0 0.0
    %6766 = vmatpush1.xpose.msra.mxu0 0.0
    %6767 = vmatprep.subr.mxu0 0.0
    %6768 = vmatpush1.xpose.msra.mxu0 0.0
    %6769 = vmatprep.subr.mxu0 0.0
    %6770 = vmatpush1.xpose.msra.mxu0 0.0
    %6771 = vmatprep.subr.mxu0 0.0
    %6772 = vmatpush1.xpose.msra.mxu0 0.0
    %6773 = vmatprep.subr.mxu0 0.0
    %6774 = vmatpush1.xpose.msra.mxu0 0.0
    %6775 = vmatprep.subr.mxu0 0.0
    %6776 = vmatpush1.xpose.msra.mxu0 0.0
    %6777 = vmatprep.subr.mxu0 0.0
    %6778 = vmatpush1.xpose.msra.mxu0 0.0
    %6779 = vmatprep.subr.mxu0 0.0
    %6780 = vmatpush1.xpose.msra.mxu0 0.0
    %6781 = vmatprep.subr.mxu0 0.0
    %6782 = vmatpush1.xpose.msra.mxu0 0.0
    %6783 = vmatprep.subr.mxu0 0.0
    %6784 = vmatpush1.xpose.msra.mxu0 0.0
    %6785 = vmatprep.subr.mxu0 0.0
    %6786 = vmatpush1.xpose.msra.mxu0 0.0
    %6787 = vmatprep.mubr.f32.mxu0 0.0
    %6788 = vmatmul.mubr.f32.gmra.mrb[0].mxu0 %v6718
    %v6789 = vpop.f32.mrb[0].mxu0
    %v6790 = vadd.f32 0.0, %v6789
    %v6791 = vpop.f32.mrb[0].mxu0
    %6792 = vdwg.mxu0
    %v6793 = vmul.f32 %v6790, 0.25
    %v6794 = vsel %vm5253, %v6793, -inf
    %6795 = vmax.xlane.f32.xlu0 %v6794
    %v6796 = vpop.xlane.xlu0 %6795
    %v6797 = vsub.f32 %v6793, %v6796
    %v6798 = vmul.f32 %v6797, 1.442695
    %v6799 = vpow.pop %v6798
    %v6800 = vsel %vm5253, %v6799, 0.0
    %6801 = vadd.xlane.f32.xlu0 %v6800
    %v6802 = vpop.xlane.xlu0 %6801
    %v6803 = vrcp.pop %v6802
    %v6804 = vmul.f32 %v6799, %v6803
    %v6806 = vsel %vm5253, %v6804, 0
    %6808 = vmatprep.subr.mxu0 0.0
    %6809 = vmatpush1.msra.mxu0 %v6712
    %6810 = vmatprep.subr.mxu0 0.0
    %6811 = vmatpush1.msra.mxu0 0.0
    %6812 = vmatprep.subr.mxu0 0.0
    %6813 = vmatpush1.msra.mxu0 0.0
    %6814 = vmatprep.subr.mxu0 0.0
    %6815 = vmatpush1.msra.mxu0 0.0
    %6816 = vmatprep.subr.mxu0 0.0
    %6817 = vmatpush1.msra.mxu0 0.0
    %6818 = vmatprep.subr.mxu0 0.0
    %6819 = vmatpush1.msra.mxu0 0.0
    %6820 = vmatprep.subr.mxu0 0.0
    %6821 = vmatpush1.msra.mxu0 0.0
    %6822 = vmatprep.subr.mxu0 0.0
    %6823 = vmatpush1.msra.mxu0 0.0
    %6824 = vmatprep.subr.mxu0 0.0
    %6825 = vmatpush1.msra.mxu0 0.0
    %6826 = vmatprep.subr.mxu0 0.0
    %6827 = vmatpush1.msra.mxu0 0.0
    %6828 = vmatprep.subr.mxu0 0.0
    %6829 = vmatpush1.msra.mxu0 0.0
    %6830 = vmatprep.subr.mxu0 0.0
    %6831 = vmatpush1.msra.mxu0 0.0
    %6832 = vmatprep.subr.mxu0 0.0
    %6833 = vmatpush1.msra.mxu0 0.0
    %6834 = vmatprep.subr.mxu0 0.0
    %6835 = vmatpush1.msra.mxu0 0.0
    %6836 = vmatprep.subr.mxu0 0.0
    %6837 = vmatpush1.msra.mxu0 0.0
    %6838 = vmatprep.subr.mxu0 0.0
    %6839 = vmatpush1.msra.mxu0 0.0
    %6840 = vmatprep.subr.mxu0 0.0
    %6841 = vmatpush1.msra.mxu0 0.0
    %6842 = vmatprep.subr.mxu0 0.0
    %6843 = vmatpush1.msra.mxu0 0.0
    %6844 = vmatprep.subr.mxu0 0.0
    %6845 = vmatpush1.msra.mxu0 0.0
    %6846 = vmatprep.subr.mxu0 0.0
    %6847 = vmatpush1.msra.mxu0 0.0
    %6848 = vmatprep.subr.mxu0 0.0
    %6849 = vmatpush1.msra.mxu0 0.0
    %6850 = vmatprep.subr.mxu0 0.0
    %6851 = vmatpush1.msra.mxu0 0.0
    %6852 = vmatprep.subr.mxu0 0.0
    %6853 = vmatpush1.msra.mxu0 0.0
    %6854 = vmatprep.subr.mxu0 0.0
    %6855 = vmatpush1.msra.mxu0 0.0
    %6856 = vmatprep.subr.mxu0 0.0
    %6857 = vmatpush1.msra.mxu0 0.0
    %6858 = vmatprep.subr.mxu0 0.0
    %6859 = vmatpush1.msra.mxu0 0.0
    %6860 = vmatprep.subr.mxu0 0.0
    %6861 = vmatpush1.msra.mxu0 0.0
    %6862 = vmatprep.subr.mxu0 0.0
    %6863 = vmatpush1.msra.mxu0 0.0
    %6864 = vmatprep.subr.mxu0 0.0
    %6865 = vmatpush1.msra.mxu0 0.0
    %6866 = vmatprep.subr.mxu0 0.0
    %6867 = vmatpush1.msra.mxu0 0.0
    %6868 = vmatprep.subr.mxu0 0.0
    %6869 = vmatpush1.msra.mxu0 0.0
    %6870 = vmatprep.subr.mxu0 0.0
    %6871 = vmatpush1.msra.mxu0 0.0
    %6872 = vmatprep.mubr.f32.mxu0 0.0
    %6873 = vmatmul.mubr.f32.gmra.mrb[0].mxu0 %v6806
    %v6874 = vpop.f32.mrb[0].mxu0
    %v6875 = vadd.f32 0.0, %v6874
    %v6876 = vpop.f32.mrb[0].mxu0
    %6877 = vdwg.mxu0
    %6878 = vrot.lane.b32.xlu0 %v6572, 112
    %v6879 = vpop.permute.xlu0 %6878
    %6880 = vrot.lane.b32.xlu0 %v6642, 112
    %v6881 = vpop.permute.xlu0 %6880
    %v6882 = vsel %vm263, %v6879, 0
    %v6884 = vsel %vm263, %v6881, 0
    %6886 = vmatprep.subr.mxu0 0.0
    %6887 = vmatpush1.xpose.msra.mxu0 %v6884
    %6888 = vmatprep.subr.mxu0 0.0
    %6889 = vmatpush1.xpose.msra.mxu0 0.0
    %6890 = vmatprep.subr.mxu0 0.0
    %6891 = vmatpush1.xpose.msra.mxu0 0.0
    %6892 = vmatprep.subr.mxu0 0.0
    %6893 = vmatpush1.xpose.msra.mxu0 0.0
    %6894 = vmatprep.subr.mxu0 0.0
    %6895 = vmatpush1.xpose.msra.mxu0 0.0
    %6896 = vmatprep.subr.mxu0 0.0
    %6897 = vmatpush1.xpose.msra.mxu0 0.0
    %6898 = vmatprep.subr.mxu0 0.0
    %6899 = vmatpush1.xpose.msra.mxu0 0.0
    %6900 = vmatprep.subr.mxu0 0.0
    %6901 = vmatpush1.xpose.msra.mxu0 0.0
    %6902 = vmatprep.subr.mxu0 0.0
    %6903 = vmatpush1.xpose.msra.mxu0 0.0
    %6904 = vmatprep.subr.mxu0 0.0
    %6905 = vmatpush1.xpose.msra.mxu0 0.0
    %6906 = vmatprep.subr.mxu0 0.0
    %6907 = vmatpush1.xpose.msra.mxu0 0.0
    %6908 = vmatprep.subr.mxu0 0.0
    %6909 = vmatpush1.xpose.msra.mxu0 0.0
    %6910 = vmatprep.subr.mxu0 0.0
    %6911 = vmatpush1.xpose.msra.mxu0 0.0
    %6912 = vmatprep.subr.mxu0 0.0
    %6913 = vmatpush1.xpose.msra.mxu0 0.0
    %6914 = vmatprep.subr.mxu0 0.0
    %6915 = vmatpush1.xpose.msra.mxu0 0.0
    %6916 = vmatprep.subr.mxu0 0.0
    %6917 = vmatpush1.xpose.msra.mxu0 0.0
    %6918 = vmatprep.subr.mxu0 0.0
    %6919 = vmatpush1.xpose.msra.mxu0 0.0
    %6920 = vmatprep.subr.mxu0 0.0
    %6921 = vmatpush1.xpose.msra.mxu0 0.0
    %6922 = vmatprep.subr.mxu0 0.0
    %6923 = vmatpush1.xpose.msra.mxu0 0.0
    %6924 = vmatprep.subr.mxu0 0.0
    %6925 = vmatpush1.xpose.msra.mxu0 0.0
    %6926 = vmatprep.subr.mxu0 0.0
    %6927 = vmatpush1.xpose.msra.mxu0 0.0
    %6928 = vmatprep.subr.mxu0 0.0
    %6929 = vmatpush1.xpose.msra.mxu0 0.0
    %6930 = vmatprep.subr.mxu0 0.0
    %6931 = vmatpush1.xpose.msra.mxu0 0.0
    %6932 = vmatprep.subr.mxu0 0.0
    %6933 = vmatpush1.xpose.msra.mxu0 0.0
    %6934 = vmatprep.subr.mxu0 0.0
    %6935 = vmatpush1.xpose.msra.mxu0 0.0
    %6936 = vmatprep.subr.mxu0 0.0
    %6937 = vmatpush1.xpose.msra.mxu0 0.0
    %6938 = vmatprep.subr.mxu0 0.0
    %6939 = vmatpush1.xpose.msra.mxu0 0.0
    %6940 = vmatprep.subr.mxu0 0.0
    %6941 = vmatpush1.xpose.msra.mxu0 0.0
    %6942 = vmatprep.subr.mxu0 0.0
    %6943 = vmatpush1.xpose.msra.mxu0 0.0
    %6944 = vmatprep.subr.mxu0 0.0
    %6945 = vmatpush1.xpose.msra.mxu0 0.0
    %6946 = vmatprep.subr.mxu0 0.0
    %6947 = vmatpush1.xpose.msra.mxu0 0.0
    %6948 = vmatprep.subr.mxu0 0.0
    %6949 = vmatpush1.xpose.msra.mxu0 0.0
    %6950 = vmatprep.mubr.f32.mxu0 0.0
    %6951 = vmatmul.mubr.f32.gmra.mrb[0].mxu0 %v6882
    %v6952 = vpop.f32.mrb[0].mxu0
    %v6953 = vadd.f32 0.0, %v6952
    %v6954 = vpop.f32.mrb[0].mxu0
    %6955 = vdwg.mxu0
    %v6956 = vmul.f32 %v6953, 0.25
    %v6957 = vsel %vm5253, %v6956, -inf
    %6958 = vmax.xlane.f32.xlu0 %v6957
    %v6959 = vpop.xlane.xlu0 %6958
    %v6960 = vsub.f32 %v6956, %v6959
    %v6961 = vmul.f32 %v6960, 1.442695
    %v6962 = vpow.pop %v6961
    %v6963 = vsel %vm5253, %v6962, 0.0
    %6964 = vadd.xlane.f32.xlu0 %v6963
    %v6965 = vpop.xlane.xlu0 %6964
    %v6966 = vrcp.pop %v6965
    %v6967 = vmul.f32 %v6962, %v6966
    %6969 = vrot.lane.b32.xlu0 %v6712, 112
    %v6970 = vpop.permute.xlu0 %6969
    %v6973 = vsel %vm5253, %v6967, 0
    %6975 = vmatprep.subr.mxu0 0.0
    %6976 = vmatpush1.msra.mxu0 %v6970
    %6977 = vmatprep.subr.mxu0 0.0
    %6978 = vmatpush1.msra.mxu0 0.0
    %6979 = vmatprep.subr.mxu0 0.0
    %6980 = vmatpush1.msra.mxu0 0.0
    %6981 = vmatprep.subr.mxu0 0.0
    %6982 = vmatpush1.msra.mxu0 0.0
    %6983 = vmatprep.subr.mxu0 0.0
    %6984 = vmatpush1.msra.mxu0 0.0
    %6985 = vmatprep.subr.mxu0 0.0
    %6986 = vmatpush1.msra.mxu0 0.0
    %6987 = vmatprep.subr.mxu0 0.0
    %6988 = vmatpush1.msra.mxu0 0.0
    %6989 = vmatprep.subr.mxu0 0.0
    %6990 = vmatpush1.msra.mxu0 0.0
    %6991 = vmatprep.subr.mxu0 0.0
    %6992 = vmatpush1.msra.mxu0 0.0
    %6993 = vmatprep.subr.mxu0 0.0
    %6994 = vmatpush1.msra.mxu0 0.0
    %6995 = vmatprep.subr.mxu0 0.0
    %6996 = vmatpush1.msra.mxu0 0.0
    %6997 = vmatprep.subr.mxu0 0.0
    %6998 = vmatpush1.msra.mxu0 0.0
    %6999 = vmatprep.subr.mxu0 0.0
    %7000 = vmatpush1.msra.mxu0 0.0
    %7001 = vmatprep.subr.mxu0 0.0
    %7002 = vmatpush1.msra.mxu0 0.0
    %7003 = vmatprep.subr.mxu0 0.0
    %7004 = vmatpush1.msra.mxu0 0.0
    %7005 = vmatprep.subr.mxu0 0.0
    %7006 = vmatpush1.msra.mxu0 0.0
    %7007 = vmatprep.subr.mxu0 0.0
    %7008 = vmatpush1.msra.mxu0 0.0
    %7009 = vmatprep.subr.mxu0 0.0
    %7010 = vmatpush1.msra.mxu0 0.0
    %7011 = vmatprep.subr.mxu0 0.0
    %7012 = vmatpush1.msra.mxu0 0.0
    %7013 = vmatprep.subr.mxu0 0.0
    %7014 = vmatpush1.msra.mxu0 0.0
    %7015 = vmatprep.subr.mxu0 0.0
    %7016 = vmatpush1.msra.mxu0 0.0
    %7017 = vmatprep.subr.mxu0 0.0
    %7018 = vmatpush1.msra.mxu0 0.0
    %7019 = vmatprep.subr.mxu0 0.0
    %7020 = vmatpush1.msra.mxu0 0.0
    %7021 = vmatprep.subr.mxu0 0.0
    %7022 = vmatpush1.msra.mxu0 0.0
    %7023 = vmatprep.subr.mxu0 0.0
    %7024 = vmatpush1.msra.mxu0 0.0
    %7025 = vmatprep.subr.mxu0 0.0
    %7026 = vmatpush1.msra.mxu0 0.0
    %7027 = vmatprep.subr.mxu0 0.0
    %7028 = vmatpush1.msra.mxu0 0.0
    %7029 = vmatprep.subr.mxu0 0.0
    %7030 = vmatpush1.msra.mxu0 0.0
    %7031 = vmatprep.subr.mxu0 0.0
    %7032 = vmatpush1.msra.mxu0 0.0
    %7033 = vmatprep.subr.mxu0 0.0
    %7034 = vmatpush1.msra.mxu0 0.0
    %7035 = vmatprep.subr.mxu0 0.0
    %7036 = vmatpush1.msra.mxu0 0.0
    %7037 = vmatprep.subr.mxu0 0.0
    %7038 = vmatpush1.msra.mxu0 0.0
    %7039 = vmatprep.mubr.f32.mxu0 0.0
    %7040 = vmatmul.mubr.f32.gmra.mrb[0].mxu0 %v6973
    %v7041 = vpop.f32.mrb[0].mxu0
    %v7042 = vadd.f32 0.0, %v7041
    %v7043 = vpop.f32.mrb[0].mxu0
    %7044 = vdwg.mxu0
    %7045 = vrot.lane.b32.xlu0 %v6572, 96
    %v7046 = vpop.permute.xlu0 %7045
    %7047 = vrot.lane.b32.xlu0 %v6642, 96
    %v7048 = vpop.permute.xlu0 %7047
    %v7049 = vsel %vm263, %v7046, 0
    %v7051 = vsel %vm263, %v7048, 0
    %7053 = vmatprep.subr.mxu0 0.0
    %7054 = vmatpush1.xpose.msra.mxu0 %v7051
    %7055 = vmatprep.subr.mxu0 0.0
    %7056 = vmatpush1.xpose.msra.mxu0 0.0
    %7057 = vmatprep.subr.mxu0 0.0
    %7058 = vmatpush1.xpose.msra.mxu0 0.0
    %7059 = vmatprep.subr.mxu0 0.0
    %7060 = vmatpush1.xpose.msra.mxu0 0.0
    %7061 = vmatprep.subr.mxu0 0.0
    %7062 = vmatpush1.xpose.msra.mxu0 0.0
    %7063 = vmatprep.subr.mxu0 0.0
    %7064 = vmatpush1.xpose.msra.mxu0 0.0
    %7065 = vmatprep.subr.mxu0 0.0
    %7066 = vmatpush1.xpose.msra.mxu0 0.0
    %7067 = vmatprep.subr.mxu0 0.0
    %7068 = vmatpush1.xpose.msra.mxu0 0.0
    %7069 = vmatprep.subr.mxu0 0.0
    %7070 = vmatpush1.xpose.msra.mxu0 0.0
    %7071 = vmatprep.subr.mxu0 0.0
    %7072 = vmatpush1.xpose.msra.mxu0 0.0
    %7073 = vmatprep.subr.mxu0 0.0
    %7074 = vmatpush1.xpose.msra.mxu0 0.0
    %7075 = vmatprep.subr.mxu0 0.0
    %7076 = vmatpush1.xpose.msra.mxu0 0.0
    %7077 = vmatprep.subr.mxu0 0.0
    %7078 = vmatpush1.xpose.msra.mxu0 0.0
    %7079 = vmatprep.subr.mxu0 0.0
    %7080 = vmatpush1.xpose.msra.mxu0 0.0
    %7081 = vmatprep.subr.mxu0 0.0
    %7082 = vmatpush1.xpose.msra.mxu0 0.0
    %7083 = vmatprep.subr.mxu0 0.0
    %7084 = vmatpush1.xpose.msra.mxu0 0.0
    %7085 = vmatprep.subr.mxu0 0.0
    %7086 = vmatpush1.xpose.msra.mxu0 0.0
    %7087 = vmatprep.subr.mxu0 0.0
    %7088 = vmatpush1.xpose.msra.mxu0 0.0
    %7089 = vmatprep.subr.mxu0 0.0
    %7090 = vmatpush1.xpose.msra.mxu0 0.0
    %7091 = vmatprep.subr.mxu0 0.0
    %7092 = vmatpush1.xpose.msra.mxu0 0.0
    %7093 = vmatprep.subr.mxu0 0.0
    %7094 = vmatpush1.xpose.msra.mxu0 0.0
    %7095 = vmatprep.subr.mxu0 0.0
    %7096 = vmatpush1.xpose.msra.mxu0 0.0
    %7097 = vmatprep.subr.mxu0 0.0
    %7098 = vmatpush1.xpose.msra.mxu0 0.0
    %7099 = vmatprep.subr.mxu0 0.0
    %7100 = vmatpush1.xpose.msra.mxu0 0.0
    %7101 = vmatprep.subr.mxu0 0.0
    %7102 = vmatpush1.xpose.msra.mxu0 0.0
    %7103 = vmatprep.subr.mxu0 0.0
    %7104 = vmatpush1.xpose.msra.mxu0 0.0
    %7105 = vmatprep.subr.mxu0 0.0
    %7106 = vmatpush1.xpose.msra.mxu0 0.0
    %7107 = vmatprep.subr.mxu0 0.0
    %7108 = vmatpush1.xpose.msra.mxu0 0.0
    %7109 = vmatprep.subr.mxu0 0.0
    %7110 = vmatpush1.xpose.msra.mxu0 0.0
    %7111 = vmatprep.subr.mxu0 0.0
    %7112 = vmatpush1.xpose.msra.mxu0 0.0
    %7113 = vmatprep.subr.mxu0 0.0
    %7114 = vmatpush1.xpose.msra.mxu0 0.0
    %7115 = vmatprep.subr.mxu0 0.0
    %7116 = vmatpush1.xpose.msra.mxu0 0.0
    %7117 = vmatprep.mubr.f32.mxu0 0.0
    %7118 = vmatmul.mubr.f32.gmra.mrb[0].mxu0 %v7049
    %v7119 = vpop.f32.mrb[0].mxu0
    %v7120 = vadd.f32 0.0, %v7119
    %v7121 = vpop.f32.mrb[0].mxu0
    %7122 = vdwg.mxu0
    %v7123 = vmul.f32 %v7120, 0.25
    %v7124 = vsel %vm5253, %v7123, -inf
    %7125 = vmax.xlane.f32.xlu0 %v7124
    %v7126 = vpop.xlane.xlu0 %7125
    %v7127 = vsub.f32 %v7123, %v7126
    %v7128 = vmul.f32 %v7127, 1.442695
    %v7129 = vpow.pop %v7128
    %v7130 = vsel %vm5253, %v7129, 0.0
    %7131 = vadd.xlane.f32.xlu0 %v7130
    %v7132 = vpop.xlane.xlu0 %7131
    %v7133 = vrcp.pop %v7132
    %v7134 = vmul.f32 %v7129, %v7133
    %7135 = vrot.lane.b32.xlu0 %v6712, 96
    %v7136 = vpop.permute.xlu0 %7135
    %v7139 = vsel %vm5253, %v7134, 0
    %7141 = vmatprep.subr.mxu0 0.0
    %7142 = vmatpush1.msra.mxu0 %v7136
    %7143 = vmatprep.subr.mxu0 0.0
    %7144 = vmatpush1.msra.mxu0 0.0
    %7145 = vmatprep.subr.mxu0 0.0
    %7146 = vmatpush1.msra.mxu0 0.0
    %7147 = vmatprep.subr.mxu0 0.0
    %7148 = vmatpush1.msra.mxu0 0.0
    %7149 = vmatprep.subr.mxu0 0.0
    %7150 = vmatpush1.msra.mxu0 0.0
    %7151 = vmatprep.subr.mxu0 0.0
    %7152 = vmatpush1.msra.mxu0 0.0
    %7153 = vmatprep.subr.mxu0 0.0
    %7154 = vmatpush1.msra.mxu0 0.0
    %7155 = vmatprep.subr.mxu0 0.0
    %7156 = vmatpush1.msra.mxu0 0.0
    %7157 = vmatprep.subr.mxu0 0.0
    %7158 = vmatpush1.msra.mxu0 0.0
    %7159 = vmatprep.subr.mxu0 0.0
    %7160 = vmatpush1.msra.mxu0 0.0
    %7161 = vmatprep.subr.mxu0 0.0
    %7162 = vmatpush1.msra.mxu0 0.0
    %7163 = vmatprep.subr.mxu0 0.0
    %7164 = vmatpush1.msra.mxu0 0.0
    %7165 = vmatprep.subr.mxu0 0.0
    %7166 = vmatpush1.msra.mxu0 0.0
    %7167 = vmatprep.subr.mxu0 0.0
    %7168 = vmatpush1.msra.mxu0 0.0
    %7169 = vmatprep.subr.mxu0 0.0
    %7170 = vmatpush1.msra.mxu0 0.0
    %7171 = vmatprep.subr.mxu0 0.0
    %7172 = vmatpush1.msra.mxu0 0.0
    %7173 = vmatprep.subr.mxu0 0.0
    %7174 = vmatpush1.msra.mxu0 0.0
    %7175 = vmatprep.subr.mxu0 0.0
    %7176 = vmatpush1.msra.mxu0 0.0
    %7177 = vmatprep.subr.mxu0 0.0
    %7178 = vmatpush1.msra.mxu0 0.0
    %7179 = vmatprep.subr.mxu0 0.0
    %7180 = vmatpush1.msra.mxu0 0.0
    %7181 = vmatprep.subr.mxu0 0.0
    %7182 = vmatpush1.msra.mxu0 0.0
    %7183 = vmatprep.subr.mxu0 0.0
    %7184 = vmatpush1.msra.mxu0 0.0
    %7185 = vmatprep.subr.mxu0 0.0
    %7186 = vmatpush1.msra.mxu0 0.0
    %7187 = vmatprep.subr.mxu0 0.0
    %7188 = vmatpush1.msra.mxu0 0.0
    %7189 = vmatprep.subr.mxu0 0.0
    %7190 = vmatpush1.msra.mxu0 0.0
    %7191 = vmatprep.subr.mxu0 0.0
    %7192 = vmatpush1.msra.mxu0 0.0
    %7193 = vmatprep.subr.mxu0 0.0
    %7194 = vmatpush1.msra.mxu0 0.0
    %7195 = vmatprep.subr.mxu0 0.0
    %7196 = vmatpush1.msra.mxu0 0.0
    %7197 = vmatprep.subr.mxu0 0.0
    %7198 = vmatpush1.msra.mxu0 0.0
    %7199 = vmatprep.subr.mxu0 0.0
    %7200 = vmatpush1.msra.mxu0 0.0
    %7201 = vmatprep.subr.mxu0 0.0
    %7202 = vmatpush1.msra.mxu0 0.0
    %7203 = vmatprep.subr.mxu0 0.0
    %7204 = vmatpush1.msra.mxu0 0.0
    %7205 = vmatprep.mubr.f32.mxu0 0.0
    %7206 = vmatmul.mubr.f32.gmra.mrb[0].mxu0 %v7139
    %v7207 = vpop.f32.mrb[0].mxu0
    %v7208 = vadd.f32 0.0, %v7207
    %v7209 = vpop.f32.mrb[0].mxu0
    %7210 = vdwg.mxu0
    %7211 = vrot.lane.b32.xlu0 %v6572, 80
    %v7212 = vpop.permute.xlu0 %7211
    %7213 = vrot.lane.b32.xlu0 %v6642, 80
    %v7214 = vpop.permute.xlu0 %7213
    %v7215 = vsel %vm263, %v7212, 0
    %v7217 = vsel %vm263, %v7214, 0
    %7219 = vmatprep.subr.mxu0 0.0
    %7220 = vmatpush1.xpose.msra.mxu0 %v7217
    %7221 = vmatprep.subr.mxu0 0.0
    %7222 = vmatpush1.xpose.msra.mxu0 0.0
    %7223 = vmatprep.subr.mxu0 0.0
    %7224 = vmatpush1.xpose.msra.mxu0 0.0
    %7225 = vmatprep.subr.mxu0 0.0
    %7226 = vmatpush1.xpose.msra.mxu0 0.0
    %7227 = vmatprep.subr.mxu0 0.0
    %7228 = vmatpush1.xpose.msra.mxu0 0.0
    %7229 = vmatprep.subr.mxu0 0.0
    %7230 = vmatpush1.xpose.msra.mxu0 0.0
    %7231 = vmatprep.subr.mxu0 0.0
    %7232 = vmatpush1.xpose.msra.mxu0 0.0
    %7233 = vmatprep.subr.mxu0 0.0
    %7234 = vmatpush1.xpose.msra.mxu0 0.0
    %7235 = vmatprep.subr.mxu0 0.0
    %7236 = vmatpush1.xpose.msra.mxu0 0.0
    %7237 = vmatprep.subr.mxu0 0.0
    %7238 = vmatpush1.xpose.msra.mxu0 0.0
    %7239 = vmatprep.subr.mxu0 0.0
    %7240 = vmatpush1.xpose.msra.mxu0 0.0
    %7241 = vmatprep.subr.mxu0 0.0
    %7242 = vmatpush1.xpose.msra.mxu0 0.0
    %7243 = vmatprep.subr.mxu0 0.0
    %7244 = vmatpush1.xpose.msra.mxu0 0.0
    %7245 = vmatprep.subr.mxu0 0.0
    %7246 = vmatpush1.xpose.msra.mxu0 0.0
    %7247 = vmatprep.subr.mxu0 0.0
    %7248 = vmatpush1.xpose.msra.mxu0 0.0
    %7249 = vmatprep.subr.mxu0 0.0
    %7250 = vmatpush1.xpose.msra.mxu0 0.0
    %7251 = vmatprep.subr.mxu0 0.0
    %7252 = vmatpush1.xpose.msra.mxu0 0.0
    %7253 = vmatprep.subr.mxu0 0.0
    %7254 = vmatpush1.xpose.msra.mxu0 0.0
    %7255 = vmatprep.subr.mxu0 0.0
    %7256 = vmatpush1.xpose.msra.mxu0 0.0
    %7257 = vmatprep.subr.mxu0 0.0
    %7258 = vmatpush1.xpose.msra.mxu0 0.0
    %7259 = vmatprep.subr.mxu0 0.0
    %7260 = vmatpush1.xpose.msra.mxu0 0.0
    %7261 = vmatprep.subr.mxu0 0.0
    %7262 = vmatpush1.xpose.msra.mxu0 0.0
    %7263 = vmatprep.subr.mxu0 0.0
    %7264 = vmatpush1.xpose.msra.mxu0 0.0
    %7265 = vmatprep.subr.mxu0 0.0
    %7266 = vmatpush1.xpose.msra.mxu0 0.0
    %7267 = vmatprep.subr.mxu0 0.0
    %7268 = vmatpush1.xpose.msra.mxu0 0.0
    %7269 = vmatprep.subr.mxu0 0.0
    %7270 = vmatpush1.xpose.msra.mxu0 0.0
    %7271 = vmatprep.subr.mxu0 0.0
    %7272 = vmatpush1.xpose.msra.mxu0 0.0
    %7273 = vmatprep.subr.mxu0 0.0
    %7274 = vmatpush1.xpose.msra.mxu0 0.0
    %7275 = vmatprep.subr.mxu0 0.0
    %7276 = vmatpush1.xpose.msra.mxu0 0.0
    %7277 = vmatprep.subr.mxu0 0.0
    %7278 = vmatpush1.xpose.msra.mxu0 0.0
    %7279 = vmatprep.subr.mxu0 0.0
    %7280 = vmatpush1.xpose.msra.mxu0 0.0
    %7281 = vmatprep.subr.mxu0 0.0
    %7282 = vmatpush1.xpose.msra.mxu0 0.0
    %7283 = vmatprep.mubr.f32.mxu0 0.0
    %7284 = vmatmul.mubr.f32.gmra.mrb[0].mxu0 %v7215
    %v7285 = vpop.f32.mrb[0].mxu0
    %v7286 = vadd.f32 0.0, %v7285
    %v7287 = vpop.f32.mrb[0].mxu0
    %7288 = vdwg.mxu0
    %v7289 = vmul.f32 %v7286, 0.25
    %v7290 = vsel %vm5253, %v7289, -inf
    %7291 = vmax.xlane.f32.xlu0 %v7290
    %v7292 = vpop.xlane.xlu0 %7291
    %v7293 = vsub.f32 %v7289, %v7292
    %v7294 = vmul.f32 %v7293, 1.442695
    %v7295 = vpow.pop %v7294
    %v7296 = vsel %vm5253, %v7295, 0.0
    %7297 = vadd.xlane.f32.xlu0 %v7296
    %v7298 = vpop.xlane.xlu0 %7297
    %v7299 = vrcp.pop %v7298
    %v7300 = vmul.f32 %v7295, %v7299
    %7301 = vrot.lane.b32.xlu0 %v6712, 80
    %v7302 = vpop.permute.xlu0 %7301
    %v7305 = vsel %vm5253, %v7300, 0
    %7307 = vmatprep.subr.mxu0 0.0
    %7308 = vmatpush1.msra.mxu0 %v7302
    %7309 = vmatprep.subr.mxu0 0.0
    %7310 = vmatpush1.msra.mxu0 0.0
    %7311 = vmatprep.subr.mxu0 0.0
    %7312 = vmatpush1.msra.mxu0 0.0
    %7313 = vmatprep.subr.mxu0 0.0
    %7314 = vmatpush1.msra.mxu0 0.0
    %7315 = vmatprep.subr.mxu0 0.0
    %7316 = vmatpush1.msra.mxu0 0.0
    %7317 = vmatprep.subr.mxu0 0.0
    %7318 = vmatpush1.msra.mxu0 0.0
    %7319 = vmatprep.subr.mxu0 0.0
    %7320 = vmatpush1.msra.mxu0 0.0
    %7321 = vmatprep.subr.mxu0 0.0
    %7322 = vmatpush1.msra.mxu0 0.0
    %7323 = vmatprep.subr.mxu0 0.0
    %7324 = vmatpush1.msra.mxu0 0.0
    %7325 = vmatprep.subr.mxu0 0.0
    %7326 = vmatpush1.msra.mxu0 0.0
    %7327 = vmatprep.subr.mxu0 0.0
    %7328 = vmatpush1.msra.mxu0 0.0
    %7329 = vmatprep.subr.mxu0 0.0
    %7330 = vmatpush1.msra.mxu0 0.0
    %7331 = vmatprep.subr.mxu0 0.0
    %7332 = vmatpush1.msra.mxu0 0.0
    %7333 = vmatprep.subr.mxu0 0.0
    %7334 = vmatpush1.msra.mxu0 0.0
    %7335 = vmatprep.subr.mxu0 0.0
    %7336 = vmatpush1.msra.mxu0 0.0
    %7337 = vmatprep.subr.mxu0 0.0
    %7338 = vmatpush1.msra.mxu0 0.0
    %7339 = vmatprep.subr.mxu0 0.0
    %7340 = vmatpush1.msra.mxu0 0.0
    %7341 = vmatprep.subr.mxu0 0.0
    %7342 = vmatpush1.msra.mxu0 0.0
    %7343 = vmatprep.subr.mxu0 0.0
    %7344 = vmatpush1.msra.mxu0 0.0
    %7345 = vmatprep.subr.mxu0 0.0
    %7346 = vmatpush1.msra.mxu0 0.0
    %7347 = vmatprep.subr.mxu0 0.0
    %7348 = vmatpush1.msra.mxu0 0.0
    %7349 = vmatprep.subr.mxu0 0.0
    %7350 = vmatpush1.msra.mxu0 0.0
    %7351 = vmatprep.subr.mxu0 0.0
    %7352 = vmatpush1.msra.mxu0 0.0
    %7353 = vmatprep.subr.mxu0 0.0
    %7354 = vmatpush1.msra.mxu0 0.0
    %7355 = vmatprep.subr.mxu0 0.0
    %7356 = vmatpush1.msra.mxu0 0.0
    %7357 = vmatprep.subr.mxu0 0.0
    %7358 = vmatpush1.msra.mxu0 0.0
    %7359 = vmatprep.subr.mxu0 0.0
    %7360 = vmatpush1.msra.mxu0 0.0
    %7361 = vmatprep.subr.mxu0 0.0
    %7362 = vmatpush1.msra.mxu0 0.0
    %7363 = vmatprep.subr.mxu0 0.0
    %7364 = vmatpush1.msra.mxu0 0.0
    %7365 = vmatprep.subr.mxu0 0.0
    %7366 = vmatpush1.msra.mxu0 0.0
    %7367 = vmatprep.subr.mxu0 0.0
    %7368 = vmatpush1.msra.mxu0 0.0
    %7369 = vmatprep.subr.mxu0 0.0
    %7370 = vmatpush1.msra.mxu0 0.0
    %7371 = vmatprep.mubr.f32.mxu0 0.0
    %7372 = vmatmul.mubr.f32.gmra.mrb[0].mxu0 %v7305
    %v7373 = vpop.f32.mrb[0].mxu0
    %v7374 = vadd.f32 0.0, %v7373
    %v7375 = vpop.f32.mrb[0].mxu0
    %7376 = vdwg.mxu0
    %7378 = vrot.lane.b32.xlu0 %v7042, 16
    %v7379 = vpop.permute.xlu0 %7378
    %7382 = vrot.lane.b32.xlu0 %v7208, 32
    %v7383 = vpop.permute.xlu0 %7382
    %7386 = vrot.lane.b32.xlu0 %v7374, 48
    %v7387 = vpop.permute.xlu0 %7386
    %v7389 = vsel %vm263, %v6875, %v7379
    %v7390 = vsel %vm438, %v7389, %v7383
    %v7391 = vsel %vm2467, %v7390, %v7387
    %v7392 = vtanh.pop %v7391
    %7394 = vrot.lane.b32.xlu0 %v7392, 64
    %v7395 = vpop.permute.xlu0 %7394
    %v7397 = vsel %vm851, %v6475, %v7395
    %v7398 = vld [vmem:[%s113] sm:$0xf]
    %v7399 = vld [vmem:[%s113 + $0x4] sm:$0xf]
    %v7400 = vld [vmem:[%s113 + $0x8] sm:$0xf]
    %v7401 = vld [vmem:[%s113 + $0xc] sm:$0xf]
    %v7402 = vld [vmem:[%s113 + $0x10] sm:$0xf]
    %v7403 = vld [vmem:[%s113 + $0x14] sm:$0xf]
    %v7404 = vld [vmem:[%s113 + $0x18] sm:$0xf]
    %v7405 = vld [vmem:[%s113 + $0x1c] sm:$0xf]
    %v7406 = vld [vmem:[%s113 + $0x20] sm:$0xf]
    %v7407 = vld [vmem:[%s113 + $0x24] sm:$0xf]
    %v7408 = vld [vmem:[%s113 + $0x28] sm:$0xf]
    %v7409 = vld [vmem:[%s113 + $0x2c] sm:$0xf]
    %v7410 = vld [vmem:[%s113 + $0x30] sm:$0xf]
    %v7411 = vld [vmem:[%s113 + $0x34] sm:$0xf]
    %v7412 = vld [vmem:[%s113 + $0x38] sm:$0xf]
    %v7413 = vld [vmem:[%s113 + $0x3c] sm:$0xf]
    %v7414 = vld [vmem:[%s115] sm:$0x1]
    %v7415 = vld [vmem:[%s117] sm:$0x1]
    %v7416 = vld [vmem:[%s25] sm:$0x1]
    %v7417 = vpack.c.bf16 %v7397, %v7397
    %v7419 = vlaneseq
    %v7420 = vshrl.u32 %v7419, 7
    %v7421 = vsub.s32 0, %v7420
    %v7422 = vrot.slane %v7414, %v7421
    %v7440 = vunpack.c.l.b16 %v7398
    %v7441 = vunpack.c.l.b16 %v7399
    %v7442 = vunpack.c.l.b16 %v7400
    %v7443 = vunpack.c.l.b16 %v7401
    %v7444 = vunpack.c.l.b16 %v7402
    %v7445 = vunpack.c.l.b16 %v7403
    %v7446 = vunpack.c.l.b16 %v7404
    %v7447 = vunpack.c.l.b16 %v7405
    %v7448 = vunpack.c.l.b16 %v7406
    %v7449 = vunpack.c.l.b16 %v7407
    %v7450 = vunpack.c.l.b16 %v7408
    %v7451 = vunpack.c.l.b16 %v7409
    %v7452 = vunpack.c.l.b16 %v7410
    %v7453 = vunpack.c.l.b16 %v7411
    %v7454 = vunpack.c.l.b16 %v7412
    %v7455 = vunpack.c.l.b16 %v7413
    %v7456 = vpack.c.b16 %v7441, %v7440
    %v7457 = vpack.c.b16 %v7443, %v7442
    %v7458 = vpack.c.b16 %v7445, %v7444
    %v7459 = vpack.c.b16 %v7447, %v7446
    %v7460 = vpack.c.b16 %v7449, %v7448
    %v7461 = vpack.c.b16 %v7451, %v7450
    %v7462 = vpack.c.b16 %v7453, %v7452
    %v7463 = vpack.c.b16 %v7455, %v7454
    %7472 = vmatprep.subr.bf16.mxu0 0
    %7473 = vmatpush1.bf16.msra.mxu0 %v7456
    %7474 = vmatprep.subr.bf16.mxu0 0
    %7475 = vmatpush1.bf16.msra.mxu0 %v7457
    %7476 = vmatprep.subr.bf16.mxu0 0
    %7477 = vmatpush1.bf16.msra.mxu0 %v7458
    %7478 = vmatprep.subr.bf16.mxu0 0
    %7479 = vmatpush1.bf16.msra.mxu0 %v7459
    %7480 = vmatprep.subr.bf16.mxu0 0
    %7481 = vmatpush1.bf16.msra.mxu0 %v7460
    %7482 = vmatprep.subr.bf16.mxu0 0
    %7483 = vmatpush1.bf16.msra.mxu0 %v7461
    %7484 = vmatprep.subr.bf16.mxu0 0
    %7485 = vmatpush1.bf16.msra.mxu0 %v7462
    %7486 = vmatprep.subr.bf16.mxu0 0
    %7487 = vmatpush1.bf16.msra.mxu0 %v7463
    %7488 = vmatprep.subr.bf16.mxu0 0
    %7489 = vmatpush1.bf16.msra.mxu0 0
    %7490 = vmatprep.subr.bf16.mxu0 0
    %7491 = vmatpush1.bf16.msra.mxu0 0
    %7492 = vmatprep.subr.bf16.mxu0 0
    %7493 = vmatpush1.bf16.msra.mxu0 0
    %7494 = vmatprep.subr.bf16.mxu0 0
    %7495 = vmatpush1.bf16.msra.mxu0 0
    %7496 = vmatprep.subr.bf16.mxu0 0
    %7497 = vmatpush1.bf16.msra.mxu0 0
    %7498 = vmatprep.subr.bf16.mxu0 0
    %7499 = vmatpush1.bf16.msra.mxu0 0
    %7500 = vmatprep.subr.bf16.mxu0 0
    %7501 = vmatpush1.bf16.msra.mxu0 0
    %7502 = vmatprep.subr.bf16.mxu0 0
    %7503 = vmatpush1.bf16.msra.mxu0 0
    %7504 = vmatprep.mubr.bf16.mxu0 0
    %7505 = vmatmul.mubr.bf16.gmra.mrb[0].mxu0 %v7417
    %v7506 = vpop.f32.mrb[0].mxu0
    %v7507 = vadd.f32 %v7422, %v7506
    %v7508 = vpop.f32.mrb[0].mxu0
    %v7509 = vpop.f32.mrb[0].mxu0
    %v7510 = vpop.f32.mrb[0].mxu0
    %7511 = vdwg.mxu0
    %v7512 = vtanh.pop %v7507
    %v7514 = vlaneseq
    %v7515 = vshrl.u32 %v7514, 7
    %v7516 = vsub.s32 0, %v7515
    %v7517 = vrot.slane %v7415, %v7516
    %v7519 = vmul.f32 %v7512, %v7517
    %v7520 = vsel %vm438, %v7519, 0.0
    %7521 = vadd.xlane.f32.xlu0 %v7520
    %v7522 = vpop.xlane.xlu0 %7521
    %v7523 = vrot.slane %v7522, 4
    %v7524 = vmax.f32 %v7522, %v7523
    %v7525 = vrot.slane %v7524, 2
    %v7526 = vmax.f32 %v7524, %v7525
    %v7527 = vrot.slane %v7526, 1
    %v7528 = vmax.f32 %v7526, %v7527
    %v7529 = vsub.f32 %v7522, %v7528
    %v7530 = vmul.f32 %v7529, 1.442695
    %v7531 = vpow.pop %v7530
    %v7532 = vmul.f32 %v7531, %v7397
    %v7534 = vsel %vm5253, %v7416, 0
    %7536 = vmatprep.subr.mxu0 0.0
    %7537 = vmatpush1.msra.mxu0 %v7532
    %7538 = vmatprep.subr.mxu0 0.0
    %7539 = vmatpush1.msra.mxu0 0.0
    %7540 = vmatprep.subr.mxu0 0.0
    %7541 = vmatpush1.msra.mxu0 0.0
    %7542 = vmatprep.subr.mxu0 0.0
    %7543 = vmatpush1.msra.mxu0 0.0
    %7544 = vmatprep.subr.mxu0 0.0
    %7545 = vmatpush1.msra.mxu0 0.0
    %7546 = vmatprep.subr.mxu0 0.0
    %7547 = vmatpush1.msra.mxu0 0.0
    %7548 = vmatprep.subr.mxu0 0.0
    %7549 = vmatpush1.msra.mxu0 0.0
    %7550 = vmatprep.subr.mxu0 0.0
    %7551 = vmatpush1.msra.mxu0 0.0
    %7552 = vmatprep.subr.mxu0 0.0
    %7553 = vmatpush1.msra.mxu0 0.0
    %7554 = vmatprep.subr.mxu0 0.0
    %7555 = vmatpush1.msra.mxu0 0.0
    %7556 = vmatprep.subr.mxu0 0.0
    %7557 = vmatpush1.msra.mxu0 0.0
    %7558 = vmatprep.subr.mxu0 0.0
    %7559 = vmatpush1.msra.mxu0 0.0
    %7560 = vmatprep.subr.mxu0 0.0
    %7561 = vmatpush1.msra.mxu0 0.0
    %7562 = vmatprep.subr.mxu0 0.0
    %7563 = vmatpush1.msra.mxu0 0.0
    %7564 = vmatprep.subr.mxu0 0.0
    %7565 = vmatpush1.msra.mxu0 0.0
    %7566 = vmatprep.subr.mxu0 0.0
    %7567 = vmatpush1.msra.mxu0 0.0
    %7568 = vmatprep.subr.mxu0 0.0
    %7569 = vmatpush1.msra.mxu0 0.0
    %7570 = vmatprep.subr.mxu0 0.0
    %7571 = vmatpush1.msra.mxu0 0.0
    %7572 = vmatprep.subr.mxu0 0.0
    %7573 = vmatpush1.msra.mxu0 0.0
    %7574 = vmatprep.subr.mxu0 0.0
    %7575 = vmatpush1.msra.mxu0 0.0
    %7576 = vmatprep.subr.mxu0 0.0
    %7577 = vmatpush1.msra.mxu0 0.0
    %7578 = vmatprep.subr.mxu0 0.0
    %7579 = vmatpush1.msra.mxu0 0.0
    %7580 = vmatprep.subr.mxu0 0.0
    %7581 = vmatpush1.msra.mxu0 0.0
    %7582 = vmatprep.subr.mxu0 0.0
    %7583 = vmatpush1.msra.mxu0 0.0
    %7584 = vmatprep.subr.mxu0 0.0
    %7585 = vmatpush1.msra.mxu0 0.0
    %7586 = vmatprep.subr.mxu0 0.0
    %7587 = vmatpush1.msra.mxu0 0.0
    %7588 = vmatprep.subr.mxu0 0.0
    %7589 = vmatpush1.msra.mxu0 0.0
    %7590 = vmatprep.subr.mxu0 0.0
    %7591 = vmatpush1.msra.mxu0 0.0
    %7592 = vmatprep.subr.mxu0 0.0
    %7593 = vmatpush1.msra.mxu0 0.0
    %7594 = vmatprep.subr.mxu0 0.0
    %7595 = vmatpush1.msra.mxu0 0.0
    %7596 = vmatprep.subr.mxu0 0.0
    %7597 = vmatpush1.msra.mxu0 0.0
    %7598 = vmatprep.subr.mxu0 0.0
    %7599 = vmatpush1.msra.mxu0 0.0
    %7600 = vmatprep.mubr.f32.mxu0 0.0
    %7601 = vmatmul.mubr.f32.gmra.mrb[0].mxu0 %v7534
    %v7602 = vpop.f32.mrb[0].mxu0
    %v7603 = vadd.f32 0.0, %v7602
    %v7604 = vpop.f32.mrb[0].mxu0
    %7605 = vdwg.mxu0
    %7606 = vmatprep.subr.mxu0 0.0
    %7607 = vmatpush1.msra.mxu0 %v7531
    %7608 = vmatprep.subr.mxu0 0.0
    %7609 = vmatpush1.msra.mxu0 0.0
    %7610 = vmatprep.subr.mxu0 0.0
    %7611 = vmatpush1.msra.mxu0 0.0
    %7612 = vmatprep.subr.mxu0 0.0
    %7613 = vmatpush1.msra.mxu0 0.0
    %7614 = vmatprep.subr.mxu0 0.0
    %7615 = vmatpush1.msra.mxu0 0.0
    %7616 = vmatprep.subr.mxu0 0.0
    %7617 = vmatpush1.msra.mxu0 0.0
    %7618 = vmatprep.subr.mxu0 0.0
    %7619 = vmatpush1.msra.mxu0 0.0
    %7620 = vmatprep.subr.mxu0 0.0
    %7621 = vmatpush1.msra.mxu0 0.0
    %7622 = vmatprep.subr.mxu0 0.0
    %7623 = vmatpush1.msra.mxu0 0.0
    %7624 = vmatprep.subr.mxu0 0.0
    %7625 = vmatpush1.msra.mxu0 0.0
    %7626 = vmatprep.subr.mxu0 0.0
    %7627 = vmatpush1.msra.mxu0 0.0
    %7628 = vmatprep.subr.mxu0 0.0
    %7629 = vmatpush1.msra.mxu0 0.0
    %7630 = vmatprep.subr.mxu0 0.0
    %7631 = vmatpush1.msra.mxu0 0.0
    %7632 = vmatprep.subr.mxu0 0.0
    %7633 = vmatpush1.msra.mxu0 0.0
    %7634 = vmatprep.subr.mxu0 0.0
    %7635 = vmatpush1.msra.mxu0 0.0
    %7636 = vmatprep.subr.mxu0 0.0
    %7637 = vmatpush1.msra.mxu0 0.0
    %7638 = vmatprep.subr.mxu0 0.0
    %7639 = vmatpush1.msra.mxu0 0.0
    %7640 = vmatprep.subr.mxu0 0.0
    %7641 = vmatpush1.msra.mxu0 0.0
    %7642 = vmatprep.subr.mxu0 0.0
    %7643 = vmatpush1.msra.mxu0 0.0
    %7644 = vmatprep.subr.mxu0 0.0
    %7645 = vmatpush1.msra.mxu0 0.0
    %7646 = vmatprep.subr.mxu0 0.0
    %7647 = vmatpush1.msra.mxu0 0.0
    %7648 = vmatprep.subr.mxu0 0.0
    %7649 = vmatpush1.msra.mxu0 0.0
    %7650 = vmatprep.subr.mxu0 0.0
    %7651 = vmatpush1.msra.mxu0 0.0
    %7652 = vmatprep.subr.mxu0 0.0
    %7653 = vmatpush1.msra.mxu0 0.0
    %7654 = vmatprep.subr.mxu0 0.0
    %7655 = vmatpush1.msra.mxu0 0.0
    %7656 = vmatprep.subr.mxu0 0.0
    %7657 = vmatpush1.msra.mxu0 0.0
    %7658 = vmatprep.subr.mxu0 0.0
    %7659 = vmatpush1.msra.mxu0 0.0
    %7660 = vmatprep.subr.mxu0 0.0
    %7661 = vmatpush1.msra.mxu0 0.0
    %7662 = vmatprep.subr.mxu0 0.0
    %7663 = vmatpush1.msra.mxu0 0.0
    %7664 = vmatprep.subr.mxu0 0.0
    %7665 = vmatpush1.msra.mxu0 0.0
    %7666 = vmatprep.subr.mxu0 0.0
    %7667 = vmatpush1.msra.mxu0 0.0
    %7668 = vmatprep.subr.mxu0 0.0
    %7669 = vmatpush1.msra.mxu0 0.0
    %7670 = vmatprep.mubr.f32.mxu0 0.0
    %7671 = vmatmul.mubr.f32.gmra.mrb[0].mxu0 %v7534
    %v7672 = vpop.f32.mrb[0].mxu0
    %v7673 = vadd.f32 0.0, %v7672
    %v7674 = vpop.f32.mrb[0].mxu0
    %7675 = vdwg.mxu0
    %v7676 = vrcp.pop %v7673
    %7678 = vset.pattern.permute.xlu0 0
    %7679 = vperm.xlu0 %7678, %v7676
    %v7680 = vpop.permute.xlu0 %7679
    %v7682 = vmul.f32 %v7603, %v7680
    %v7683 = vtanh.pop %v7682
    %7684 = vst [vmem:[#allocation3] sm:$0x1] %v7683
    // Predicated region
    $region238: #{user_encoder_forward.1} parent=1 // pred_check
      _
    $region239: #{user_encoder_forward.1} parent=1 // pred_check_branch
      %7686 = sbr.rel (0) target = $region241
    $region240: #{user_encoder_forward.1} parent=1 // pred_region
      %s7688 = ssub.s32 16, 16
      %7689 = vsyncadd [#allocation4], %s7688
      %s7691 = sshll.u32 [#allocation3], 4
      %s7692 = int_to_ptr.vmem [resolvable:$true] %s7691
      %7694 = dma.vmem_to_hbm [thread:$0]  %s7692, 16, %s119, [#allocation4]
    $region241: #{user_encoder_forward.1} parent=1 // pred_fallthru
      _
    // Predicated region
    $region242: #{user_encoder_forward.1} parent=1 // pred_check
      _
    $region243: #{user_encoder_forward.1} parent=1 // pred_check_branch
      %7696 = sbr.rel (0) target = $region245
    $region244: #{user_encoder_forward.1} parent=1 // pred_region
      %7697 = dma.done [#allocation4], 16
    $region245: #{user_encoder_forward.1} parent=1 // pred_fallthru
      _
    %7698 = vsyncpa [#allocation4], 1

</llo_original>
